<compile_context>
chip_gen: v6e
topology: v6e:2x2x1
jax: 0.10.0
libtpu: 0.0.40
codegen_flags: <defaults>
</compile_context>

<pallas_src>
import numpy as np

import jax
import jax.numpy as jnp
from jax.experimental import pallas as pl
from jax.experimental.pallas import tpu as pltpu

_SQRT2 = 1.4142135623730951


# ----------------------------- activations --------------------------------- #

def _erf(x):
    # Abramowitz & Stegun 7.1.26 rational approximation, max abs err ~1.5e-7
    # (f32-exact).  Used instead of lax.erf to guarantee Mosaic lowering.
    a1, a2, a3, a4, a5 = (0.254829592, -0.284496736, 1.421413741,
                          -1.453152027, 1.061405429)
    p = 0.3275911
    sgn = jnp.where(x >= 0.0, 1.0, -1.0)
    ax = jnp.abs(x)
    t = 1.0 / (1.0 + p * ax)
    poly = ((((a5 * t + a4) * t + a3) * t + a2) * t + a1) * t
    return sgn * (1.0 - poly * jnp.exp(-ax * ax))


def _gelu_exact(x):
    # PyTorch nn.GELU() default (approximate='none'): 0.5*x*(1+erf(x/sqrt(2)))
    return 0.5 * x * (1.0 + _erf(x / _SQRT2))


# ----------------------------- fused kernel -------------------------------- #

def _fused_forward_kernel(
    x_ref,
    t1a_ref, b1a_ref, t2a_ref, b2a_ref, t3a_ref, b3a_ref,
    t1b_ref, b1b_ref, t2b_ref, b2b_ref,
    wl1_ref, bl1_ref,
    wl20_ref, bl20_ref, wl21_ref, bl21_ref,
    wsm_ref, bsm_ref,
    o_ref,
):
    def mm(a, w_ref, b_ref):
        return jnp.dot(a, w_ref[...],
                       preferred_element_type=jnp.float32) + b_ref[...]

    x = x_ref[...]                               # (N, 784) — loaded into vregs once

    # ---- cnn_stack1 -> linear_stack1 --------------------------------------
    h = _gelu_exact(mm(x, t1a_ref, b1a_ref))     # Conv(1->4,k5,s2,p2)+GELU : (N, 4*14*14)
    h = _gelu_exact(mm(h, t2a_ref, b2a_ref))     # Conv(4->8,k5,s2,p1)+GELU : (N, 8*6*6)
    h = _gelu_exact(mm(h, t3a_ref, b3a_ref))     # Conv(8->16,k5,s2,p1)+GELU: (N, 16*2*2)
    x1 = mm(h, wl1_ref, bl1_ref)                 # Flatten + Linear(64->32) : (N, 32)

    # ---- cnn_stack2 -> linear_stack2 --------------------------------------
    g = _gelu_exact(mm(x, t1b_ref, b1b_ref))     # Conv(1->4,k5,s2,p2)+GELU : (N, 4*14*14)
    g = _gelu_exact(mm(g, t2b_ref, b2b_ref))     # Conv(4->8,k5,s2,p2)+GELU : (N, 8*7*7)
    g = jnp.tanh(mm(g, wl20_ref, bl20_ref))      # Flatten + Linear(392->128) + Tanh
    x2 = mm(g, wl21_ref, bl21_ref)               # Linear(128->32)          : (N, 32)

    # ---- softmax head: (x1 + x2) -> Linear(32->10) -> Softmax(dim=1) -------
    z = mm(x1 + x2, wsm_ref, bsm_ref)            # (N, 10)
    z = z - jnp.max(z, axis=-1, keepdims=True)
    e = jnp.exp(z)
    o_ref[...] = (e / jnp.sum(e, axis=-1, keepdims=True)).astype(o_ref.dtype)


_KP_ORDER = ("t1a", "b1a", "t2a", "b2a", "t3a", "b3a",
             "t1b", "b1b", "t2b", "b2b",
             "wl1", "bl1", "wl20", "bl20", "wl21", "bl21",
             "wsm", "bsm")


@jax.jit
def neural_network_forward(x, kparams):
    """x: (N, 1, 28, 28) float32, kparams: output of prepare_params."""
    n = x.shape[0]
    x2d = x.reshape(n, 28 * 28).astype(jnp.float32)   # NCHW flatten (Cin=1)
    operands = (x2d,) + tuple(kparams[k] for k in _KP_ORDER)
    return pl.pallas_call(
        _fused_forward_kernel,
        out_shape=jax.ShapeDtypeStruct((n, 10), jnp.float32),
        in_specs=[pl.BlockSpec(a.shape, lambda: (0, 0)) for a in operands],
        out_specs=pl.BlockSpec((n, 10), lambda: (0, 0)),
        compiler_params=pltpu.CompilerParams(vmem_limit_bytes=32 * 1024 * 1024),
    )(*operands)


# ----------------------- weight preparation (host, once) ------------------- #

def _conv_as_dense(wt, b, H, W, stride, pad):
    """Fold Conv2d(stride, zero padding) into a dense matrix acting on the
    NCHW-flattened per-sample activation vector.

    wt: (Cout, Cin, K, K), b: (Cout,)   (numpy float32)
    returns T: (Cin*H*W, Cout*OH*OW), b_exp: (1, Cout*OH*OW)
    so that  out_flat = act_flat @ T + b_exp   reproduces the conv exactly.
    """
    Cout, Cin, K, _ = wt.shape
    OH = (H + 2 * pad - K) // stride + 1
    OW = (W + 2 * pad - K) // stride + 1
    T = np.zeros((Cin, H, W, Cout, OH, OW), np.float32)
    for oh in range(OH):
        for ow in range(OW):
            for kh in range(K):
                ih = stride * oh + kh - pad
                if not (0 <= ih < H):
                    continue
                for kw in range(K):
                    iw = stride * ow + kw - pad
                    if not (0 <= iw < W):
                        continue
                    # T[ci, ih, iw, co, oh, ow] = wt[co, ci, kh, kw]
                    T[:, ih, iw, :, oh, ow] = wt[:, :, kh, kw].T
    T = T.reshape(Cin * H * W, Cout * OH * OW)
    b_exp = np.repeat(b.astype(np.float32), OH * OW)[None, :]   # (1, Cout*OH*OW)
    return T, b_exp


def prepare_params(params):
    """One-time host-side folding of the PyTorch-layout parameters into the
    fused-kernel form (dense conv matrices, channel-expanded biases, (1, F)
    bias rows) so the forward path does no per-call reshapes at all."""
    f = lambda a: np.asarray(a, dtype=np.float32)

    t1a, b1a = _conv_as_dense(f(params["c1_0_w"]), f(params["c1_0_b"]), 28, 28, 2, 2)
    t2a, b2a = _conv_as_dense(f(params["c1_1_w"]), f(params["c1_1_b"]), 14, 14, 2, 1)
    t3a, b3a = _conv_as_dense(f(params["c1_2_w"]), f(params["c1_2_b"]), 6, 6, 2, 1)
    t1b, b1b = _conv_as_dense(f(params["c2_0_w"]), f(params["c2_0_b"]), 28, 28, 2, 2)
    t2b, b2b = _conv_as_dense(f(params["c2_1_w"]), f(params["c2_1_b"]), 14, 14, 2, 2)

    kp = {
        "t1a": t1a, "b1a": b1a, "t2a": t2a, "b2a": b2a, "t3a": t3a, "b3a": b3a,
        "t1b": t1b, "b1b": b1b, "t2b": t2b, "b2b": b2b,
        "wl1": f(params["l1_w"]),  "bl1": f(params["l1_b"])[None, :],
        "wl20": f(params["l2_0_w"]), "bl20": f(params["l2_0_b"])[None, :],
        "wl21": f(params["l2_1_w"]), "bl21": f(params["l2_1_b"])[None, :],
        "wsm": f(params["sm_w"]),  "bsm": f(params["sm_b"])[None, :],
    }
    return {k: jnp.asarray(v) for k, v in kp.items()}


# --------------------------- parameter init -------------------------------- #

def _xavier_normal(key, shape, fan_in, fan_out):
    std = (2.0 / (fan_in + fan_out)) ** 0.5
    return std * jax.random.normal(key, shape, dtype=jnp.float32)


def init_params(key):
    keys = jax.random.split(key, 9)

    def conv_w(k, cout, cin, ksz):
        return _xavier_normal(k, (cout, cin, ksz, ksz),
                              cin * ksz * ksz, cout * ksz * ksz)

    def lin_w(k, fin, fout):
        # stored as (in, out) == PyTorch Linear weight.T
        return _xavier_normal(k, (fin, fout), fin, fout)

    z = lambda n: jnp.zeros((n,), jnp.float32)
    return {
        # cnn_stack1: Conv(1->4,k5,s2,p2), Conv(4->8,k5,s2,p1), Conv(8->16,k5,s2,p1)
        "c1_0_w": conv_w(keys[0], 4, 1, 5),  "c1_0_b": z(4),
        "c1_1_w": conv_w(keys[1], 8, 4, 5),  "c1_1_b": z(8),
        "c1_2_w": conv_w(keys[2], 16, 8, 5), "c1_2_b": z(16),
        # cnn_stack2: Conv(1->4,k5,s2,p2), Conv(4->8,k5,s2,p2)
        "c2_0_w": conv_w(keys[3], 4, 1, 5),  "c2_0_b": z(4),
        "c2_1_w": conv_w(keys[4], 8, 4, 5),  "c2_1_b": z(8),
        # linear_stack1: Linear(16*2*2 -> 32)
        "l1_w": lin_w(keys[5], 64, 32),      "l1_b": z(32),
        # linear_stack2: Linear(8*7*7 -> 128), Tanh, Linear(128 -> 32)
        "l2_0_w": lin_w(keys[6], 392, 128),  "l2_0_b": z(128),
        "l2_1_w": lin_w(keys[7], 128, 32),   "l2_1_b": z(32),
        # softmax_stack: Linear(32 -> 10), Softmax(dim=1)
        "sm_w": lin_w(keys[8], 32, 10),      "sm_b": z(10),
    }


# ------------------------- plain-JAX reference ------------------------------ #

def reference_forward(x, params):
    """Direct (non-Pallas) implementation of the PyTorch module, for checking."""
    HI = jax.lax.Precision.HIGHEST

    def conv(h, w, b, stride, pad):
        y = jax.lax.conv_general_dilated(
            h, w, window_strides=(stride, stride),
            padding=[(pad, pad), (pad, pad)],
            dimension_numbers=("NCHW", "OIHW", "NCHW"), precision=HI)
        return y + b.reshape(1, -1, 1, 1)

    gelu = lambda v: jax.nn.gelu(v, approximate=False)

    h = gelu(conv(x, params["c1_0_w"], params["c1_0_b"], 2, 2))
    h = gelu(conv(h, params["c1_1_w"], params["c1_1_b"], 2, 1))
    h = gelu(conv(h, params["c1_2_w"], params["c1_2_b"], 2, 1))
    x1 = jnp.dot(h.reshape(h.shape[0], -1), params["l1_w"], precision=HI) + params["l1_b"]

    g = gelu(conv(x, params["c2_0_w"], params["c2_0_b"], 2, 2))
    g = gelu(conv(g, params["c2_1_w"], params["c2_1_b"], 2, 2))
    x2 = jnp.dot(g.reshape(g.shape[0], -1), params["l2_0_w"], precision=HI) + params["l2_0_b"]
    x2 = jnp.tanh(x2)
    x2 = jnp.dot(x2, params["l2_1_w"], precision=HI) + params["l2_1_b"]

    z = jnp.dot(x1 + x2, params["sm_w"], precision=HI) + params["sm_b"]
    return jax.nn.softmax(z, axis=1)


# ---------------------------------- main ------------------------------------ #

if __name__ == "__main__":
    key = jax.random.PRNGKey(0)
    pkey, xkey = jax.random.split(key)

    params = init_params(pkey)
    kparams = prepare_params(params)        # one-time weight folding (host)

    # The module's linear stacks imply a 28x28 single-channel (MNIST-like) input.
    x = jax.random.normal(xkey, (2, 1, 28, 28), dtype=jnp.float32)

    y = neural_network_forward(x, kparams)  # single fused pallas_call
    jax.block_until_ready(y)

    assert y.shape == (2, 10), y.shape
    assert bool(jnp.all(jnp.isfinite(y)))
    # each row of the softmax output must sum to 1
    assert bool(jnp.allclose(jnp.sum(y, axis=1), 1.0, atol=1e-5))

    # check against a plain-JAX (lax.conv) reference of the PyTorch module
    y_ref = reference_forward(x, params)
    max_err = float(jnp.max(jnp.abs(y - y_ref)))
    assert max_err < 5e-3, f"mismatch vs reference: max abs err {max_err}"

    print("KERNEL_OK")
</pallas_src>

<mosaic_0001>
module attributes {stable_mosaic.version = 11 : i64} {
  func.func @_fused_forward_kernel(%arg0: memref<2x784xf32, #tpu.memory_space<vmem>>, %arg1: memref<784x784xf32, #tpu.memory_space<vmem>>, %arg2: memref<1x784xf32, #tpu.memory_space<vmem>>, %arg3: memref<784x288xf32, #tpu.memory_space<vmem>>, %arg4: memref<1x288xf32, #tpu.memory_space<vmem>>, %arg5: memref<288x64xf32, #tpu.memory_space<vmem>>, %arg6: memref<1x64xf32, #tpu.memory_space<vmem>>, %arg7: memref<784x784xf32, #tpu.memory_space<vmem>>, %arg8: memref<1x784xf32, #tpu.memory_space<vmem>>, %arg9: memref<784x392xf32, #tpu.memory_space<vmem>>, %arg10: memref<1x392xf32, #tpu.memory_space<vmem>>, %arg11: memref<64x32xf32, #tpu.memory_space<vmem>>, %arg12: memref<1x32xf32, #tpu.memory_space<vmem>>, %arg13: memref<392x128xf32, #tpu.memory_space<vmem>>, %arg14: memref<1x128xf32, #tpu.memory_space<vmem>>, %arg15: memref<128x32xf32, #tpu.memory_space<vmem>>, %arg16: memref<1x32xf32, #tpu.memory_space<vmem>>, %arg17: memref<32x10xf32, #tpu.memory_space<vmem>>, %arg18: memref<1x10xf32, #tpu.memory_space<vmem>>, %arg19: memref<2x10xf32, #tpu.memory_space<vmem>>) attributes {dimension_semantics = [], scalar_prefetch = 0 : i64, scratch_operands = 0 : i64, tpu.core_type = #tpu.core_type<tc>} {
    %c0 = arith.constant 0 : index
    %c0_0 = arith.constant 0 : index
    %0 = vector.load %arg0[%c0, %c0_0] : memref<2x784xf32, #tpu.memory_space<vmem>>, vector<2x784xf32>
    %c0_1 = arith.constant 0 : index
    %c0_2 = arith.constant 0 : index
    %1 = vector.load %arg1[%c0_1, %c0_2] : memref<784x784xf32, #tpu.memory_space<vmem>>, vector<784x784xf32>
    %cst = arith.constant dense<0.000000e+00> : vector<2x784xf32>
    %2 = tpu.matmul %0, %1, %cst {dimension_numbers = #tpu.dot_dimension_numbers<[1], [0], [0], [1], [0, 0, 1, 1], [], []>} : vector<2x784xf32>, vector<784x784xf32>, vector<2x784xf32> -> vector<2x784xf32>
    %c0_3 = arith.constant 0 : index
    %c0_4 = arith.constant 0 : index
    %3 = vector.load %arg2[%c0_3, %c0_4] : memref<1x784xf32, #tpu.memory_space<vmem>>, vector<1x784xf32>
    %4 = vector.broadcast %3 : vector<1x784xf32> to vector<2x784xf32>
    %5 = arith.addf %2, %4 : vector<2x784xf32>
    %cst_5 = arith.constant 5.000000e-01 : f32
    %6 = vector.broadcast %cst_5 : f32 to vector<2x784xf32>
    %7 = arith.mulf %6, %5 : vector<2x784xf32>
    %cst_6 = arith.constant 1.41421354 : f32
    %8 = vector.broadcast %cst_6 : f32 to vector<2x784xf32>
    %9 = arith.divf %5, %8 : vector<2x784xf32>
    %cst_7 = arith.constant 0.000000e+00 : f32
    %10 = vector.broadcast %cst_7 : f32 to vector<2x784xf32>
    %11 = arith.cmpf oge, %9, %10 : vector<2x784xf32>
    %cst_8 = arith.constant 1.000000e+00 : f32
    %cst_9 = arith.constant -1.000000e+00 : f32
    %12 = vector.broadcast %cst_8 : f32 to vector<2x784xf32>
    %13 = vector.broadcast %cst_9 : f32 to vector<2x784xf32>
    %14 = arith.select %11, %12, %13 : vector<2x784xi1>, vector<2x784xf32>
    %15 = math.absf %9 : vector<2x784xf32>
    %cst_10 = arith.constant 0.327591091 : f32
    %16 = vector.broadcast %cst_10 : f32 to vector<2x784xf32>
    %17 = arith.mulf %16, %15 : vector<2x784xf32>
    %cst_11 = arith.constant 1.000000e+00 : f32
    %18 = vector.broadcast %cst_11 : f32 to vector<2x784xf32>
    %19 = arith.addf %18, %17 : vector<2x784xf32>
    %cst_12 = arith.constant 1.000000e+00 : f32
    %20 = vector.broadcast %cst_12 : f32 to vector<2x784xf32>
    %21 = arith.divf %20, %19 : vector<2x784xf32>
    %cst_13 = arith.constant 1.06140542 : f32
    %22 = vector.broadcast %cst_13 : f32 to vector<2x784xf32>
    %23 = arith.mulf %22, %21 : vector<2x784xf32>
    %cst_14 = arith.constant -1.45315206 : f32
    %24 = vector.broadcast %cst_14 : f32 to vector<2x784xf32>
    %25 = arith.addf %23, %24 : vector<2x784xf32>
    %26 = arith.mulf %25, %21 : vector<2x784xf32>
    %cst_15 = arith.constant 1.42141378 : f32
    %27 = vector.broadcast %cst_15 : f32 to vector<2x784xf32>
    %28 = arith.addf %26, %27 : vector<2x784xf32>
    %29 = arith.mulf %28, %21 : vector<2x784xf32>
    %cst_16 = arith.constant -0.284496725 : f32
    %30 = vector.broadcast %cst_16 : f32 to vector<2x784xf32>
    %31 = arith.addf %29, %30 : vector<2x784xf32>
    %32 = arith.mulf %31, %21 : vector<2x784xf32>
    %cst_17 = arith.constant 0.254829586 : f32
    %33 = vector.broadcast %cst_17 : f32 to vector<2x784xf32>
    %34 = arith.addf %32, %33 : vector<2x784xf32>
    %35 = arith.mulf %34, %21 : vector<2x784xf32>
    %cst_18 = arith.constant 0.000000e+00 : f32
    %36 = vector.broadcast %cst_18 : f32 to vector<2x784xf32>
    %37 = arith.subf %36, %15 : vector<2x784xf32>
    %38 = arith.mulf %37, %15 : vector<2x784xf32>
    %39 = math.exp %38 : vector<2x784xf32>
    %40 = arith.mulf %35, %39 : vector<2x784xf32>
    %cst_19 = arith.constant 1.000000e+00 : f32
    %41 = vector.broadcast %cst_19 : f32 to vector<2x784xf32>
    %42 = arith.subf %41, %40 : vector<2x784xf32>
    %43 = arith.mulf %14, %42 : vector<2x784xf32>
    %cst_20 = arith.constant 1.000000e+00 : f32
    %44 = vector.broadcast %cst_20 : f32 to vector<2x784xf32>
    %45 = arith.addf %44, %43 : vector<2x784xf32>
    %46 = arith.mulf %7, %45 : vector<2x784xf32>
    %c0_21 = arith.constant 0 : index
    %c0_22 = arith.constant 0 : index
    %47 = vector.load %arg3[%c0_21, %c0_22] : memref<784x288xf32, #tpu.memory_space<vmem>>, vector<784x288xf32>
    %cst_23 = arith.constant dense<0.000000e+00> : vector<2x288xf32>
    %48 = tpu.matmul %46, %47, %cst_23 {dimension_numbers = #tpu.dot_dimension_numbers<[1], [0], [0], [1], [0, 0, 1, 1], [], []>} : vector<2x784xf32>, vector<784x288xf32>, vector<2x288xf32> -> vector<2x288xf32>
    %c0_24 = arith.constant 0 : index
    %c0_25 = arith.constant 0 : index
    %49 = vector.load %arg4[%c0_24, %c0_25] : memref<1x288xf32, #tpu.memory_space<vmem>>, vector<1x288xf32>
    %50 = vector.broadcast %49 : vector<1x288xf32> to vector<2x288xf32>
    %51 = arith.addf %48, %50 : vector<2x288xf32>
    %cst_26 = arith.constant 5.000000e-01 : f32
    %52 = vector.broadcast %cst_26 : f32 to vector<2x288xf32>
    %53 = arith.mulf %52, %51 : vector<2x288xf32>
    %cst_27 = arith.constant 1.41421354 : f32
    %54 = vector.broadcast %cst_27 : f32 to vector<2x288xf32>
    %55 = arith.divf %51, %54 : vector<2x288xf32>
    %cst_28 = arith.constant 0.000000e+00 : f32
    %56 = vector.broadcast %cst_28 : f32 to vector<2x288xf32>
    %57 = arith.cmpf oge, %55, %56 : vector<2x288xf32>
    %cst_29 = arith.constant 1.000000e+00 : f32
    %cst_30 = arith.constant -1.000000e+00 : f32
    %58 = vector.broadcast %cst_29 : f32 to vector<2x288xf32>
    %59 = vector.broadcast %cst_30 : f32 to vector<2x288xf32>
    %60 = arith.select %57, %58, %59 : vector<2x288xi1>, vector<2x288xf32>
    %61 = math.absf %55 : vector<2x288xf32>
    %cst_31 = arith.constant 0.327591091 : f32
    %62 = vector.broadcast %cst_31 : f32 to vector<2x288xf32>
    %63 = arith.mulf %62, %61 : vector<2x288xf32>
    %cst_32 = arith.constant 1.000000e+00 : f32
    %64 = vector.broadcast %cst_32 : f32 to vector<2x288xf32>
    %65 = arith.addf %64, %63 : vector<2x288xf32>
    %cst_33 = arith.constant 1.000000e+00 : f32
    %66 = vector.broadcast %cst_33 : f32 to vector<2x288xf32>
    %67 = arith.divf %66, %65 : vector<2x288xf32>
    %cst_34 = arith.constant 1.06140542 : f32
    %68 = vector.broadcast %cst_34 : f32 to vector<2x288xf32>
    %69 = arith.mulf %68, %67 : vector<2x288xf32>
    %cst_35 = arith.constant -1.45315206 : f32
    %70 = vector.broadcast %cst_35 : f32 to vector<2x288xf32>
    %71 = arith.addf %69, %70 : vector<2x288xf32>
    %72 = arith.mulf %71, %67 : vector<2x288xf32>
    %cst_36 = arith.constant 1.42141378 : f32
    %73 = vector.broadcast %cst_36 : f32 to vector<2x288xf32>
    %74 = arith.addf %72, %73 : vector<2x288xf32>
    %75 = arith.mulf %74, %67 : vector<2x288xf32>
    %cst_37 = arith.constant -0.284496725 : f32
    %76 = vector.broadcast %cst_37 : f32 to vector<2x288xf32>
    %77 = arith.addf %75, %76 : vector<2x288xf32>
    %78 = arith.mulf %77, %67 : vector<2x288xf32>
    %cst_38 = arith.constant 0.254829586 : f32
    %79 = vector.broadcast %cst_38 : f32 to vector<2x288xf32>
    %80 = arith.addf %78, %79 : vector<2x288xf32>
    %81 = arith.mulf %80, %67 : vector<2x288xf32>
    %cst_39 = arith.constant 0.000000e+00 : f32
    %82 = vector.broadcast %cst_39 : f32 to vector<2x288xf32>
    %83 = arith.subf %82, %61 : vector<2x288xf32>
    %84 = arith.mulf %83, %61 : vector<2x288xf32>
    %85 = math.exp %84 : vector<2x288xf32>
    %86 = arith.mulf %81, %85 : vector<2x288xf32>
    %cst_40 = arith.constant 1.000000e+00 : f32
    %87 = vector.broadcast %cst_40 : f32 to vector<2x288xf32>
    %88 = arith.subf %87, %86 : vector<2x288xf32>
    %89 = arith.mulf %60, %88 : vector<2x288xf32>
    %cst_41 = arith.constant 1.000000e+00 : f32
    %90 = vector.broadcast %cst_41 : f32 to vector<2x288xf32>
    %91 = arith.addf %90, %89 : vector<2x288xf32>
    %92 = arith.mulf %53, %91 : vector<2x288xf32>
    %c0_42 = arith.constant 0 : index
    %c0_43 = arith.constant 0 : index
    %93 = vector.load %arg5[%c0_42, %c0_43] : memref<288x64xf32, #tpu.memory_space<vmem>>, vector<288x64xf32>
    %cst_44 = arith.constant dense<0.000000e+00> : vector<2x64xf32>
    %94 = tpu.matmul %92, %93, %cst_44 {dimension_numbers = #tpu.dot_dimension_numbers<[1], [0], [0], [1], [0, 0, 1, 1], [], []>} : vector<2x288xf32>, vector<288x64xf32>, vector<2x64xf32> -> vector<2x64xf32>
    %c0_45 = arith.constant 0 : index
    %c0_46 = arith.constant 0 : index
    %95 = vector.load %arg6[%c0_45, %c0_46] : memref<1x64xf32, #tpu.memory_space<vmem>>, vector<1x64xf32>
    %96 = vector.broadcast %95 : vector<1x64xf32> to vector<2x64xf32>
    %97 = arith.addf %94, %96 : vector<2x64xf32>
    %cst_47 = arith.constant 5.000000e-01 : f32
    %98 = vector.broadcast %cst_47 : f32 to vector<2x64xf32>
    %99 = arith.mulf %98, %97 : vector<2x64xf32>
    %cst_48 = arith.constant 1.41421354 : f32
    %100 = vector.broadcast %cst_48 : f32 to vector<2x64xf32>
    %101 = arith.divf %97, %100 : vector<2x64xf32>
    %cst_49 = arith.constant 0.000000e+00 : f32
    %102 = vector.broadcast %cst_49 : f32 to vector<2x64xf32>
    %103 = arith.cmpf oge, %101, %102 : vector<2x64xf32>
    %cst_50 = arith.constant 1.000000e+00 : f32
    %cst_51 = arith.constant -1.000000e+00 : f32
    %104 = vector.broadcast %cst_50 : f32 to vector<2x64xf32>
    %105 = vector.broadcast %cst_51 : f32 to vector<2x64xf32>
    %106 = arith.select %103, %104, %105 : vector<2x64xi1>, vector<2x64xf32>
    %107 = math.absf %101 : vector<2x64xf32>
    %cst_52 = arith.constant 0.327591091 : f32
    %108 = vector.broadcast %cst_52 : f32 to vector<2x64xf32>
    %109 = arith.mulf %108, %107 : vector<2x64xf32>
    %cst_53 = arith.constant 1.000000e+00 : f32
    %110 = vector.broadcast %cst_53 : f32 to vector<2x64xf32>
    %111 = arith.addf %110, %109 : vector<2x64xf32>
    %cst_54 = arith.constant 1.000000e+00 : f32
    %112 = vector.broadcast %cst_54 : f32 to vector<2x64xf32>
    %113 = arith.divf %112, %111 : vector<2x64xf32>
    %cst_55 = arith.constant 1.06140542 : f32
    %114 = vector.broadcast %cst_55 : f32 to vector<2x64xf32>
    %115 = arith.mulf %114, %113 : vector<2x64xf32>
    %cst_56 = arith.constant -1.45315206 : f32
    %116 = vector.broadcast %cst_56 : f32 to vector<2x64xf32>
    %117 = arith.addf %115, %116 : vector<2x64xf32>
    %118 = arith.mulf %117, %113 : vector<2x64xf32>
    %cst_57 = arith.constant 1.42141378 : f32
    %119 = vector.broadcast %cst_57 : f32 to vector<2x64xf32>
    %120 = arith.addf %118, %119 : vector<2x64xf32>
    %121 = arith.mulf %120, %113 : vector<2x64xf32>
    %cst_58 = arith.constant -0.284496725 : f32
    %122 = vector.broadcast %cst_58 : f32 to vector<2x64xf32>
    %123 = arith.addf %121, %122 : vector<2x64xf32>
    %124 = arith.mulf %123, %113 : vector<2x64xf32>
    %cst_59 = arith.constant 0.254829586 : f32
    %125 = vector.broadcast %cst_59 : f32 to vector<2x64xf32>
    %126 = arith.addf %124, %125 : vector<2x64xf32>
    %127 = arith.mulf %126, %113 : vector<2x64xf32>
    %cst_60 = arith.constant 0.000000e+00 : f32
    %128 = vector.broadcast %cst_60 : f32 to vector<2x64xf32>
    %129 = arith.subf %128, %107 : vector<2x64xf32>
    %130 = arith.mulf %129, %107 : vector<2x64xf32>
    %131 = math.exp %130 : vector<2x64xf32>
    %132 = arith.mulf %127, %131 : vector<2x64xf32>
    %cst_61 = arith.constant 1.000000e+00 : f32
    %133 = vector.broadcast %cst_61 : f32 to vector<2x64xf32>
    %134 = arith.subf %133, %132 : vector<2x64xf32>
    %135 = arith.mulf %106, %134 : vector<2x64xf32>
    %cst_62 = arith.constant 1.000000e+00 : f32
    %136 = vector.broadcast %cst_62 : f32 to vector<2x64xf32>
    %137 = arith.addf %136, %135 : vector<2x64xf32>
    %138 = arith.mulf %99, %137 : vector<2x64xf32>
    %c0_63 = arith.constant 0 : index
    %c0_64 = arith.constant 0 : index
    %139 = vector.load %arg11[%c0_63, %c0_64] : memref<64x32xf32, #tpu.memory_space<vmem>>, vector<64x32xf32>
    %cst_65 = arith.constant dense<0.000000e+00> : vector<2x32xf32>
    %140 = tpu.matmul %138, %139, %cst_65 {dimension_numbers = #tpu.dot_dimension_numbers<[1], [0], [0], [1], [0, 0, 1, 1], [], []>} : vector<2x64xf32>, vector<64x32xf32>, vector<2x32xf32> -> vector<2x32xf32>
    %c0_66 = arith.constant 0 : index
    %c0_67 = arith.constant 0 : index
    %141 = vector.load %arg12[%c0_66, %c0_67] : memref<1x32xf32, #tpu.memory_space<vmem>>, vector<1x32xf32>
    %142 = vector.broadcast %141 : vector<1x32xf32> to vector<2x32xf32>
    %143 = arith.addf %140, %142 : vector<2x32xf32>
    %c0_68 = arith.constant 0 : index
    %c0_69 = arith.constant 0 : index
    %144 = vector.load %arg7[%c0_68, %c0_69] : memref<784x784xf32, #tpu.memory_space<vmem>>, vector<784x784xf32>
    %cst_70 = arith.constant dense<0.000000e+00> : vector<2x784xf32>
    %145 = tpu.matmul %0, %144, %cst_70 {dimension_numbers = #tpu.dot_dimension_numbers<[1], [0], [0], [1], [0, 0, 1, 1], [], []>} : vector<2x784xf32>, vector<784x784xf32>, vector<2x784xf32> -> vector<2x784xf32>
    %c0_71 = arith.constant 0 : index
    %c0_72 = arith.constant 0 : index
    %146 = vector.load %arg8[%c0_71, %c0_72] : memref<1x784xf32, #tpu.memory_space<vmem>>, vector<1x784xf32>
    %147 = vector.broadcast %146 : vector<1x784xf32> to vector<2x784xf32>
    %148 = arith.addf %145, %147 : vector<2x784xf32>
    %cst_73 = arith.constant 5.000000e-01 : f32
    %149 = vector.broadcast %cst_73 : f32 to vector<2x784xf32>
    %150 = arith.mulf %149, %148 : vector<2x784xf32>
    %cst_74 = arith.constant 1.41421354 : f32
    %151 = vector.broadcast %cst_74 : f32 to vector<2x784xf32>
    %152 = arith.divf %148, %151 : vector<2x784xf32>
    %cst_75 = arith.constant 0.000000e+00 : f32
    %153 = vector.broadcast %cst_75 : f32 to vector<2x784xf32>
    %154 = arith.cmpf oge, %152, %153 : vector<2x784xf32>
    %cst_76 = arith.constant 1.000000e+00 : f32
    %cst_77 = arith.constant -1.000000e+00 : f32
    %155 = vector.broadcast %cst_76 : f32 to vector<2x784xf32>
    %156 = vector.broadcast %cst_77 : f32 to vector<2x784xf32>
    %157 = arith.select %154, %155, %156 : vector<2x784xi1>, vector<2x784xf32>
    %158 = math.absf %152 : vector<2x784xf32>
    %cst_78 = arith.constant 0.327591091 : f32
    %159 = vector.broadcast %cst_78 : f32 to vector<2x784xf32>
    %160 = arith.mulf %159, %158 : vector<2x784xf32>
    %cst_79 = arith.constant 1.000000e+00 : f32
    %161 = vector.broadcast %cst_79 : f32 to vector<2x784xf32>
    %162 = arith.addf %161, %160 : vector<2x784xf32>
    %cst_80 = arith.constant 1.000000e+00 : f32
    %163 = vector.broadcast %cst_80 : f32 to vector<2x784xf32>
    %164 = arith.divf %163, %162 : vector<2x784xf32>
    %cst_81 = arith.constant 1.06140542 : f32
    %165 = vector.broadcast %cst_81 : f32 to vector<2x784xf32>
    %166 = arith.mulf %165, %164 : vector<2x784xf32>
    %cst_82 = arith.constant -1.45315206 : f32
    %167 = vector.broadcast %cst_82 : f32 to vector<2x784xf32>
    %168 = arith.addf %166, %167 : vector<2x784xf32>
    %169 = arith.mulf %168, %164 : vector<2x784xf32>
    %cst_83 = arith.constant 1.42141378 : f32
    %170 = vector.broadcast %cst_83 : f32 to vector<2x784xf32>
    %171 = arith.addf %169, %170 : vector<2x784xf32>
    %172 = arith.mulf %171, %164 : vector<2x784xf32>
    %cst_84 = arith.constant -0.284496725 : f32
    %173 = vector.broadcast %cst_84 : f32 to vector<2x784xf32>
    %174 = arith.addf %172, %173 : vector<2x784xf32>
    %175 = arith.mulf %174, %164 : vector<2x784xf32>
    %cst_85 = arith.constant 0.254829586 : f32
    %176 = vector.broadcast %cst_85 : f32 to vector<2x784xf32>
    %177 = arith.addf %175, %176 : vector<2x784xf32>
    %178 = arith.mulf %177, %164 : vector<2x784xf32>
    %cst_86 = arith.constant 0.000000e+00 : f32
    %179 = vector.broadcast %cst_86 : f32 to vector<2x784xf32>
    %180 = arith.subf %179, %158 : vector<2x784xf32>
    %181 = arith.mulf %180, %158 : vector<2x784xf32>
    %182 = math.exp %181 : vector<2x784xf32>
    %183 = arith.mulf %178, %182 : vector<2x784xf32>
    %cst_87 = arith.constant 1.000000e+00 : f32
    %184 = vector.broadcast %cst_87 : f32 to vector<2x784xf32>
    %185 = arith.subf %184, %183 : vector<2x784xf32>
    %186 = arith.mulf %157, %185 : vector<2x784xf32>
    %cst_88 = arith.constant 1.000000e+00 : f32
    %187 = vector.broadcast %cst_88 : f32 to vector<2x784xf32>
    %188 = arith.addf %187, %186 : vector<2x784xf32>
    %189 = arith.mulf %150, %188 : vector<2x784xf32>
    %c0_89 = arith.constant 0 : index
    %c0_90 = arith.constant 0 : index
    %190 = vector.load %arg9[%c0_89, %c0_90] : memref<784x392xf32, #tpu.memory_space<vmem>>, vector<784x392xf32>
    %cst_91 = arith.constant dense<0.000000e+00> : vector<2x392xf32>
    %191 = tpu.matmul %189, %190, %cst_91 {dimension_numbers = #tpu.dot_dimension_numbers<[1], [0], [0], [1], [0, 0, 1, 1], [], []>} : vector<2x784xf32>, vector<784x392xf32>, vector<2x392xf32> -> vector<2x392xf32>
    %c0_92 = arith.constant 0 : index
    %c0_93 = arith.constant 0 : index
    %192 = vector.load %arg10[%c0_92, %c0_93] : memref<1x392xf32, #tpu.memory_space<vmem>>, vector<1x392xf32>
    %193 = vector.broadcast %192 : vector<1x392xf32> to vector<2x392xf32>
    %194 = arith.addf %191, %193 : vector<2x392xf32>
    %cst_94 = arith.constant 5.000000e-01 : f32
    %195 = vector.broadcast %cst_94 : f32 to vector<2x392xf32>
    %196 = arith.mulf %195, %194 : vector<2x392xf32>
    %cst_95 = arith.constant 1.41421354 : f32
    %197 = vector.broadcast %cst_95 : f32 to vector<2x392xf32>
    %198 = arith.divf %194, %197 : vector<2x392xf32>
    %cst_96 = arith.constant 0.000000e+00 : f32
    %199 = vector.broadcast %cst_96 : f32 to vector<2x392xf32>
    %200 = arith.cmpf oge, %198, %199 : vector<2x392xf32>
    %cst_97 = arith.constant 1.000000e+00 : f32
    %cst_98 = arith.constant -1.000000e+00 : f32
    %201 = vector.broadcast %cst_97 : f32 to vector<2x392xf32>
    %202 = vector.broadcast %cst_98 : f32 to vector<2x392xf32>
    %203 = arith.select %200, %201, %202 : vector<2x392xi1>, vector<2x392xf32>
    %204 = math.absf %198 : vector<2x392xf32>
    %cst_99 = arith.constant 0.327591091 : f32
    %205 = vector.broadcast %cst_99 : f32 to vector<2x392xf32>
    %206 = arith.mulf %205, %204 : vector<2x392xf32>
    %cst_100 = arith.constant 1.000000e+00 : f32
    %207 = vector.broadcast %cst_100 : f32 to vector<2x392xf32>
    %208 = arith.addf %207, %206 : vector<2x392xf32>
    %cst_101 = arith.constant 1.000000e+00 : f32
    %209 = vector.broadcast %cst_101 : f32 to vector<2x392xf32>
    %210 = arith.divf %209, %208 : vector<2x392xf32>
    %cst_102 = arith.constant 1.06140542 : f32
    %211 = vector.broadcast %cst_102 : f32 to vector<2x392xf32>
    %212 = arith.mulf %211, %210 : vector<2x392xf32>
    %cst_103 = arith.constant -1.45315206 : f32
    %213 = vector.broadcast %cst_103 : f32 to vector<2x392xf32>
    %214 = arith.addf %212, %213 : vector<2x392xf32>
    %215 = arith.mulf %214, %210 : vector<2x392xf32>
    %cst_104 = arith.constant 1.42141378 : f32
    %216 = vector.broadcast %cst_104 : f32 to vector<2x392xf32>
    %217 = arith.addf %215, %216 : vector<2x392xf32>
    %218 = arith.mulf %217, %210 : vector<2x392xf32>
    %cst_105 = arith.constant -0.284496725 : f32
    %219 = vector.broadcast %cst_105 : f32 to vector<2x392xf32>
    %220 = arith.addf %218, %219 : vector<2x392xf32>
    %221 = arith.mulf %220, %210 : vector<2x392xf32>
    %cst_106 = arith.constant 0.254829586 : f32
    %222 = vector.broadcast %cst_106 : f32 to vector<2x392xf32>
    %223 = arith.addf %221, %222 : vector<2x392xf32>
    %224 = arith.mulf %223, %210 : vector<2x392xf32>
    %cst_107 = arith.constant 0.000000e+00 : f32
    %225 = vector.broadcast %cst_107 : f32 to vector<2x392xf32>
    %226 = arith.subf %225, %204 : vector<2x392xf32>
    %227 = arith.mulf %226, %204 : vector<2x392xf32>
    %228 = math.exp %227 : vector<2x392xf32>
    %229 = arith.mulf %224, %228 : vector<2x392xf32>
    %cst_108 = arith.constant 1.000000e+00 : f32
    %230 = vector.broadcast %cst_108 : f32 to vector<2x392xf32>
    %231 = arith.subf %230, %229 : vector<2x392xf32>
    %232 = arith.mulf %203, %231 : vector<2x392xf32>
    %cst_109 = arith.constant 1.000000e+00 : f32
    %233 = vector.broadcast %cst_109 : f32 to vector<2x392xf32>
    %234 = arith.addf %233, %232 : vector<2x392xf32>
    %235 = arith.mulf %196, %234 : vector<2x392xf32>
    %c0_110 = arith.constant 0 : index
    %c0_111 = arith.constant 0 : index
    %236 = vector.load %arg13[%c0_110, %c0_111] : memref<392x128xf32, #tpu.memory_space<vmem>>, vector<392x128xf32>
    %cst_112 = arith.constant dense<0.000000e+00> : vector<2x128xf32>
    %237 = tpu.matmul %235, %236, %cst_112 {dimension_numbers = #tpu.dot_dimension_numbers<[1], [0], [0], [1], [0, 0, 1, 1], [], []>} : vector<2x392xf32>, vector<392x128xf32>, vector<2x128xf32> -> vector<2x128xf32>
    %c0_113 = arith.constant 0 : index
    %c0_114 = arith.constant 0 : index
    %238 = vector.load %arg14[%c0_113, %c0_114] : memref<1x128xf32, #tpu.memory_space<vmem>>, vector<1x128xf32>
    %239 = vector.broadcast %238 : vector<1x128xf32> to vector<2x128xf32>
    %240 = arith.addf %237, %239 : vector<2x128xf32>
    %241 = math.tanh %240 : vector<2x128xf32>
    %c0_115 = arith.constant 0 : index
    %c0_116 = arith.constant 0 : index
    %242 = vector.load %arg15[%c0_115, %c0_116] : memref<128x32xf32, #tpu.memory_space<vmem>>, vector<128x32xf32>
    %cst_117 = arith.constant dense<0.000000e+00> : vector<2x32xf32>
    %243 = tpu.matmul %241, %242, %cst_117 {dimension_numbers = #tpu.dot_dimension_numbers<[1], [0], [0], [1], [0, 0, 1, 1], [], []>} : vector<2x128xf32>, vector<128x32xf32>, vector<2x32xf32> -> vector<2x32xf32>
    %c0_118 = arith.constant 0 : index
    %c0_119 = arith.constant 0 : index
    %244 = vector.load %arg16[%c0_118, %c0_119] : memref<1x32xf32, #tpu.memory_space<vmem>>, vector<1x32xf32>
    %245 = vector.broadcast %244 : vector<1x32xf32> to vector<2x32xf32>
    %246 = arith.addf %243, %245 : vector<2x32xf32>
    %247 = arith.addf %143, %246 : vector<2x32xf32>
    %c0_120 = arith.constant 0 : index
    %c0_121 = arith.constant 0 : index
    %248 = vector.load %arg17[%c0_120, %c0_121] : memref<32x10xf32, #tpu.memory_space<vmem>>, vector<32x10xf32>
    %cst_122 = arith.constant dense<0.000000e+00> : vector<2x10xf32>
    %249 = tpu.matmul %247, %248, %cst_122 {dimension_numbers = #tpu.dot_dimension_numbers<[1], [0], [0], [1], [0, 0, 1, 1], [], []>} : vector<2x32xf32>, vector<32x10xf32>, vector<2x10xf32> -> vector<2x10xf32>
    %c0_123 = arith.constant 0 : index
    %c0_124 = arith.constant 0 : index
    %250 = vector.load %arg18[%c0_123, %c0_124] : memref<1x10xf32, #tpu.memory_space<vmem>>, vector<1x10xf32>
    %251 = vector.broadcast %250 : vector<1x10xf32> to vector<2x10xf32>
    %252 = arith.addf %249, %251 : vector<2x10xf32>
    %cst_125 = arith.constant dense<0xFF800000> : vector<2xf32>
    %253 = vector.multi_reduction <maximumf>, %252, %cst_125 [1] : vector<2x10xf32> to vector<2xf32>
    %254 = vector.shape_cast %253 : vector<2xf32> to vector<2x1xf32>
    %255 = vector.broadcast %254 : vector<2x1xf32> to vector<2x10xf32>
    %256 = arith.subf %252, %255 : vector<2x10xf32>
    %257 = math.exp %256 : vector<2x10xf32>
    %cst_126 = arith.constant dense<0.000000e+00> : vector<2xf32>
    %258 = vector.multi_reduction <add>, %257, %cst_126 [1] : vector<2x10xf32> to vector<2xf32>
    %259 = vector.shape_cast %258 : vector<2xf32> to vector<2x1xf32>
    %260 = vector.broadcast %259 : vector<2x1xf32> to vector<2x10xf32>
    %261 = arith.divf %257, %260 : vector<2x10xf32>
    %c0_127 = arith.constant 0 : index
    %c0_128 = arith.constant 0 : index
    %262 = vector.load %arg19[%c0_127, %c0_128] : memref<2x10xf32, #tpu.memory_space<vmem>>, vector<2x10xf32>
    tpu.vector_store %arg19[%c0_127, %c0_128], %261 {strides = array<i32>} : memref<2x10xf32, #tpu.memory_space<vmem>>, vector<2x10xf32>,
    return
  }
}

</mosaic_0001>

<llo_original>
// kernel: neural_network_forward.1
$region0: #{neural_network_forward.1}
  #allocation0 [shape = 'u32[]', space=smem, size = 0x4, offset = 0x4, fixed_abs, tag = 'smem constant byte address 0x4 - core index']
  #allocation1 [shape = 'u32[144,128]{1,0:T(1,128)}', space=vmem, size = 0x12000, scoped, tag = 'internal scratch']
  %s0 = inlined_call_operand.vmem [shape: f32[2,784], index: 0, kind: input, shape index: {}]
  %s1 = inlined_call_operand.vmem [shape: f32[784,784], index: 1, kind: input, shape index: {}]
  %s2 = inlined_call_operand.vmem [shape: f32[1,784], index: 2, kind: input, shape index: {}]
  %s3 = inlined_call_operand.vmem [shape: f32[784,288], index: 3, kind: input, shape index: {}]
  %s4 = inlined_call_operand.vmem [shape: f32[1,288], index: 4, kind: input, shape index: {}]
  %s5 = inlined_call_operand.vmem [shape: f32[288,64], index: 5, kind: input, shape index: {}]
  %s6 = inlined_call_operand.vmem [shape: f32[1,64], index: 6, kind: input, shape index: {}]
  %s7 = inlined_call_operand.vmem [shape: f32[784,784], index: 7, kind: input, shape index: {}]
  %s8 = inlined_call_operand.vmem [shape: f32[1,784], index: 8, kind: input, shape index: {}]
  %s9 = inlined_call_operand.vmem [shape: f32[784,392], index: 9, kind: input, shape index: {}]
  %s10 = inlined_call_operand.vmem [shape: f32[1,392], index: 10, kind: input, shape index: {}]
  %s11 = inlined_call_operand.vmem [shape: f32[64,32], index: 11, kind: input, shape index: {}]
  %s12 = inlined_call_operand.vmem [shape: f32[1,32], index: 12, kind: input, shape index: {}]
  %s13 = inlined_call_operand.hbm [shape: f32[392,128], index: 13, kind: input, shape index: {}]
  %s14 = inlined_call_operand.vmem [shape: f32[1,128], index: 14, kind: input, shape index: {}]
  %s15 = inlined_call_operand.vmem [shape: f32[128,32], index: 15, kind: input, shape index: {}]
  %s16 = inlined_call_operand.vmem [shape: f32[1,32], index: 16, kind: input, shape index: {}]
  %s17 = inlined_call_operand.vmem [shape: f32[32,10], index: 17, kind: input, shape index: {}]
  %s18 = inlined_call_operand.vmem [shape: f32[1,10], index: 18, kind: input, shape index: {}]
  %s19 = inlined_call_operand.hbm [shape: f32[2,10], index: 19, kind: output, shape index: {}]
  %s20 = sld [smem:[#allocation0]]
  $region90: #{neural_network_forward.1} parent=0
    _
  %s22 = ssub.s32 1, %s20
  %s23 = scalar_select 0, %s22, %s20
  $region1: #{neural_network_forward.1} parent=0
    #allocation2 [shape = 'u8[200704]{0}', space=vmem, size = 0x31000, scoped, tag = 'input window, operand 13, single buffered']
    #allocation3 [shape = 's32[1]{0}', space=sflag, size = 0x4, scoped, tag = 'scoped memory for neural_network_forward.1']
    #allocation4 [shape = 's32[1]{0}', space=sflag, size = 0x4, scoped, tag = 'scoped memory for neural_network_forward.1']
    #allocation5 [shape = 'u8[1024]{0}', space=vmem, size = 0x400, scoped, tag = 'output window, operand 0, single buffered']
    %24 = vsyncpa [#allocation3], 0
    %25 = vsyncpa [#allocation4], 0
    // Predicated region
    $region2: #{neural_network_forward.1} parent=1 // pred_check
      _
    $region3: #{neural_network_forward.1} parent=1 // pred_check_branch
      %27 = sbr.rel (0) target = $region5
    $region4: #{neural_network_forward.1} parent=1 // pred_region
      _
    $region5: #{neural_network_forward.1} parent=1 // pred_fallthru
      _
    // Predicated region
    $region6: #{neural_network_forward.1} parent=1 // pred_check
      _
    $region7: #{neural_network_forward.1} parent=1 // pred_check_branch
      %29 = sbr.rel (0) target = $region9
    $region8: #{neural_network_forward.1} parent=1 // pred_region
      _
    $region9: #{neural_network_forward.1} parent=1 // pred_fallthru
      _
    // Predicated region
    $region10: #{neural_network_forward.1} parent=1 // pred_check
      _
    $region11: #{neural_network_forward.1} parent=1 // pred_check_branch
      %31 = sbr.rel (0) target = $region13
    $region12: #{neural_network_forward.1} parent=1 // pred_region
      _
    $region13: #{neural_network_forward.1} parent=1 // pred_fallthru
      _
    // Predicated region
    $region14: #{neural_network_forward.1} parent=1 // pred_check
      _
    $region15: #{neural_network_forward.1} parent=1 // pred_check_branch
      %33 = sbr.rel (0) target = $region17
    $region16: #{neural_network_forward.1} parent=1 // pred_region
      _
    $region17: #{neural_network_forward.1} parent=1 // pred_fallthru
      _
    // Predicated region
    $region18: #{neural_network_forward.1} parent=1 // pred_check
      _
    $region19: #{neural_network_forward.1} parent=1 // pred_check_branch
      %35 = sbr.rel (0) target = $region21
    $region20: #{neural_network_forward.1} parent=1 // pred_region
      _
    $region21: #{neural_network_forward.1} parent=1 // pred_fallthru
      _
    // Predicated region
    $region22: #{neural_network_forward.1} parent=1 // pred_check
      _
    $region23: #{neural_network_forward.1} parent=1 // pred_check_branch
      %37 = sbr.rel (0) target = $region25
    $region24: #{neural_network_forward.1} parent=1 // pred_region
      _
    $region25: #{neural_network_forward.1} parent=1 // pred_fallthru
      _
    // Predicated region
    $region26: #{neural_network_forward.1} parent=1 // pred_check
      _
    $region27: #{neural_network_forward.1} parent=1 // pred_check_branch
      %39 = sbr.rel (0) target = $region29
    $region28: #{neural_network_forward.1} parent=1 // pred_region
      _
    $region29: #{neural_network_forward.1} parent=1 // pred_fallthru
      _
    // Predicated region
    $region30: #{neural_network_forward.1} parent=1 // pred_check
      _
    $region31: #{neural_network_forward.1} parent=1 // pred_check_branch
      %41 = sbr.rel (0) target = $region33
    $region32: #{neural_network_forward.1} parent=1 // pred_region
      _
    $region33: #{neural_network_forward.1} parent=1 // pred_fallthru
      _
    // Predicated region
    $region34: #{neural_network_forward.1} parent=1 // pred_check
      _
    $region35: #{neural_network_forward.1} parent=1 // pred_check_branch
      %43 = sbr.rel (0) target = $region37
    $region36: #{neural_network_forward.1} parent=1 // pred_region
      _
    $region37: #{neural_network_forward.1} parent=1 // pred_fallthru
      _
    // Predicated region
    $region38: #{neural_network_forward.1} parent=1 // pred_check
      _
    $region39: #{neural_network_forward.1} parent=1 // pred_check_branch
      %45 = sbr.rel (0) target = $region41
    $region40: #{neural_network_forward.1} parent=1 // pred_region
      _
    $region41: #{neural_network_forward.1} parent=1 // pred_fallthru
      _
    // Predicated region
    $region42: #{neural_network_forward.1} parent=1 // pred_check
      _
    $region43: #{neural_network_forward.1} parent=1 // pred_check_branch
      %47 = sbr.rel (0) target = $region45
    $region44: #{neural_network_forward.1} parent=1 // pred_region
      _
    $region45: #{neural_network_forward.1} parent=1 // pred_fallthru
      _
    // Predicated region
    $region46: #{neural_network_forward.1} parent=1 // pred_check
      _
    $region47: #{neural_network_forward.1} parent=1 // pred_check_branch
      %49 = sbr.rel (0) target = $region49
    $region48: #{neural_network_forward.1} parent=1 // pred_region
      _
    $region49: #{neural_network_forward.1} parent=1 // pred_fallthru
      _
    // Predicated region
    $region50: #{neural_network_forward.1} parent=1 // pred_check
      _
    $region51: #{neural_network_forward.1} parent=1 // pred_check_branch
      %51 = sbr.rel (0) target = $region53
    $region52: #{neural_network_forward.1} parent=1 // pred_region
      _
    $region53: #{neural_network_forward.1} parent=1 // pred_fallthru
      _
    // Predicated region
    $region54: #{neural_network_forward.1} parent=1 // pred_check
      _
    $region55: #{neural_network_forward.1} parent=1 // pred_check_branch
      %53 = sbr.rel (0) target = $region57
    $region56: #{neural_network_forward.1} parent=1 // pred_region
      %s55 = ssub.s32 6272, 6272
      %56 = vsyncadd [#allocation3], %s55
      %s57 = sshll.u32 [#allocation2], 4
      %s58 = int_to_ptr.vmem [resolvable:$true] %s57
      %63 = dma.hbm_to_vmem [thread:$0]  %s13, 6272, %s58, [#allocation3], 128, 128, 8
    $region57: #{neural_network_forward.1} parent=1 // pred_fallthru
      _
    // Predicated region
    $region58: #{neural_network_forward.1} parent=1 // pred_check
      _
    $region59: #{neural_network_forward.1} parent=1 // pred_check_branch
      %65 = sbr.rel (0) target = $region61
    $region60: #{neural_network_forward.1} parent=1 // pred_region
      _
    $region61: #{neural_network_forward.1} parent=1 // pred_fallthru
      _
    // Predicated region
    $region62: #{neural_network_forward.1} parent=1 // pred_check
      _
    $region63: #{neural_network_forward.1} parent=1 // pred_check_branch
      %67 = sbr.rel (0) target = $region65
    $region64: #{neural_network_forward.1} parent=1 // pred_region
      _
    $region65: #{neural_network_forward.1} parent=1 // pred_fallthru
      _
    // Predicated region
    $region66: #{neural_network_forward.1} parent=1 // pred_check
      _
    $region67: #{neural_network_forward.1} parent=1 // pred_check_branch
      %69 = sbr.rel (0) target = $region69
    $region68: #{neural_network_forward.1} parent=1 // pred_region
      _
    $region69: #{neural_network_forward.1} parent=1 // pred_fallthru
      _
    // Predicated region
    $region70: #{neural_network_forward.1} parent=1 // pred_check
      _
    $region71: #{neural_network_forward.1} parent=1 // pred_check_branch
      %71 = sbr.rel (0) target = $region73
    $region72: #{neural_network_forward.1} parent=1 // pred_region
      _
    $region73: #{neural_network_forward.1} parent=1 // pred_fallthru
      _
    // Predicated region
    $region74: #{neural_network_forward.1} parent=1 // pred_check
      _
    $region75: #{neural_network_forward.1} parent=1 // pred_check_branch
      %73 = sbr.rel (0) target = $region77
    $region76: #{neural_network_forward.1} parent=1 // pred_region
      _
    $region77: #{neural_network_forward.1} parent=1 // pred_fallthru
      _
    // Predicated region
    $region78: #{neural_network_forward.1} parent=1 // pred_check
      _
    $region79: #{neural_network_forward.1} parent=1 // pred_check_branch
      %75 = sbr.rel (0) target = $region81
    $region80: #{neural_network_forward.1} parent=1 // pred_region
      %76 = dma.done [#allocation3], 6272
    $region81: #{neural_network_forward.1} parent=1 // pred_fallthru
      _
    %v77 = vld [vmem:[%s0] sm:$0xff]
    %v78 = vld [vmem:[%s0 + $0x8] sm:$0x3f]
    %v79 = vld [vmem:[%s1] sm:$0xff]
    %v80 = vld [vmem:[%s1 + $0x8] sm:$0xff]
    %v81 = vld [vmem:[%s1 + $0x10] sm:$0xff]
    %v82 = vld [vmem:[%s1 + $0x18] sm:$0xff]
    %v83 = vld [vmem:[%s1 + $0x20] sm:$0xff]
    %v84 = vld [vmem:[%s1 + $0x28] sm:$0xff]
    %v85 = vld [vmem:[%s1 + $0x30] sm:$0xff]
    %v86 = vld [vmem:[%s1 + $0x38] sm:$0xff]
    %v87 = vld [vmem:[%s1 + $0x40] sm:$0xff]
    %v88 = vld [vmem:[%s1 + $0x48] sm:$0xff]
    %v89 = vld [vmem:[%s1 + $0x50] sm:$0xff]
    %v90 = vld [vmem:[%s1 + $0x58] sm:$0xff]
    %v91 = vld [vmem:[%s1 + $0x60] sm:$0xff]
    %v92 = vld [vmem:[%s1 + $0x68] sm:$0xff]
    %v93 = vld [vmem:[%s1 + $0x70] sm:$0xff]
    %v94 = vld [vmem:[%s1 + $0x78] sm:$0xff]
    %v95 = vld [vmem:[%s1 + $0x80] sm:$0xff]
    %v96 = vld [vmem:[%s1 + $0x88] sm:$0xff]
    %v97 = vld [vmem:[%s1 + $0x90] sm:$0xff]
    %v98 = vld [vmem:[%s1 + $0x98] sm:$0xff]
    %v99 = vld [vmem:[%s1 + $0xa0] sm:$0xff]
    %v100 = vld [vmem:[%s1 + $0xa8] sm:$0xff]
    %v101 = vld [vmem:[%s1 + $0xb0] sm:$0xff]
    %v102 = vld [vmem:[%s1 + $0xb8] sm:$0xff]
    %v103 = vld [vmem:[%s1 + $0xc0] sm:$0xff]
    %v104 = vld [vmem:[%s1 + $0xc8] sm:$0xff]
    %v105 = vld [vmem:[%s1 + $0xd0] sm:$0xff]
    %v106 = vld [vmem:[%s1 + $0xd8] sm:$0xff]
    %v107 = vld [vmem:[%s1 + $0xe0] sm:$0xff]
    %v108 = vld [vmem:[%s1 + $0xe8] sm:$0xff]
    %v109 = vld [vmem:[%s1 + $0xf0] sm:$0xff]
    %v110 = vld [vmem:[%s1 + $0xf8] sm:$0xff]
    %v111 = vld [vmem:[%s1 + $0x100] sm:$0xff]
    %v112 = vld [vmem:[%s1 + $0x108] sm:$0xff]
    %v113 = vld [vmem:[%s1 + $0x110] sm:$0xff]
    %v114 = vld [vmem:[%s1 + $0x118] sm:$0xff]
    %v115 = vld [vmem:[%s1 + $0x120] sm:$0xff]
    %v116 = vld [vmem:[%s1 + $0x128] sm:$0xff]
    %v117 = vld [vmem:[%s1 + $0x130] sm:$0xff]
    %v118 = vld [vmem:[%s1 + $0x138] sm:$0xff]
    %v119 = vld [vmem:[%s1 + $0x140] sm:$0xff]
    %v120 = vld [vmem:[%s1 + $0x148] sm:$0xff]
    %v121 = vld [vmem:[%s1 + $0x150] sm:$0xff]
    %v122 = vld [vmem:[%s1 + $0x158] sm:$0xff]
    %v123 = vld [vmem:[%s1 + $0x160] sm:$0xff]
    %v124 = vld [vmem:[%s1 + $0x168] sm:$0xff]
    %v125 = vld [vmem:[%s1 + $0x170] sm:$0xff]
    %v126 = vld [vmem:[%s1 + $0x178] sm:$0xff]
    %v127 = vld [vmem:[%s1 + $0x180] sm:$0xff]
    %v128 = vld [vmem:[%s1 + $0x188] sm:$0xff]
    %v129 = vld [vmem:[%s1 + $0x190] sm:$0xff]
    %v130 = vld [vmem:[%s1 + $0x198] sm:$0xff]
    %v131 = vld [vmem:[%s1 + $0x1a0] sm:$0xff]
    %v132 = vld [vmem:[%s1 + $0x1a8] sm:$0xff]
    %v133 = vld [vmem:[%s1 + $0x1b0] sm:$0xff]
    %v134 = vld [vmem:[%s1 + $0x1b8] sm:$0xff]
    %v135 = vld [vmem:[%s1 + $0x1c0] sm:$0xff]
    %v136 = vld [vmem:[%s1 + $0x1c8] sm:$0xff]
    %v137 = vld [vmem:[%s1 + $0x1d0] sm:$0xff]
    %v138 = vld [vmem:[%s1 + $0x1d8] sm:$0xff]
    %v139 = vld [vmem:[%s1 + $0x1e0] sm:$0xff]
    %v140 = vld [vmem:[%s1 + $0x1e8] sm:$0xff]
    %v141 = vld [vmem:[%s1 + $0x1f0] sm:$0xff]
    %v142 = vld [vmem:[%s1 + $0x1f8] sm:$0xff]
    %v143 = vld [vmem:[%s1 + $0x200] sm:$0xff]
    %v144 = vld [vmem:[%s1 + $0x208] sm:$0xff]
    %v145 = vld [vmem:[%s1 + $0x210] sm:$0xff]
    %v146 = vld [vmem:[%s1 + $0x218] sm:$0xff]
    %v147 = vld [vmem:[%s1 + $0x220] sm:$0xff]
    %v148 = vld [vmem:[%s1 + $0x228] sm:$0xff]
    %v149 = vld [vmem:[%s1 + $0x230] sm:$0xff]
    %v150 = vld [vmem:[%s1 + $0x238] sm:$0xff]
    %v151 = vld [vmem:[%s1 + $0x240] sm:$0xff]
    %v152 = vld [vmem:[%s1 + $0x248] sm:$0xff]
    %v153 = vld [vmem:[%s1 + $0x250] sm:$0xff]
    %v154 = vld [vmem:[%s1 + $0x258] sm:$0xff]
    %v155 = vld [vmem:[%s1 + $0x260] sm:$0xff]
    %v156 = vld [vmem:[%s1 + $0x268] sm:$0xff]
    %v157 = vld [vmem:[%s1 + $0x270] sm:$0xff]
    %v158 = vld [vmem:[%s1 + $0x278] sm:$0xff]
    %v159 = vld [vmem:[%s1 + $0x280] sm:$0xff]
    %v160 = vld [vmem:[%s1 + $0x288] sm:$0xff]
    %v161 = vld [vmem:[%s1 + $0x290] sm:$0xff]
    %v162 = vld [vmem:[%s1 + $0x298] sm:$0xff]
    %v163 = vld [vmem:[%s1 + $0x2a0] sm:$0xff]
    %v164 = vld [vmem:[%s1 + $0x2a8] sm:$0xff]
    %v165 = vld [vmem:[%s1 + $0x2b0] sm:$0xff]
    %v166 = vld [vmem:[%s1 + $0x2b8] sm:$0xff]
    %v167 = vld [vmem:[%s1 + $0x2c0] sm:$0xff]
    %v168 = vld [vmem:[%s1 + $0x2c8] sm:$0xff]
    %v169 = vld [vmem:[%s1 + $0x2d0] sm:$0xff]
    %v170 = vld [vmem:[%s1 + $0x2d8] sm:$0xff]
    %v171 = vld [vmem:[%s1 + $0x2e0] sm:$0xff]
    %v172 = vld [vmem:[%s1 + $0x2e8] sm:$0xff]
    %v173 = vld [vmem:[%s1 + $0x2f0] sm:$0xff]
    %v174 = vld [vmem:[%s1 + $0x2f8] sm:$0xff]
    %v175 = vld [vmem:[%s1 + $0x300] sm:$0xff]
    %v176 = vld [vmem:[%s1 + $0x308] sm:$0xff]
    %v177 = vld [vmem:[%s1 + $0x310] sm:$0xff]
    %v178 = vld [vmem:[%s1 + $0x318] sm:$0xff]
    %v179 = vld [vmem:[%s1 + $0x320] sm:$0xff]
    %v180 = vld [vmem:[%s1 + $0x328] sm:$0xff]
    %v181 = vld [vmem:[%s1 + $0x330] sm:$0xff]
    %v182 = vld [vmem:[%s1 + $0x338] sm:$0xff]
    %v183 = vld [vmem:[%s1 + $0x340] sm:$0xff]
    %v184 = vld [vmem:[%s1 + $0x348] sm:$0xff]
    %v185 = vld [vmem:[%s1 + $0x350] sm:$0xff]
    %v186 = vld [vmem:[%s1 + $0x358] sm:$0xff]
    %v187 = vld [vmem:[%s1 + $0x360] sm:$0xff]
    %v188 = vld [vmem:[%s1 + $0x368] sm:$0xff]
    %v189 = vld [vmem:[%s1 + $0x370] sm:$0xff]
    %v190 = vld [vmem:[%s1 + $0x378] sm:$0xff]
    %v191 = vld [vmem:[%s1 + $0x380] sm:$0xff]
    %v192 = vld [vmem:[%s1 + $0x388] sm:$0xff]
    %v193 = vld [vmem:[%s1 + $0x390] sm:$0xff]
    %v194 = vld [vmem:[%s1 + $0x398] sm:$0xff]
    %v195 = vld [vmem:[%s1 + $0x3a0] sm:$0xff]
    %v196 = vld [vmem:[%s1 + $0x3a8] sm:$0xff]
    %v197 = vld [vmem:[%s1 + $0x3b0] sm:$0xff]
    %v198 = vld [vmem:[%s1 + $0x3b8] sm:$0xff]
    %v199 = vld [vmem:[%s1 + $0x3c0] sm:$0xff]
    %v200 = vld [vmem:[%s1 + $0x3c8] sm:$0xff]
    %v201 = vld [vmem:[%s1 + $0x3d0] sm:$0xff]
    %v202 = vld [vmem:[%s1 + $0x3d8] sm:$0xff]
    %v203 = vld [vmem:[%s1 + $0x3e0] sm:$0xff]
    %v204 = vld [vmem:[%s1 + $0x3e8] sm:$0xff]
    %v205 = vld [vmem:[%s1 + $0x3f0] sm:$0xff]
    %v206 = vld [vmem:[%s1 + $0x3f8] sm:$0xff]
    %v207 = vld [vmem:[%s1 + $0x400] sm:$0xff]
    %v208 = vld [vmem:[%s1 + $0x408] sm:$0xff]
    %v209 = vld [vmem:[%s1 + $0x410] sm:$0xff]
    %v210 = vld [vmem:[%s1 + $0x418] sm:$0xff]
    %v211 = vld [vmem:[%s1 + $0x420] sm:$0xff]
    %v212 = vld [vmem:[%s1 + $0x428] sm:$0xff]
    %v213 = vld [vmem:[%s1 + $0x430] sm:$0xff]
    %v214 = vld [vmem:[%s1 + $0x438] sm:$0xff]
    %v215 = vld [vmem:[%s1 + $0x440] sm:$0xff]
    %v216 = vld [vmem:[%s1 + $0x448] sm:$0xff]
    %v217 = vld [vmem:[%s1 + $0x450] sm:$0xff]
    %v218 = vld [vmem:[%s1 + $0x458] sm:$0xff]
    %v219 = vld [vmem:[%s1 + $0x460] sm:$0xff]
    %v220 = vld [vmem:[%s1 + $0x468] sm:$0xff]
    %v221 = vld [vmem:[%s1 + $0x470] sm:$0xff]
    %v222 = vld [vmem:[%s1 + $0x478] sm:$0xff]
    %v223 = vld [vmem:[%s1 + $0x480] sm:$0xff]
    %v224 = vld [vmem:[%s1 + $0x488] sm:$0xff]
    %v225 = vld [vmem:[%s1 + $0x490] sm:$0xff]
    %v226 = vld [vmem:[%s1 + $0x498] sm:$0xff]
    %v227 = vld [vmem:[%s1 + $0x4a0] sm:$0xff]
    %v228 = vld [vmem:[%s1 + $0x4a8] sm:$0xff]
    %v229 = vld [vmem:[%s1 + $0x4b0] sm:$0xff]
    %v230 = vld [vmem:[%s1 + $0x4b8] sm:$0xff]
    %v231 = vld [vmem:[%s1 + $0x4c0] sm:$0xff]
    %v232 = vld [vmem:[%s1 + $0x4c8] sm:$0xff]
    %v233 = vld [vmem:[%s1 + $0x4d0] sm:$0xff]
    %v234 = vld [vmem:[%s1 + $0x4d8] sm:$0xff]
    %v235 = vld [vmem:[%s1 + $0x4e0] sm:$0xff]
    %v236 = vld [vmem:[%s1 + $0x4e8] sm:$0xff]
    %v237 = vld [vmem:[%s1 + $0x4f0] sm:$0xff]
    %v238 = vld [vmem:[%s1 + $0x4f8] sm:$0xff]
    %v239 = vld [vmem:[%s1 + $0x500] sm:$0xff]
    %v240 = vld [vmem:[%s1 + $0x508] sm:$0xff]
    %v241 = vld [vmem:[%s1 + $0x510] sm:$0xff]
    %v242 = vld [vmem:[%s1 + $0x518] sm:$0xff]
    %v243 = vld [vmem:[%s1 + $0x520] sm:$0xff]
    %v244 = vld [vmem:[%s1 + $0x528] sm:$0xff]
    %v245 = vld [vmem:[%s1 + $0x530] sm:$0xff]
    %v246 = vld [vmem:[%s1 + $0x538] sm:$0xff]
    %v247 = vld [vmem:[%s1 + $0x540] sm:$0xff]
    %v248 = vld [vmem:[%s1 + $0x548] sm:$0xff]
    %v249 = vld [vmem:[%s1 + $0x550] sm:$0xff]
    %v250 = vld [vmem:[%s1 + $0x558] sm:$0xff]
    %v251 = vld [vmem:[%s1 + $0x560] sm:$0xff]
    %v252 = vld [vmem:[%s1 + $0x568] sm:$0xff]
    %v253 = vld [vmem:[%s1 + $0x570] sm:$0xff]
    %v254 = vld [vmem:[%s1 + $0x578] sm:$0xff]
    %v255 = vld [vmem:[%s1 + $0x580] sm:$0xff]
    %v256 = vld [vmem:[%s1 + $0x588] sm:$0xff]
    %v257 = vld [vmem:[%s1 + $0x590] sm:$0xff]
    %v258 = vld [vmem:[%s1 + $0x598] sm:$0xff]
    %v259 = vld [vmem:[%s1 + $0x5a0] sm:$0xff]
    %v260 = vld [vmem:[%s1 + $0x5a8] sm:$0xff]
    %v261 = vld [vmem:[%s1 + $0x5b0] sm:$0xff]
    %v262 = vld [vmem:[%s1 + $0x5b8] sm:$0xff]
    %v263 = vld [vmem:[%s1 + $0x5c0] sm:$0xff]
    %v264 = vld [vmem:[%s1 + $0x5c8] sm:$0xff]
    %v265 = vld [vmem:[%s1 + $0x5d0] sm:$0xff]
    %v266 = vld [vmem:[%s1 + $0x5d8] sm:$0xff]
    %v267 = vld [vmem:[%s1 + $0x5e0] sm:$0xff]
    %v268 = vld [vmem:[%s1 + $0x5e8] sm:$0xff]
    %v269 = vld [vmem:[%s1 + $0x5f0] sm:$0xff]
    %v270 = vld [vmem:[%s1 + $0x5f8] sm:$0xff]
    %v271 = vld [vmem:[%s1 + $0x600] sm:$0xff]
    %v272 = vld [vmem:[%s1 + $0x608] sm:$0xff]
    %v273 = vld [vmem:[%s1 + $0x610] sm:$0xff]
    %v274 = vld [vmem:[%s1 + $0x618] sm:$0xff]
    %v275 = vld [vmem:[%s1 + $0x620] sm:$0xff]
    %v276 = vld [vmem:[%s1 + $0x628] sm:$0xff]
    %v277 = vld [vmem:[%s1 + $0x630] sm:$0xff]
    %v278 = vld [vmem:[%s1 + $0x638] sm:$0xff]
    %v279 = vld [vmem:[%s1 + $0x640] sm:$0xff]
    %v280 = vld [vmem:[%s1 + $0x648] sm:$0xff]
    %v281 = vld [vmem:[%s1 + $0x650] sm:$0xff]
    %v282 = vld [vmem:[%s1 + $0x658] sm:$0xff]
    %v283 = vld [vmem:[%s1 + $0x660] sm:$0xff]
    %v284 = vld [vmem:[%s1 + $0x668] sm:$0xff]
    %v285 = vld [vmem:[%s1 + $0x670] sm:$0xff]
    %v286 = vld [vmem:[%s1 + $0x678] sm:$0xff]
    %v287 = vld [vmem:[%s1 + $0x680] sm:$0xff]
    %v288 = vld [vmem:[%s1 + $0x688] sm:$0xff]
    %v289 = vld [vmem:[%s1 + $0x690] sm:$0xff]
    %v290 = vld [vmem:[%s1 + $0x698] sm:$0xff]
    %v291 = vld [vmem:[%s1 + $0x6a0] sm:$0xff]
    %v292 = vld [vmem:[%s1 + $0x6a8] sm:$0xff]
    %v293 = vld [vmem:[%s1 + $0x6b0] sm:$0xff]
    %v294 = vld [vmem:[%s1 + $0x6b8] sm:$0xff]
    %v295 = vld [vmem:[%s1 + $0x6c0] sm:$0xff]
    %v296 = vld [vmem:[%s1 + $0x6c8] sm:$0xff]
    %v297 = vld [vmem:[%s1 + $0x6d0] sm:$0xff]
    %v298 = vld [vmem:[%s1 + $0x6d8] sm:$0xff]
    %v299 = vld [vmem:[%s1 + $0x6e0] sm:$0xff]
    %v300 = vld [vmem:[%s1 + $0x6e8] sm:$0xff]
    %v301 = vld [vmem:[%s1 + $0x6f0] sm:$0xff]
    %v302 = vld [vmem:[%s1 + $0x6f8] sm:$0xff]
    %v303 = vld [vmem:[%s1 + $0x700] sm:$0xff]
    %v304 = vld [vmem:[%s1 + $0x708] sm:$0xff]
    %v305 = vld [vmem:[%s1 + $0x710] sm:$0xff]
    %v306 = vld [vmem:[%s1 + $0x718] sm:$0xff]
    %v307 = vld [vmem:[%s1 + $0x720] sm:$0xff]
    %v308 = vld [vmem:[%s1 + $0x728] sm:$0xff]
    %v309 = vld [vmem:[%s1 + $0x730] sm:$0xff]
    %v310 = vld [vmem:[%s1 + $0x738] sm:$0xff]
    %v311 = vld [vmem:[%s1 + $0x740] sm:$0xff]
    %v312 = vld [vmem:[%s1 + $0x748] sm:$0xff]
    %v313 = vld [vmem:[%s1 + $0x750] sm:$0xff]
    %v314 = vld [vmem:[%s1 + $0x758] sm:$0xff]
    %v315 = vld [vmem:[%s1 + $0x760] sm:$0xff]
    %v316 = vld [vmem:[%s1 + $0x768] sm:$0xff]
    %v317 = vld [vmem:[%s1 + $0x770] sm:$0xff]
    %v318 = vld [vmem:[%s1 + $0x778] sm:$0xff]
    %v319 = vld [vmem:[%s1 + $0x780] sm:$0xff]
    %v320 = vld [vmem:[%s1 + $0x788] sm:$0xff]
    %v321 = vld [vmem:[%s1 + $0x790] sm:$0xff]
    %v322 = vld [vmem:[%s1 + $0x798] sm:$0xff]
    %v323 = vld [vmem:[%s1 + $0x7a0] sm:$0xff]
    %v324 = vld [vmem:[%s1 + $0x7a8] sm:$0xff]
    %v325 = vld [vmem:[%s1 + $0x7b0] sm:$0xff]
    %v326 = vld [vmem:[%s1 + $0x7b8] sm:$0xff]
    %v327 = vld [vmem:[%s1 + $0x7c0] sm:$0xff]
    %v328 = vld [vmem:[%s1 + $0x7c8] sm:$0xff]
    %v329 = vld [vmem:[%s1 + $0x7d0] sm:$0xff]
    %v330 = vld [vmem:[%s1 + $0x7d8] sm:$0xff]
    %v331 = vld [vmem:[%s1 + $0x7e0] sm:$0xff]
    %v332 = vld [vmem:[%s1 + $0x7e8] sm:$0xff]
    %v333 = vld [vmem:[%s1 + $0x7f0] sm:$0xff]
    %v334 = vld [vmem:[%s1 + $0x7f8] sm:$0xff]
    %v335 = vld [vmem:[%s1 + $0x800] sm:$0xff]
    %v336 = vld [vmem:[%s1 + $0x808] sm:$0xff]
    %v337 = vld [vmem:[%s1 + $0x810] sm:$0xff]
    %v338 = vld [vmem:[%s1 + $0x818] sm:$0xff]
    %v339 = vld [vmem:[%s1 + $0x820] sm:$0xff]
    %v340 = vld [vmem:[%s1 + $0x828] sm:$0xff]
    %v341 = vld [vmem:[%s1 + $0x830] sm:$0xff]
    %v342 = vld [vmem:[%s1 + $0x838] sm:$0xff]
    %v343 = vld [vmem:[%s1 + $0x840] sm:$0xff]
    %v344 = vld [vmem:[%s1 + $0x848] sm:$0xff]
    %v345 = vld [vmem:[%s1 + $0x850] sm:$0xff]
    %v346 = vld [vmem:[%s1 + $0x858] sm:$0xff]
    %v347 = vld [vmem:[%s1 + $0x860] sm:$0xff]
    %v348 = vld [vmem:[%s1 + $0x868] sm:$0xff]
    %v349 = vld [vmem:[%s1 + $0x870] sm:$0xff]
    %v350 = vld [vmem:[%s1 + $0x878] sm:$0xff]
    %v351 = vld [vmem:[%s1 + $0x880] sm:$0xff]
    %v352 = vld [vmem:[%s1 + $0x888] sm:$0xff]
    %v353 = vld [vmem:[%s1 + $0x890] sm:$0xff]
    %v354 = vld [vmem:[%s1 + $0x898] sm:$0xff]
    %v355 = vld [vmem:[%s1 + $0x8a0] sm:$0xff]
    %v356 = vld [vmem:[%s1 + $0x8a8] sm:$0xff]
    %v357 = vld [vmem:[%s1 + $0x8b0] sm:$0xff]
    %v358 = vld [vmem:[%s1 + $0x8b8] sm:$0xff]
    %v359 = vld [vmem:[%s1 + $0x8c0] sm:$0xff]
    %v360 = vld [vmem:[%s1 + $0x8c8] sm:$0xff]
    %v361 = vld [vmem:[%s1 + $0x8d0] sm:$0xff]
    %v362 = vld [vmem:[%s1 + $0x8d8] sm:$0xff]
    %v363 = vld [vmem:[%s1 + $0x8e0] sm:$0xff]
    %v364 = vld [vmem:[%s1 + $0x8e8] sm:$0xff]
    %v365 = vld [vmem:[%s1 + $0x8f0] sm:$0xff]
    %v366 = vld [vmem:[%s1 + $0x8f8] sm:$0xff]
    %v367 = vld [vmem:[%s1 + $0x900] sm:$0xff]
    %v368 = vld [vmem:[%s1 + $0x908] sm:$0xff]
    %v369 = vld [vmem:[%s1 + $0x910] sm:$0xff]
    %v370 = vld [vmem:[%s1 + $0x918] sm:$0xff]
    %v371 = vld [vmem:[%s1 + $0x920] sm:$0xff]
    %v372 = vld [vmem:[%s1 + $0x928] sm:$0xff]
    %v373 = vld [vmem:[%s1 + $0x930] sm:$0xff]
    %v374 = vld [vmem:[%s1 + $0x938] sm:$0xff]
    %v375 = vld [vmem:[%s1 + $0x940] sm:$0xff]
    %v376 = vld [vmem:[%s1 + $0x948] sm:$0xff]
    %v377 = vld [vmem:[%s1 + $0x950] sm:$0xff]
    %v378 = vld [vmem:[%s1 + $0x958] sm:$0xff]
    %v379 = vld [vmem:[%s1 + $0x960] sm:$0xff]
    %v380 = vld [vmem:[%s1 + $0x968] sm:$0xff]
    %v381 = vld [vmem:[%s1 + $0x970] sm:$0xff]
    %v382 = vld [vmem:[%s1 + $0x978] sm:$0xff]
    %v383 = vld [vmem:[%s1 + $0x980] sm:$0xff]
    %v384 = vld [vmem:[%s1 + $0x988] sm:$0xff]
    %v385 = vld [vmem:[%s1 + $0x990] sm:$0xff]
    %v386 = vld [vmem:[%s1 + $0x998] sm:$0xff]
    %v387 = vld [vmem:[%s1 + $0x9a0] sm:$0xff]
    %v388 = vld [vmem:[%s1 + $0x9a8] sm:$0xff]
    %v389 = vld [vmem:[%s1 + $0x9b0] sm:$0xff]
    %v390 = vld [vmem:[%s1 + $0x9b8] sm:$0xff]
    %v391 = vld [vmem:[%s1 + $0x9c0] sm:$0xff]
    %v392 = vld [vmem:[%s1 + $0x9c8] sm:$0xff]
    %v393 = vld [vmem:[%s1 + $0x9d0] sm:$0xff]
    %v394 = vld [vmem:[%s1 + $0x9d8] sm:$0xff]
    %v395 = vld [vmem:[%s1 + $0x9e0] sm:$0xff]
    %v396 = vld [vmem:[%s1 + $0x9e8] sm:$0xff]
    %v397 = vld [vmem:[%s1 + $0x9f0] sm:$0xff]
    %v398 = vld [vmem:[%s1 + $0x9f8] sm:$0xff]
    %v399 = vld [vmem:[%s1 + $0xa00] sm:$0xff]
    %v400 = vld [vmem:[%s1 + $0xa08] sm:$0xff]
    %v401 = vld [vmem:[%s1 + $0xa10] sm:$0xff]
    %v402 = vld [vmem:[%s1 + $0xa18] sm:$0xff]
    %v403 = vld [vmem:[%s1 + $0xa20] sm:$0xff]
    %v404 = vld [vmem:[%s1 + $0xa28] sm:$0xff]
    %v405 = vld [vmem:[%s1 + $0xa30] sm:$0xff]
    %v406 = vld [vmem:[%s1 + $0xa38] sm:$0xff]
    %v407 = vld [vmem:[%s1 + $0xa40] sm:$0xff]
    %v408 = vld [vmem:[%s1 + $0xa48] sm:$0xff]
    %v409 = vld [vmem:[%s1 + $0xa50] sm:$0xff]
    %v410 = vld [vmem:[%s1 + $0xa58] sm:$0xff]
    %v411 = vld [vmem:[%s1 + $0xa60] sm:$0xff]
    %v412 = vld [vmem:[%s1 + $0xa68] sm:$0xff]
    %v413 = vld [vmem:[%s1 + $0xa70] sm:$0xff]
    %v414 = vld [vmem:[%s1 + $0xa78] sm:$0xff]
    %v415 = vld [vmem:[%s1 + $0xa80] sm:$0xff]
    %v416 = vld [vmem:[%s1 + $0xa88] sm:$0xff]
    %v417 = vld [vmem:[%s1 + $0xa90] sm:$0xff]
    %v418 = vld [vmem:[%s1 + $0xa98] sm:$0xff]
    %v419 = vld [vmem:[%s1 + $0xaa0] sm:$0xff]
    %v420 = vld [vmem:[%s1 + $0xaa8] sm:$0xff]
    %v421 = vld [vmem:[%s1 + $0xab0] sm:$0xff]
    %v422 = vld [vmem:[%s1 + $0xab8] sm:$0xff]
    %v423 = vld [vmem:[%s1 + $0xac0] sm:$0xff]
    %v424 = vld [vmem:[%s1 + $0xac8] sm:$0xff]
    %v425 = vld [vmem:[%s1 + $0xad0] sm:$0xff]
    %v426 = vld [vmem:[%s1 + $0xad8] sm:$0xff]
    %v427 = vld [vmem:[%s1 + $0xae0] sm:$0xff]
    %v428 = vld [vmem:[%s1 + $0xae8] sm:$0xff]
    %v429 = vld [vmem:[%s1 + $0xaf0] sm:$0xff]
    %v430 = vld [vmem:[%s1 + $0xaf8] sm:$0xff]
    %v431 = vld [vmem:[%s1 + $0xb00] sm:$0xff]
    %v432 = vld [vmem:[%s1 + $0xb08] sm:$0xff]
    %v433 = vld [vmem:[%s1 + $0xb10] sm:$0xff]
    %v434 = vld [vmem:[%s1 + $0xb18] sm:$0xff]
    %v435 = vld [vmem:[%s1 + $0xb20] sm:$0xff]
    %v436 = vld [vmem:[%s1 + $0xb28] sm:$0xff]
    %v437 = vld [vmem:[%s1 + $0xb30] sm:$0xff]
    %v438 = vld [vmem:[%s1 + $0xb38] sm:$0xff]
    %v439 = vld [vmem:[%s1 + $0xb40] sm:$0xff]
    %v440 = vld [vmem:[%s1 + $0xb48] sm:$0xff]
    %v441 = vld [vmem:[%s1 + $0xb50] sm:$0xff]
    %v442 = vld [vmem:[%s1 + $0xb58] sm:$0xff]
    %v443 = vld [vmem:[%s1 + $0xb60] sm:$0xff]
    %v444 = vld [vmem:[%s1 + $0xb68] sm:$0xff]
    %v445 = vld [vmem:[%s1 + $0xb70] sm:$0xff]
    %v446 = vld [vmem:[%s1 + $0xb78] sm:$0xff]
    %v447 = vld [vmem:[%s1 + $0xb80] sm:$0xff]
    %v448 = vld [vmem:[%s1 + $0xb88] sm:$0xff]
    %v449 = vld [vmem:[%s1 + $0xb90] sm:$0xff]
    %v450 = vld [vmem:[%s1 + $0xb98] sm:$0xff]
    %v451 = vld [vmem:[%s1 + $0xba0] sm:$0xff]
    %v452 = vld [vmem:[%s1 + $0xba8] sm:$0xff]
    %v453 = vld [vmem:[%s1 + $0xbb0] sm:$0xff]
    %v454 = vld [vmem:[%s1 + $0xbb8] sm:$0xff]
    %v455 = vld [vmem:[%s1 + $0xbc0] sm:$0xff]
    %v456 = vld [vmem:[%s1 + $0xbc8] sm:$0xff]
    %v457 = vld [vmem:[%s1 + $0xbd0] sm:$0xff]
    %v458 = vld [vmem:[%s1 + $0xbd8] sm:$0xff]
    %v459 = vld [vmem:[%s1 + $0xbe0] sm:$0xff]
    %v460 = vld [vmem:[%s1 + $0xbe8] sm:$0xff]
    %v461 = vld [vmem:[%s1 + $0xbf0] sm:$0xff]
    %v462 = vld [vmem:[%s1 + $0xbf8] sm:$0xff]
    %v463 = vld [vmem:[%s1 + $0xc00] sm:$0xff]
    %v464 = vld [vmem:[%s1 + $0xc08] sm:$0xff]
    %v465 = vld [vmem:[%s1 + $0xc10] sm:$0xff]
    %v466 = vld [vmem:[%s1 + $0xc18] sm:$0xff]
    %v467 = vld [vmem:[%s1 + $0xc20] sm:$0xff]
    %v468 = vld [vmem:[%s1 + $0xc28] sm:$0xff]
    %v469 = vld [vmem:[%s1 + $0xc30] sm:$0xff]
    %v470 = vld [vmem:[%s1 + $0xc38] sm:$0xff]
    %v471 = vld [vmem:[%s1 + $0xc40] sm:$0xff]
    %v472 = vld [vmem:[%s1 + $0xc48] sm:$0xff]
    %v473 = vld [vmem:[%s1 + $0xc50] sm:$0xff]
    %v474 = vld [vmem:[%s1 + $0xc58] sm:$0xff]
    %v475 = vld [vmem:[%s1 + $0xc60] sm:$0xff]
    %v476 = vld [vmem:[%s1 + $0xc68] sm:$0xff]
    %v477 = vld [vmem:[%s1 + $0xc70] sm:$0xff]
    %v478 = vld [vmem:[%s1 + $0xc78] sm:$0xff]
    %v479 = vld [vmem:[%s1 + $0xc80] sm:$0xff]
    %v480 = vld [vmem:[%s1 + $0xc88] sm:$0xff]
    %v481 = vld [vmem:[%s1 + $0xc90] sm:$0xff]
    %v482 = vld [vmem:[%s1 + $0xc98] sm:$0xff]
    %v483 = vld [vmem:[%s1 + $0xca0] sm:$0xff]
    %v484 = vld [vmem:[%s1 + $0xca8] sm:$0xff]
    %v485 = vld [vmem:[%s1 + $0xcb0] sm:$0xff]
    %v486 = vld [vmem:[%s1 + $0xcb8] sm:$0xff]
    %v487 = vld [vmem:[%s1 + $0xcc0] sm:$0xff]
    %v488 = vld [vmem:[%s1 + $0xcc8] sm:$0xff]
    %v489 = vld [vmem:[%s1 + $0xcd0] sm:$0xff]
    %v490 = vld [vmem:[%s1 + $0xcd8] sm:$0xff]
    %v491 = vld [vmem:[%s1 + $0xce0] sm:$0xff]
    %v492 = vld [vmem:[%s1 + $0xce8] sm:$0xff]
    %v493 = vld [vmem:[%s1 + $0xcf0] sm:$0xff]
    %v494 = vld [vmem:[%s1 + $0xcf8] sm:$0xff]
    %v495 = vld [vmem:[%s1 + $0xd00] sm:$0xff]
    %v496 = vld [vmem:[%s1 + $0xd08] sm:$0xff]
    %v497 = vld [vmem:[%s1 + $0xd10] sm:$0xff]
    %v498 = vld [vmem:[%s1 + $0xd18] sm:$0xff]
    %v499 = vld [vmem:[%s1 + $0xd20] sm:$0xff]
    %v500 = vld [vmem:[%s1 + $0xd28] sm:$0xff]
    %v501 = vld [vmem:[%s1 + $0xd30] sm:$0xff]
    %v502 = vld [vmem:[%s1 + $0xd38] sm:$0xff]
    %v503 = vld [vmem:[%s1 + $0xd40] sm:$0xff]
    %v504 = vld [vmem:[%s1 + $0xd48] sm:$0xff]
    %v505 = vld [vmem:[%s1 + $0xd50] sm:$0xff]
    %v506 = vld [vmem:[%s1 + $0xd58] sm:$0xff]
    %v507 = vld [vmem:[%s1 + $0xd60] sm:$0xff]
    %v508 = vld [vmem:[%s1 + $0xd68] sm:$0xff]
    %v509 = vld [vmem:[%s1 + $0xd70] sm:$0xff]
    %v510 = vld [vmem:[%s1 + $0xd78] sm:$0xff]
    %v511 = vld [vmem:[%s1 + $0xd80] sm:$0xff]
    %v512 = vld [vmem:[%s1 + $0xd88] sm:$0xff]
    %v513 = vld [vmem:[%s1 + $0xd90] sm:$0xff]
    %v514 = vld [vmem:[%s1 + $0xd98] sm:$0xff]
    %v515 = vld [vmem:[%s1 + $0xda0] sm:$0xff]
    %v516 = vld [vmem:[%s1 + $0xda8] sm:$0xff]
    %v517 = vld [vmem:[%s1 + $0xdb0] sm:$0xff]
    %v518 = vld [vmem:[%s1 + $0xdb8] sm:$0xff]
    %v519 = vld [vmem:[%s1 + $0xdc0] sm:$0xff]
    %v520 = vld [vmem:[%s1 + $0xdc8] sm:$0xff]
    %v521 = vld [vmem:[%s1 + $0xdd0] sm:$0xff]
    %v522 = vld [vmem:[%s1 + $0xdd8] sm:$0xff]
    %v523 = vld [vmem:[%s1 + $0xde0] sm:$0xff]
    %v524 = vld [vmem:[%s1 + $0xde8] sm:$0xff]
    %v525 = vld [vmem:[%s1 + $0xdf0] sm:$0xff]
    %v526 = vld [vmem:[%s1 + $0xdf8] sm:$0xff]
    %v527 = vld [vmem:[%s1 + $0xe00] sm:$0xff]
    %v528 = vld [vmem:[%s1 + $0xe08] sm:$0xff]
    %v529 = vld [vmem:[%s1 + $0xe10] sm:$0xff]
    %v530 = vld [vmem:[%s1 + $0xe18] sm:$0xff]
    %v531 = vld [vmem:[%s1 + $0xe20] sm:$0xff]
    %v532 = vld [vmem:[%s1 + $0xe28] sm:$0xff]
    %v533 = vld [vmem:[%s1 + $0xe30] sm:$0xff]
    %v534 = vld [vmem:[%s1 + $0xe38] sm:$0xff]
    %v535 = vld [vmem:[%s1 + $0xe40] sm:$0xff]
    %v536 = vld [vmem:[%s1 + $0xe48] sm:$0xff]
    %v537 = vld [vmem:[%s1 + $0xe50] sm:$0xff]
    %v538 = vld [vmem:[%s1 + $0xe58] sm:$0xff]
    %v539 = vld [vmem:[%s1 + $0xe60] sm:$0xff]
    %v540 = vld [vmem:[%s1 + $0xe68] sm:$0xff]
    %v541 = vld [vmem:[%s1 + $0xe70] sm:$0xff]
    %v542 = vld [vmem:[%s1 + $0xe78] sm:$0xff]
    %v543 = vld [vmem:[%s1 + $0xe80] sm:$0xff]
    %v544 = vld [vmem:[%s1 + $0xe88] sm:$0xff]
    %v545 = vld [vmem:[%s1 + $0xe90] sm:$0xff]
    %v546 = vld [vmem:[%s1 + $0xe98] sm:$0xff]
    %v547 = vld [vmem:[%s1 + $0xea0] sm:$0xff]
    %v548 = vld [vmem:[%s1 + $0xea8] sm:$0xff]
    %v549 = vld [vmem:[%s1 + $0xeb0] sm:$0xff]
    %v550 = vld [vmem:[%s1 + $0xeb8] sm:$0xff]
    %v551 = vld [vmem:[%s1 + $0xec0] sm:$0xff]
    %v552 = vld [vmem:[%s1 + $0xec8] sm:$0xff]
    %v553 = vld [vmem:[%s1 + $0xed0] sm:$0xff]
    %v554 = vld [vmem:[%s1 + $0xed8] sm:$0xff]
    %v555 = vld [vmem:[%s1 + $0xee0] sm:$0xff]
    %v556 = vld [vmem:[%s1 + $0xee8] sm:$0xff]
    %v557 = vld [vmem:[%s1 + $0xef0] sm:$0xff]
    %v558 = vld [vmem:[%s1 + $0xef8] sm:$0xff]
    %v559 = vld [vmem:[%s1 + $0xf00] sm:$0xff]
    %v560 = vld [vmem:[%s1 + $0xf08] sm:$0xff]
    %v561 = vld [vmem:[%s1 + $0xf10] sm:$0xff]
    %v562 = vld [vmem:[%s1 + $0xf18] sm:$0xff]
    %v563 = vld [vmem:[%s1 + $0xf20] sm:$0xff]
    %v564 = vld [vmem:[%s1 + $0xf28] sm:$0xff]
    %v565 = vld [vmem:[%s1 + $0xf30] sm:$0xff]
    %v566 = vld [vmem:[%s1 + $0xf38] sm:$0xff]
    %v567 = vld [vmem:[%s1 + $0xf40] sm:$0xff]
    %v568 = vld [vmem:[%s1 + $0xf48] sm:$0xff]
    %v569 = vld [vmem:[%s1 + $0xf50] sm:$0xff]
    %v570 = vld [vmem:[%s1 + $0xf58] sm:$0xff]
    %v571 = vld [vmem:[%s1 + $0xf60] sm:$0xff]
    %v572 = vld [vmem:[%s1 + $0xf68] sm:$0xff]
    %v573 = vld [vmem:[%s1 + $0xf70] sm:$0xff]
    %v574 = vld [vmem:[%s1 + $0xf78] sm:$0xff]
    %v575 = vld [vmem:[%s1 + $0xf80] sm:$0xff]
    %v576 = vld [vmem:[%s1 + $0xf88] sm:$0xff]
    %v577 = vld [vmem:[%s1 + $0xf90] sm:$0xff]
    %v578 = vld [vmem:[%s1 + $0xf98] sm:$0xff]
    %v579 = vld [vmem:[%s1 + $0xfa0] sm:$0xff]
    %v580 = vld [vmem:[%s1 + $0xfa8] sm:$0xff]
    %v581 = vld [vmem:[%s1 + $0xfb0] sm:$0xff]
    %v582 = vld [vmem:[%s1 + $0xfb8] sm:$0xff]
    %v583 = vld [vmem:[%s1 + $0xfc0] sm:$0xff]
    %v584 = vld [vmem:[%s1 + $0xfc8] sm:$0xff]
    %v585 = vld [vmem:[%s1 + $0xfd0] sm:$0xff]
    %v586 = vld [vmem:[%s1 + $0xfd8] sm:$0xff]
    %v587 = vld [vmem:[%s1 + $0xfe0] sm:$0xff]
    %v588 = vld [vmem:[%s1 + $0xfe8] sm:$0xff]
    %v589 = vld [vmem:[%s1 + $0xff0] sm:$0xff]
    %v590 = vld [vmem:[%s1 + $0xff8] sm:$0xff]
    %v591 = vld [vmem:[%s1 + $0x1000] sm:$0xff]
    %v592 = vld [vmem:[%s1 + $0x1008] sm:$0xff]
    %v593 = vld [vmem:[%s1 + $0x1010] sm:$0xff]
    %v594 = vld [vmem:[%s1 + $0x1018] sm:$0xff]
    %v595 = vld [vmem:[%s1 + $0x1020] sm:$0xff]
    %v596 = vld [vmem:[%s1 + $0x1028] sm:$0xff]
    %v597 = vld [vmem:[%s1 + $0x1030] sm:$0xff]
    %v598 = vld [vmem:[%s1 + $0x1038] sm:$0xff]
    %v599 = vld [vmem:[%s1 + $0x1040] sm:$0xff]
    %v600 = vld [vmem:[%s1 + $0x1048] sm:$0xff]
    %v601 = vld [vmem:[%s1 + $0x1050] sm:$0xff]
    %v602 = vld [vmem:[%s1 + $0x1058] sm:$0xff]
    %v603 = vld [vmem:[%s1 + $0x1060] sm:$0xff]
    %v604 = vld [vmem:[%s1 + $0x1068] sm:$0xff]
    %v605 = vld [vmem:[%s1 + $0x1070] sm:$0xff]
    %v606 = vld [vmem:[%s1 + $0x1078] sm:$0xff]
    %v607 = vld [vmem:[%s1 + $0x1080] sm:$0xff]
    %v608 = vld [vmem:[%s1 + $0x1088] sm:$0xff]
    %v609 = vld [vmem:[%s1 + $0x1090] sm:$0xff]
    %v610 = vld [vmem:[%s1 + $0x1098] sm:$0xff]
    %v611 = vld [vmem:[%s1 + $0x10a0] sm:$0xff]
    %v612 = vld [vmem:[%s1 + $0x10a8] sm:$0xff]
    %v613 = vld [vmem:[%s1 + $0x10b0] sm:$0xff]
    %v614 = vld [vmem:[%s1 + $0x10b8] sm:$0xff]
    %v615 = vld [vmem:[%s1 + $0x10c0] sm:$0xff]
    %v616 = vld [vmem:[%s1 + $0x10c8] sm:$0xff]
    %v617 = vld [vmem:[%s1 + $0x10d0] sm:$0xff]
    %v618 = vld [vmem:[%s1 + $0x10d8] sm:$0xff]
    %v619 = vld [vmem:[%s1 + $0x10e0] sm:$0xff]
    %v620 = vld [vmem:[%s1 + $0x10e8] sm:$0xff]
    %v621 = vld [vmem:[%s1 + $0x10f0] sm:$0xff]
    %v622 = vld [vmem:[%s1 + $0x10f8] sm:$0xff]
    %v623 = vld [vmem:[%s1 + $0x1100] sm:$0xff]
    %v624 = vld [vmem:[%s1 + $0x1108] sm:$0xff]
    %v625 = vld [vmem:[%s1 + $0x1110] sm:$0xff]
    %v626 = vld [vmem:[%s1 + $0x1118] sm:$0xff]
    %v627 = vld [vmem:[%s1 + $0x1120] sm:$0xff]
    %v628 = vld [vmem:[%s1 + $0x1128] sm:$0xff]
    %v629 = vld [vmem:[%s1 + $0x1130] sm:$0xff]
    %v630 = vld [vmem:[%s1 + $0x1138] sm:$0xff]
    %v631 = vld [vmem:[%s1 + $0x1140] sm:$0xff]
    %v632 = vld [vmem:[%s1 + $0x1148] sm:$0xff]
    %v633 = vld [vmem:[%s1 + $0x1150] sm:$0xff]
    %v634 = vld [vmem:[%s1 + $0x1158] sm:$0xff]
    %v635 = vld [vmem:[%s1 + $0x1160] sm:$0xff]
    %v636 = vld [vmem:[%s1 + $0x1168] sm:$0xff]
    %v637 = vld [vmem:[%s1 + $0x1170] sm:$0xff]
    %v638 = vld [vmem:[%s1 + $0x1178] sm:$0xff]
    %v639 = vld [vmem:[%s1 + $0x1180] sm:$0xff]
    %v640 = vld [vmem:[%s1 + $0x1188] sm:$0xff]
    %v641 = vld [vmem:[%s1 + $0x1190] sm:$0xff]
    %v642 = vld [vmem:[%s1 + $0x1198] sm:$0xff]
    %v643 = vld [vmem:[%s1 + $0x11a0] sm:$0xff]
    %v644 = vld [vmem:[%s1 + $0x11a8] sm:$0xff]
    %v645 = vld [vmem:[%s1 + $0x11b0] sm:$0xff]
    %v646 = vld [vmem:[%s1 + $0x11b8] sm:$0xff]
    %v647 = vld [vmem:[%s1 + $0x11c0] sm:$0xff]
    %v648 = vld [vmem:[%s1 + $0x11c8] sm:$0xff]
    %v649 = vld [vmem:[%s1 + $0x11d0] sm:$0xff]
    %v650 = vld [vmem:[%s1 + $0x11d8] sm:$0xff]
    %v651 = vld [vmem:[%s1 + $0x11e0] sm:$0xff]
    %v652 = vld [vmem:[%s1 + $0x11e8] sm:$0xff]
    %v653 = vld [vmem:[%s1 + $0x11f0] sm:$0xff]
    %v654 = vld [vmem:[%s1 + $0x11f8] sm:$0xff]
    %v655 = vld [vmem:[%s1 + $0x1200] sm:$0xff]
    %v656 = vld [vmem:[%s1 + $0x1208] sm:$0xff]
    %v657 = vld [vmem:[%s1 + $0x1210] sm:$0xff]
    %v658 = vld [vmem:[%s1 + $0x1218] sm:$0xff]
    %v659 = vld [vmem:[%s1 + $0x1220] sm:$0xff]
    %v660 = vld [vmem:[%s1 + $0x1228] sm:$0xff]
    %v661 = vld [vmem:[%s1 + $0x1230] sm:$0xff]
    %v662 = vld [vmem:[%s1 + $0x1238] sm:$0xff]
    %v663 = vld [vmem:[%s1 + $0x1240] sm:$0xff]
    %v664 = vld [vmem:[%s1 + $0x1248] sm:$0xff]
    %v665 = vld [vmem:[%s1 + $0x1250] sm:$0xff]
    %v666 = vld [vmem:[%s1 + $0x1258] sm:$0xff]
    %v667 = vld [vmem:[%s1 + $0x1260] sm:$0xff]
    %v668 = vld [vmem:[%s1 + $0x1268] sm:$0xff]
    %v669 = vld [vmem:[%s1 + $0x1270] sm:$0xff]
    %v670 = vld [vmem:[%s1 + $0x1278] sm:$0xff]
    %v671 = vld [vmem:[%s1 + $0x1280] sm:$0xff]
    %v672 = vld [vmem:[%s1 + $0x1288] sm:$0xff]
    %v673 = vld [vmem:[%s1 + $0x1290] sm:$0xff]
    %v674 = vld [vmem:[%s1 + $0x1298] sm:$0xff]
    %v675 = vld [vmem:[%s1 + $0x12a0] sm:$0xff]
    %v676 = vld [vmem:[%s1 + $0x12a8] sm:$0xff]
    %v677 = vld [vmem:[%s1 + $0x12b0] sm:$0xff]
    %v678 = vld [vmem:[%s1 + $0x12b8] sm:$0xff]
    %v679 = vld [vmem:[%s1 + $0x12c0] sm:$0xff]
    %v680 = vld [vmem:[%s1 + $0x12c8] sm:$0xff]
    %v681 = vld [vmem:[%s1 + $0x12d0] sm:$0xff]
    %v682 = vld [vmem:[%s1 + $0x12d8] sm:$0xff]
    %v683 = vld [vmem:[%s1 + $0x12e0] sm:$0xff]
    %v684 = vld [vmem:[%s1 + $0x12e8] sm:$0xff]
    %v685 = vld [vmem:[%s1 + $0x12f0] sm:$0xff]
    %v686 = vld [vmem:[%s1 + $0x12f8] sm:$0xff]
    %v687 = vld [vmem:[%s1 + $0x1300] sm:$0xff]
    %v688 = vld [vmem:[%s1 + $0x1308] sm:$0xff]
    %v689 = vld [vmem:[%s1 + $0x1310] sm:$0xff]
    %v690 = vld [vmem:[%s1 + $0x1318] sm:$0xff]
    %v691 = vld [vmem:[%s1 + $0x1320] sm:$0xff]
    %v692 = vld [vmem:[%s1 + $0x1328] sm:$0xff]
    %v693 = vld [vmem:[%s1 + $0x1330] sm:$0xff]
    %v694 = vld [vmem:[%s1 + $0x1338] sm:$0xff]
    %v695 = vld [vmem:[%s1 + $0x1340] sm:$0xff]
    %v696 = vld [vmem:[%s1 + $0x1348] sm:$0xff]
    %v697 = vld [vmem:[%s1 + $0x1350] sm:$0xff]
    %v698 = vld [vmem:[%s1 + $0x1358] sm:$0xff]
    %v699 = vld [vmem:[%s1 + $0x1360] sm:$0xff]
    %v700 = vld [vmem:[%s1 + $0x1368] sm:$0xff]
    %v701 = vld [vmem:[%s1 + $0x1370] sm:$0xff]
    %v702 = vld [vmem:[%s1 + $0x1378] sm:$0xff]
    %v703 = vld [vmem:[%s1 + $0x1380] sm:$0xff]
    %v704 = vld [vmem:[%s1 + $0x1388] sm:$0xff]
    %v705 = vld [vmem:[%s1 + $0x1390] sm:$0xff]
    %v706 = vld [vmem:[%s1 + $0x1398] sm:$0xff]
    %v707 = vld [vmem:[%s1 + $0x13a0] sm:$0xff]
    %v708 = vld [vmem:[%s1 + $0x13a8] sm:$0xff]
    %v709 = vld [vmem:[%s1 + $0x13b0] sm:$0xff]
    %v710 = vld [vmem:[%s1 + $0x13b8] sm:$0xff]
    %v711 = vld [vmem:[%s1 + $0x13c0] sm:$0xff]
    %v712 = vld [vmem:[%s1 + $0x13c8] sm:$0xff]
    %v713 = vld [vmem:[%s1 + $0x13d0] sm:$0xff]
    %v714 = vld [vmem:[%s1 + $0x13d8] sm:$0xff]
    %v715 = vld [vmem:[%s1 + $0x13e0] sm:$0xff]
    %v716 = vld [vmem:[%s1 + $0x13e8] sm:$0xff]
    %v717 = vld [vmem:[%s1 + $0x13f0] sm:$0xff]
    %v718 = vld [vmem:[%s1 + $0x13f8] sm:$0xff]
    %v719 = vld [vmem:[%s1 + $0x1400] sm:$0xff]
    %v720 = vld [vmem:[%s1 + $0x1408] sm:$0xff]
    %v721 = vld [vmem:[%s1 + $0x1410] sm:$0xff]
    %v722 = vld [vmem:[%s1 + $0x1418] sm:$0xff]
    %v723 = vld [vmem:[%s1 + $0x1420] sm:$0xff]
    %v724 = vld [vmem:[%s1 + $0x1428] sm:$0xff]
    %v725 = vld [vmem:[%s1 + $0x1430] sm:$0xff]
    %v726 = vld [vmem:[%s1 + $0x1438] sm:$0xff]
    %v727 = vld [vmem:[%s1 + $0x1440] sm:$0xff]
    %v728 = vld [vmem:[%s1 + $0x1448] sm:$0xff]
    %v729 = vld [vmem:[%s1 + $0x1450] sm:$0xff]
    %v730 = vld [vmem:[%s1 + $0x1458] sm:$0xff]
    %v731 = vld [vmem:[%s1 + $0x1460] sm:$0xff]
    %v732 = vld [vmem:[%s1 + $0x1468] sm:$0xff]
    %v733 = vld [vmem:[%s1 + $0x1470] sm:$0xff]
    %v734 = vld [vmem:[%s1 + $0x1478] sm:$0xff]
    %v735 = vld [vmem:[%s1 + $0x1480] sm:$0xff]
    %v736 = vld [vmem:[%s1 + $0x1488] sm:$0xff]
    %v737 = vld [vmem:[%s1 + $0x1490] sm:$0xff]
    %v738 = vld [vmem:[%s1 + $0x1498] sm:$0xff]
    %v739 = vld [vmem:[%s1 + $0x14a0] sm:$0xff]
    %v740 = vld [vmem:[%s1 + $0x14a8] sm:$0xff]
    %v741 = vld [vmem:[%s1 + $0x14b0] sm:$0xff]
    %v742 = vld [vmem:[%s1 + $0x14b8] sm:$0xff]
    %v743 = vld [vmem:[%s1 + $0x14c0] sm:$0xff]
    %v744 = vld [vmem:[%s1 + $0x14c8] sm:$0xff]
    %v745 = vld [vmem:[%s1 + $0x14d0] sm:$0xff]
    %v746 = vld [vmem:[%s1 + $0x14d8] sm:$0xff]
    %v747 = vld [vmem:[%s1 + $0x14e0] sm:$0xff]
    %v748 = vld [vmem:[%s1 + $0x14e8] sm:$0xff]
    %v749 = vld [vmem:[%s1 + $0x14f0] sm:$0xff]
    %v750 = vld [vmem:[%s1 + $0x14f8] sm:$0xff]
    %v751 = vld [vmem:[%s1 + $0x1500] sm:$0xff]
    %v752 = vld [vmem:[%s1 + $0x1508] sm:$0xff]
    %v753 = vld [vmem:[%s1 + $0x1510] sm:$0xff]
    %v754 = vld [vmem:[%s1 + $0x1518] sm:$0xff]
    %v755 = vld [vmem:[%s1 + $0x1520] sm:$0xff]
    %v756 = vld [vmem:[%s1 + $0x1528] sm:$0xff]
    %v757 = vld [vmem:[%s1 + $0x1530] sm:$0xff]
    %v758 = vld [vmem:[%s1 + $0x1538] sm:$0xff]
    %v759 = vld [vmem:[%s1 + $0x1540] sm:$0xff]
    %v760 = vld [vmem:[%s1 + $0x1548] sm:$0xff]
    %v761 = vld [vmem:[%s1 + $0x1550] sm:$0xff]
    %v762 = vld [vmem:[%s1 + $0x1558] sm:$0xff]
    %v763 = vld [vmem:[%s1 + $0x1560] sm:$0xff]
    %v764 = vld [vmem:[%s1 + $0x1568] sm:$0xff]
    %v765 = vld [vmem:[%s2] sm:$0x7f]
    %v767 = vlaneseq
    %v768 = vshrl.u32 %v767, 7
    %v769 = vsub.s32 0, %v768
    %v770 = vrot.slane %v765, %v769
    %v771 = vlaneseq
    %v772 = vshrl.u32 %v771, 7
    %v773 = vsub.s32 1, %v772
    %v774 = vrot.slane %v765, %v773
    %v775 = vlaneseq
    %v776 = vshrl.u32 %v775, 7
    %v777 = vsub.s32 2, %v776
    %v778 = vrot.slane %v765, %v777
    %v779 = vlaneseq
    %v780 = vshrl.u32 %v779, 7
    %v781 = vsub.s32 3, %v780
    %v782 = vrot.slane %v765, %v781
    %v783 = vlaneseq
    %v784 = vshrl.u32 %v783, 7
    %v785 = vsub.s32 4, %v784
    %v786 = vrot.slane %v765, %v785
    %v787 = vlaneseq
    %v788 = vshrl.u32 %v787, 7
    %v789 = vsub.s32 5, %v788
    %v790 = vrot.slane %v765, %v789
    %v791 = vlaneseq
    %v792 = vshrl.u32 %v791, 7
    %v793 = vsub.s32 6, %v792
    %v794 = vrot.slane %v765, %v793
    %v804 = vcombine.high %v77, %v77
    %v806 = vunpack.c.l.s4 1983009808
    %v807 = vunpack.c.0.s8 %v806
    %v808 = vlaneseq
    %v809 = vshrl.u32 %v808, 7
    %v810 = vsub.s32 %v807, %v809
    %v811 = vrot.slane %v77, %v810
    %v813 = vunpack.c.l.s4 1983009808
    %v814 = vunpack.c.0.s8 %v813
    %v815 = vlaneseq
    %v816 = vshrl.u32 %v815, 7
    %v817 = vsub.s32 %v814, %v816
    %v818 = vrot.slane %v804, %v817
    %v819 = vcombine.high %v811, %v811
    %v820 = vcombine.high %v818, %v818
    %v821 = vcombine.high %v78, %v78
    %v823 = vunpack.c.l.s4 1983009808
    %v824 = vunpack.c.0.s8 %v823
    %v825 = vlaneseq
    %v826 = vshrl.u32 %v825, 7
    %v827 = vsub.s32 %v824, %v826
    %v828 = vrot.slane %v78, %v827
    %v830 = vunpack.c.l.s4 1983009808
    %v831 = vunpack.c.0.s8 %v830
    %v832 = vlaneseq
    %v833 = vshrl.u32 %v832, 7
    %v834 = vsub.s32 %v831, %v833
    %v835 = vrot.slane %v821, %v834
    %v836 = vcombine.high %v828, %v828
    %vm843 = vcmask 130048
    %v844 = vsel %vm843, %v835, 0
    %846 = vmatprep.subr.mxu0 %v185
    %847 = vmatpush1.msra.mxu0 %v184
    %848 = vmatprep.subr.mxu0 %v178
    %849 = vmatpush1.msra.mxu0 %v177
    %850 = vmatprep.subr.mxu0 %v171
    %851 = vmatpush1.msra.mxu0 %v170
    %852 = vmatprep.subr.mxu0 %v164
    %853 = vmatpush1.msra.mxu0 %v163
    %854 = vmatprep.subr.mxu0 %v157
    %855 = vmatpush1.msra.mxu0 %v156
    %856 = vmatprep.subr.mxu0 %v150
    %857 = vmatpush1.msra.mxu0 %v149
    %858 = vmatprep.subr.mxu0 %v143
    %859 = vmatpush1.msra.mxu0 %v142
    %860 = vmatprep.subr.mxu0 %v136
    %861 = vmatpush1.msra.mxu0 %v135
    %862 = vmatprep.subr.mxu0 %v129
    %863 = vmatpush1.msra.mxu0 %v128
    %864 = vmatprep.subr.mxu0 %v122
    %865 = vmatpush1.msra.mxu0 %v121
    %866 = vmatprep.subr.mxu0 %v115
    %867 = vmatpush1.msra.mxu0 %v114
    %868 = vmatprep.subr.mxu0 %v108
    %869 = vmatpush1.msra.mxu0 %v107
    %870 = vmatprep.subr.mxu0 %v101
    %871 = vmatpush1.msra.mxu0 %v100
    %872 = vmatprep.subr.mxu0 %v94
    %873 = vmatpush1.msra.mxu0 %v93
    %874 = vmatprep.subr.mxu0 %v87
    %875 = vmatpush1.msra.mxu0 %v86
    %876 = vmatprep.subr.mxu0 %v80
    %877 = vmatpush1.msra.mxu0 %v79
    %878 = vmatprep.subr.mxu0 %v297
    %879 = vmatpush2.msra.mxu0 %v296
    %880 = vmatprep.subr.mxu0 %v290
    %881 = vmatpush2.msra.mxu0 %v289
    %882 = vmatprep.subr.mxu0 %v283
    %883 = vmatpush2.msra.mxu0 %v282
    %884 = vmatprep.subr.mxu0 %v276
    %885 = vmatpush2.msra.mxu0 %v275
    %886 = vmatprep.subr.mxu0 %v269
    %887 = vmatpush2.msra.mxu0 %v268
    %888 = vmatprep.subr.mxu0 %v262
    %889 = vmatpush2.msra.mxu0 %v261
    %890 = vmatprep.subr.mxu0 %v255
    %891 = vmatpush2.msra.mxu0 %v254
    %892 = vmatprep.subr.mxu0 %v248
    %893 = vmatpush2.msra.mxu0 %v247
    %894 = vmatprep.subr.mxu0 %v241
    %895 = vmatpush2.msra.mxu0 %v240
    %896 = vmatprep.subr.mxu0 %v234
    %897 = vmatpush2.msra.mxu0 %v233
    %898 = vmatprep.subr.mxu0 %v227
    %899 = vmatpush2.msra.mxu0 %v226
    %900 = vmatprep.subr.mxu0 %v220
    %901 = vmatpush2.msra.mxu0 %v219
    %902 = vmatprep.subr.mxu0 %v213
    %903 = vmatpush2.msra.mxu0 %v212
    %904 = vmatprep.subr.mxu0 %v206
    %905 = vmatpush2.msra.mxu0 %v205
    %906 = vmatprep.subr.mxu0 %v199
    %907 = vmatpush2.msra.mxu0 %v198
    %908 = vmatprep.subr.mxu0 %v192
    %909 = vmatpush2.msra.mxu0 %v191
    %910 = vmatprep.mubr.f32.mxu0 %v819
    %911 = vmatmul.mubr.f32.gmra.mxu0 %v811
    %v912 = vpop.f32.mrf.mxu0
    %v913 = vadd.f32 %v770, %v912
    %v914 = vpop.f32.mrf.mxu0
    %v915 = vadd.f32 %v774, %v914
    %916 = vdwg.mxu0
    %917 = vmatprep.subr.mxu0 %v409
    %918 = vmatpush1.msra.mxu0 %v408
    %919 = vmatprep.subr.mxu0 %v402
    %920 = vmatpush1.msra.mxu0 %v401
    %921 = vmatprep.subr.mxu0 %v395
    %922 = vmatpush1.msra.mxu0 %v394
    %923 = vmatprep.subr.mxu0 %v388
    %924 = vmatpush1.msra.mxu0 %v387
    %925 = vmatprep.subr.mxu0 %v381
    %926 = vmatpush1.msra.mxu0 %v380
    %927 = vmatprep.subr.mxu0 %v374
    %928 = vmatpush1.msra.mxu0 %v373
    %929 = vmatprep.subr.mxu0 %v367
    %930 = vmatpush1.msra.mxu0 %v366
    %931 = vmatprep.subr.mxu0 %v360
    %932 = vmatpush1.msra.mxu0 %v359
    %933 = vmatprep.subr.mxu0 %v353
    %934 = vmatpush1.msra.mxu0 %v352
    %935 = vmatprep.subr.mxu0 %v346
    %936 = vmatpush1.msra.mxu0 %v345
    %937 = vmatprep.subr.mxu0 %v339
    %938 = vmatpush1.msra.mxu0 %v338
    %939 = vmatprep.subr.mxu0 %v332
    %940 = vmatpush1.msra.mxu0 %v331
    %941 = vmatprep.subr.mxu0 %v325
    %942 = vmatpush1.msra.mxu0 %v324
    %943 = vmatprep.subr.mxu0 %v318
    %944 = vmatpush1.msra.mxu0 %v317
    %945 = vmatprep.subr.mxu0 %v311
    %946 = vmatpush1.msra.mxu0 %v310
    %947 = vmatprep.subr.mxu0 %v304
    %948 = vmatpush1.msra.mxu0 %v303
    %949 = vmatprep.subr.mxu0 %v521
    %950 = vmatpush2.msra.mxu0 %v520
    %951 = vmatprep.subr.mxu0 %v514
    %952 = vmatpush2.msra.mxu0 %v513
    %953 = vmatprep.subr.mxu0 %v507
    %954 = vmatpush2.msra.mxu0 %v506
    %955 = vmatprep.subr.mxu0 %v500
    %956 = vmatpush2.msra.mxu0 %v499
    %957 = vmatprep.subr.mxu0 %v493
    %958 = vmatpush2.msra.mxu0 %v492
    %959 = vmatprep.subr.mxu0 %v486
    %960 = vmatpush2.msra.mxu0 %v485
    %961 = vmatprep.subr.mxu0 %v479
    %962 = vmatpush2.msra.mxu0 %v478
    %963 = vmatprep.subr.mxu0 %v472
    %964 = vmatpush2.msra.mxu0 %v471
    %965 = vmatprep.subr.mxu0 %v465
    %966 = vmatpush2.msra.mxu0 %v464
    %967 = vmatprep.subr.mxu0 %v458
    %968 = vmatpush2.msra.mxu0 %v457
    %969 = vmatprep.subr.mxu0 %v451
    %970 = vmatpush2.msra.mxu0 %v450
    %971 = vmatprep.subr.mxu0 %v444
    %972 = vmatpush2.msra.mxu0 %v443
    %973 = vmatprep.subr.mxu0 %v437
    %974 = vmatpush2.msra.mxu0 %v436
    %975 = vmatprep.subr.mxu0 %v430
    %976 = vmatpush2.msra.mxu0 %v429
    %977 = vmatprep.subr.mxu0 %v423
    %978 = vmatpush2.msra.mxu0 %v422
    %979 = vmatprep.subr.mxu0 %v416
    %980 = vmatpush2.msra.mxu0 %v415
    %981 = vmatprep.mubr.f32.mxu0 %v820
    %982 = vmatmul.mubr.f32.gmra.mxu0 %v818
    %v983 = vpop.f32.mrf.mxu0
    %v984 = vadd.f32 %v913, %v983
    %v985 = vpop.f32.mrf.mxu0
    %v986 = vadd.f32 %v915, %v985
    %987 = vdwg.mxu0
    %988 = vmatprep.subr.mxu0 %v633
    %989 = vmatpush1.msra.mxu0 %v632
    %990 = vmatprep.subr.mxu0 %v626
    %991 = vmatpush1.msra.mxu0 %v625
    %992 = vmatprep.subr.mxu0 %v619
    %993 = vmatpush1.msra.mxu0 %v618
    %994 = vmatprep.subr.mxu0 %v612
    %995 = vmatpush1.msra.mxu0 %v611
    %996 = vmatprep.subr.mxu0 %v605
    %997 = vmatpush1.msra.mxu0 %v604
    %998 = vmatprep.subr.mxu0 %v598
    %999 = vmatpush1.msra.mxu0 %v597
    %1000 = vmatprep.subr.mxu0 %v591
    %1001 = vmatpush1.msra.mxu0 %v590
    %1002 = vmatprep.subr.mxu0 %v584
    %1003 = vmatpush1.msra.mxu0 %v583
    %1004 = vmatprep.subr.mxu0 %v577
    %1005 = vmatpush1.msra.mxu0 %v576
    %1006 = vmatprep.subr.mxu0 %v570
    %1007 = vmatpush1.msra.mxu0 %v569
    %1008 = vmatprep.subr.mxu0 %v563
    %1009 = vmatpush1.msra.mxu0 %v562
    %1010 = vmatprep.subr.mxu0 %v556
    %1011 = vmatpush1.msra.mxu0 %v555
    %1012 = vmatprep.subr.mxu0 %v549
    %1013 = vmatpush1.msra.mxu0 %v548
    %1014 = vmatprep.subr.mxu0 %v542
    %1015 = vmatpush1.msra.mxu0 %v541
    %1016 = vmatprep.subr.mxu0 %v535
    %1017 = vmatpush1.msra.mxu0 %v534
    %1018 = vmatprep.subr.mxu0 %v528
    %1019 = vmatpush1.msra.mxu0 %v527
    %1020 = vmatprep.subr.mxu0 %v745
    %1021 = vmatpush2.msra.mxu0 %v744
    %1022 = vmatprep.subr.mxu0 %v738
    %1023 = vmatpush2.msra.mxu0 %v737
    %1024 = vmatprep.subr.mxu0 %v731
    %1025 = vmatpush2.msra.mxu0 %v730
    %1026 = vmatprep.subr.mxu0 %v724
    %1027 = vmatpush2.msra.mxu0 %v723
    %1028 = vmatprep.subr.mxu0 %v717
    %1029 = vmatpush2.msra.mxu0 %v716
    %1030 = vmatprep.subr.mxu0 %v710
    %1031 = vmatpush2.msra.mxu0 %v709
    %1032 = vmatprep.subr.mxu0 %v703
    %1033 = vmatpush2.msra.mxu0 %v702
    %1034 = vmatprep.subr.mxu0 %v696
    %1035 = vmatpush2.msra.mxu0 %v695
    %1036 = vmatprep.subr.mxu0 %v689
    %1037 = vmatpush2.msra.mxu0 %v688
    %1038 = vmatprep.subr.mxu0 %v682
    %1039 = vmatpush2.msra.mxu0 %v681
    %1040 = vmatprep.subr.mxu0 %v675
    %1041 = vmatpush2.msra.mxu0 %v674
    %1042 = vmatprep.subr.mxu0 %v668
    %1043 = vmatpush2.msra.mxu0 %v667
    %1044 = vmatprep.subr.mxu0 %v661
    %1045 = vmatpush2.msra.mxu0 %v660
    %1046 = vmatprep.subr.mxu0 %v654
    %1047 = vmatpush2.msra.mxu0 %v653
    %1048 = vmatprep.subr.mxu0 %v647
    %1049 = vmatpush2.msra.mxu0 %v646
    %1050 = vmatprep.subr.mxu0 %v640
    %1051 = vmatpush2.msra.mxu0 %v639
    %1052 = vmatprep.mubr.f32.mxu0 %v836
    %1053 = vmatmul.mubr.f32.gmra.mxu0 %v828
    %v1054 = vpop.f32.mrf.mxu0
    %v1055 = vadd.f32 %v984, %v1054
    %v1056 = vpop.f32.mrf.mxu0
    %v1057 = vadd.f32 %v986, %v1056
    %1058 = vdwg.mxu0
    %1059 = vmatprep.subr.mxu0 0.0
    %1060 = vmatpush1.msra.mxu0 0.0
    %1061 = vmatprep.subr.mxu0 0.0
    %1062 = vmatpush1.msra.mxu0 0.0
    %1063 = vmatprep.subr.mxu0 0.0
    %1064 = vmatpush1.msra.mxu0 0.0
    %1065 = vmatprep.subr.mxu0 0.0
    %1066 = vmatpush1.msra.mxu0 0.0
    %1067 = vmatprep.subr.mxu0 0.0
    %1068 = vmatpush1.msra.mxu0 0.0
    %1069 = vmatprep.subr.mxu0 0.0
    %1070 = vmatpush1.msra.mxu0 0.0
    %1071 = vmatprep.subr.mxu0 0.0
    %1072 = vmatpush1.msra.mxu0 0.0
    %1073 = vmatprep.subr.mxu0 0.0
    %1074 = vmatpush1.msra.mxu0 0.0
    %1075 = vmatprep.subr.mxu0 0.0
    %1076 = vmatpush1.msra.mxu0 0.0
    %1077 = vmatprep.subr.mxu0 0.0
    %1078 = vmatpush1.msra.mxu0 0.0
    %1079 = vmatprep.subr.mxu0 0.0
    %1080 = vmatpush1.msra.mxu0 0.0
    %1081 = vmatprep.subr.mxu0 0.0
    %1082 = vmatpush1.msra.mxu0 0.0
    %1083 = vmatprep.subr.mxu0 0.0
    %1084 = vmatpush1.msra.mxu0 0.0
    %1085 = vmatprep.subr.mxu0 0.0
    %1086 = vmatpush1.msra.mxu0 0.0
    %1087 = vmatprep.subr.mxu0 %v759
    %1088 = vmatpush1.msra.mxu0 %v758
    %1089 = vmatprep.subr.mxu0 %v752
    %1090 = vmatpush1.msra.mxu0 %v751
    %1091 = vmatprep.subr.mxu0 0.0
    %1092 = vmatpush2.msra.mxu0 0.0
    %1093 = vmatprep.subr.mxu0 0.0
    %1094 = vmatpush2.msra.mxu0 0.0
    %1095 = vmatprep.subr.mxu0 0.0
    %1096 = vmatpush2.msra.mxu0 0.0
    %1097 = vmatprep.subr.mxu0 0.0
    %1098 = vmatpush2.msra.mxu0 0.0
    %1099 = vmatprep.subr.mxu0 0.0
    %1100 = vmatpush2.msra.mxu0 0.0
    %1101 = vmatprep.subr.mxu0 0.0
    %1102 = vmatpush2.msra.mxu0 0.0
    %1103 = vmatprep.subr.mxu0 0.0
    %1104 = vmatpush2.msra.mxu0 0.0
    %1105 = vmatprep.subr.mxu0 0.0
    %1106 = vmatpush2.msra.mxu0 0.0
    %1107 = vmatprep.subr.mxu0 0.0
    %1108 = vmatpush2.msra.mxu0 0.0
    %1109 = vmatprep.subr.mxu0 0.0
    %1110 = vmatpush2.msra.mxu0 0.0
    %1111 = vmatprep.subr.mxu0 0.0
    %1112 = vmatpush2.msra.mxu0 0.0
    %1113 = vmatprep.subr.mxu0 0.0
    %1114 = vmatpush2.msra.mxu0 0.0
    %1115 = vmatprep.subr.mxu0 0.0
    %1116 = vmatpush2.msra.mxu0 0.0
    %1117 = vmatprep.subr.mxu0 0.0
    %1118 = vmatpush2.msra.mxu0 0.0
    %1119 = vmatprep.subr.mxu0 0.0
    %1120 = vmatpush2.msra.mxu0 0.0
    %1121 = vmatprep.subr.mxu0 0.0
    %1122 = vmatpush2.msra.mxu0 0.0
    %1123 = vmatprep.mubr.f32.mxu0 0.0
    %1124 = vmatmul.mubr.f32.gmra.mxu0 %v844
    %v1125 = vpop.f32.mrf.mxu0
    %v1126 = vadd.f32 %v1055, %v1125
    %v1127 = vpop.f32.mrf.mxu0
    %v1128 = vadd.f32 %v1057, %v1127
    %1129 = vdwg.mxu0
    %1130 = vmatprep.subr.mxu0 %v187
    %1131 = vmatpush1.msra.mxu0 %v186
    %1132 = vmatprep.subr.mxu0 %v180
    %1133 = vmatpush1.msra.mxu0 %v179
    %1134 = vmatprep.subr.mxu0 %v173
    %1135 = vmatpush1.msra.mxu0 %v172
    %1136 = vmatprep.subr.mxu0 %v166
    %1137 = vmatpush1.msra.mxu0 %v165
    %1138 = vmatprep.subr.mxu0 %v159
    %1139 = vmatpush1.msra.mxu0 %v158
    %1140 = vmatprep.subr.mxu0 %v152
    %1141 = vmatpush1.msra.mxu0 %v151
    %1142 = vmatprep.subr.mxu0 %v145
    %1143 = vmatpush1.msra.mxu0 %v144
    %1144 = vmatprep.subr.mxu0 %v138
    %1145 = vmatpush1.msra.mxu0 %v137
    %1146 = vmatprep.subr.mxu0 %v131
    %1147 = vmatpush1.msra.mxu0 %v130
    %1148 = vmatprep.subr.mxu0 %v124
    %1149 = vmatpush1.msra.mxu0 %v123
    %1150 = vmatprep.subr.mxu0 %v117
    %1151 = vmatpush1.msra.mxu0 %v116
    %1152 = vmatprep.subr.mxu0 %v110
    %1153 = vmatpush1.msra.mxu0 %v109
    %1154 = vmatprep.subr.mxu0 %v103
    %1155 = vmatpush1.msra.mxu0 %v102
    %1156 = vmatprep.subr.mxu0 %v96
    %1157 = vmatpush1.msra.mxu0 %v95
    %1158 = vmatprep.subr.mxu0 %v89
    %1159 = vmatpush1.msra.mxu0 %v88
    %1160 = vmatprep.subr.mxu0 %v82
    %1161 = vmatpush1.msra.mxu0 %v81
    %1162 = vmatprep.subr.mxu0 %v299
    %1163 = vmatpush2.msra.mxu0 %v298
    %1164 = vmatprep.subr.mxu0 %v292
    %1165 = vmatpush2.msra.mxu0 %v291
    %1166 = vmatprep.subr.mxu0 %v285
    %1167 = vmatpush2.msra.mxu0 %v284
    %1168 = vmatprep.subr.mxu0 %v278
    %1169 = vmatpush2.msra.mxu0 %v277
    %1170 = vmatprep.subr.mxu0 %v271
    %1171 = vmatpush2.msra.mxu0 %v270
    %1172 = vmatprep.subr.mxu0 %v264
    %1173 = vmatpush2.msra.mxu0 %v263
    %1174 = vmatprep.subr.mxu0 %v257
    %1175 = vmatpush2.msra.mxu0 %v256
    %1176 = vmatprep.subr.mxu0 %v250
    %1177 = vmatpush2.msra.mxu0 %v249
    %1178 = vmatprep.subr.mxu0 %v243
    %1179 = vmatpush2.msra.mxu0 %v242
    %1180 = vmatprep.subr.mxu0 %v236
    %1181 = vmatpush2.msra.mxu0 %v235
    %1182 = vmatprep.subr.mxu0 %v229
    %1183 = vmatpush2.msra.mxu0 %v228
    %1184 = vmatprep.subr.mxu0 %v222
    %1185 = vmatpush2.msra.mxu0 %v221
    %1186 = vmatprep.subr.mxu0 %v215
    %1187 = vmatpush2.msra.mxu0 %v214
    %1188 = vmatprep.subr.mxu0 %v208
    %1189 = vmatpush2.msra.mxu0 %v207
    %1190 = vmatprep.subr.mxu0 %v201
    %1191 = vmatpush2.msra.mxu0 %v200
    %1192 = vmatprep.subr.mxu0 %v194
    %1193 = vmatpush2.msra.mxu0 %v193
    %1194 = vmatprep.mubr.f32.mxu0 %v819
    %1195 = vmatmul.mubr.f32.gmra.mxu0 %v811
    %v1196 = vpop.f32.mrf.mxu0
    %v1197 = vadd.f32 %v778, %v1196
    %v1198 = vpop.f32.mrf.mxu0
    %v1199 = vadd.f32 %v782, %v1198
    %1200 = vdwg.mxu0
    %1201 = vmatprep.subr.mxu0 %v411
    %1202 = vmatpush1.msra.mxu0 %v410
    %1203 = vmatprep.subr.mxu0 %v404
    %1204 = vmatpush1.msra.mxu0 %v403
    %1205 = vmatprep.subr.mxu0 %v397
    %1206 = vmatpush1.msra.mxu0 %v396
    %1207 = vmatprep.subr.mxu0 %v390
    %1208 = vmatpush1.msra.mxu0 %v389
    %1209 = vmatprep.subr.mxu0 %v383
    %1210 = vmatpush1.msra.mxu0 %v382
    %1211 = vmatprep.subr.mxu0 %v376
    %1212 = vmatpush1.msra.mxu0 %v375
    %1213 = vmatprep.subr.mxu0 %v369
    %1214 = vmatpush1.msra.mxu0 %v368
    %1215 = vmatprep.subr.mxu0 %v362
    %1216 = vmatpush1.msra.mxu0 %v361
    %1217 = vmatprep.subr.mxu0 %v355
    %1218 = vmatpush1.msra.mxu0 %v354
    %1219 = vmatprep.subr.mxu0 %v348
    %1220 = vmatpush1.msra.mxu0 %v347
    %1221 = vmatprep.subr.mxu0 %v341
    %1222 = vmatpush1.msra.mxu0 %v340
    %1223 = vmatprep.subr.mxu0 %v334
    %1224 = vmatpush1.msra.mxu0 %v333
    %1225 = vmatprep.subr.mxu0 %v327
    %1226 = vmatpush1.msra.mxu0 %v326
    %1227 = vmatprep.subr.mxu0 %v320
    %1228 = vmatpush1.msra.mxu0 %v319
    %1229 = vmatprep.subr.mxu0 %v313
    %1230 = vmatpush1.msra.mxu0 %v312
    %1231 = vmatprep.subr.mxu0 %v306
    %1232 = vmatpush1.msra.mxu0 %v305
    %1233 = vmatprep.subr.mxu0 %v523
    %1234 = vmatpush2.msra.mxu0 %v522
    %1235 = vmatprep.subr.mxu0 %v516
    %1236 = vmatpush2.msra.mxu0 %v515
    %1237 = vmatprep.subr.mxu0 %v509
    %1238 = vmatpush2.msra.mxu0 %v508
    %1239 = vmatprep.subr.mxu0 %v502
    %1240 = vmatpush2.msra.mxu0 %v501
    %1241 = vmatprep.subr.mxu0 %v495
    %1242 = vmatpush2.msra.mxu0 %v494
    %1243 = vmatprep.subr.mxu0 %v488
    %1244 = vmatpush2.msra.mxu0 %v487
    %1245 = vmatprep.subr.mxu0 %v481
    %1246 = vmatpush2.msra.mxu0 %v480
    %1247 = vmatprep.subr.mxu0 %v474
    %1248 = vmatpush2.msra.mxu0 %v473
    %1249 = vmatprep.subr.mxu0 %v467
    %1250 = vmatpush2.msra.mxu0 %v466
    %1251 = vmatprep.subr.mxu0 %v460
    %1252 = vmatpush2.msra.mxu0 %v459
    %1253 = vmatprep.subr.mxu0 %v453
    %1254 = vmatpush2.msra.mxu0 %v452
    %1255 = vmatprep.subr.mxu0 %v446
    %1256 = vmatpush2.msra.mxu0 %v445
    %1257 = vmatprep.subr.mxu0 %v439
    %1258 = vmatpush2.msra.mxu0 %v438
    %1259 = vmatprep.subr.mxu0 %v432
    %1260 = vmatpush2.msra.mxu0 %v431
    %1261 = vmatprep.subr.mxu0 %v425
    %1262 = vmatpush2.msra.mxu0 %v424
    %1263 = vmatprep.subr.mxu0 %v418
    %1264 = vmatpush2.msra.mxu0 %v417
    %1265 = vmatprep.mubr.f32.mxu0 %v820
    %1266 = vmatmul.mubr.f32.gmra.mxu0 %v818
    %v1267 = vpop.f32.mrf.mxu0
    %v1268 = vadd.f32 %v1197, %v1267
    %v1269 = vpop.f32.mrf.mxu0
    %v1270 = vadd.f32 %v1199, %v1269
    %1271 = vdwg.mxu0
    %1272 = vmatprep.subr.mxu0 %v635
    %1273 = vmatpush1.msra.mxu0 %v634
    %1274 = vmatprep.subr.mxu0 %v628
    %1275 = vmatpush1.msra.mxu0 %v627
    %1276 = vmatprep.subr.mxu0 %v621
    %1277 = vmatpush1.msra.mxu0 %v620
    %1278 = vmatprep.subr.mxu0 %v614
    %1279 = vmatpush1.msra.mxu0 %v613
    %1280 = vmatprep.subr.mxu0 %v607
    %1281 = vmatpush1.msra.mxu0 %v606
    %1282 = vmatprep.subr.mxu0 %v600
    %1283 = vmatpush1.msra.mxu0 %v599
    %1284 = vmatprep.subr.mxu0 %v593
    %1285 = vmatpush1.msra.mxu0 %v592
    %1286 = vmatprep.subr.mxu0 %v586
    %1287 = vmatpush1.msra.mxu0 %v585
    %1288 = vmatprep.subr.mxu0 %v579
    %1289 = vmatpush1.msra.mxu0 %v578
    %1290 = vmatprep.subr.mxu0 %v572
    %1291 = vmatpush1.msra.mxu0 %v571
    %1292 = vmatprep.subr.mxu0 %v565
    %1293 = vmatpush1.msra.mxu0 %v564
    %1294 = vmatprep.subr.mxu0 %v558
    %1295 = vmatpush1.msra.mxu0 %v557
    %1296 = vmatprep.subr.mxu0 %v551
    %1297 = vmatpush1.msra.mxu0 %v550
    %1298 = vmatprep.subr.mxu0 %v544
    %1299 = vmatpush1.msra.mxu0 %v543
    %1300 = vmatprep.subr.mxu0 %v537
    %1301 = vmatpush1.msra.mxu0 %v536
    %1302 = vmatprep.subr.mxu0 %v530
    %1303 = vmatpush1.msra.mxu0 %v529
    %1304 = vmatprep.subr.mxu0 %v747
    %1305 = vmatpush2.msra.mxu0 %v746
    %1306 = vmatprep.subr.mxu0 %v740
    %1307 = vmatpush2.msra.mxu0 %v739
    %1308 = vmatprep.subr.mxu0 %v733
    %1309 = vmatpush2.msra.mxu0 %v732
    %1310 = vmatprep.subr.mxu0 %v726
    %1311 = vmatpush2.msra.mxu0 %v725
    %1312 = vmatprep.subr.mxu0 %v719
    %1313 = vmatpush2.msra.mxu0 %v718
    %1314 = vmatprep.subr.mxu0 %v712
    %1315 = vmatpush2.msra.mxu0 %v711
    %1316 = vmatprep.subr.mxu0 %v705
    %1317 = vmatpush2.msra.mxu0 %v704
    %1318 = vmatprep.subr.mxu0 %v698
    %1319 = vmatpush2.msra.mxu0 %v697
    %1320 = vmatprep.subr.mxu0 %v691
    %1321 = vmatpush2.msra.mxu0 %v690
    %1322 = vmatprep.subr.mxu0 %v684
    %1323 = vmatpush2.msra.mxu0 %v683
    %1324 = vmatprep.subr.mxu0 %v677
    %1325 = vmatpush2.msra.mxu0 %v676
    %1326 = vmatprep.subr.mxu0 %v670
    %1327 = vmatpush2.msra.mxu0 %v669
    %1328 = vmatprep.subr.mxu0 %v663
    %1329 = vmatpush2.msra.mxu0 %v662
    %1330 = vmatprep.subr.mxu0 %v656
    %1331 = vmatpush2.msra.mxu0 %v655
    %1332 = vmatprep.subr.mxu0 %v649
    %1333 = vmatpush2.msra.mxu0 %v648
    %1334 = vmatprep.subr.mxu0 %v642
    %1335 = vmatpush2.msra.mxu0 %v641
    %1336 = vmatprep.mubr.f32.mxu0 %v836
    %1337 = vmatmul.mubr.f32.gmra.mxu0 %v828
    %v1338 = vpop.f32.mrf.mxu0
    %v1339 = vadd.f32 %v1268, %v1338
    %v1340 = vpop.f32.mrf.mxu0
    %v1341 = vadd.f32 %v1270, %v1340
    %1342 = vdwg.mxu0
    %1343 = vmatprep.subr.mxu0 0.0
    %1344 = vmatpush1.msra.mxu0 0.0
    %1345 = vmatprep.subr.mxu0 0.0
    %1346 = vmatpush1.msra.mxu0 0.0
    %1347 = vmatprep.subr.mxu0 0.0
    %1348 = vmatpush1.msra.mxu0 0.0
    %1349 = vmatprep.subr.mxu0 0.0
    %1350 = vmatpush1.msra.mxu0 0.0
    %1351 = vmatprep.subr.mxu0 0.0
    %1352 = vmatpush1.msra.mxu0 0.0
    %1353 = vmatprep.subr.mxu0 0.0
    %1354 = vmatpush1.msra.mxu0 0.0
    %1355 = vmatprep.subr.mxu0 0.0
    %1356 = vmatpush1.msra.mxu0 0.0
    %1357 = vmatprep.subr.mxu0 0.0
    %1358 = vmatpush1.msra.mxu0 0.0
    %1359 = vmatprep.subr.mxu0 0.0
    %1360 = vmatpush1.msra.mxu0 0.0
    %1361 = vmatprep.subr.mxu0 0.0
    %1362 = vmatpush1.msra.mxu0 0.0
    %1363 = vmatprep.subr.mxu0 0.0
    %1364 = vmatpush1.msra.mxu0 0.0
    %1365 = vmatprep.subr.mxu0 0.0
    %1366 = vmatpush1.msra.mxu0 0.0
    %1367 = vmatprep.subr.mxu0 0.0
    %1368 = vmatpush1.msra.mxu0 0.0
    %1369 = vmatprep.subr.mxu0 0.0
    %1370 = vmatpush1.msra.mxu0 0.0
    %1371 = vmatprep.subr.mxu0 %v761
    %1372 = vmatpush1.msra.mxu0 %v760
    %1373 = vmatprep.subr.mxu0 %v754
    %1374 = vmatpush1.msra.mxu0 %v753
    %1375 = vmatprep.subr.mxu0 0.0
    %1376 = vmatpush2.msra.mxu0 0.0
    %1377 = vmatprep.subr.mxu0 0.0
    %1378 = vmatpush2.msra.mxu0 0.0
    %1379 = vmatprep.subr.mxu0 0.0
    %1380 = vmatpush2.msra.mxu0 0.0
    %1381 = vmatprep.subr.mxu0 0.0
    %1382 = vmatpush2.msra.mxu0 0.0
    %1383 = vmatprep.subr.mxu0 0.0
    %1384 = vmatpush2.msra.mxu0 0.0
    %1385 = vmatprep.subr.mxu0 0.0
    %1386 = vmatpush2.msra.mxu0 0.0
    %1387 = vmatprep.subr.mxu0 0.0
    %1388 = vmatpush2.msra.mxu0 0.0
    %1389 = vmatprep.subr.mxu0 0.0
    %1390 = vmatpush2.msra.mxu0 0.0
    %1391 = vmatprep.subr.mxu0 0.0
    %1392 = vmatpush2.msra.mxu0 0.0
    %1393 = vmatprep.subr.mxu0 0.0
    %1394 = vmatpush2.msra.mxu0 0.0
    %1395 = vmatprep.subr.mxu0 0.0
    %1396 = vmatpush2.msra.mxu0 0.0
    %1397 = vmatprep.subr.mxu0 0.0
    %1398 = vmatpush2.msra.mxu0 0.0
    %1399 = vmatprep.subr.mxu0 0.0
    %1400 = vmatpush2.msra.mxu0 0.0
    %1401 = vmatprep.subr.mxu0 0.0
    %1402 = vmatpush2.msra.mxu0 0.0
    %1403 = vmatprep.subr.mxu0 0.0
    %1404 = vmatpush2.msra.mxu0 0.0
    %1405 = vmatprep.subr.mxu0 0.0
    %1406 = vmatpush2.msra.mxu0 0.0
    %1407 = vmatprep.mubr.f32.mxu0 0.0
    %1408 = vmatmul.mubr.f32.gmra.mxu0 %v844
    %v1409 = vpop.f32.mrf.mxu0
    %v1410 = vadd.f32 %v1339, %v1409
    %v1411 = vpop.f32.mrf.mxu0
    %v1412 = vadd.f32 %v1341, %v1411
    %1413 = vdwg.mxu0
    %1414 = vmatprep.subr.mxu0 %v189
    %1415 = vmatpush1.msra.mxu0 %v188
    %1416 = vmatprep.subr.mxu0 %v182
    %1417 = vmatpush1.msra.mxu0 %v181
    %1418 = vmatprep.subr.mxu0 %v175
    %1419 = vmatpush1.msra.mxu0 %v174
    %1420 = vmatprep.subr.mxu0 %v168
    %1421 = vmatpush1.msra.mxu0 %v167
    %1422 = vmatprep.subr.mxu0 %v161
    %1423 = vmatpush1.msra.mxu0 %v160
    %1424 = vmatprep.subr.mxu0 %v154
    %1425 = vmatpush1.msra.mxu0 %v153
    %1426 = vmatprep.subr.mxu0 %v147
    %1427 = vmatpush1.msra.mxu0 %v146
    %1428 = vmatprep.subr.mxu0 %v140
    %1429 = vmatpush1.msra.mxu0 %v139
    %1430 = vmatprep.subr.mxu0 %v133
    %1431 = vmatpush1.msra.mxu0 %v132
    %1432 = vmatprep.subr.mxu0 %v126
    %1433 = vmatpush1.msra.mxu0 %v125
    %1434 = vmatprep.subr.mxu0 %v119
    %1435 = vmatpush1.msra.mxu0 %v118
    %1436 = vmatprep.subr.mxu0 %v112
    %1437 = vmatpush1.msra.mxu0 %v111
    %1438 = vmatprep.subr.mxu0 %v105
    %1439 = vmatpush1.msra.mxu0 %v104
    %1440 = vmatprep.subr.mxu0 %v98
    %1441 = vmatpush1.msra.mxu0 %v97
    %1442 = vmatprep.subr.mxu0 %v91
    %1443 = vmatpush1.msra.mxu0 %v90
    %1444 = vmatprep.subr.mxu0 %v84
    %1445 = vmatpush1.msra.mxu0 %v83
    %1446 = vmatprep.subr.mxu0 %v301
    %1447 = vmatpush2.msra.mxu0 %v300
    %1448 = vmatprep.subr.mxu0 %v294
    %1449 = vmatpush2.msra.mxu0 %v293
    %1450 = vmatprep.subr.mxu0 %v287
    %1451 = vmatpush2.msra.mxu0 %v286
    %1452 = vmatprep.subr.mxu0 %v280
    %1453 = vmatpush2.msra.mxu0 %v279
    %1454 = vmatprep.subr.mxu0 %v273
    %1455 = vmatpush2.msra.mxu0 %v272
    %1456 = vmatprep.subr.mxu0 %v266
    %1457 = vmatpush2.msra.mxu0 %v265
    %1458 = vmatprep.subr.mxu0 %v259
    %1459 = vmatpush2.msra.mxu0 %v258
    %1460 = vmatprep.subr.mxu0 %v252
    %1461 = vmatpush2.msra.mxu0 %v251
    %1462 = vmatprep.subr.mxu0 %v245
    %1463 = vmatpush2.msra.mxu0 %v244
    %1464 = vmatprep.subr.mxu0 %v238
    %1465 = vmatpush2.msra.mxu0 %v237
    %1466 = vmatprep.subr.mxu0 %v231
    %1467 = vmatpush2.msra.mxu0 %v230
    %1468 = vmatprep.subr.mxu0 %v224
    %1469 = vmatpush2.msra.mxu0 %v223
    %1470 = vmatprep.subr.mxu0 %v217
    %1471 = vmatpush2.msra.mxu0 %v216
    %1472 = vmatprep.subr.mxu0 %v210
    %1473 = vmatpush2.msra.mxu0 %v209
    %1474 = vmatprep.subr.mxu0 %v203
    %1475 = vmatpush2.msra.mxu0 %v202
    %1476 = vmatprep.subr.mxu0 %v196
    %1477 = vmatpush2.msra.mxu0 %v195
    %1478 = vmatprep.mubr.f32.mxu0 %v819
    %1479 = vmatmul.mubr.f32.gmra.mxu0 %v811
    %v1480 = vpop.f32.mrf.mxu0
    %v1481 = vadd.f32 %v786, %v1480
    %v1482 = vpop.f32.mrf.mxu0
    %v1483 = vadd.f32 %v790, %v1482
    %1484 = vdwg.mxu0
    %1485 = vmatprep.subr.mxu0 %v413
    %1486 = vmatpush1.msra.mxu0 %v412
    %1487 = vmatprep.subr.mxu0 %v406
    %1488 = vmatpush1.msra.mxu0 %v405
    %1489 = vmatprep.subr.mxu0 %v399
    %1490 = vmatpush1.msra.mxu0 %v398
    %1491 = vmatprep.subr.mxu0 %v392
    %1492 = vmatpush1.msra.mxu0 %v391
    %1493 = vmatprep.subr.mxu0 %v385
    %1494 = vmatpush1.msra.mxu0 %v384
    %1495 = vmatprep.subr.mxu0 %v378
    %1496 = vmatpush1.msra.mxu0 %v377
    %1497 = vmatprep.subr.mxu0 %v371
    %1498 = vmatpush1.msra.mxu0 %v370
    %1499 = vmatprep.subr.mxu0 %v364
    %1500 = vmatpush1.msra.mxu0 %v363
    %1501 = vmatprep.subr.mxu0 %v357
    %1502 = vmatpush1.msra.mxu0 %v356
    %1503 = vmatprep.subr.mxu0 %v350
    %1504 = vmatpush1.msra.mxu0 %v349
    %1505 = vmatprep.subr.mxu0 %v343
    %1506 = vmatpush1.msra.mxu0 %v342
    %1507 = vmatprep.subr.mxu0 %v336
    %1508 = vmatpush1.msra.mxu0 %v335
    %1509 = vmatprep.subr.mxu0 %v329
    %1510 = vmatpush1.msra.mxu0 %v328
    %1511 = vmatprep.subr.mxu0 %v322
    %1512 = vmatpush1.msra.mxu0 %v321
    %1513 = vmatprep.subr.mxu0 %v315
    %1514 = vmatpush1.msra.mxu0 %v314
    %1515 = vmatprep.subr.mxu0 %v308
    %1516 = vmatpush1.msra.mxu0 %v307
    %1517 = vmatprep.subr.mxu0 %v525
    %1518 = vmatpush2.msra.mxu0 %v524
    %1519 = vmatprep.subr.mxu0 %v518
    %1520 = vmatpush2.msra.mxu0 %v517
    %1521 = vmatprep.subr.mxu0 %v511
    %1522 = vmatpush2.msra.mxu0 %v510
    %1523 = vmatprep.subr.mxu0 %v504
    %1524 = vmatpush2.msra.mxu0 %v503
    %1525 = vmatprep.subr.mxu0 %v497
    %1526 = vmatpush2.msra.mxu0 %v496
    %1527 = vmatprep.subr.mxu0 %v490
    %1528 = vmatpush2.msra.mxu0 %v489
    %1529 = vmatprep.subr.mxu0 %v483
    %1530 = vmatpush2.msra.mxu0 %v482
    %1531 = vmatprep.subr.mxu0 %v476
    %1532 = vmatpush2.msra.mxu0 %v475
    %1533 = vmatprep.subr.mxu0 %v469
    %1534 = vmatpush2.msra.mxu0 %v468
    %1535 = vmatprep.subr.mxu0 %v462
    %1536 = vmatpush2.msra.mxu0 %v461
    %1537 = vmatprep.subr.mxu0 %v455
    %1538 = vmatpush2.msra.mxu0 %v454
    %1539 = vmatprep.subr.mxu0 %v448
    %1540 = vmatpush2.msra.mxu0 %v447
    %1541 = vmatprep.subr.mxu0 %v441
    %1542 = vmatpush2.msra.mxu0 %v440
    %1543 = vmatprep.subr.mxu0 %v434
    %1544 = vmatpush2.msra.mxu0 %v433
    %1545 = vmatprep.subr.mxu0 %v427
    %1546 = vmatpush2.msra.mxu0 %v426
    %1547 = vmatprep.subr.mxu0 %v420
    %1548 = vmatpush2.msra.mxu0 %v419
    %1549 = vmatprep.mubr.f32.mxu0 %v820
    %1550 = vmatmul.mubr.f32.gmra.mxu0 %v818
    %v1551 = vpop.f32.mrf.mxu0
    %v1552 = vadd.f32 %v1481, %v1551
    %v1553 = vpop.f32.mrf.mxu0
    %v1554 = vadd.f32 %v1483, %v1553
    %1555 = vdwg.mxu0
    %1556 = vmatprep.subr.mxu0 %v637
    %1557 = vmatpush1.msra.mxu0 %v636
    %1558 = vmatprep.subr.mxu0 %v630
    %1559 = vmatpush1.msra.mxu0 %v629
    %1560 = vmatprep.subr.mxu0 %v623
    %1561 = vmatpush1.msra.mxu0 %v622
    %1562 = vmatprep.subr.mxu0 %v616
    %1563 = vmatpush1.msra.mxu0 %v615
    %1564 = vmatprep.subr.mxu0 %v609
    %1565 = vmatpush1.msra.mxu0 %v608
    %1566 = vmatprep.subr.mxu0 %v602
    %1567 = vmatpush1.msra.mxu0 %v601
    %1568 = vmatprep.subr.mxu0 %v595
    %1569 = vmatpush1.msra.mxu0 %v594
    %1570 = vmatprep.subr.mxu0 %v588
    %1571 = vmatpush1.msra.mxu0 %v587
    %1572 = vmatprep.subr.mxu0 %v581
    %1573 = vmatpush1.msra.mxu0 %v580
    %1574 = vmatprep.subr.mxu0 %v574
    %1575 = vmatpush1.msra.mxu0 %v573
    %1576 = vmatprep.subr.mxu0 %v567
    %1577 = vmatpush1.msra.mxu0 %v566
    %1578 = vmatprep.subr.mxu0 %v560
    %1579 = vmatpush1.msra.mxu0 %v559
    %1580 = vmatprep.subr.mxu0 %v553
    %1581 = vmatpush1.msra.mxu0 %v552
    %1582 = vmatprep.subr.mxu0 %v546
    %1583 = vmatpush1.msra.mxu0 %v545
    %1584 = vmatprep.subr.mxu0 %v539
    %1585 = vmatpush1.msra.mxu0 %v538
    %1586 = vmatprep.subr.mxu0 %v532
    %1587 = vmatpush1.msra.mxu0 %v531
    %1588 = vmatprep.subr.mxu0 %v749
    %1589 = vmatpush2.msra.mxu0 %v748
    %1590 = vmatprep.subr.mxu0 %v742
    %1591 = vmatpush2.msra.mxu0 %v741
    %1592 = vmatprep.subr.mxu0 %v735
    %1593 = vmatpush2.msra.mxu0 %v734
    %1594 = vmatprep.subr.mxu0 %v728
    %1595 = vmatpush2.msra.mxu0 %v727
    %1596 = vmatprep.subr.mxu0 %v721
    %1597 = vmatpush2.msra.mxu0 %v720
    %1598 = vmatprep.subr.mxu0 %v714
    %1599 = vmatpush2.msra.mxu0 %v713
    %1600 = vmatprep.subr.mxu0 %v707
    %1601 = vmatpush2.msra.mxu0 %v706
    %1602 = vmatprep.subr.mxu0 %v700
    %1603 = vmatpush2.msra.mxu0 %v699
    %1604 = vmatprep.subr.mxu0 %v693
    %1605 = vmatpush2.msra.mxu0 %v692
    %1606 = vmatprep.subr.mxu0 %v686
    %1607 = vmatpush2.msra.mxu0 %v685
    %1608 = vmatprep.subr.mxu0 %v679
    %1609 = vmatpush2.msra.mxu0 %v678
    %1610 = vmatprep.subr.mxu0 %v672
    %1611 = vmatpush2.msra.mxu0 %v671
    %1612 = vmatprep.subr.mxu0 %v665
    %1613 = vmatpush2.msra.mxu0 %v664
    %1614 = vmatprep.subr.mxu0 %v658
    %1615 = vmatpush2.msra.mxu0 %v657
    %1616 = vmatprep.subr.mxu0 %v651
    %1617 = vmatpush2.msra.mxu0 %v650
    %1618 = vmatprep.subr.mxu0 %v644
    %1619 = vmatpush2.msra.mxu0 %v643
    %1620 = vmatprep.mubr.f32.mxu0 %v836
    %1621 = vmatmul.mubr.f32.gmra.mxu0 %v828
    %v1622 = vpop.f32.mrf.mxu0
    %v1623 = vadd.f32 %v1552, %v1622
    %v1624 = vpop.f32.mrf.mxu0
    %v1625 = vadd.f32 %v1554, %v1624
    %1626 = vdwg.mxu0
    %1627 = vmatprep.subr.mxu0 0.0
    %1628 = vmatpush1.msra.mxu0 0.0
    %1629 = vmatprep.subr.mxu0 0.0
    %1630 = vmatpush1.msra.mxu0 0.0
    %1631 = vmatprep.subr.mxu0 0.0
    %1632 = vmatpush1.msra.mxu0 0.0
    %1633 = vmatprep.subr.mxu0 0.0
    %1634 = vmatpush1.msra.mxu0 0.0
    %1635 = vmatprep.subr.mxu0 0.0
    %1636 = vmatpush1.msra.mxu0 0.0
    %1637 = vmatprep.subr.mxu0 0.0
    %1638 = vmatpush1.msra.mxu0 0.0
    %1639 = vmatprep.subr.mxu0 0.0
    %1640 = vmatpush1.msra.mxu0 0.0
    %1641 = vmatprep.subr.mxu0 0.0
    %1642 = vmatpush1.msra.mxu0 0.0
    %1643 = vmatprep.subr.mxu0 0.0
    %1644 = vmatpush1.msra.mxu0 0.0
    %1645 = vmatprep.subr.mxu0 0.0
    %1646 = vmatpush1.msra.mxu0 0.0
    %1647 = vmatprep.subr.mxu0 0.0
    %1648 = vmatpush1.msra.mxu0 0.0
    %1649 = vmatprep.subr.mxu0 0.0
    %1650 = vmatpush1.msra.mxu0 0.0
    %1651 = vmatprep.subr.mxu0 0.0
    %1652 = vmatpush1.msra.mxu0 0.0
    %1653 = vmatprep.subr.mxu0 0.0
    %1654 = vmatpush1.msra.mxu0 0.0
    %1655 = vmatprep.subr.mxu0 %v763
    %1656 = vmatpush1.msra.mxu0 %v762
    %1657 = vmatprep.subr.mxu0 %v756
    %1658 = vmatpush1.msra.mxu0 %v755
    %1659 = vmatprep.subr.mxu0 0.0
    %1660 = vmatpush2.msra.mxu0 0.0
    %1661 = vmatprep.subr.mxu0 0.0
    %1662 = vmatpush2.msra.mxu0 0.0
    %1663 = vmatprep.subr.mxu0 0.0
    %1664 = vmatpush2.msra.mxu0 0.0
    %1665 = vmatprep.subr.mxu0 0.0
    %1666 = vmatpush2.msra.mxu0 0.0
    %1667 = vmatprep.subr.mxu0 0.0
    %1668 = vmatpush2.msra.mxu0 0.0
    %1669 = vmatprep.subr.mxu0 0.0
    %1670 = vmatpush2.msra.mxu0 0.0
    %1671 = vmatprep.subr.mxu0 0.0
    %1672 = vmatpush2.msra.mxu0 0.0
    %1673 = vmatprep.subr.mxu0 0.0
    %1674 = vmatpush2.msra.mxu0 0.0
    %1675 = vmatprep.subr.mxu0 0.0
    %1676 = vmatpush2.msra.mxu0 0.0
    %1677 = vmatprep.subr.mxu0 0.0
    %1678 = vmatpush2.msra.mxu0 0.0
    %1679 = vmatprep.subr.mxu0 0.0
    %1680 = vmatpush2.msra.mxu0 0.0
    %1681 = vmatprep.subr.mxu0 0.0
    %1682 = vmatpush2.msra.mxu0 0.0
    %1683 = vmatprep.subr.mxu0 0.0
    %1684 = vmatpush2.msra.mxu0 0.0
    %1685 = vmatprep.subr.mxu0 0.0
    %1686 = vmatpush2.msra.mxu0 0.0
    %1687 = vmatprep.subr.mxu0 0.0
    %1688 = vmatpush2.msra.mxu0 0.0
    %1689 = vmatprep.subr.mxu0 0.0
    %1690 = vmatpush2.msra.mxu0 0.0
    %1691 = vmatprep.mubr.f32.mxu0 0.0
    %1692 = vmatmul.mubr.f32.gmra.mxu0 %v844
    %v1693 = vpop.f32.mrf.mxu0
    %v1694 = vadd.f32 %v1623, %v1693
    %v1695 = vpop.f32.mrf.mxu0
    %v1696 = vadd.f32 %v1625, %v1695
    %1697 = vdwg.mxu0
    %1698 = vmatprep.subr.mxu0 0.0
    %1699 = vmatpush1.msra.mxu0 %v190
    %1700 = vmatprep.subr.mxu0 0.0
    %1701 = vmatpush1.msra.mxu0 %v183
    %1702 = vmatprep.subr.mxu0 0.0
    %1703 = vmatpush1.msra.mxu0 %v176
    %1704 = vmatprep.subr.mxu0 0.0
    %1705 = vmatpush1.msra.mxu0 %v169
    %1706 = vmatprep.subr.mxu0 0.0
    %1707 = vmatpush1.msra.mxu0 %v162
    %1708 = vmatprep.subr.mxu0 0.0
    %1709 = vmatpush1.msra.mxu0 %v155
    %1710 = vmatprep.subr.mxu0 0.0
    %1711 = vmatpush1.msra.mxu0 %v148
    %1712 = vmatprep.subr.mxu0 0.0
    %1713 = vmatpush1.msra.mxu0 %v141
    %1714 = vmatprep.subr.mxu0 0.0
    %1715 = vmatpush1.msra.mxu0 %v134
    %1716 = vmatprep.subr.mxu0 0.0
    %1717 = vmatpush1.msra.mxu0 %v127
    %1718 = vmatprep.subr.mxu0 0.0
    %1719 = vmatpush1.msra.mxu0 %v120
    %1720 = vmatprep.subr.mxu0 0.0
    %1721 = vmatpush1.msra.mxu0 %v113
    %1722 = vmatprep.subr.mxu0 0.0
    %1723 = vmatpush1.msra.mxu0 %v106
    %1724 = vmatprep.subr.mxu0 0.0
    %1725 = vmatpush1.msra.mxu0 %v99
    %1726 = vmatprep.subr.mxu0 0.0
    %1727 = vmatpush1.msra.mxu0 %v92
    %1728 = vmatprep.subr.mxu0 0.0
    %1729 = vmatpush1.msra.mxu0 %v85
    %1730 = vmatprep.subr.mxu0 0.0
    %1731 = vmatpush2.msra.mxu0 %v302
    %1732 = vmatprep.subr.mxu0 0.0
    %1733 = vmatpush2.msra.mxu0 %v295
    %1734 = vmatprep.subr.mxu0 0.0
    %1735 = vmatpush2.msra.mxu0 %v288
    %1736 = vmatprep.subr.mxu0 0.0
    %1737 = vmatpush2.msra.mxu0 %v281
    %1738 = vmatprep.subr.mxu0 0.0
    %1739 = vmatpush2.msra.mxu0 %v274
    %1740 = vmatprep.subr.mxu0 0.0
    %1741 = vmatpush2.msra.mxu0 %v267
    %1742 = vmatprep.subr.mxu0 0.0
    %1743 = vmatpush2.msra.mxu0 %v260
    %1744 = vmatprep.subr.mxu0 0.0
    %1745 = vmatpush2.msra.mxu0 %v253
    %1746 = vmatprep.subr.mxu0 0.0
    %1747 = vmatpush2.msra.mxu0 %v246
    %1748 = vmatprep.subr.mxu0 0.0
    %1749 = vmatpush2.msra.mxu0 %v239
    %1750 = vmatprep.subr.mxu0 0.0
    %1751 = vmatpush2.msra.mxu0 %v232
    %1752 = vmatprep.subr.mxu0 0.0
    %1753 = vmatpush2.msra.mxu0 %v225
    %1754 = vmatprep.subr.mxu0 0.0
    %1755 = vmatpush2.msra.mxu0 %v218
    %1756 = vmatprep.subr.mxu0 0.0
    %1757 = vmatpush2.msra.mxu0 %v211
    %1758 = vmatprep.subr.mxu0 0.0
    %1759 = vmatpush2.msra.mxu0 %v204
    %1760 = vmatprep.subr.mxu0 0.0
    %1761 = vmatpush2.msra.mxu0 %v197
    %1762 = vmatprep.mubr.f32.mxu0 %v819
    %1763 = vmatmul.mubr.f32.gmra.mxu0 %v811
    %v1764 = vpop.f32.mrf.mxu0
    %v1765 = vadd.f32 %v794, %v1764
    %v1766 = vpop.f32.mrf.mxu0
    %1767 = vdwg.mxu0
    %1768 = vmatprep.subr.mxu0 0.0
    %1769 = vmatpush1.msra.mxu0 %v414
    %1770 = vmatprep.subr.mxu0 0.0
    %1771 = vmatpush1.msra.mxu0 %v407
    %1772 = vmatprep.subr.mxu0 0.0
    %1773 = vmatpush1.msra.mxu0 %v400
    %1774 = vmatprep.subr.mxu0 0.0
    %1775 = vmatpush1.msra.mxu0 %v393
    %1776 = vmatprep.subr.mxu0 0.0
    %1777 = vmatpush1.msra.mxu0 %v386
    %1778 = vmatprep.subr.mxu0 0.0
    %1779 = vmatpush1.msra.mxu0 %v379
    %1780 = vmatprep.subr.mxu0 0.0
    %1781 = vmatpush1.msra.mxu0 %v372
    %1782 = vmatprep.subr.mxu0 0.0
    %1783 = vmatpush1.msra.mxu0 %v365
    %1784 = vmatprep.subr.mxu0 0.0
    %1785 = vmatpush1.msra.mxu0 %v358
    %1786 = vmatprep.subr.mxu0 0.0
    %1787 = vmatpush1.msra.mxu0 %v351
    %1788 = vmatprep.subr.mxu0 0.0
    %1789 = vmatpush1.msra.mxu0 %v344
    %1790 = vmatprep.subr.mxu0 0.0
    %1791 = vmatpush1.msra.mxu0 %v337
    %1792 = vmatprep.subr.mxu0 0.0
    %1793 = vmatpush1.msra.mxu0 %v330
    %1794 = vmatprep.subr.mxu0 0.0
    %1795 = vmatpush1.msra.mxu0 %v323
    %1796 = vmatprep.subr.mxu0 0.0
    %1797 = vmatpush1.msra.mxu0 %v316
    %1798 = vmatprep.subr.mxu0 0.0
    %1799 = vmatpush1.msra.mxu0 %v309
    %1800 = vmatprep.subr.mxu0 0.0
    %1801 = vmatpush2.msra.mxu0 %v526
    %1802 = vmatprep.subr.mxu0 0.0
    %1803 = vmatpush2.msra.mxu0 %v519
    %1804 = vmatprep.subr.mxu0 0.0
    %1805 = vmatpush2.msra.mxu0 %v512
    %1806 = vmatprep.subr.mxu0 0.0
    %1807 = vmatpush2.msra.mxu0 %v505
    %1808 = vmatprep.subr.mxu0 0.0
    %1809 = vmatpush2.msra.mxu0 %v498
    %1810 = vmatprep.subr.mxu0 0.0
    %1811 = vmatpush2.msra.mxu0 %v491
    %1812 = vmatprep.subr.mxu0 0.0
    %1813 = vmatpush2.msra.mxu0 %v484
    %1814 = vmatprep.subr.mxu0 0.0
    %1815 = vmatpush2.msra.mxu0 %v477
    %1816 = vmatprep.subr.mxu0 0.0
    %1817 = vmatpush2.msra.mxu0 %v470
    %1818 = vmatprep.subr.mxu0 0.0
    %1819 = vmatpush2.msra.mxu0 %v463
    %1820 = vmatprep.subr.mxu0 0.0
    %1821 = vmatpush2.msra.mxu0 %v456
    %1822 = vmatprep.subr.mxu0 0.0
    %1823 = vmatpush2.msra.mxu0 %v449
    %1824 = vmatprep.subr.mxu0 0.0
    %1825 = vmatpush2.msra.mxu0 %v442
    %1826 = vmatprep.subr.mxu0 0.0
    %1827 = vmatpush2.msra.mxu0 %v435
    %1828 = vmatprep.subr.mxu0 0.0
    %1829 = vmatpush2.msra.mxu0 %v428
    %1830 = vmatprep.subr.mxu0 0.0
    %1831 = vmatpush2.msra.mxu0 %v421
    %1832 = vmatprep.mubr.f32.mxu0 %v820
    %1833 = vmatmul.mubr.f32.gmra.mxu0 %v818
    %v1834 = vpop.f32.mrf.mxu0
    %v1835 = vadd.f32 %v1765, %v1834
    %v1836 = vpop.f32.mrf.mxu0
    %1837 = vdwg.mxu0
    %1838 = vmatprep.subr.mxu0 0.0
    %1839 = vmatpush1.msra.mxu0 %v638
    %1840 = vmatprep.subr.mxu0 0.0
    %1841 = vmatpush1.msra.mxu0 %v631
    %1842 = vmatprep.subr.mxu0 0.0
    %1843 = vmatpush1.msra.mxu0 %v624
    %1844 = vmatprep.subr.mxu0 0.0
    %1845 = vmatpush1.msra.mxu0 %v617
    %1846 = vmatprep.subr.mxu0 0.0
    %1847 = vmatpush1.msra.mxu0 %v610
    %1848 = vmatprep.subr.mxu0 0.0
    %1849 = vmatpush1.msra.mxu0 %v603
    %1850 = vmatprep.subr.mxu0 0.0
    %1851 = vmatpush1.msra.mxu0 %v596
    %1852 = vmatprep.subr.mxu0 0.0
    %1853 = vmatpush1.msra.mxu0 %v589
    %1854 = vmatprep.subr.mxu0 0.0
    %1855 = vmatpush1.msra.mxu0 %v582
    %1856 = vmatprep.subr.mxu0 0.0
    %1857 = vmatpush1.msra.mxu0 %v575
    %1858 = vmatprep.subr.mxu0 0.0
    %1859 = vmatpush1.msra.mxu0 %v568
    %1860 = vmatprep.subr.mxu0 0.0
    %1861 = vmatpush1.msra.mxu0 %v561
    %1862 = vmatprep.subr.mxu0 0.0
    %1863 = vmatpush1.msra.mxu0 %v554
    %1864 = vmatprep.subr.mxu0 0.0
    %1865 = vmatpush1.msra.mxu0 %v547
    %1866 = vmatprep.subr.mxu0 0.0
    %1867 = vmatpush1.msra.mxu0 %v540
    %1868 = vmatprep.subr.mxu0 0.0
    %1869 = vmatpush1.msra.mxu0 %v533
    %1870 = vmatprep.subr.mxu0 0.0
    %1871 = vmatpush2.msra.mxu0 %v750
    %1872 = vmatprep.subr.mxu0 0.0
    %1873 = vmatpush2.msra.mxu0 %v743
    %1874 = vmatprep.subr.mxu0 0.0
    %1875 = vmatpush2.msra.mxu0 %v736
    %1876 = vmatprep.subr.mxu0 0.0
    %1877 = vmatpush2.msra.mxu0 %v729
    %1878 = vmatprep.subr.mxu0 0.0
    %1879 = vmatpush2.msra.mxu0 %v722
    %1880 = vmatprep.subr.mxu0 0.0
    %1881 = vmatpush2.msra.mxu0 %v715
    %1882 = vmatprep.subr.mxu0 0.0
    %1883 = vmatpush2.msra.mxu0 %v708
    %1884 = vmatprep.subr.mxu0 0.0
    %1885 = vmatpush2.msra.mxu0 %v701
    %1886 = vmatprep.subr.mxu0 0.0
    %1887 = vmatpush2.msra.mxu0 %v694
    %1888 = vmatprep.subr.mxu0 0.0
    %1889 = vmatpush2.msra.mxu0 %v687
    %1890 = vmatprep.subr.mxu0 0.0
    %1891 = vmatpush2.msra.mxu0 %v680
    %1892 = vmatprep.subr.mxu0 0.0
    %1893 = vmatpush2.msra.mxu0 %v673
    %1894 = vmatprep.subr.mxu0 0.0
    %1895 = vmatpush2.msra.mxu0 %v666
    %1896 = vmatprep.subr.mxu0 0.0
    %1897 = vmatpush2.msra.mxu0 %v659
    %1898 = vmatprep.subr.mxu0 0.0
    %1899 = vmatpush2.msra.mxu0 %v652
    %1900 = vmatprep.subr.mxu0 0.0
    %1901 = vmatpush2.msra.mxu0 %v645
    %1902 = vmatprep.mubr.f32.mxu0 %v836
    %1903 = vmatmul.mubr.f32.gmra.mxu0 %v828
    %v1904 = vpop.f32.mrf.mxu0
    %v1905 = vadd.f32 %v1835, %v1904
    %v1906 = vpop.f32.mrf.mxu0
    %1907 = vdwg.mxu0
    %1908 = vmatprep.subr.mxu0 0.0
    %1909 = vmatpush1.msra.mxu0 0.0
    %1910 = vmatprep.subr.mxu0 0.0
    %1911 = vmatpush1.msra.mxu0 0.0
    %1912 = vmatprep.subr.mxu0 0.0
    %1913 = vmatpush1.msra.mxu0 0.0
    %1914 = vmatprep.subr.mxu0 0.0
    %1915 = vmatpush1.msra.mxu0 0.0
    %1916 = vmatprep.subr.mxu0 0.0
    %1917 = vmatpush1.msra.mxu0 0.0
    %1918 = vmatprep.subr.mxu0 0.0
    %1919 = vmatpush1.msra.mxu0 0.0
    %1920 = vmatprep.subr.mxu0 0.0
    %1921 = vmatpush1.msra.mxu0 0.0
    %1922 = vmatprep.subr.mxu0 0.0
    %1923 = vmatpush1.msra.mxu0 0.0
    %1924 = vmatprep.subr.mxu0 0.0
    %1925 = vmatpush1.msra.mxu0 0.0
    %1926 = vmatprep.subr.mxu0 0.0
    %1927 = vmatpush1.msra.mxu0 0.0
    %1928 = vmatprep.subr.mxu0 0.0
    %1929 = vmatpush1.msra.mxu0 0.0
    %1930 = vmatprep.subr.mxu0 0.0
    %1931 = vmatpush1.msra.mxu0 0.0
    %1932 = vmatprep.subr.mxu0 0.0
    %1933 = vmatpush1.msra.mxu0 0.0
    %1934 = vmatprep.subr.mxu0 0.0
    %1935 = vmatpush1.msra.mxu0 0.0
    %1936 = vmatprep.subr.mxu0 0.0
    %1937 = vmatpush1.msra.mxu0 %v764
    %1938 = vmatprep.subr.mxu0 0.0
    %1939 = vmatpush1.msra.mxu0 %v757
    %1940 = vmatprep.subr.mxu0 0.0
    %1941 = vmatpush2.msra.mxu0 0.0
    %1942 = vmatprep.subr.mxu0 0.0
    %1943 = vmatpush2.msra.mxu0 0.0
    %1944 = vmatprep.subr.mxu0 0.0
    %1945 = vmatpush2.msra.mxu0 0.0
    %1946 = vmatprep.subr.mxu0 0.0
    %1947 = vmatpush2.msra.mxu0 0.0
    %1948 = vmatprep.subr.mxu0 0.0
    %1949 = vmatpush2.msra.mxu0 0.0
    %1950 = vmatprep.subr.mxu0 0.0
    %1951 = vmatpush2.msra.mxu0 0.0
    %1952 = vmatprep.subr.mxu0 0.0
    %1953 = vmatpush2.msra.mxu0 0.0
    %1954 = vmatprep.subr.mxu0 0.0
    %1955 = vmatpush2.msra.mxu0 0.0
    %1956 = vmatprep.subr.mxu0 0.0
    %1957 = vmatpush2.msra.mxu0 0.0
    %1958 = vmatprep.subr.mxu0 0.0
    %1959 = vmatpush2.msra.mxu0 0.0
    %1960 = vmatprep.subr.mxu0 0.0
    %1961 = vmatpush2.msra.mxu0 0.0
    %1962 = vmatprep.subr.mxu0 0.0
    %1963 = vmatpush2.msra.mxu0 0.0
    %1964 = vmatprep.subr.mxu0 0.0
    %1965 = vmatpush2.msra.mxu0 0.0
    %1966 = vmatprep.subr.mxu0 0.0
    %1967 = vmatpush2.msra.mxu0 0.0
    %1968 = vmatprep.subr.mxu0 0.0
    %1969 = vmatpush2.msra.mxu0 0.0
    %1970 = vmatprep.subr.mxu0 0.0
    %1971 = vmatpush2.msra.mxu0 0.0
    %1972 = vmatprep.mubr.f32.mxu0 0.0
    %1973 = vmatmul.mubr.f32.gmra.mxu0 %v844
    %v1974 = vpop.f32.mrf.mxu0
    %v1975 = vadd.f32 %v1905, %v1974
    %v1976 = vpop.f32.mrf.mxu0
    %1977 = vdwg.mxu0
    %v1978 = vmul.f32 %v1126, 0.5
    %v1979 = vmul.f32 %v1128, 0.5
    %v1980 = vmul.f32 %v1410, 0.5
    %v1981 = vmul.f32 %v1412, 0.5
    %v1982 = vmul.f32 %v1694, 0.5
    %v1983 = vmul.f32 %v1696, 0.5
    %v1984 = vmul.f32 %v1975, 0.5
    %v1985 = vrcp.pop 1.4142135
    %v1986 = vmul.f32 %v1126, %v1985
    %v1987 = vmul.f32 %v1128, %v1985
    %v1988 = vmul.f32 %v1410, %v1985
    %v1989 = vmul.f32 %v1412, %v1985
    %v1990 = vmul.f32 %v1694, %v1985
    %v1991 = vmul.f32 %v1696, %v1985
    %v1992 = vmul.f32 %v1975, %v1985
    %vm1993 = vcmp.ge.f32.partialorder %v1986, 0.0
    %vm1994 = vcmp.ge.f32.partialorder %v1987, 0.0
    %vm1995 = vcmp.ge.f32.partialorder %v1988, 0.0
    %vm1996 = vcmp.ge.f32.partialorder %v1989, 0.0
    %vm1997 = vcmp.ge.f32.partialorder %v1990, 0.0
    %vm1998 = vcmp.ge.f32.partialorder %v1991, 0.0
    %vm1999 = vcmp.ge.f32.partialorder %v1992, 0.0
    %v2000 = vsel %vm1993, 1.0, -1.0
    %v2001 = vsel %vm1994, 1.0, -1.0
    %v2002 = vsel %vm1995, 1.0, -1.0
    %v2003 = vsel %vm1996, 1.0, -1.0
    %v2004 = vsel %vm1997, 1.0, -1.0
    %v2005 = vsel %vm1998, 1.0, -1.0
    %v2006 = vsel %vm1999, 1.0, -1.0
    %v2007 = vand.u32 2147483647, %v1986
    %v2008 = vand.u32 2147483647, %v1987
    %v2009 = vand.u32 2147483647, %v1988
    %v2010 = vand.u32 2147483647, %v1989
    %v2011 = vand.u32 2147483647, %v1990
    %v2012 = vand.u32 2147483647, %v1991
    %v2013 = vand.u32 2147483647, %v1992
    %v2014 = vmul.f32 %v2007, 0.3275911
    %v2015 = vmul.f32 %v2008, 0.3275911
    %v2016 = vmul.f32 %v2009, 0.3275911
    %v2017 = vmul.f32 %v2010, 0.3275911
    %v2018 = vmul.f32 %v2011, 0.3275911
    %v2019 = vmul.f32 %v2012, 0.3275911
    %v2020 = vmul.f32 %v2013, 0.3275911
    %v2021 = vadd.f32 %v2014, 1.0
    %v2022 = vadd.f32 %v2015, 1.0
    %v2023 = vadd.f32 %v2016, 1.0
    %v2024 = vadd.f32 %v2017, 1.0
    %v2025 = vadd.f32 %v2018, 1.0
    %v2026 = vadd.f32 %v2019, 1.0
    %v2027 = vadd.f32 %v2020, 1.0
    %v2028 = vrcp.pop %v2021
    %v2029 = vmul.f32 1.0, %v2028
    %v2030 = vrcp.pop %v2022
    %v2031 = vmul.f32 1.0, %v2030
    %v2032 = vrcp.pop %v2023
    %v2033 = vmul.f32 1.0, %v2032
    %v2034 = vrcp.pop %v2024
    %v2035 = vmul.f32 1.0, %v2034
    %v2036 = vrcp.pop %v2025
    %v2037 = vmul.f32 1.0, %v2036
    %v2038 = vrcp.pop %v2026
    %v2039 = vmul.f32 1.0, %v2038
    %v2040 = vrcp.pop %v2027
    %v2041 = vmul.f32 1.0, %v2040
    %v2042 = vmul.f32 %v2029, 1.0614054
    %v2043 = vmul.f32 %v2031, 1.0614054
    %v2044 = vmul.f32 %v2033, 1.0614054
    %v2045 = vmul.f32 %v2035, 1.0614054
    %v2046 = vmul.f32 %v2037, 1.0614054
    %v2047 = vmul.f32 %v2039, 1.0614054
    %v2048 = vmul.f32 %v2041, 1.0614054
    %v2049 = vadd.f32 %v2042, -1.4531521
    %v2050 = vadd.f32 %v2043, -1.4531521
    %v2051 = vadd.f32 %v2044, -1.4531521
    %v2052 = vadd.f32 %v2045, -1.4531521
    %v2053 = vadd.f32 %v2046, -1.4531521
    %v2054 = vadd.f32 %v2047, -1.4531521
    %v2055 = vadd.f32 %v2048, -1.4531521
    %v2056 = vmul.f32 %v2049, %v2029
    %v2057 = vmul.f32 %v2050, %v2031
    %v2058 = vmul.f32 %v2051, %v2033
    %v2059 = vmul.f32 %v2052, %v2035
    %v2060 = vmul.f32 %v2053, %v2037
    %v2061 = vmul.f32 %v2054, %v2039
    %v2062 = vmul.f32 %v2055, %v2041
    %v2063 = vadd.f32 %v2056, 1.4214138
    %v2064 = vadd.f32 %v2057, 1.4214138
    %v2065 = vadd.f32 %v2058, 1.4214138
    %v2066 = vadd.f32 %v2059, 1.4214138
    %v2067 = vadd.f32 %v2060, 1.4214138
    %v2068 = vadd.f32 %v2061, 1.4214138
    %v2069 = vadd.f32 %v2062, 1.4214138
    %v2070 = vmul.f32 %v2063, %v2029
    %v2071 = vmul.f32 %v2064, %v2031
    %v2072 = vmul.f32 %v2065, %v2033
    %v2073 = vmul.f32 %v2066, %v2035
    %v2074 = vmul.f32 %v2067, %v2037
    %v2075 = vmul.f32 %v2068, %v2039
    %v2076 = vmul.f32 %v2069, %v2041
    %v2077 = vadd.f32 %v2070, -0.28449672
    %v2078 = vadd.f32 %v2071, -0.28449672
    %v2079 = vadd.f32 %v2072, -0.28449672
    %v2080 = vadd.f32 %v2073, -0.28449672
    %v2081 = vadd.f32 %v2074, -0.28449672
    %v2082 = vadd.f32 %v2075, -0.28449672
    %v2083 = vadd.f32 %v2076, -0.28449672
    %v2084 = vmul.f32 %v2077, %v2029
    %v2085 = vmul.f32 %v2078, %v2031
    %v2086 = vmul.f32 %v2079, %v2033
    %v2087 = vmul.f32 %v2080, %v2035
    %v2088 = vmul.f32 %v2081, %v2037
    %v2089 = vmul.f32 %v2082, %v2039
    %v2090 = vmul.f32 %v2083, %v2041
    %v2091 = vadd.f32 %v2084, 0.2548296
    %v2092 = vadd.f32 %v2085, 0.2548296
    %v2093 = vadd.f32 %v2086, 0.2548296
    %v2094 = vadd.f32 %v2087, 0.2548296
    %v2095 = vadd.f32 %v2088, 0.2548296
    %v2096 = vadd.f32 %v2089, 0.2548296
    %v2097 = vadd.f32 %v2090, 0.2548296
    %v2098 = vmul.f32 %v2091, %v2029
    %v2099 = vmul.f32 %v2092, %v2031
    %v2100 = vmul.f32 %v2093, %v2033
    %v2101 = vmul.f32 %v2094, %v2035
    %v2102 = vmul.f32 %v2095, %v2037
    %v2103 = vmul.f32 %v2096, %v2039
    %v2104 = vmul.f32 %v2097, %v2041
    %v2105 = vsub.f32 0.0, %v2007
    %v2106 = vsub.f32 0.0, %v2008
    %v2107 = vsub.f32 0.0, %v2009
    %v2108 = vsub.f32 0.0, %v2010
    %v2109 = vsub.f32 0.0, %v2011
    %v2110 = vsub.f32 0.0, %v2012
    %v2111 = vsub.f32 0.0, %v2013
    %v2112 = vmul.f32 %v2105, %v2007
    %v2113 = vmul.f32 %v2106, %v2008
    %v2114 = vmul.f32 %v2107, %v2009
    %v2115 = vmul.f32 %v2108, %v2010
    %v2116 = vmul.f32 %v2109, %v2011
    %v2117 = vmul.f32 %v2110, %v2012
    %v2118 = vmul.f32 %v2111, %v2013
    %v2119 = vmul.f32 %v2112, 1.442695
    %v2120 = vpow.pop %v2119
    %v2121 = vmul.f32 %v2113, 1.442695
    %v2122 = vpow.pop %v2121
    %v2123 = vmul.f32 %v2114, 1.442695
    %v2124 = vpow.pop %v2123
    %v2125 = vmul.f32 %v2115, 1.442695
    %v2126 = vpow.pop %v2125
    %v2127 = vmul.f32 %v2116, 1.442695
    %v2128 = vpow.pop %v2127
    %v2129 = vmul.f32 %v2117, 1.442695
    %v2130 = vpow.pop %v2129
    %v2131 = vmul.f32 %v2118, 1.442695
    %v2132 = vpow.pop %v2131
    %v2133 = vmul.f32 %v2098, %v2120
    %v2134 = vmul.f32 %v2099, %v2122
    %v2135 = vmul.f32 %v2100, %v2124
    %v2136 = vmul.f32 %v2101, %v2126
    %v2137 = vmul.f32 %v2102, %v2128
    %v2138 = vmul.f32 %v2103, %v2130
    %v2139 = vmul.f32 %v2104, %v2132
    %v2140 = vsub.f32 1.0, %v2133
    %v2141 = vsub.f32 1.0, %v2134
    %v2142 = vsub.f32 1.0, %v2135
    %v2143 = vsub.f32 1.0, %v2136
    %v2144 = vsub.f32 1.0, %v2137
    %v2145 = vsub.f32 1.0, %v2138
    %v2146 = vsub.f32 1.0, %v2139
    %v2147 = vmul.f32 %v2000, %v2140
    %v2148 = vmul.f32 %v2001, %v2141
    %v2149 = vmul.f32 %v2002, %v2142
    %v2150 = vmul.f32 %v2003, %v2143
    %v2151 = vmul.f32 %v2004, %v2144
    %v2152 = vmul.f32 %v2005, %v2145
    %v2153 = vmul.f32 %v2006, %v2146
    %v2154 = vadd.f32 %v2147, 1.0
    %v2155 = vadd.f32 %v2148, 1.0
    %v2156 = vadd.f32 %v2149, 1.0
    %v2157 = vadd.f32 %v2150, 1.0
    %v2158 = vadd.f32 %v2151, 1.0
    %v2159 = vadd.f32 %v2152, 1.0
    %v2160 = vadd.f32 %v2153, 1.0
    %v2161 = vmul.f32 %v1978, %v2154
    %v2162 = vmul.f32 %v1979, %v2155
    %v2163 = vmul.f32 %v1980, %v2156
    %v2164 = vmul.f32 %v1981, %v2157
    %v2165 = vmul.f32 %v1982, %v2158
    %v2166 = vmul.f32 %v1983, %v2159
    %v2167 = vmul.f32 %v1984, %v2160
    %v2168 = vld [vmem:[%s3] sm:$0xff]
    %v2169 = vld [vmem:[%s3 + $0x8] sm:$0xff]
    %v2170 = vld [vmem:[%s3 + $0x10] sm:$0xff]
    %v2171 = vld [vmem:[%s3 + $0x18] sm:$0xff]
    %v2172 = vld [vmem:[%s3 + $0x20] sm:$0xff]
    %v2173 = vld [vmem:[%s3 + $0x28] sm:$0xff]
    %v2174 = vld [vmem:[%s3 + $0x30] sm:$0xff]
    %v2175 = vld [vmem:[%s3 + $0x38] sm:$0xff]
    %v2176 = vld [vmem:[%s3 + $0x40] sm:$0xff]
    %v2177 = vld [vmem:[%s3 + $0x48] sm:$0xff]
    %v2178 = vld [vmem:[%s3 + $0x50] sm:$0xff]
    %v2179 = vld [vmem:[%s3 + $0x58] sm:$0xff]
    %v2180 = vld [vmem:[%s3 + $0x60] sm:$0xff]
    %v2181 = vld [vmem:[%s3 + $0x68] sm:$0xff]
    %v2182 = vld [vmem:[%s3 + $0x70] sm:$0xff]
    %v2183 = vld [vmem:[%s3 + $0x78] sm:$0xff]
    %v2184 = vld [vmem:[%s3 + $0x80] sm:$0xff]
    %v2185 = vld [vmem:[%s3 + $0x88] sm:$0xff]
    %v2186 = vld [vmem:[%s3 + $0x90] sm:$0xff]
    %v2187 = vld [vmem:[%s3 + $0x98] sm:$0xff]
    %v2188 = vld [vmem:[%s3 + $0xa0] sm:$0xff]
    %v2189 = vld [vmem:[%s3 + $0xa8] sm:$0xff]
    %v2190 = vld [vmem:[%s3 + $0xb0] sm:$0xff]
    %v2191 = vld [vmem:[%s3 + $0xb8] sm:$0xff]
    %v2192 = vld [vmem:[%s3 + $0xc0] sm:$0xff]
    %v2193 = vld [vmem:[%s3 + $0xc8] sm:$0xff]
    %v2194 = vld [vmem:[%s3 + $0xd0] sm:$0xff]
    %v2195 = vld [vmem:[%s3 + $0xd8] sm:$0xff]
    %v2196 = vld [vmem:[%s3 + $0xe0] sm:$0xff]
    %v2197 = vld [vmem:[%s3 + $0xe8] sm:$0xff]
    %v2198 = vld [vmem:[%s3 + $0xf0] sm:$0xff]
    %v2199 = vld [vmem:[%s3 + $0xf8] sm:$0xff]
    %v2200 = vld [vmem:[%s3 + $0x100] sm:$0xff]
    %v2201 = vld [vmem:[%s3 + $0x108] sm:$0xff]
    %v2202 = vld [vmem:[%s3 + $0x110] sm:$0xff]
    %v2203 = vld [vmem:[%s3 + $0x118] sm:$0xff]
    %v2204 = vld [vmem:[%s3 + $0x120] sm:$0xff]
    %v2205 = vld [vmem:[%s3 + $0x128] sm:$0xff]
    %v2206 = vld [vmem:[%s3 + $0x130] sm:$0xff]
    %v2207 = vld [vmem:[%s3 + $0x138] sm:$0xff]
    %v2208 = vld [vmem:[%s3 + $0x140] sm:$0xff]
    %v2209 = vld [vmem:[%s3 + $0x148] sm:$0xff]
    %v2210 = vld [vmem:[%s3 + $0x150] sm:$0xff]
    %v2211 = vld [vmem:[%s3 + $0x158] sm:$0xff]
    %v2212 = vld [vmem:[%s3 + $0x160] sm:$0xff]
    %v2213 = vld [vmem:[%s3 + $0x168] sm:$0xff]
    %v2214 = vld [vmem:[%s3 + $0x170] sm:$0xff]
    %v2215 = vld [vmem:[%s3 + $0x178] sm:$0xff]
    %v2216 = vld [vmem:[%s3 + $0x180] sm:$0xff]
    %v2217 = vld [vmem:[%s3 + $0x188] sm:$0xff]
    %v2218 = vld [vmem:[%s3 + $0x190] sm:$0xff]
    %v2219 = vld [vmem:[%s3 + $0x198] sm:$0xff]
    %v2220 = vld [vmem:[%s3 + $0x1a0] sm:$0xff]
    %v2221 = vld [vmem:[%s3 + $0x1a8] sm:$0xff]
    %v2222 = vld [vmem:[%s3 + $0x1b0] sm:$0xff]
    %v2223 = vld [vmem:[%s3 + $0x1b8] sm:$0xff]
    %v2224 = vld [vmem:[%s3 + $0x1c0] sm:$0xff]
    %v2225 = vld [vmem:[%s3 + $0x1c8] sm:$0xff]
    %v2226 = vld [vmem:[%s3 + $0x1d0] sm:$0xff]
    %v2227 = vld [vmem:[%s3 + $0x1d8] sm:$0xff]
    %v2228 = vld [vmem:[%s3 + $0x1e0] sm:$0xff]
    %v2229 = vld [vmem:[%s3 + $0x1e8] sm:$0xff]
    %v2230 = vld [vmem:[%s3 + $0x1f0] sm:$0xff]
    %v2231 = vld [vmem:[%s3 + $0x1f8] sm:$0xff]
    %v2232 = vld [vmem:[%s3 + $0x200] sm:$0xff]
    %v2233 = vld [vmem:[%s3 + $0x208] sm:$0xff]
    %v2234 = vld [vmem:[%s3 + $0x210] sm:$0xff]
    %v2235 = vld [vmem:[%s3 + $0x218] sm:$0xff]
    %v2236 = vld [vmem:[%s3 + $0x220] sm:$0xff]
    %v2237 = vld [vmem:[%s3 + $0x228] sm:$0xff]
    %v2238 = vld [vmem:[%s3 + $0x230] sm:$0xff]
    %v2239 = vld [vmem:[%s3 + $0x238] sm:$0xff]
    %v2240 = vld [vmem:[%s3 + $0x240] sm:$0xff]
    %v2241 = vld [vmem:[%s3 + $0x248] sm:$0xff]
    %v2242 = vld [vmem:[%s3 + $0x250] sm:$0xff]
    %v2243 = vld [vmem:[%s3 + $0x258] sm:$0xff]
    %v2244 = vld [vmem:[%s3 + $0x260] sm:$0xff]
    %v2245 = vld [vmem:[%s3 + $0x268] sm:$0xff]
    %v2246 = vld [vmem:[%s3 + $0x270] sm:$0xff]
    %v2247 = vld [vmem:[%s3 + $0x278] sm:$0xff]
    %v2248 = vld [vmem:[%s3 + $0x280] sm:$0xff]
    %v2249 = vld [vmem:[%s3 + $0x288] sm:$0xff]
    %v2250 = vld [vmem:[%s3 + $0x290] sm:$0xff]
    %v2251 = vld [vmem:[%s3 + $0x298] sm:$0xff]
    %v2252 = vld [vmem:[%s3 + $0x2a0] sm:$0xff]
    %v2253 = vld [vmem:[%s3 + $0x2a8] sm:$0xff]
    %v2254 = vld [vmem:[%s3 + $0x2b0] sm:$0xff]
    %v2255 = vld [vmem:[%s3 + $0x2b8] sm:$0xff]
    %v2256 = vld [vmem:[%s3 + $0x2c0] sm:$0xff]
    %v2257 = vld [vmem:[%s3 + $0x2c8] sm:$0xff]
    %v2258 = vld [vmem:[%s3 + $0x2d0] sm:$0xff]
    %v2259 = vld [vmem:[%s3 + $0x2d8] sm:$0xff]
    %v2260 = vld [vmem:[%s3 + $0x2e0] sm:$0xff]
    %v2261 = vld [vmem:[%s3 + $0x2e8] sm:$0xff]
    %v2262 = vld [vmem:[%s3 + $0x2f0] sm:$0xff]
    %v2263 = vld [vmem:[%s3 + $0x2f8] sm:$0xff]
    %v2264 = vld [vmem:[%s3 + $0x300] sm:$0xff]
    %v2265 = vld [vmem:[%s3 + $0x308] sm:$0xff]
    %v2266 = vld [vmem:[%s3 + $0x310] sm:$0xff]
    %v2267 = vld [vmem:[%s3 + $0x318] sm:$0xff]
    %v2268 = vld [vmem:[%s3 + $0x320] sm:$0xff]
    %v2269 = vld [vmem:[%s3 + $0x328] sm:$0xff]
    %v2270 = vld [vmem:[%s3 + $0x330] sm:$0xff]
    %v2271 = vld [vmem:[%s3 + $0x338] sm:$0xff]
    %v2272 = vld [vmem:[%s3 + $0x340] sm:$0xff]
    %v2273 = vld [vmem:[%s3 + $0x348] sm:$0xff]
    %v2274 = vld [vmem:[%s3 + $0x350] sm:$0xff]
    %v2275 = vld [vmem:[%s3 + $0x358] sm:$0xff]
    %v2276 = vld [vmem:[%s3 + $0x360] sm:$0xff]
    %v2277 = vld [vmem:[%s3 + $0x368] sm:$0xff]
    %v2278 = vld [vmem:[%s3 + $0x370] sm:$0xff]
    %v2279 = vld [vmem:[%s3 + $0x378] sm:$0xff]
    %v2280 = vld [vmem:[%s3 + $0x380] sm:$0xff]
    %v2281 = vld [vmem:[%s3 + $0x388] sm:$0xff]
    %v2282 = vld [vmem:[%s3 + $0x390] sm:$0xff]
    %v2283 = vld [vmem:[%s3 + $0x398] sm:$0xff]
    %v2284 = vld [vmem:[%s3 + $0x3a0] sm:$0xff]
    %v2285 = vld [vmem:[%s3 + $0x3a8] sm:$0xff]
    %v2286 = vld [vmem:[%s3 + $0x3b0] sm:$0xff]
    %v2287 = vld [vmem:[%s3 + $0x3b8] sm:$0xff]
    %v2288 = vld [vmem:[%s3 + $0x3c0] sm:$0xff]
    %v2289 = vld [vmem:[%s3 + $0x3c8] sm:$0xff]
    %v2290 = vld [vmem:[%s3 + $0x3d0] sm:$0xff]
    %v2291 = vld [vmem:[%s3 + $0x3d8] sm:$0xff]
    %v2292 = vld [vmem:[%s3 + $0x3e0] sm:$0xff]
    %v2293 = vld [vmem:[%s3 + $0x3e8] sm:$0xff]
    %v2294 = vld [vmem:[%s3 + $0x3f0] sm:$0xff]
    %v2295 = vld [vmem:[%s3 + $0x3f8] sm:$0xff]
    %v2296 = vld [vmem:[%s3 + $0x400] sm:$0xff]
    %v2297 = vld [vmem:[%s3 + $0x408] sm:$0xff]
    %v2298 = vld [vmem:[%s3 + $0x410] sm:$0xff]
    %v2299 = vld [vmem:[%s3 + $0x418] sm:$0xff]
    %v2300 = vld [vmem:[%s3 + $0x420] sm:$0xff]
    %v2301 = vld [vmem:[%s3 + $0x428] sm:$0xff]
    %v2302 = vld [vmem:[%s3 + $0x430] sm:$0xff]
    %v2303 = vld [vmem:[%s3 + $0x438] sm:$0xff]
    %v2304 = vld [vmem:[%s3 + $0x440] sm:$0xff]
    %v2305 = vld [vmem:[%s3 + $0x448] sm:$0xff]
    %v2306 = vld [vmem:[%s3 + $0x450] sm:$0xff]
    %v2307 = vld [vmem:[%s3 + $0x458] sm:$0xff]
    %v2308 = vld [vmem:[%s3 + $0x460] sm:$0xff]
    %v2309 = vld [vmem:[%s3 + $0x468] sm:$0xff]
    %v2310 = vld [vmem:[%s3 + $0x470] sm:$0xff]
    %v2311 = vld [vmem:[%s3 + $0x478] sm:$0xff]
    %v2312 = vld [vmem:[%s3 + $0x480] sm:$0xff]
    %v2313 = vld [vmem:[%s3 + $0x488] sm:$0xff]
    %v2314 = vld [vmem:[%s3 + $0x490] sm:$0xff]
    %v2315 = vld [vmem:[%s3 + $0x498] sm:$0xff]
    %v2316 = vld [vmem:[%s3 + $0x4a0] sm:$0xff]
    %v2317 = vld [vmem:[%s3 + $0x4a8] sm:$0xff]
    %v2318 = vld [vmem:[%s3 + $0x4b0] sm:$0xff]
    %v2319 = vld [vmem:[%s3 + $0x4b8] sm:$0xff]
    %v2320 = vld [vmem:[%s3 + $0x4c0] sm:$0xff]
    %v2321 = vld [vmem:[%s3 + $0x4c8] sm:$0xff]
    %v2322 = vld [vmem:[%s3 + $0x4d0] sm:$0xff]
    %v2323 = vld [vmem:[%s3 + $0x4d8] sm:$0xff]
    %v2324 = vld [vmem:[%s3 + $0x4e0] sm:$0xff]
    %v2325 = vld [vmem:[%s3 + $0x4e8] sm:$0xff]
    %v2326 = vld [vmem:[%s3 + $0x4f0] sm:$0xff]
    %v2327 = vld [vmem:[%s3 + $0x4f8] sm:$0xff]
    %v2328 = vld [vmem:[%s3 + $0x500] sm:$0xff]
    %v2329 = vld [vmem:[%s3 + $0x508] sm:$0xff]
    %v2330 = vld [vmem:[%s3 + $0x510] sm:$0xff]
    %v2331 = vld [vmem:[%s3 + $0x518] sm:$0xff]
    %v2332 = vld [vmem:[%s3 + $0x520] sm:$0xff]
    %v2333 = vld [vmem:[%s3 + $0x528] sm:$0xff]
    %v2334 = vld [vmem:[%s3 + $0x530] sm:$0xff]
    %v2335 = vld [vmem:[%s3 + $0x538] sm:$0xff]
    %v2336 = vld [vmem:[%s3 + $0x540] sm:$0xff]
    %v2337 = vld [vmem:[%s3 + $0x548] sm:$0xff]
    %v2338 = vld [vmem:[%s3 + $0x550] sm:$0xff]
    %v2339 = vld [vmem:[%s3 + $0x558] sm:$0xff]
    %v2340 = vld [vmem:[%s3 + $0x560] sm:$0xff]
    %v2341 = vld [vmem:[%s3 + $0x568] sm:$0xff]
    %v2342 = vld [vmem:[%s3 + $0x570] sm:$0xff]
    %v2343 = vld [vmem:[%s3 + $0x578] sm:$0xff]
    %v2344 = vld [vmem:[%s3 + $0x580] sm:$0xff]
    %v2345 = vld [vmem:[%s3 + $0x588] sm:$0xff]
    %v2346 = vld [vmem:[%s3 + $0x590] sm:$0xff]
    %v2347 = vld [vmem:[%s3 + $0x598] sm:$0xff]
    %v2348 = vld [vmem:[%s3 + $0x5a0] sm:$0xff]
    %v2349 = vld [vmem:[%s3 + $0x5a8] sm:$0xff]
    %v2350 = vld [vmem:[%s3 + $0x5b0] sm:$0xff]
    %v2351 = vld [vmem:[%s3 + $0x5b8] sm:$0xff]
    %v2352 = vld [vmem:[%s3 + $0x5c0] sm:$0xff]
    %v2353 = vld [vmem:[%s3 + $0x5c8] sm:$0xff]
    %v2354 = vld [vmem:[%s3 + $0x5d0] sm:$0xff]
    %v2355 = vld [vmem:[%s3 + $0x5d8] sm:$0xff]
    %v2356 = vld [vmem:[%s3 + $0x5e0] sm:$0xff]
    %v2357 = vld [vmem:[%s3 + $0x5e8] sm:$0xff]
    %v2358 = vld [vmem:[%s3 + $0x5f0] sm:$0xff]
    %v2359 = vld [vmem:[%s3 + $0x5f8] sm:$0xff]
    %v2360 = vld [vmem:[%s3 + $0x600] sm:$0xff]
    %v2361 = vld [vmem:[%s3 + $0x608] sm:$0xff]
    %v2362 = vld [vmem:[%s3 + $0x610] sm:$0xff]
    %v2363 = vld [vmem:[%s3 + $0x618] sm:$0xff]
    %v2364 = vld [vmem:[%s3 + $0x620] sm:$0xff]
    %v2365 = vld [vmem:[%s3 + $0x628] sm:$0xff]
    %v2366 = vld [vmem:[%s3 + $0x630] sm:$0xff]
    %v2367 = vld [vmem:[%s3 + $0x638] sm:$0xff]
    %v2368 = vld [vmem:[%s3 + $0x640] sm:$0xff]
    %v2369 = vld [vmem:[%s3 + $0x648] sm:$0xff]
    %v2370 = vld [vmem:[%s3 + $0x650] sm:$0xff]
    %v2371 = vld [vmem:[%s3 + $0x658] sm:$0xff]
    %v2372 = vld [vmem:[%s3 + $0x660] sm:$0xff]
    %v2373 = vld [vmem:[%s3 + $0x668] sm:$0xff]
    %v2374 = vld [vmem:[%s3 + $0x670] sm:$0xff]
    %v2375 = vld [vmem:[%s3 + $0x678] sm:$0xff]
    %v2376 = vld [vmem:[%s3 + $0x680] sm:$0xff]
    %v2377 = vld [vmem:[%s3 + $0x688] sm:$0xff]
    %v2378 = vld [vmem:[%s3 + $0x690] sm:$0xff]
    %v2379 = vld [vmem:[%s3 + $0x698] sm:$0xff]
    %v2380 = vld [vmem:[%s3 + $0x6a0] sm:$0xff]
    %v2381 = vld [vmem:[%s3 + $0x6a8] sm:$0xff]
    %v2382 = vld [vmem:[%s3 + $0x6b0] sm:$0xff]
    %v2383 = vld [vmem:[%s3 + $0x6b8] sm:$0xff]
    %v2384 = vld [vmem:[%s3 + $0x6c0] sm:$0xff]
    %v2385 = vld [vmem:[%s3 + $0x6c8] sm:$0xff]
    %v2386 = vld [vmem:[%s3 + $0x6d0] sm:$0xff]
    %v2387 = vld [vmem:[%s3 + $0x6d8] sm:$0xff]
    %v2388 = vld [vmem:[%s3 + $0x6e0] sm:$0xff]
    %v2389 = vld [vmem:[%s3 + $0x6e8] sm:$0xff]
    %v2390 = vld [vmem:[%s3 + $0x6f0] sm:$0xff]
    %v2391 = vld [vmem:[%s3 + $0x6f8] sm:$0xff]
    %v2392 = vld [vmem:[%s3 + $0x700] sm:$0xff]
    %v2393 = vld [vmem:[%s3 + $0x708] sm:$0xff]
    %v2394 = vld [vmem:[%s3 + $0x710] sm:$0xff]
    %v2395 = vld [vmem:[%s3 + $0x718] sm:$0xff]
    %v2396 = vld [vmem:[%s3 + $0x720] sm:$0xff]
    %v2397 = vld [vmem:[%s3 + $0x728] sm:$0xff]
    %v2398 = vld [vmem:[%s3 + $0x730] sm:$0xff]
    %v2399 = vld [vmem:[%s3 + $0x738] sm:$0xff]
    %v2400 = vld [vmem:[%s3 + $0x740] sm:$0xff]
    %v2401 = vld [vmem:[%s3 + $0x748] sm:$0xff]
    %v2402 = vld [vmem:[%s3 + $0x750] sm:$0xff]
    %v2403 = vld [vmem:[%s3 + $0x758] sm:$0xff]
    %v2404 = vld [vmem:[%s3 + $0x760] sm:$0xff]
    %v2405 = vld [vmem:[%s3 + $0x768] sm:$0xff]
    %v2406 = vld [vmem:[%s3 + $0x770] sm:$0xff]
    %v2407 = vld [vmem:[%s3 + $0x778] sm:$0xff]
    %v2408 = vld [vmem:[%s3 + $0x780] sm:$0xff]
    %v2409 = vld [vmem:[%s3 + $0x788] sm:$0xff]
    %v2410 = vld [vmem:[%s3 + $0x790] sm:$0xff]
    %v2411 = vld [vmem:[%s3 + $0x798] sm:$0xff]
    %v2412 = vld [vmem:[%s3 + $0x7a0] sm:$0xff]
    %v2413 = vld [vmem:[%s3 + $0x7a8] sm:$0xff]
    %v2414 = vld [vmem:[%s3 + $0x7b0] sm:$0xff]
    %v2415 = vld [vmem:[%s3 + $0x7b8] sm:$0xff]
    %v2416 = vld [vmem:[%s3 + $0x7c0] sm:$0xff]
    %v2417 = vld [vmem:[%s3 + $0x7c8] sm:$0xff]
    %v2418 = vld [vmem:[%s3 + $0x7d0] sm:$0xff]
    %v2419 = vld [vmem:[%s3 + $0x7d8] sm:$0xff]
    %v2420 = vld [vmem:[%s3 + $0x7e0] sm:$0xff]
    %v2421 = vld [vmem:[%s3 + $0x7e8] sm:$0xff]
    %v2422 = vld [vmem:[%s3 + $0x7f0] sm:$0xff]
    %v2423 = vld [vmem:[%s3 + $0x7f8] sm:$0xff]
    %v2424 = vld [vmem:[%s3 + $0x800] sm:$0xff]
    %v2425 = vld [vmem:[%s3 + $0x808] sm:$0xff]
    %v2426 = vld [vmem:[%s3 + $0x810] sm:$0xff]
    %v2427 = vld [vmem:[%s3 + $0x818] sm:$0xff]
    %v2428 = vld [vmem:[%s3 + $0x820] sm:$0xff]
    %v2429 = vld [vmem:[%s3 + $0x828] sm:$0xff]
    %v2430 = vld [vmem:[%s3 + $0x830] sm:$0xff]
    %v2431 = vld [vmem:[%s3 + $0x838] sm:$0xff]
    %v2432 = vld [vmem:[%s3 + $0x840] sm:$0xff]
    %v2433 = vld [vmem:[%s3 + $0x848] sm:$0xff]
    %v2434 = vld [vmem:[%s3 + $0x850] sm:$0xff]
    %v2435 = vld [vmem:[%s3 + $0x858] sm:$0xff]
    %v2436 = vld [vmem:[%s3 + $0x860] sm:$0xff]
    %v2437 = vld [vmem:[%s3 + $0x868] sm:$0xff]
    %v2438 = vld [vmem:[%s3 + $0x870] sm:$0xff]
    %v2439 = vld [vmem:[%s3 + $0x878] sm:$0xff]
    %v2440 = vld [vmem:[%s3 + $0x880] sm:$0xff]
    %v2441 = vld [vmem:[%s3 + $0x888] sm:$0xff]
    %v2442 = vld [vmem:[%s3 + $0x890] sm:$0xff]
    %v2443 = vld [vmem:[%s3 + $0x898] sm:$0xff]
    %v2444 = vld [vmem:[%s3 + $0x8a0] sm:$0xff]
    %v2445 = vld [vmem:[%s3 + $0x8a8] sm:$0xff]
    %v2446 = vld [vmem:[%s3 + $0x8b0] sm:$0xff]
    %v2447 = vld [vmem:[%s3 + $0x8b8] sm:$0xff]
    %v2448 = vld [vmem:[%s3 + $0x8c0] sm:$0xff]
    %v2449 = vld [vmem:[%s3 + $0x8c8] sm:$0xff]
    %v2450 = vld [vmem:[%s3 + $0x8d0] sm:$0xff]
    %v2451 = vld [vmem:[%s3 + $0x8d8] sm:$0xff]
    %v2452 = vld [vmem:[%s3 + $0x8e0] sm:$0xff]
    %v2453 = vld [vmem:[%s3 + $0x8e8] sm:$0xff]
    %v2454 = vld [vmem:[%s3 + $0x8f0] sm:$0xff]
    %v2455 = vld [vmem:[%s3 + $0x8f8] sm:$0xff]
    %v2456 = vld [vmem:[%s3 + $0x900] sm:$0xff]
    %v2457 = vld [vmem:[%s3 + $0x908] sm:$0xff]
    %v2458 = vld [vmem:[%s3 + $0x910] sm:$0xff]
    %v2459 = vld [vmem:[%s3 + $0x918] sm:$0xff]
    %v2460 = vld [vmem:[%s3 + $0x920] sm:$0xff]
    %v2461 = vld [vmem:[%s3 + $0x928] sm:$0xff]
    %v2462 = vld [vmem:[%s4] sm:$0x7]
    %v2464 = vlaneseq
    %v2465 = vshrl.u32 %v2464, 7
    %v2466 = vsub.s32 0, %v2465
    %v2467 = vrot.slane %v2462, %v2466
    %v2468 = vlaneseq
    %v2469 = vshrl.u32 %v2468, 7
    %v2470 = vsub.s32 1, %v2469
    %v2471 = vrot.slane %v2462, %v2470
    %v2472 = vlaneseq
    %v2473 = vshrl.u32 %v2472, 7
    %v2474 = vsub.s32 2, %v2473
    %v2475 = vrot.slane %v2462, %v2474
    %v2480 = vsel %vm843, %v2167, 0
    %2482 = vmatprep.subr.mxu0 %v2214
    %2483 = vmatpush1.msra.mxu0 %v2213
    %2484 = vmatprep.subr.mxu0 %v2211
    %2485 = vmatpush1.msra.mxu0 %v2210
    %2486 = vmatprep.subr.mxu0 %v2208
    %2487 = vmatpush1.msra.mxu0 %v2207
    %2488 = vmatprep.subr.mxu0 %v2205
    %2489 = vmatpush1.msra.mxu0 %v2204
    %2490 = vmatprep.subr.mxu0 %v2202
    %2491 = vmatpush1.msra.mxu0 %v2201
    %2492 = vmatprep.subr.mxu0 %v2199
    %2493 = vmatpush1.msra.mxu0 %v2198
    %2494 = vmatprep.subr.mxu0 %v2196
    %2495 = vmatpush1.msra.mxu0 %v2195
    %2496 = vmatprep.subr.mxu0 %v2193
    %2497 = vmatpush1.msra.mxu0 %v2192
    %2498 = vmatprep.subr.mxu0 %v2190
    %2499 = vmatpush1.msra.mxu0 %v2189
    %2500 = vmatprep.subr.mxu0 %v2187
    %2501 = vmatpush1.msra.mxu0 %v2186
    %2502 = vmatprep.subr.mxu0 %v2184
    %2503 = vmatpush1.msra.mxu0 %v2183
    %2504 = vmatprep.subr.mxu0 %v2181
    %2505 = vmatpush1.msra.mxu0 %v2180
    %2506 = vmatprep.subr.mxu0 %v2178
    %2507 = vmatpush1.msra.mxu0 %v2177
    %2508 = vmatprep.subr.mxu0 %v2175
    %2509 = vmatpush1.msra.mxu0 %v2174
    %2510 = vmatprep.subr.mxu0 %v2172
    %2511 = vmatpush1.msra.mxu0 %v2171
    %2512 = vmatprep.subr.mxu0 %v2169
    %2513 = vmatpush1.msra.mxu0 %v2168
    %2514 = vmatprep.subr.mxu0 %v2262
    %2515 = vmatpush2.msra.mxu0 %v2261
    %2516 = vmatprep.subr.mxu0 %v2259
    %2517 = vmatpush2.msra.mxu0 %v2258
    %2518 = vmatprep.subr.mxu0 %v2256
    %2519 = vmatpush2.msra.mxu0 %v2255
    %2520 = vmatprep.subr.mxu0 %v2253
    %2521 = vmatpush2.msra.mxu0 %v2252
    %2522 = vmatprep.subr.mxu0 %v2250
    %2523 = vmatpush2.msra.mxu0 %v2249
    %2524 = vmatprep.subr.mxu0 %v2247
    %2525 = vmatpush2.msra.mxu0 %v2246
    %2526 = vmatprep.subr.mxu0 %v2244
    %2527 = vmatpush2.msra.mxu0 %v2243
    %2528 = vmatprep.subr.mxu0 %v2241
    %2529 = vmatpush2.msra.mxu0 %v2240
    %2530 = vmatprep.subr.mxu0 %v2238
    %2531 = vmatpush2.msra.mxu0 %v2237
    %2532 = vmatprep.subr.mxu0 %v2235
    %2533 = vmatpush2.msra.mxu0 %v2234
    %2534 = vmatprep.subr.mxu0 %v2232
    %2535 = vmatpush2.msra.mxu0 %v2231
    %2536 = vmatprep.subr.mxu0 %v2229
    %2537 = vmatpush2.msra.mxu0 %v2228
    %2538 = vmatprep.subr.mxu0 %v2226
    %2539 = vmatpush2.msra.mxu0 %v2225
    %2540 = vmatprep.subr.mxu0 %v2223
    %2541 = vmatpush2.msra.mxu0 %v2222
    %2542 = vmatprep.subr.mxu0 %v2220
    %2543 = vmatpush2.msra.mxu0 %v2219
    %2544 = vmatprep.subr.mxu0 %v2217
    %2545 = vmatpush2.msra.mxu0 %v2216
    %2546 = vmatprep.mubr.f32.mxu0 %v2162
    %2547 = vmatmul.mubr.f32.gmra.mxu0 %v2161
    %v2548 = vpop.f32.mrf.mxu0
    %v2549 = vadd.f32 %v2467, %v2548
    %v2550 = vpop.f32.mrf.mxu0
    %v2551 = vadd.f32 %v2471, %v2550
    %2552 = vdwg.mxu0
    %2553 = vmatprep.subr.mxu0 %v2310
    %2554 = vmatpush1.msra.mxu0 %v2309
    %2555 = vmatprep.subr.mxu0 %v2307
    %2556 = vmatpush1.msra.mxu0 %v2306
    %2557 = vmatprep.subr.mxu0 %v2304
    %2558 = vmatpush1.msra.mxu0 %v2303
    %2559 = vmatprep.subr.mxu0 %v2301
    %2560 = vmatpush1.msra.mxu0 %v2300
    %2561 = vmatprep.subr.mxu0 %v2298
    %2562 = vmatpush1.msra.mxu0 %v2297
    %2563 = vmatprep.subr.mxu0 %v2295
    %2564 = vmatpush1.msra.mxu0 %v2294
    %2565 = vmatprep.subr.mxu0 %v2292
    %2566 = vmatpush1.msra.mxu0 %v2291
    %2567 = vmatprep.subr.mxu0 %v2289
    %2568 = vmatpush1.msra.mxu0 %v2288
    %2569 = vmatprep.subr.mxu0 %v2286
    %2570 = vmatpush1.msra.mxu0 %v2285
    %2571 = vmatprep.subr.mxu0 %v2283
    %2572 = vmatpush1.msra.mxu0 %v2282
    %2573 = vmatprep.subr.mxu0 %v2280
    %2574 = vmatpush1.msra.mxu0 %v2279
    %2575 = vmatprep.subr.mxu0 %v2277
    %2576 = vmatpush1.msra.mxu0 %v2276
    %2577 = vmatprep.subr.mxu0 %v2274
    %2578 = vmatpush1.msra.mxu0 %v2273
    %2579 = vmatprep.subr.mxu0 %v2271
    %2580 = vmatpush1.msra.mxu0 %v2270
    %2581 = vmatprep.subr.mxu0 %v2268
    %2582 = vmatpush1.msra.mxu0 %v2267
    %2583 = vmatprep.subr.mxu0 %v2265
    %2584 = vmatpush1.msra.mxu0 %v2264
    %2585 = vmatprep.subr.mxu0 %v2358
    %2586 = vmatpush2.msra.mxu0 %v2357
    %2587 = vmatprep.subr.mxu0 %v2355
    %2588 = vmatpush2.msra.mxu0 %v2354
    %2589 = vmatprep.subr.mxu0 %v2352
    %2590 = vmatpush2.msra.mxu0 %v2351
    %2591 = vmatprep.subr.mxu0 %v2349
    %2592 = vmatpush2.msra.mxu0 %v2348
    %2593 = vmatprep.subr.mxu0 %v2346
    %2594 = vmatpush2.msra.mxu0 %v2345
    %2595 = vmatprep.subr.mxu0 %v2343
    %2596 = vmatpush2.msra.mxu0 %v2342
    %2597 = vmatprep.subr.mxu0 %v2340
    %2598 = vmatpush2.msra.mxu0 %v2339
    %2599 = vmatprep.subr.mxu0 %v2337
    %2600 = vmatpush2.msra.mxu0 %v2336
    %2601 = vmatprep.subr.mxu0 %v2334
    %2602 = vmatpush2.msra.mxu0 %v2333
    %2603 = vmatprep.subr.mxu0 %v2331
    %2604 = vmatpush2.msra.mxu0 %v2330
    %2605 = vmatprep.subr.mxu0 %v2328
    %2606 = vmatpush2.msra.mxu0 %v2327
    %2607 = vmatprep.subr.mxu0 %v2325
    %2608 = vmatpush2.msra.mxu0 %v2324
    %2609 = vmatprep.subr.mxu0 %v2322
    %2610 = vmatpush2.msra.mxu0 %v2321
    %2611 = vmatprep.subr.mxu0 %v2319
    %2612 = vmatpush2.msra.mxu0 %v2318
    %2613 = vmatprep.subr.mxu0 %v2316
    %2614 = vmatpush2.msra.mxu0 %v2315
    %2615 = vmatprep.subr.mxu0 %v2313
    %2616 = vmatpush2.msra.mxu0 %v2312
    %2617 = vmatprep.mubr.f32.mxu0 %v2164
    %2618 = vmatmul.mubr.f32.gmra.mxu0 %v2163
    %v2619 = vpop.f32.mrf.mxu0
    %v2620 = vadd.f32 %v2549, %v2619
    %v2621 = vpop.f32.mrf.mxu0
    %v2622 = vadd.f32 %v2551, %v2621
    %2623 = vdwg.mxu0
    %2624 = vmatprep.subr.mxu0 %v2406
    %2625 = vmatpush1.msra.mxu0 %v2405
    %2626 = vmatprep.subr.mxu0 %v2403
    %2627 = vmatpush1.msra.mxu0 %v2402
    %2628 = vmatprep.subr.mxu0 %v2400
    %2629 = vmatpush1.msra.mxu0 %v2399
    %2630 = vmatprep.subr.mxu0 %v2397
    %2631 = vmatpush1.msra.mxu0 %v2396
    %2632 = vmatprep.subr.mxu0 %v2394
    %2633 = vmatpush1.msra.mxu0 %v2393
    %2634 = vmatprep.subr.mxu0 %v2391
    %2635 = vmatpush1.msra.mxu0 %v2390
    %2636 = vmatprep.subr.mxu0 %v2388
    %2637 = vmatpush1.msra.mxu0 %v2387
    %2638 = vmatprep.subr.mxu0 %v2385
    %2639 = vmatpush1.msra.mxu0 %v2384
    %2640 = vmatprep.subr.mxu0 %v2382
    %2641 = vmatpush1.msra.mxu0 %v2381
    %2642 = vmatprep.subr.mxu0 %v2379
    %2643 = vmatpush1.msra.mxu0 %v2378
    %2644 = vmatprep.subr.mxu0 %v2376
    %2645 = vmatpush1.msra.mxu0 %v2375
    %2646 = vmatprep.subr.mxu0 %v2373
    %2647 = vmatpush1.msra.mxu0 %v2372
    %2648 = vmatprep.subr.mxu0 %v2370
    %2649 = vmatpush1.msra.mxu0 %v2369
    %2650 = vmatprep.subr.mxu0 %v2367
    %2651 = vmatpush1.msra.mxu0 %v2366
    %2652 = vmatprep.subr.mxu0 %v2364
    %2653 = vmatpush1.msra.mxu0 %v2363
    %2654 = vmatprep.subr.mxu0 %v2361
    %2655 = vmatpush1.msra.mxu0 %v2360
    %2656 = vmatprep.subr.mxu0 %v2454
    %2657 = vmatpush2.msra.mxu0 %v2453
    %2658 = vmatprep.subr.mxu0 %v2451
    %2659 = vmatpush2.msra.mxu0 %v2450
    %2660 = vmatprep.subr.mxu0 %v2448
    %2661 = vmatpush2.msra.mxu0 %v2447
    %2662 = vmatprep.subr.mxu0 %v2445
    %2663 = vmatpush2.msra.mxu0 %v2444
    %2664 = vmatprep.subr.mxu0 %v2442
    %2665 = vmatpush2.msra.mxu0 %v2441
    %2666 = vmatprep.subr.mxu0 %v2439
    %2667 = vmatpush2.msra.mxu0 %v2438
    %2668 = vmatprep.subr.mxu0 %v2436
    %2669 = vmatpush2.msra.mxu0 %v2435
    %2670 = vmatprep.subr.mxu0 %v2433
    %2671 = vmatpush2.msra.mxu0 %v2432
    %2672 = vmatprep.subr.mxu0 %v2430
    %2673 = vmatpush2.msra.mxu0 %v2429
    %2674 = vmatprep.subr.mxu0 %v2427
    %2675 = vmatpush2.msra.mxu0 %v2426
    %2676 = vmatprep.subr.mxu0 %v2424
    %2677 = vmatpush2.msra.mxu0 %v2423
    %2678 = vmatprep.subr.mxu0 %v2421
    %2679 = vmatpush2.msra.mxu0 %v2420
    %2680 = vmatprep.subr.mxu0 %v2418
    %2681 = vmatpush2.msra.mxu0 %v2417
    %2682 = vmatprep.subr.mxu0 %v2415
    %2683 = vmatpush2.msra.mxu0 %v2414
    %2684 = vmatprep.subr.mxu0 %v2412
    %2685 = vmatpush2.msra.mxu0 %v2411
    %2686 = vmatprep.subr.mxu0 %v2409
    %2687 = vmatpush2.msra.mxu0 %v2408
    %2688 = vmatprep.mubr.f32.mxu0 %v2166
    %2689 = vmatmul.mubr.f32.gmra.mxu0 %v2165
    %v2690 = vpop.f32.mrf.mxu0
    %v2691 = vadd.f32 %v2620, %v2690
    %v2692 = vpop.f32.mrf.mxu0
    %v2693 = vadd.f32 %v2622, %v2692
    %2694 = vdwg.mxu0
    %2695 = vmatprep.subr.mxu0 0.0
    %2696 = vmatpush1.msra.mxu0 0.0
    %2697 = vmatprep.subr.mxu0 0.0
    %2698 = vmatpush1.msra.mxu0 0.0
    %2699 = vmatprep.subr.mxu0 0.0
    %2700 = vmatpush1.msra.mxu0 0.0
    %2701 = vmatprep.subr.mxu0 0.0
    %2702 = vmatpush1.msra.mxu0 0.0
    %2703 = vmatprep.subr.mxu0 0.0
    %2704 = vmatpush1.msra.mxu0 0.0
    %2705 = vmatprep.subr.mxu0 0.0
    %2706 = vmatpush1.msra.mxu0 0.0
    %2707 = vmatprep.subr.mxu0 0.0
    %2708 = vmatpush1.msra.mxu0 0.0
    %2709 = vmatprep.subr.mxu0 0.0
    %2710 = vmatpush1.msra.mxu0 0.0
    %2711 = vmatprep.subr.mxu0 0.0
    %2712 = vmatpush1.msra.mxu0 0.0
    %2713 = vmatprep.subr.mxu0 0.0
    %2714 = vmatpush1.msra.mxu0 0.0
    %2715 = vmatprep.subr.mxu0 0.0
    %2716 = vmatpush1.msra.mxu0 0.0
    %2717 = vmatprep.subr.mxu0 0.0
    %2718 = vmatpush1.msra.mxu0 0.0
    %2719 = vmatprep.subr.mxu0 0.0
    %2720 = vmatpush1.msra.mxu0 0.0
    %2721 = vmatprep.subr.mxu0 0.0
    %2722 = vmatpush1.msra.mxu0 0.0
    %2723 = vmatprep.subr.mxu0 %v2460
    %2724 = vmatpush1.msra.mxu0 %v2459
    %2725 = vmatprep.subr.mxu0 %v2457
    %2726 = vmatpush1.msra.mxu0 %v2456
    %2727 = vmatprep.subr.mxu0 0.0
    %2728 = vmatpush2.msra.mxu0 0.0
    %2729 = vmatprep.subr.mxu0 0.0
    %2730 = vmatpush2.msra.mxu0 0.0
    %2731 = vmatprep.subr.mxu0 0.0
    %2732 = vmatpush2.msra.mxu0 0.0
    %2733 = vmatprep.subr.mxu0 0.0
    %2734 = vmatpush2.msra.mxu0 0.0
    %2735 = vmatprep.subr.mxu0 0.0
    %2736 = vmatpush2.msra.mxu0 0.0
    %2737 = vmatprep.subr.mxu0 0.0
    %2738 = vmatpush2.msra.mxu0 0.0
    %2739 = vmatprep.subr.mxu0 0.0
    %2740 = vmatpush2.msra.mxu0 0.0
    %2741 = vmatprep.subr.mxu0 0.0
    %2742 = vmatpush2.msra.mxu0 0.0
    %2743 = vmatprep.subr.mxu0 0.0
    %2744 = vmatpush2.msra.mxu0 0.0
    %2745 = vmatprep.subr.mxu0 0.0
    %2746 = vmatpush2.msra.mxu0 0.0
    %2747 = vmatprep.subr.mxu0 0.0
    %2748 = vmatpush2.msra.mxu0 0.0
    %2749 = vmatprep.subr.mxu0 0.0
    %2750 = vmatpush2.msra.mxu0 0.0
    %2751 = vmatprep.subr.mxu0 0.0
    %2752 = vmatpush2.msra.mxu0 0.0
    %2753 = vmatprep.subr.mxu0 0.0
    %2754 = vmatpush2.msra.mxu0 0.0
    %2755 = vmatprep.subr.mxu0 0.0
    %2756 = vmatpush2.msra.mxu0 0.0
    %2757 = vmatprep.subr.mxu0 0.0
    %2758 = vmatpush2.msra.mxu0 0.0
    %2759 = vmatprep.mubr.f32.mxu0 0.0
    %2760 = vmatmul.mubr.f32.gmra.mxu0 %v2480
    %v2761 = vpop.f32.mrf.mxu0
    %v2762 = vadd.f32 %v2691, %v2761
    %v2763 = vpop.f32.mrf.mxu0
    %v2764 = vadd.f32 %v2693, %v2763
    %2765 = vdwg.mxu0
    %2766 = vmatprep.subr.mxu0 0.0
    %2767 = vmatpush1.msra.mxu0 %v2215
    %2768 = vmatprep.subr.mxu0 0.0
    %2769 = vmatpush1.msra.mxu0 %v2212
    %2770 = vmatprep.subr.mxu0 0.0
    %2771 = vmatpush1.msra.mxu0 %v2209
    %2772 = vmatprep.subr.mxu0 0.0
    %2773 = vmatpush1.msra.mxu0 %v2206
    %2774 = vmatprep.subr.mxu0 0.0
    %2775 = vmatpush1.msra.mxu0 %v2203
    %2776 = vmatprep.subr.mxu0 0.0
    %2777 = vmatpush1.msra.mxu0 %v2200
    %2778 = vmatprep.subr.mxu0 0.0
    %2779 = vmatpush1.msra.mxu0 %v2197
    %2780 = vmatprep.subr.mxu0 0.0
    %2781 = vmatpush1.msra.mxu0 %v2194
    %2782 = vmatprep.subr.mxu0 0.0
    %2783 = vmatpush1.msra.mxu0 %v2191
    %2784 = vmatprep.subr.mxu0 0.0
    %2785 = vmatpush1.msra.mxu0 %v2188
    %2786 = vmatprep.subr.mxu0 0.0
    %2787 = vmatpush1.msra.mxu0 %v2185
    %2788 = vmatprep.subr.mxu0 0.0
    %2789 = vmatpush1.msra.mxu0 %v2182
    %2790 = vmatprep.subr.mxu0 0.0
    %2791 = vmatpush1.msra.mxu0 %v2179
    %2792 = vmatprep.subr.mxu0 0.0
    %2793 = vmatpush1.msra.mxu0 %v2176
    %2794 = vmatprep.subr.mxu0 0.0
    %2795 = vmatpush1.msra.mxu0 %v2173
    %2796 = vmatprep.subr.mxu0 0.0
    %2797 = vmatpush1.msra.mxu0 %v2170
    %2798 = vmatprep.subr.mxu0 0.0
    %2799 = vmatpush2.msra.mxu0 %v2263
    %2800 = vmatprep.subr.mxu0 0.0
    %2801 = vmatpush2.msra.mxu0 %v2260
    %2802 = vmatprep.subr.mxu0 0.0
    %2803 = vmatpush2.msra.mxu0 %v2257
    %2804 = vmatprep.subr.mxu0 0.0
    %2805 = vmatpush2.msra.mxu0 %v2254
    %2806 = vmatprep.subr.mxu0 0.0
    %2807 = vmatpush2.msra.mxu0 %v2251
    %2808 = vmatprep.subr.mxu0 0.0
    %2809 = vmatpush2.msra.mxu0 %v2248
    %2810 = vmatprep.subr.mxu0 0.0
    %2811 = vmatpush2.msra.mxu0 %v2245
    %2812 = vmatprep.subr.mxu0 0.0
    %2813 = vmatpush2.msra.mxu0 %v2242
    %2814 = vmatprep.subr.mxu0 0.0
    %2815 = vmatpush2.msra.mxu0 %v2239
    %2816 = vmatprep.subr.mxu0 0.0
    %2817 = vmatpush2.msra.mxu0 %v2236
    %2818 = vmatprep.subr.mxu0 0.0
    %2819 = vmatpush2.msra.mxu0 %v2233
    %2820 = vmatprep.subr.mxu0 0.0
    %2821 = vmatpush2.msra.mxu0 %v2230
    %2822 = vmatprep.subr.mxu0 0.0
    %2823 = vmatpush2.msra.mxu0 %v2227
    %2824 = vmatprep.subr.mxu0 0.0
    %2825 = vmatpush2.msra.mxu0 %v2224
    %2826 = vmatprep.subr.mxu0 0.0
    %2827 = vmatpush2.msra.mxu0 %v2221
    %2828 = vmatprep.subr.mxu0 0.0
    %2829 = vmatpush2.msra.mxu0 %v2218
    %2830 = vmatprep.mubr.f32.mxu0 %v2162
    %2831 = vmatmul.mubr.f32.gmra.mxu0 %v2161
    %v2832 = vpop.f32.mrf.mxu0
    %v2833 = vadd.f32 %v2475, %v2832
    %v2834 = vpop.f32.mrf.mxu0
    %2835 = vdwg.mxu0
    %2836 = vmatprep.subr.mxu0 0.0
    %2837 = vmatpush1.msra.mxu0 %v2311
    %2838 = vmatprep.subr.mxu0 0.0
    %2839 = vmatpush1.msra.mxu0 %v2308
    %2840 = vmatprep.subr.mxu0 0.0
    %2841 = vmatpush1.msra.mxu0 %v2305
    %2842 = vmatprep.subr.mxu0 0.0
    %2843 = vmatpush1.msra.mxu0 %v2302
    %2844 = vmatprep.subr.mxu0 0.0
    %2845 = vmatpush1.msra.mxu0 %v2299
    %2846 = vmatprep.subr.mxu0 0.0
    %2847 = vmatpush1.msra.mxu0 %v2296
    %2848 = vmatprep.subr.mxu0 0.0
    %2849 = vmatpush1.msra.mxu0 %v2293
    %2850 = vmatprep.subr.mxu0 0.0
    %2851 = vmatpush1.msra.mxu0 %v2290
    %2852 = vmatprep.subr.mxu0 0.0
    %2853 = vmatpush1.msra.mxu0 %v2287
    %2854 = vmatprep.subr.mxu0 0.0
    %2855 = vmatpush1.msra.mxu0 %v2284
    %2856 = vmatprep.subr.mxu0 0.0
    %2857 = vmatpush1.msra.mxu0 %v2281
    %2858 = vmatprep.subr.mxu0 0.0
    %2859 = vmatpush1.msra.mxu0 %v2278
    %2860 = vmatprep.subr.mxu0 0.0
    %2861 = vmatpush1.msra.mxu0 %v2275
    %2862 = vmatprep.subr.mxu0 0.0
    %2863 = vmatpush1.msra.mxu0 %v2272
    %2864 = vmatprep.subr.mxu0 0.0
    %2865 = vmatpush1.msra.mxu0 %v2269
    %2866 = vmatprep.subr.mxu0 0.0
    %2867 = vmatpush1.msra.mxu0 %v2266
    %2868 = vmatprep.subr.mxu0 0.0
    %2869 = vmatpush2.msra.mxu0 %v2359
    %2870 = vmatprep.subr.mxu0 0.0
    %2871 = vmatpush2.msra.mxu0 %v2356
    %2872 = vmatprep.subr.mxu0 0.0
    %2873 = vmatpush2.msra.mxu0 %v2353
    %2874 = vmatprep.subr.mxu0 0.0
    %2875 = vmatpush2.msra.mxu0 %v2350
    %2876 = vmatprep.subr.mxu0 0.0
    %2877 = vmatpush2.msra.mxu0 %v2347
    %2878 = vmatprep.subr.mxu0 0.0
    %2879 = vmatpush2.msra.mxu0 %v2344
    %2880 = vmatprep.subr.mxu0 0.0
    %2881 = vmatpush2.msra.mxu0 %v2341
    %2882 = vmatprep.subr.mxu0 0.0
    %2883 = vmatpush2.msra.mxu0 %v2338
    %2884 = vmatprep.subr.mxu0 0.0
    %2885 = vmatpush2.msra.mxu0 %v2335
    %2886 = vmatprep.subr.mxu0 0.0
    %2887 = vmatpush2.msra.mxu0 %v2332
    %2888 = vmatprep.subr.mxu0 0.0
    %2889 = vmatpush2.msra.mxu0 %v2329
    %2890 = vmatprep.subr.mxu0 0.0
    %2891 = vmatpush2.msra.mxu0 %v2326
    %2892 = vmatprep.subr.mxu0 0.0
    %2893 = vmatpush2.msra.mxu0 %v2323
    %2894 = vmatprep.subr.mxu0 0.0
    %2895 = vmatpush2.msra.mxu0 %v2320
    %2896 = vmatprep.subr.mxu0 0.0
    %2897 = vmatpush2.msra.mxu0 %v2317
    %2898 = vmatprep.subr.mxu0 0.0
    %2899 = vmatpush2.msra.mxu0 %v2314
    %2900 = vmatprep.mubr.f32.mxu0 %v2164
    %2901 = vmatmul.mubr.f32.gmra.mxu0 %v2163
    %v2902 = vpop.f32.mrf.mxu0
    %v2903 = vadd.f32 %v2833, %v2902
    %v2904 = vpop.f32.mrf.mxu0
    %2905 = vdwg.mxu0
    %2906 = vmatprep.subr.mxu0 0.0
    %2907 = vmatpush1.msra.mxu0 %v2407
    %2908 = vmatprep.subr.mxu0 0.0
    %2909 = vmatpush1.msra.mxu0 %v2404
    %2910 = vmatprep.subr.mxu0 0.0
    %2911 = vmatpush1.msra.mxu0 %v2401
    %2912 = vmatprep.subr.mxu0 0.0
    %2913 = vmatpush1.msra.mxu0 %v2398
    %2914 = vmatprep.subr.mxu0 0.0
    %2915 = vmatpush1.msra.mxu0 %v2395
    %2916 = vmatprep.subr.mxu0 0.0
    %2917 = vmatpush1.msra.mxu0 %v2392
    %2918 = vmatprep.subr.mxu0 0.0
    %2919 = vmatpush1.msra.mxu0 %v2389
    %2920 = vmatprep.subr.mxu0 0.0
    %2921 = vmatpush1.msra.mxu0 %v2386
    %2922 = vmatprep.subr.mxu0 0.0
    %2923 = vmatpush1.msra.mxu0 %v2383
    %2924 = vmatprep.subr.mxu0 0.0
    %2925 = vmatpush1.msra.mxu0 %v2380
    %2926 = vmatprep.subr.mxu0 0.0
    %2927 = vmatpush1.msra.mxu0 %v2377
    %2928 = vmatprep.subr.mxu0 0.0
    %2929 = vmatpush1.msra.mxu0 %v2374
    %2930 = vmatprep.subr.mxu0 0.0
    %2931 = vmatpush1.msra.mxu0 %v2371
    %2932 = vmatprep.subr.mxu0 0.0
    %2933 = vmatpush1.msra.mxu0 %v2368
    %2934 = vmatprep.subr.mxu0 0.0
    %2935 = vmatpush1.msra.mxu0 %v2365
    %2936 = vmatprep.subr.mxu0 0.0
    %2937 = vmatpush1.msra.mxu0 %v2362
    %2938 = vmatprep.subr.mxu0 0.0
    %2939 = vmatpush2.msra.mxu0 %v2455
    %2940 = vmatprep.subr.mxu0 0.0
    %2941 = vmatpush2.msra.mxu0 %v2452
    %2942 = vmatprep.subr.mxu0 0.0
    %2943 = vmatpush2.msra.mxu0 %v2449
    %2944 = vmatprep.subr.mxu0 0.0
    %2945 = vmatpush2.msra.mxu0 %v2446
    %2946 = vmatprep.subr.mxu0 0.0
    %2947 = vmatpush2.msra.mxu0 %v2443
    %2948 = vmatprep.subr.mxu0 0.0
    %2949 = vmatpush2.msra.mxu0 %v2440
    %2950 = vmatprep.subr.mxu0 0.0
    %2951 = vmatpush2.msra.mxu0 %v2437
    %2952 = vmatprep.subr.mxu0 0.0
    %2953 = vmatpush2.msra.mxu0 %v2434
    %2954 = vmatprep.subr.mxu0 0.0
    %2955 = vmatpush2.msra.mxu0 %v2431
    %2956 = vmatprep.subr.mxu0 0.0
    %2957 = vmatpush2.msra.mxu0 %v2428
    %2958 = vmatprep.subr.mxu0 0.0
    %2959 = vmatpush2.msra.mxu0 %v2425
    %2960 = vmatprep.subr.mxu0 0.0
    %2961 = vmatpush2.msra.mxu0 %v2422
    %2962 = vmatprep.subr.mxu0 0.0
    %2963 = vmatpush2.msra.mxu0 %v2419
    %2964 = vmatprep.subr.mxu0 0.0
    %2965 = vmatpush2.msra.mxu0 %v2416
    %2966 = vmatprep.subr.mxu0 0.0
    %2967 = vmatpush2.msra.mxu0 %v2413
    %2968 = vmatprep.subr.mxu0 0.0
    %2969 = vmatpush2.msra.mxu0 %v2410
    %2970 = vmatprep.mubr.f32.mxu0 %v2166
    %2971 = vmatmul.mubr.f32.gmra.mxu0 %v2165
    %v2972 = vpop.f32.mrf.mxu0
    %v2973 = vadd.f32 %v2903, %v2972
    %v2974 = vpop.f32.mrf.mxu0
    %2975 = vdwg.mxu0
    %2976 = vmatprep.subr.mxu0 0.0
    %2977 = vmatpush1.msra.mxu0 0.0
    %2978 = vmatprep.subr.mxu0 0.0
    %2979 = vmatpush1.msra.mxu0 0.0
    %2980 = vmatprep.subr.mxu0 0.0
    %2981 = vmatpush1.msra.mxu0 0.0
    %2982 = vmatprep.subr.mxu0 0.0
    %2983 = vmatpush1.msra.mxu0 0.0
    %2984 = vmatprep.subr.mxu0 0.0
    %2985 = vmatpush1.msra.mxu0 0.0
    %2986 = vmatprep.subr.mxu0 0.0
    %2987 = vmatpush1.msra.mxu0 0.0
    %2988 = vmatprep.subr.mxu0 0.0
    %2989 = vmatpush1.msra.mxu0 0.0
    %2990 = vmatprep.subr.mxu0 0.0
    %2991 = vmatpush1.msra.mxu0 0.0
    %2992 = vmatprep.subr.mxu0 0.0
    %2993 = vmatpush1.msra.mxu0 0.0
    %2994 = vmatprep.subr.mxu0 0.0
    %2995 = vmatpush1.msra.mxu0 0.0
    %2996 = vmatprep.subr.mxu0 0.0
    %2997 = vmatpush1.msra.mxu0 0.0
    %2998 = vmatprep.subr.mxu0 0.0
    %2999 = vmatpush1.msra.mxu0 0.0
    %3000 = vmatprep.subr.mxu0 0.0
    %3001 = vmatpush1.msra.mxu0 0.0
    %3002 = vmatprep.subr.mxu0 0.0
    %3003 = vmatpush1.msra.mxu0 0.0
    %3004 = vmatprep.subr.mxu0 0.0
    %3005 = vmatpush1.msra.mxu0 %v2461
    %3006 = vmatprep.subr.mxu0 0.0
    %3007 = vmatpush1.msra.mxu0 %v2458
    %3008 = vmatprep.subr.mxu0 0.0
    %3009 = vmatpush2.msra.mxu0 0.0
    %3010 = vmatprep.subr.mxu0 0.0
    %3011 = vmatpush2.msra.mxu0 0.0
    %3012 = vmatprep.subr.mxu0 0.0
    %3013 = vmatpush2.msra.mxu0 0.0
    %3014 = vmatprep.subr.mxu0 0.0
    %3015 = vmatpush2.msra.mxu0 0.0
    %3016 = vmatprep.subr.mxu0 0.0
    %3017 = vmatpush2.msra.mxu0 0.0
    %3018 = vmatprep.subr.mxu0 0.0
    %3019 = vmatpush2.msra.mxu0 0.0
    %3020 = vmatprep.subr.mxu0 0.0
    %3021 = vmatpush2.msra.mxu0 0.0
    %3022 = vmatprep.subr.mxu0 0.0
    %3023 = vmatpush2.msra.mxu0 0.0
    %3024 = vmatprep.subr.mxu0 0.0
    %3025 = vmatpush2.msra.mxu0 0.0
    %3026 = vmatprep.subr.mxu0 0.0
    %3027 = vmatpush2.msra.mxu0 0.0
    %3028 = vmatprep.subr.mxu0 0.0
    %3029 = vmatpush2.msra.mxu0 0.0
    %3030 = vmatprep.subr.mxu0 0.0
    %3031 = vmatpush2.msra.mxu0 0.0
    %3032 = vmatprep.subr.mxu0 0.0
    %3033 = vmatpush2.msra.mxu0 0.0
    %3034 = vmatprep.subr.mxu0 0.0
    %3035 = vmatpush2.msra.mxu0 0.0
    %3036 = vmatprep.subr.mxu0 0.0
    %3037 = vmatpush2.msra.mxu0 0.0
    %3038 = vmatprep.subr.mxu0 0.0
    %3039 = vmatpush2.msra.mxu0 0.0
    %3040 = vmatprep.mubr.f32.mxu0 0.0
    %3041 = vmatmul.mubr.f32.gmra.mxu0 %v2480
    %v3042 = vpop.f32.mrf.mxu0
    %v3043 = vadd.f32 %v2973, %v3042
    %v3044 = vpop.f32.mrf.mxu0
    %3045 = vdwg.mxu0
    %v3046 = vmul.f32 %v2762, 0.5
    %v3047 = vmul.f32 %v2764, 0.5
    %v3048 = vmul.f32 %v3043, 0.5
    %v3049 = vmul.f32 %v2762, %v1985
    %v3050 = vmul.f32 %v2764, %v1985
    %v3051 = vmul.f32 %v3043, %v1985
    %vm3052 = vcmp.ge.f32.partialorder %v3049, 0.0
    %vm3053 = vcmp.ge.f32.partialorder %v3050, 0.0
    %vm3054 = vcmp.ge.f32.partialorder %v3051, 0.0
    %v3055 = vsel %vm3052, 1.0, -1.0
    %v3056 = vsel %vm3053, 1.0, -1.0
    %v3057 = vsel %vm3054, 1.0, -1.0
    %v3058 = vand.u32 2147483647, %v3049
    %v3059 = vand.u32 2147483647, %v3050
    %v3060 = vand.u32 2147483647, %v3051
    %v3061 = vmul.f32 %v3058, 0.3275911
    %v3062 = vmul.f32 %v3059, 0.3275911
    %v3063 = vmul.f32 %v3060, 0.3275911
    %v3064 = vadd.f32 %v3061, 1.0
    %v3065 = vadd.f32 %v3062, 1.0
    %v3066 = vadd.f32 %v3063, 1.0
    %v3067 = vrcp.pop %v3064
    %v3068 = vmul.f32 1.0, %v3067
    %v3069 = vrcp.pop %v3065
    %v3070 = vmul.f32 1.0, %v3069
    %v3071 = vrcp.pop %v3066
    %v3072 = vmul.f32 1.0, %v3071
    %v3073 = vmul.f32 %v3068, 1.0614054
    %v3074 = vmul.f32 %v3070, 1.0614054
    %v3075 = vmul.f32 %v3072, 1.0614054
    %v3076 = vadd.f32 %v3073, -1.4531521
    %v3077 = vadd.f32 %v3074, -1.4531521
    %v3078 = vadd.f32 %v3075, -1.4531521
    %v3079 = vmul.f32 %v3076, %v3068
    %v3080 = vmul.f32 %v3077, %v3070
    %v3081 = vmul.f32 %v3078, %v3072
    %v3082 = vadd.f32 %v3079, 1.4214138
    %v3083 = vadd.f32 %v3080, 1.4214138
    %v3084 = vadd.f32 %v3081, 1.4214138
    %v3085 = vmul.f32 %v3082, %v3068
    %v3086 = vmul.f32 %v3083, %v3070
    %v3087 = vmul.f32 %v3084, %v3072
    %v3088 = vadd.f32 %v3085, -0.28449672
    %v3089 = vadd.f32 %v3086, -0.28449672
    %v3090 = vadd.f32 %v3087, -0.28449672
    %v3091 = vmul.f32 %v3088, %v3068
    %v3092 = vmul.f32 %v3089, %v3070
    %v3093 = vmul.f32 %v3090, %v3072
    %v3094 = vadd.f32 %v3091, 0.2548296
    %v3095 = vadd.f32 %v3092, 0.2548296
    %v3096 = vadd.f32 %v3093, 0.2548296
    %v3097 = vmul.f32 %v3094, %v3068
    %v3098 = vmul.f32 %v3095, %v3070
    %v3099 = vmul.f32 %v3096, %v3072
    %v3100 = vsub.f32 0.0, %v3058
    %v3101 = vsub.f32 0.0, %v3059
    %v3102 = vsub.f32 0.0, %v3060
    %v3103 = vmul.f32 %v3100, %v3058
    %v3104 = vmul.f32 %v3101, %v3059
    %v3105 = vmul.f32 %v3102, %v3060
    %v3106 = vmul.f32 %v3103, 1.442695
    %v3107 = vpow.pop %v3106
    %v3108 = vmul.f32 %v3104, 1.442695
    %v3109 = vpow.pop %v3108
    %v3110 = vmul.f32 %v3105, 1.442695
    %v3111 = vpow.pop %v3110
    %v3112 = vmul.f32 %v3097, %v3107
    %v3113 = vmul.f32 %v3098, %v3109
    %v3114 = vmul.f32 %v3099, %v3111
    %v3115 = vsub.f32 1.0, %v3112
    %v3116 = vsub.f32 1.0, %v3113
    %v3117 = vsub.f32 1.0, %v3114
    %v3118 = vmul.f32 %v3055, %v3115
    %v3119 = vmul.f32 %v3056, %v3116
    %v3120 = vmul.f32 %v3057, %v3117
    %v3121 = vadd.f32 %v3118, 1.0
    %v3122 = vadd.f32 %v3119, 1.0
    %v3123 = vadd.f32 %v3120, 1.0
    %v3124 = vmul.f32 %v3046, %v3121
    %v3125 = vmul.f32 %v3047, %v3122
    %v3126 = vmul.f32 %v3048, %v3123
    %v3127 = vld [vmem:[%s5] sm:$0xff]
    %v3128 = vld [vmem:[%s5 + $0x8] sm:$0xff]
    %v3129 = vld [vmem:[%s5 + $0x10] sm:$0xff]
    %v3130 = vld [vmem:[%s5 + $0x18] sm:$0xff]
    %v3131 = vld [vmem:[%s5 + $0x20] sm:$0xff]
    %v3132 = vld [vmem:[%s5 + $0x28] sm:$0xff]
    %v3133 = vld [vmem:[%s5 + $0x30] sm:$0xff]
    %v3134 = vld [vmem:[%s5 + $0x38] sm:$0xff]
    %v3135 = vld [vmem:[%s5 + $0x40] sm:$0xff]
    %v3136 = vld [vmem:[%s5 + $0x48] sm:$0xff]
    %v3137 = vld [vmem:[%s5 + $0x50] sm:$0xff]
    %v3138 = vld [vmem:[%s5 + $0x58] sm:$0xff]
    %v3139 = vld [vmem:[%s5 + $0x60] sm:$0xff]
    %v3140 = vld [vmem:[%s5 + $0x68] sm:$0xff]
    %v3141 = vld [vmem:[%s5 + $0x70] sm:$0xff]
    %v3142 = vld [vmem:[%s5 + $0x78] sm:$0xff]
    %v3143 = vld [vmem:[%s5 + $0x80] sm:$0xff]
    %v3144 = vld [vmem:[%s5 + $0x88] sm:$0xff]
    %v3145 = vld [vmem:[%s5 + $0x90] sm:$0xff]
    %v3146 = vld [vmem:[%s5 + $0x98] sm:$0xff]
    %v3147 = vld [vmem:[%s5 + $0xa0] sm:$0xff]
    %v3148 = vld [vmem:[%s5 + $0xa8] sm:$0xff]
    %v3149 = vld [vmem:[%s5 + $0xb0] sm:$0xff]
    %v3150 = vld [vmem:[%s5 + $0xb8] sm:$0xff]
    %v3151 = vld [vmem:[%s5 + $0xc0] sm:$0xff]
    %v3152 = vld [vmem:[%s5 + $0xc8] sm:$0xff]
    %v3153 = vld [vmem:[%s5 + $0xd0] sm:$0xff]
    %v3154 = vld [vmem:[%s5 + $0xd8] sm:$0xff]
    %v3155 = vld [vmem:[%s5 + $0xe0] sm:$0xff]
    %v3156 = vld [vmem:[%s5 + $0xe8] sm:$0xff]
    %v3157 = vld [vmem:[%s5 + $0xf0] sm:$0xff]
    %v3158 = vld [vmem:[%s5 + $0xf8] sm:$0xff]
    %v3159 = vld [vmem:[%s5 + $0x100] sm:$0xff]
    %v3160 = vld [vmem:[%s5 + $0x108] sm:$0xff]
    %v3161 = vld [vmem:[%s5 + $0x110] sm:$0xff]
    %v3162 = vld [vmem:[%s5 + $0x118] sm:$0xff]
    %v3163 = vld [vmem:[%s6] sm:$0x1]
    %v3165 = vlaneseq
    %v3166 = vshrl.u32 %v3165, 7
    %v3167 = vsub.s32 0, %v3166
    %v3168 = vrot.slane %v3163, %v3167
    %vm3170 = vcmask 261120
    %v3172 = vsel %vm3170, %v3126, 0
    %3174 = vmatprep.subr.mxu0 0.0
    %3175 = vmatpush1.msra.mxu0 %v3142
    %3176 = vmatprep.subr.mxu0 0.0
    %3177 = vmatpush1.msra.mxu0 %v3141
    %3178 = vmatprep.subr.mxu0 0.0
    %3179 = vmatpush1.msra.mxu0 %v3140
    %3180 = vmatprep.subr.mxu0 0.0
    %3181 = vmatpush1.msra.mxu0 %v3139
    %3182 = vmatprep.subr.mxu0 0.0
    %3183 = vmatpush1.msra.mxu0 %v3138
    %3184 = vmatprep.subr.mxu0 0.0
    %3185 = vmatpush1.msra.mxu0 %v3137
    %3186 = vmatprep.subr.mxu0 0.0
    %3187 = vmatpush1.msra.mxu0 %v3136
    %3188 = vmatprep.subr.mxu0 0.0
    %3189 = vmatpush1.msra.mxu0 %v3135
    %3190 = vmatprep.subr.mxu0 0.0
    %3191 = vmatpush1.msra.mxu0 %v3134
    %3192 = vmatprep.subr.mxu0 0.0
    %3193 = vmatpush1.msra.mxu0 %v3133
    %3194 = vmatprep.subr.mxu0 0.0
    %3195 = vmatpush1.msra.mxu0 %v3132
    %3196 = vmatprep.subr.mxu0 0.0
    %3197 = vmatpush1.msra.mxu0 %v3131
    %3198 = vmatprep.subr.mxu0 0.0
    %3199 = vmatpush1.msra.mxu0 %v3130
    %3200 = vmatprep.subr.mxu0 0.0
    %3201 = vmatpush1.msra.mxu0 %v3129
    %3202 = vmatprep.subr.mxu0 0.0
    %3203 = vmatpush1.msra.mxu0 %v3128
    %3204 = vmatprep.subr.mxu0 0.0
    %3205 = vmatpush1.msra.mxu0 %v3127
    %3206 = vmatprep.subr.mxu0 0.0
    %3207 = vmatpush2.msra.mxu0 %v3158
    %3208 = vmatprep.subr.mxu0 0.0
    %3209 = vmatpush2.msra.mxu0 %v3157
    %3210 = vmatprep.subr.mxu0 0.0
    %3211 = vmatpush2.msra.mxu0 %v3156
    %3212 = vmatprep.subr.mxu0 0.0
    %3213 = vmatpush2.msra.mxu0 %v3155
    %3214 = vmatprep.subr.mxu0 0.0
    %3215 = vmatpush2.msra.mxu0 %v3154
    %3216 = vmatprep.subr.mxu0 0.0
    %3217 = vmatpush2.msra.mxu0 %v3153
    %3218 = vmatprep.subr.mxu0 0.0
    %3219 = vmatpush2.msra.mxu0 %v3152
    %3220 = vmatprep.subr.mxu0 0.0
    %3221 = vmatpush2.msra.mxu0 %v3151
    %3222 = vmatprep.subr.mxu0 0.0
    %3223 = vmatpush2.msra.mxu0 %v3150
    %3224 = vmatprep.subr.mxu0 0.0
    %3225 = vmatpush2.msra.mxu0 %v3149
    %3226 = vmatprep.subr.mxu0 0.0
    %3227 = vmatpush2.msra.mxu0 %v3148
    %3228 = vmatprep.subr.mxu0 0.0
    %3229 = vmatpush2.msra.mxu0 %v3147
    %3230 = vmatprep.subr.mxu0 0.0
    %3231 = vmatpush2.msra.mxu0 %v3146
    %3232 = vmatprep.subr.mxu0 0.0
    %3233 = vmatpush2.msra.mxu0 %v3145
    %3234 = vmatprep.subr.mxu0 0.0
    %3235 = vmatpush2.msra.mxu0 %v3144
    %3236 = vmatprep.subr.mxu0 0.0
    %3237 = vmatpush2.msra.mxu0 %v3143
    %3238 = vmatprep.mubr.f32.mxu0 %v3125
    %3239 = vmatmul.mubr.f32.gmra.mxu0 %v3124
    %v3240 = vpop.f32.mrf.mxu0
    %v3241 = vadd.f32 %v3168, %v3240
    %v3242 = vpop.f32.mrf.mxu0
    %3243 = vdwg.mxu0
    %3244 = vmatprep.subr.mxu0 0.0
    %3245 = vmatpush1.msra.mxu0 0.0
    %3246 = vmatprep.subr.mxu0 0.0
    %3247 = vmatpush1.msra.mxu0 0.0
    %3248 = vmatprep.subr.mxu0 0.0
    %3249 = vmatpush1.msra.mxu0 0.0
    %3250 = vmatprep.subr.mxu0 0.0
    %3251 = vmatpush1.msra.mxu0 0.0
    %3252 = vmatprep.subr.mxu0 0.0
    %3253 = vmatpush1.msra.mxu0 0.0
    %3254 = vmatprep.subr.mxu0 0.0
    %3255 = vmatpush1.msra.mxu0 0.0
    %3256 = vmatprep.subr.mxu0 0.0
    %3257 = vmatpush1.msra.mxu0 0.0
    %3258 = vmatprep.subr.mxu0 0.0
    %3259 = vmatpush1.msra.mxu0 0.0
    %3260 = vmatprep.subr.mxu0 0.0
    %3261 = vmatpush1.msra.mxu0 0.0
    %3262 = vmatprep.subr.mxu0 0.0
    %3263 = vmatpush1.msra.mxu0 0.0
    %3264 = vmatprep.subr.mxu0 0.0
    %3265 = vmatpush1.msra.mxu0 0.0
    %3266 = vmatprep.subr.mxu0 0.0
    %3267 = vmatpush1.msra.mxu0 0.0
    %3268 = vmatprep.subr.mxu0 0.0
    %3269 = vmatpush1.msra.mxu0 %v3162
    %3270 = vmatprep.subr.mxu0 0.0
    %3271 = vmatpush1.msra.mxu0 %v3161
    %3272 = vmatprep.subr.mxu0 0.0
    %3273 = vmatpush1.msra.mxu0 %v3160
    %3274 = vmatprep.subr.mxu0 0.0
    %3275 = vmatpush1.msra.mxu0 %v3159
    %3276 = vmatprep.subr.mxu0 0.0
    %3277 = vmatpush2.msra.mxu0 0.0
    %3278 = vmatprep.subr.mxu0 0.0
    %3279 = vmatpush2.msra.mxu0 0.0
    %3280 = vmatprep.subr.mxu0 0.0
    %3281 = vmatpush2.msra.mxu0 0.0
    %3282 = vmatprep.subr.mxu0 0.0
    %3283 = vmatpush2.msra.mxu0 0.0
    %3284 = vmatprep.subr.mxu0 0.0
    %3285 = vmatpush2.msra.mxu0 0.0
    %3286 = vmatprep.subr.mxu0 0.0
    %3287 = vmatpush2.msra.mxu0 0.0
    %3288 = vmatprep.subr.mxu0 0.0
    %3289 = vmatpush2.msra.mxu0 0.0
    %3290 = vmatprep.subr.mxu0 0.0
    %3291 = vmatpush2.msra.mxu0 0.0
    %3292 = vmatprep.subr.mxu0 0.0
    %3293 = vmatpush2.msra.mxu0 0.0
    %3294 = vmatprep.subr.mxu0 0.0
    %3295 = vmatpush2.msra.mxu0 0.0
    %3296 = vmatprep.subr.mxu0 0.0
    %3297 = vmatpush2.msra.mxu0 0.0
    %3298 = vmatprep.subr.mxu0 0.0
    %3299 = vmatpush2.msra.mxu0 0.0
    %3300 = vmatprep.subr.mxu0 0.0
    %3301 = vmatpush2.msra.mxu0 0.0
    %3302 = vmatprep.subr.mxu0 0.0
    %3303 = vmatpush2.msra.mxu0 0.0
    %3304 = vmatprep.subr.mxu0 0.0
    %3305 = vmatpush2.msra.mxu0 0.0
    %3306 = vmatprep.subr.mxu0 0.0
    %3307 = vmatpush2.msra.mxu0 0.0
    %3308 = vmatprep.mubr.f32.mxu0 0.0
    %3309 = vmatmul.mubr.f32.gmra.mxu0 %v3172
    %v3310 = vpop.f32.mrf.mxu0
    %v3311 = vadd.f32 %v3241, %v3310
    %v3312 = vpop.f32.mrf.mxu0
    %3313 = vdwg.mxu0
    %v3314 = vmul.f32 %v3311, 0.5
    %v3315 = vmul.f32 %v3311, %v1985
    %vm3316 = vcmp.ge.f32.partialorder %v3315, 0.0
    %v3317 = vsel %vm3316, 1.0, -1.0
    %v3318 = vand.u32 2147483647, %v3315
    %v3319 = vmul.f32 %v3318, 0.3275911
    %v3320 = vadd.f32 %v3319, 1.0
    %v3321 = vrcp.pop %v3320
    %v3322 = vmul.f32 1.0, %v3321
    %v3323 = vmul.f32 %v3322, 1.0614054
    %v3324 = vadd.f32 %v3323, -1.4531521
    %v3325 = vmul.f32 %v3324, %v3322
    %v3326 = vadd.f32 %v3325, 1.4214138
    %v3327 = vmul.f32 %v3326, %v3322
    %v3328 = vadd.f32 %v3327, -0.28449672
    %v3329 = vmul.f32 %v3328, %v3322
    %v3330 = vadd.f32 %v3329, 0.2548296
    %v3331 = vmul.f32 %v3330, %v3322
    %v3332 = vsub.f32 0.0, %v3318
    %v3333 = vmul.f32 %v3332, %v3318
    %v3334 = vmul.f32 %v3333, 1.442695
    %v3335 = vpow.pop %v3334
    %v3336 = vmul.f32 %v3331, %v3335
    %v3337 = vsub.f32 1.0, %v3336
    %v3338 = vmul.f32 %v3317, %v3337
    %v3339 = vadd.f32 %v3338, 1.0
    %v3340 = vmul.f32 %v3314, %v3339
    %v3341 = vld [vmem:[%s11] sm:$0xff]
    %v3342 = vld [vmem:[%s11 + $0x8] sm:$0xff]
    %v3343 = vld [vmem:[%s11 + $0x10] sm:$0xff]
    %v3344 = vld [vmem:[%s11 + $0x18] sm:$0xff]
    %v3345 = vld [vmem:[%s11 + $0x20] sm:$0xff]
    %v3346 = vld [vmem:[%s11 + $0x28] sm:$0xff]
    %v3347 = vld [vmem:[%s11 + $0x30] sm:$0xff]
    %v3348 = vld [vmem:[%s11 + $0x38] sm:$0xff]
    %v3349 = vld [vmem:[%s12] sm:$0x1]
    %v3351 = vlaneseq
    %v3352 = vshrl.u32 %v3351, 7
    %v3353 = vsub.s32 0, %v3352
    %v3354 = vrot.slane %v3349, %v3353
    %vm3356 = vcmask 523264
    %v3358 = vsel %vm3356, %v3340, 0
    %3360 = vmatprep.subr.mxu0 0.0
    %3361 = vmatpush1.msra.mxu0 0.0
    %3362 = vmatprep.subr.mxu0 0.0
    %3363 = vmatpush1.msra.mxu0 0.0
    %3364 = vmatprep.subr.mxu0 0.0
    %3365 = vmatpush1.msra.mxu0 0.0
    %3366 = vmatprep.subr.mxu0 0.0
    %3367 = vmatpush1.msra.mxu0 0.0
    %3368 = vmatprep.subr.mxu0 0.0
    %3369 = vmatpush1.msra.mxu0 0.0
    %3370 = vmatprep.subr.mxu0 0.0
    %3371 = vmatpush1.msra.mxu0 0.0
    %3372 = vmatprep.subr.mxu0 0.0
    %3373 = vmatpush1.msra.mxu0 0.0
    %3374 = vmatprep.subr.mxu0 0.0
    %3375 = vmatpush1.msra.mxu0 0.0
    %3376 = vmatprep.subr.mxu0 0.0
    %3377 = vmatpush1.msra.mxu0 %v3348
    %3378 = vmatprep.subr.mxu0 0.0
    %3379 = vmatpush1.msra.mxu0 %v3347
    %3380 = vmatprep.subr.mxu0 0.0
    %3381 = vmatpush1.msra.mxu0 %v3346
    %3382 = vmatprep.subr.mxu0 0.0
    %3383 = vmatpush1.msra.mxu0 %v3345
    %3384 = vmatprep.subr.mxu0 0.0
    %3385 = vmatpush1.msra.mxu0 %v3344
    %3386 = vmatprep.subr.mxu0 0.0
    %3387 = vmatpush1.msra.mxu0 %v3343
    %3388 = vmatprep.subr.mxu0 0.0
    %3389 = vmatpush1.msra.mxu0 %v3342
    %3390 = vmatprep.subr.mxu0 0.0
    %3391 = vmatpush1.msra.mxu0 %v3341
    %3392 = vmatprep.subr.mxu0 0.0
    %3393 = vmatpush2.msra.mxu0 0.0
    %3394 = vmatprep.subr.mxu0 0.0
    %3395 = vmatpush2.msra.mxu0 0.0
    %3396 = vmatprep.subr.mxu0 0.0
    %3397 = vmatpush2.msra.mxu0 0.0
    %3398 = vmatprep.subr.mxu0 0.0
    %3399 = vmatpush2.msra.mxu0 0.0
    %3400 = vmatprep.subr.mxu0 0.0
    %3401 = vmatpush2.msra.mxu0 0.0
    %3402 = vmatprep.subr.mxu0 0.0
    %3403 = vmatpush2.msra.mxu0 0.0
    %3404 = vmatprep.subr.mxu0 0.0
    %3405 = vmatpush2.msra.mxu0 0.0
    %3406 = vmatprep.subr.mxu0 0.0
    %3407 = vmatpush2.msra.mxu0 0.0
    %3408 = vmatprep.subr.mxu0 0.0
    %3409 = vmatpush2.msra.mxu0 0.0
    %3410 = vmatprep.subr.mxu0 0.0
    %3411 = vmatpush2.msra.mxu0 0.0
    %3412 = vmatprep.subr.mxu0 0.0
    %3413 = vmatpush2.msra.mxu0 0.0
    %3414 = vmatprep.subr.mxu0 0.0
    %3415 = vmatpush2.msra.mxu0 0.0
    %3416 = vmatprep.subr.mxu0 0.0
    %3417 = vmatpush2.msra.mxu0 0.0
    %3418 = vmatprep.subr.mxu0 0.0
    %3419 = vmatpush2.msra.mxu0 0.0
    %3420 = vmatprep.subr.mxu0 0.0
    %3421 = vmatpush2.msra.mxu0 0.0
    %3422 = vmatprep.subr.mxu0 0.0
    %3423 = vmatpush2.msra.mxu0 0.0
    %3424 = vmatprep.mubr.f32.mxu0 0.0
    %3425 = vmatmul.mubr.f32.gmra.mxu0 %v3358
    %v3426 = vpop.f32.mrf.mxu0
    %v3427 = vadd.f32 %v3354, %v3426
    %v3428 = vpop.f32.mrf.mxu0
    %3429 = vdwg.mxu0
    %v3430 = vld [vmem:[%s7] sm:$0xff]
    %v3431 = vld [vmem:[%s7 + $0x8] sm:$0xff]
    %v3432 = vld [vmem:[%s7 + $0x10] sm:$0xff]
    %v3433 = vld [vmem:[%s7 + $0x18] sm:$0xff]
    %v3434 = vld [vmem:[%s7 + $0x20] sm:$0xff]
    %v3435 = vld [vmem:[%s7 + $0x28] sm:$0xff]
    %v3436 = vld [vmem:[%s7 + $0x30] sm:$0xff]
    %v3437 = vld [vmem:[%s7 + $0x38] sm:$0xff]
    %v3438 = vld [vmem:[%s7 + $0x40] sm:$0xff]
    %v3439 = vld [vmem:[%s7 + $0x48] sm:$0xff]
    %v3440 = vld [vmem:[%s7 + $0x50] sm:$0xff]
    %v3441 = vld [vmem:[%s7 + $0x58] sm:$0xff]
    %v3442 = vld [vmem:[%s7 + $0x60] sm:$0xff]
    %v3443 = vld [vmem:[%s7 + $0x68] sm:$0xff]
    %v3444 = vld [vmem:[%s7 + $0x70] sm:$0xff]
    %v3445 = vld [vmem:[%s7 + $0x78] sm:$0xff]
    %v3446 = vld [vmem:[%s7 + $0x80] sm:$0xff]
    %v3447 = vld [vmem:[%s7 + $0x88] sm:$0xff]
    %v3448 = vld [vmem:[%s7 + $0x90] sm:$0xff]
    %v3449 = vld [vmem:[%s7 + $0x98] sm:$0xff]
    %v3450 = vld [vmem:[%s7 + $0xa0] sm:$0xff]
    %v3451 = vld [vmem:[%s7 + $0xa8] sm:$0xff]
    %v3452 = vld [vmem:[%s7 + $0xb0] sm:$0xff]
    %v3453 = vld [vmem:[%s7 + $0xb8] sm:$0xff]
    %v3454 = vld [vmem:[%s7 + $0xc0] sm:$0xff]
    %v3455 = vld [vmem:[%s7 + $0xc8] sm:$0xff]
    %v3456 = vld [vmem:[%s7 + $0xd0] sm:$0xff]
    %v3457 = vld [vmem:[%s7 + $0xd8] sm:$0xff]
    %v3458 = vld [vmem:[%s7 + $0xe0] sm:$0xff]
    %v3459 = vld [vmem:[%s7 + $0xe8] sm:$0xff]
    %v3460 = vld [vmem:[%s7 + $0xf0] sm:$0xff]
    %v3461 = vld [vmem:[%s7 + $0xf8] sm:$0xff]
    %v3462 = vld [vmem:[%s7 + $0x100] sm:$0xff]
    %v3463 = vld [vmem:[%s7 + $0x108] sm:$0xff]
    %v3464 = vld [vmem:[%s7 + $0x110] sm:$0xff]
    %v3465 = vld [vmem:[%s7 + $0x118] sm:$0xff]
    %v3466 = vld [vmem:[%s7 + $0x120] sm:$0xff]
    %v3467 = vld [vmem:[%s7 + $0x128] sm:$0xff]
    %v3468 = vld [vmem:[%s7 + $0x130] sm:$0xff]
    %v3469 = vld [vmem:[%s7 + $0x138] sm:$0xff]
    %v3470 = vld [vmem:[%s7 + $0x140] sm:$0xff]
    %v3471 = vld [vmem:[%s7 + $0x148] sm:$0xff]
    %v3472 = vld [vmem:[%s7 + $0x150] sm:$0xff]
    %v3473 = vld [vmem:[%s7 + $0x158] sm:$0xff]
    %v3474 = vld [vmem:[%s7 + $0x160] sm:$0xff]
    %v3475 = vld [vmem:[%s7 + $0x168] sm:$0xff]
    %v3476 = vld [vmem:[%s7 + $0x170] sm:$0xff]
    %v3477 = vld [vmem:[%s7 + $0x178] sm:$0xff]
    %v3478 = vld [vmem:[%s7 + $0x180] sm:$0xff]
    %v3479 = vld [vmem:[%s7 + $0x188] sm:$0xff]
    %v3480 = vld [vmem:[%s7 + $0x190] sm:$0xff]
    %v3481 = vld [vmem:[%s7 + $0x198] sm:$0xff]
    %v3482 = vld [vmem:[%s7 + $0x1a0] sm:$0xff]
    %v3483 = vld [vmem:[%s7 + $0x1a8] sm:$0xff]
    %v3484 = vld [vmem:[%s7 + $0x1b0] sm:$0xff]
    %v3485 = vld [vmem:[%s7 + $0x1b8] sm:$0xff]
    %v3486 = vld [vmem:[%s7 + $0x1c0] sm:$0xff]
    %v3487 = vld [vmem:[%s7 + $0x1c8] sm:$0xff]
    %v3488 = vld [vmem:[%s7 + $0x1d0] sm:$0xff]
    %v3489 = vld [vmem:[%s7 + $0x1d8] sm:$0xff]
    %v3490 = vld [vmem:[%s7 + $0x1e0] sm:$0xff]
    %v3491 = vld [vmem:[%s7 + $0x1e8] sm:$0xff]
    %v3492 = vld [vmem:[%s7 + $0x1f0] sm:$0xff]
    %v3493 = vld [vmem:[%s7 + $0x1f8] sm:$0xff]
    %v3494 = vld [vmem:[%s7 + $0x200] sm:$0xff]
    %v3495 = vld [vmem:[%s7 + $0x208] sm:$0xff]
    %v3496 = vld [vmem:[%s7 + $0x210] sm:$0xff]
    %v3497 = vld [vmem:[%s7 + $0x218] sm:$0xff]
    %v3498 = vld [vmem:[%s7 + $0x220] sm:$0xff]
    %v3499 = vld [vmem:[%s7 + $0x228] sm:$0xff]
    %v3500 = vld [vmem:[%s7 + $0x230] sm:$0xff]
    %v3501 = vld [vmem:[%s7 + $0x238] sm:$0xff]
    %v3502 = vld [vmem:[%s7 + $0x240] sm:$0xff]
    %v3503 = vld [vmem:[%s7 + $0x248] sm:$0xff]
    %v3504 = vld [vmem:[%s7 + $0x250] sm:$0xff]
    %v3505 = vld [vmem:[%s7 + $0x258] sm:$0xff]
    %v3506 = vld [vmem:[%s7 + $0x260] sm:$0xff]
    %v3507 = vld [vmem:[%s7 + $0x268] sm:$0xff]
    %v3508 = vld [vmem:[%s7 + $0x270] sm:$0xff]
    %v3509 = vld [vmem:[%s7 + $0x278] sm:$0xff]
    %v3510 = vld [vmem:[%s7 + $0x280] sm:$0xff]
    %v3511 = vld [vmem:[%s7 + $0x288] sm:$0xff]
    %v3512 = vld [vmem:[%s7 + $0x290] sm:$0xff]
    %v3513 = vld [vmem:[%s7 + $0x298] sm:$0xff]
    %v3514 = vld [vmem:[%s7 + $0x2a0] sm:$0xff]
    %v3515 = vld [vmem:[%s7 + $0x2a8] sm:$0xff]
    %v3516 = vld [vmem:[%s7 + $0x2b0] sm:$0xff]
    %v3517 = vld [vmem:[%s7 + $0x2b8] sm:$0xff]
    %v3518 = vld [vmem:[%s7 + $0x2c0] sm:$0xff]
    %v3519 = vld [vmem:[%s7 + $0x2c8] sm:$0xff]
    %v3520 = vld [vmem:[%s7 + $0x2d0] sm:$0xff]
    %v3521 = vld [vmem:[%s7 + $0x2d8] sm:$0xff]
    %v3522 = vld [vmem:[%s7 + $0x2e0] sm:$0xff]
    %v3523 = vld [vmem:[%s7 + $0x2e8] sm:$0xff]
    %v3524 = vld [vmem:[%s7 + $0x2f0] sm:$0xff]
    %v3525 = vld [vmem:[%s7 + $0x2f8] sm:$0xff]
    %v3526 = vld [vmem:[%s7 + $0x300] sm:$0xff]
    %v3527 = vld [vmem:[%s7 + $0x308] sm:$0xff]
    %v3528 = vld [vmem:[%s7 + $0x310] sm:$0xff]
    %v3529 = vld [vmem:[%s7 + $0x318] sm:$0xff]
    %v3530 = vld [vmem:[%s7 + $0x320] sm:$0xff]
    %v3531 = vld [vmem:[%s7 + $0x328] sm:$0xff]
    %v3532 = vld [vmem:[%s7 + $0x330] sm:$0xff]
    %v3533 = vld [vmem:[%s7 + $0x338] sm:$0xff]
    %v3534 = vld [vmem:[%s7 + $0x340] sm:$0xff]
    %v3535 = vld [vmem:[%s7 + $0x348] sm:$0xff]
    %v3536 = vld [vmem:[%s7 + $0x350] sm:$0xff]
    %v3537 = vld [vmem:[%s7 + $0x358] sm:$0xff]
    %v3538 = vld [vmem:[%s7 + $0x360] sm:$0xff]
    %v3539 = vld [vmem:[%s7 + $0x368] sm:$0xff]
    %v3540 = vld [vmem:[%s7 + $0x370] sm:$0xff]
    %v3541 = vld [vmem:[%s7 + $0x378] sm:$0xff]
    %v3542 = vld [vmem:[%s7 + $0x380] sm:$0xff]
    %v3543 = vld [vmem:[%s7 + $0x388] sm:$0xff]
    %v3544 = vld [vmem:[%s7 + $0x390] sm:$0xff]
    %v3545 = vld [vmem:[%s7 + $0x398] sm:$0xff]
    %v3546 = vld [vmem:[%s7 + $0x3a0] sm:$0xff]
    %v3547 = vld [vmem:[%s7 + $0x3a8] sm:$0xff]
    %v3548 = vld [vmem:[%s7 + $0x3b0] sm:$0xff]
    %v3549 = vld [vmem:[%s7 + $0x3b8] sm:$0xff]
    %v3550 = vld [vmem:[%s7 + $0x3c0] sm:$0xff]
    %v3551 = vld [vmem:[%s7 + $0x3c8] sm:$0xff]
    %v3552 = vld [vmem:[%s7 + $0x3d0] sm:$0xff]
    %v3553 = vld [vmem:[%s7 + $0x3d8] sm:$0xff]
    %v3554 = vld [vmem:[%s7 + $0x3e0] sm:$0xff]
    %v3555 = vld [vmem:[%s7 + $0x3e8] sm:$0xff]
    %v3556 = vld [vmem:[%s7 + $0x3f0] sm:$0xff]
    %v3557 = vld [vmem:[%s7 + $0x3f8] sm:$0xff]
    %v3558 = vld [vmem:[%s7 + $0x400] sm:$0xff]
    %v3559 = vld [vmem:[%s7 + $0x408] sm:$0xff]
    %v3560 = vld [vmem:[%s7 + $0x410] sm:$0xff]
    %v3561 = vld [vmem:[%s7 + $0x418] sm:$0xff]
    %v3562 = vld [vmem:[%s7 + $0x420] sm:$0xff]
    %v3563 = vld [vmem:[%s7 + $0x428] sm:$0xff]
    %v3564 = vld [vmem:[%s7 + $0x430] sm:$0xff]
    %v3565 = vld [vmem:[%s7 + $0x438] sm:$0xff]
    %v3566 = vld [vmem:[%s7 + $0x440] sm:$0xff]
    %v3567 = vld [vmem:[%s7 + $0x448] sm:$0xff]
    %v3568 = vld [vmem:[%s7 + $0x450] sm:$0xff]
    %v3569 = vld [vmem:[%s7 + $0x458] sm:$0xff]
    %v3570 = vld [vmem:[%s7 + $0x460] sm:$0xff]
    %v3571 = vld [vmem:[%s7 + $0x468] sm:$0xff]
    %v3572 = vld [vmem:[%s7 + $0x470] sm:$0xff]
    %v3573 = vld [vmem:[%s7 + $0x478] sm:$0xff]
    %v3574 = vld [vmem:[%s7 + $0x480] sm:$0xff]
    %v3575 = vld [vmem:[%s7 + $0x488] sm:$0xff]
    %v3576 = vld [vmem:[%s7 + $0x490] sm:$0xff]
    %v3577 = vld [vmem:[%s7 + $0x498] sm:$0xff]
    %v3578 = vld [vmem:[%s7 + $0x4a0] sm:$0xff]
    %v3579 = vld [vmem:[%s7 + $0x4a8] sm:$0xff]
    %v3580 = vld [vmem:[%s7 + $0x4b0] sm:$0xff]
    %v3581 = vld [vmem:[%s7 + $0x4b8] sm:$0xff]
    %v3582 = vld [vmem:[%s7 + $0x4c0] sm:$0xff]
    %v3583 = vld [vmem:[%s7 + $0x4c8] sm:$0xff]
    %v3584 = vld [vmem:[%s7 + $0x4d0] sm:$0xff]
    %v3585 = vld [vmem:[%s7 + $0x4d8] sm:$0xff]
    %v3586 = vld [vmem:[%s7 + $0x4e0] sm:$0xff]
    %v3587 = vld [vmem:[%s7 + $0x4e8] sm:$0xff]
    %v3588 = vld [vmem:[%s7 + $0x4f0] sm:$0xff]
    %v3589 = vld [vmem:[%s7 + $0x4f8] sm:$0xff]
    %v3590 = vld [vmem:[%s7 + $0x500] sm:$0xff]
    %v3591 = vld [vmem:[%s7 + $0x508] sm:$0xff]
    %v3592 = vld [vmem:[%s7 + $0x510] sm:$0xff]
    %v3593 = vld [vmem:[%s7 + $0x518] sm:$0xff]
    %v3594 = vld [vmem:[%s7 + $0x520] sm:$0xff]
    %v3595 = vld [vmem:[%s7 + $0x528] sm:$0xff]
    %v3596 = vld [vmem:[%s7 + $0x530] sm:$0xff]
    %v3597 = vld [vmem:[%s7 + $0x538] sm:$0xff]
    %v3598 = vld [vmem:[%s7 + $0x540] sm:$0xff]
    %v3599 = vld [vmem:[%s7 + $0x548] sm:$0xff]
    %v3600 = vld [vmem:[%s7 + $0x550] sm:$0xff]
    %v3601 = vld [vmem:[%s7 + $0x558] sm:$0xff]
    %v3602 = vld [vmem:[%s7 + $0x560] sm:$0xff]
    %v3603 = vld [vmem:[%s7 + $0x568] sm:$0xff]
    %v3604 = vld [vmem:[%s7 + $0x570] sm:$0xff]
    %v3605 = vld [vmem:[%s7 + $0x578] sm:$0xff]
    %v3606 = vld [vmem:[%s7 + $0x580] sm:$0xff]
    %v3607 = vld [vmem:[%s7 + $0x588] sm:$0xff]
    %v3608 = vld [vmem:[%s7 + $0x590] sm:$0xff]
    %v3609 = vld [vmem:[%s7 + $0x598] sm:$0xff]
    %v3610 = vld [vmem:[%s7 + $0x5a0] sm:$0xff]
    %v3611 = vld [vmem:[%s7 + $0x5a8] sm:$0xff]
    %v3612 = vld [vmem:[%s7 + $0x5b0] sm:$0xff]
    %v3613 = vld [vmem:[%s7 + $0x5b8] sm:$0xff]
    %v3614 = vld [vmem:[%s7 + $0x5c0] sm:$0xff]
    %v3615 = vld [vmem:[%s7 + $0x5c8] sm:$0xff]
    %v3616 = vld [vmem:[%s7 + $0x5d0] sm:$0xff]
    %v3617 = vld [vmem:[%s7 + $0x5d8] sm:$0xff]
    %v3618 = vld [vmem:[%s7 + $0x5e0] sm:$0xff]
    %v3619 = vld [vmem:[%s7 + $0x5e8] sm:$0xff]
    %v3620 = vld [vmem:[%s7 + $0x5f0] sm:$0xff]
    %v3621 = vld [vmem:[%s7 + $0x5f8] sm:$0xff]
    %v3622 = vld [vmem:[%s7 + $0x600] sm:$0xff]
    %v3623 = vld [vmem:[%s7 + $0x608] sm:$0xff]
    %v3624 = vld [vmem:[%s7 + $0x610] sm:$0xff]
    %v3625 = vld [vmem:[%s7 + $0x618] sm:$0xff]
    %v3626 = vld [vmem:[%s7 + $0x620] sm:$0xff]
    %v3627 = vld [vmem:[%s7 + $0x628] sm:$0xff]
    %v3628 = vld [vmem:[%s7 + $0x630] sm:$0xff]
    %v3629 = vld [vmem:[%s7 + $0x638] sm:$0xff]
    %v3630 = vld [vmem:[%s7 + $0x640] sm:$0xff]
    %v3631 = vld [vmem:[%s7 + $0x648] sm:$0xff]
    %v3632 = vld [vmem:[%s7 + $0x650] sm:$0xff]
    %v3633 = vld [vmem:[%s7 + $0x658] sm:$0xff]
    %v3634 = vld [vmem:[%s7 + $0x660] sm:$0xff]
    %v3635 = vld [vmem:[%s7 + $0x668] sm:$0xff]
    %v3636 = vld [vmem:[%s7 + $0x670] sm:$0xff]
    %v3637 = vld [vmem:[%s7 + $0x678] sm:$0xff]
    %v3638 = vld [vmem:[%s7 + $0x680] sm:$0xff]
    %v3639 = vld [vmem:[%s7 + $0x688] sm:$0xff]
    %v3640 = vld [vmem:[%s7 + $0x690] sm:$0xff]
    %v3641 = vld [vmem:[%s7 + $0x698] sm:$0xff]
    %v3642 = vld [vmem:[%s7 + $0x6a0] sm:$0xff]
    %v3643 = vld [vmem:[%s7 + $0x6a8] sm:$0xff]
    %v3644 = vld [vmem:[%s7 + $0x6b0] sm:$0xff]
    %v3645 = vld [vmem:[%s7 + $0x6b8] sm:$0xff]
    %v3646 = vld [vmem:[%s7 + $0x6c0] sm:$0xff]
    %v3647 = vld [vmem:[%s7 + $0x6c8] sm:$0xff]
    %v3648 = vld [vmem:[%s7 + $0x6d0] sm:$0xff]
    %v3649 = vld [vmem:[%s7 + $0x6d8] sm:$0xff]
    %v3650 = vld [vmem:[%s7 + $0x6e0] sm:$0xff]
    %v3651 = vld [vmem:[%s7 + $0x6e8] sm:$0xff]
    %v3652 = vld [vmem:[%s7 + $0x6f0] sm:$0xff]
    %v3653 = vld [vmem:[%s7 + $0x6f8] sm:$0xff]
    %v3654 = vld [vmem:[%s7 + $0x700] sm:$0xff]
    %v3655 = vld [vmem:[%s7 + $0x708] sm:$0xff]
    %v3656 = vld [vmem:[%s7 + $0x710] sm:$0xff]
    %v3657 = vld [vmem:[%s7 + $0x718] sm:$0xff]
    %v3658 = vld [vmem:[%s7 + $0x720] sm:$0xff]
    %v3659 = vld [vmem:[%s7 + $0x728] sm:$0xff]
    %v3660 = vld [vmem:[%s7 + $0x730] sm:$0xff]
    %v3661 = vld [vmem:[%s7 + $0x738] sm:$0xff]
    %v3662 = vld [vmem:[%s7 + $0x740] sm:$0xff]
    %v3663 = vld [vmem:[%s7 + $0x748] sm:$0xff]
    %v3664 = vld [vmem:[%s7 + $0x750] sm:$0xff]
    %v3665 = vld [vmem:[%s7 + $0x758] sm:$0xff]
    %v3666 = vld [vmem:[%s7 + $0x760] sm:$0xff]
    %v3667 = vld [vmem:[%s7 + $0x768] sm:$0xff]
    %v3668 = vld [vmem:[%s7 + $0x770] sm:$0xff]
    %v3669 = vld [vmem:[%s7 + $0x778] sm:$0xff]
    %v3670 = vld [vmem:[%s7 + $0x780] sm:$0xff]
    %v3671 = vld [vmem:[%s7 + $0x788] sm:$0xff]
    %v3672 = vld [vmem:[%s7 + $0x790] sm:$0xff]
    %v3673 = vld [vmem:[%s7 + $0x798] sm:$0xff]
    %v3674 = vld [vmem:[%s7 + $0x7a0] sm:$0xff]
    %v3675 = vld [vmem:[%s7 + $0x7a8] sm:$0xff]
    %v3676 = vld [vmem:[%s7 + $0x7b0] sm:$0xff]
    %v3677 = vld [vmem:[%s7 + $0x7b8] sm:$0xff]
    %v3678 = vld [vmem:[%s7 + $0x7c0] sm:$0xff]
    %v3679 = vld [vmem:[%s7 + $0x7c8] sm:$0xff]
    %v3680 = vld [vmem:[%s7 + $0x7d0] sm:$0xff]
    %v3681 = vld [vmem:[%s7 + $0x7d8] sm:$0xff]
    %v3682 = vld [vmem:[%s7 + $0x7e0] sm:$0xff]
    %v3683 = vld [vmem:[%s7 + $0x7e8] sm:$0xff]
    %v3684 = vld [vmem:[%s7 + $0x7f0] sm:$0xff]
    %v3685 = vld [vmem:[%s7 + $0x7f8] sm:$0xff]
    %v3686 = vld [vmem:[%s7 + $0x800] sm:$0xff]
    %v3687 = vld [vmem:[%s7 + $0x808] sm:$0xff]
    %v3688 = vld [vmem:[%s7 + $0x810] sm:$0xff]
    %v3689 = vld [vmem:[%s7 + $0x818] sm:$0xff]
    %v3690 = vld [vmem:[%s7 + $0x820] sm:$0xff]
    %v3691 = vld [vmem:[%s7 + $0x828] sm:$0xff]
    %v3692 = vld [vmem:[%s7 + $0x830] sm:$0xff]
    %v3693 = vld [vmem:[%s7 + $0x838] sm:$0xff]
    %v3694 = vld [vmem:[%s7 + $0x840] sm:$0xff]
    %v3695 = vld [vmem:[%s7 + $0x848] sm:$0xff]
    %v3696 = vld [vmem:[%s7 + $0x850] sm:$0xff]
    %v3697 = vld [vmem:[%s7 + $0x858] sm:$0xff]
    %v3698 = vld [vmem:[%s7 + $0x860] sm:$0xff]
    %v3699 = vld [vmem:[%s7 + $0x868] sm:$0xff]
    %v3700 = vld [vmem:[%s7 + $0x870] sm:$0xff]
    %v3701 = vld [vmem:[%s7 + $0x878] sm:$0xff]
    %v3702 = vld [vmem:[%s7 + $0x880] sm:$0xff]
    %v3703 = vld [vmem:[%s7 + $0x888] sm:$0xff]
    %v3704 = vld [vmem:[%s7 + $0x890] sm:$0xff]
    %v3705 = vld [vmem:[%s7 + $0x898] sm:$0xff]
    %v3706 = vld [vmem:[%s7 + $0x8a0] sm:$0xff]
    %v3707 = vld [vmem:[%s7 + $0x8a8] sm:$0xff]
    %v3708 = vld [vmem:[%s7 + $0x8b0] sm:$0xff]
    %v3709 = vld [vmem:[%s7 + $0x8b8] sm:$0xff]
    %v3710 = vld [vmem:[%s7 + $0x8c0] sm:$0xff]
    %v3711 = vld [vmem:[%s7 + $0x8c8] sm:$0xff]
    %v3712 = vld [vmem:[%s7 + $0x8d0] sm:$0xff]
    %v3713 = vld [vmem:[%s7 + $0x8d8] sm:$0xff]
    %v3714 = vld [vmem:[%s7 + $0x8e0] sm:$0xff]
    %v3715 = vld [vmem:[%s7 + $0x8e8] sm:$0xff]
    %v3716 = vld [vmem:[%s7 + $0x8f0] sm:$0xff]
    %v3717 = vld [vmem:[%s7 + $0x8f8] sm:$0xff]
    %v3718 = vld [vmem:[%s7 + $0x900] sm:$0xff]
    %v3719 = vld [vmem:[%s7 + $0x908] sm:$0xff]
    %v3720 = vld [vmem:[%s7 + $0x910] sm:$0xff]
    %v3721 = vld [vmem:[%s7 + $0x918] sm:$0xff]
    %v3722 = vld [vmem:[%s7 + $0x920] sm:$0xff]
    %v3723 = vld [vmem:[%s7 + $0x928] sm:$0xff]
    %v3724 = vld [vmem:[%s7 + $0x930] sm:$0xff]
    %v3725 = vld [vmem:[%s7 + $0x938] sm:$0xff]
    %v3726 = vld [vmem:[%s7 + $0x940] sm:$0xff]
    %v3727 = vld [vmem:[%s7 + $0x948] sm:$0xff]
    %v3728 = vld [vmem:[%s7 + $0x950] sm:$0xff]
    %v3729 = vld [vmem:[%s7 + $0x958] sm:$0xff]
    %v3730 = vld [vmem:[%s7 + $0x960] sm:$0xff]
    %v3731 = vld [vmem:[%s7 + $0x968] sm:$0xff]
    %v3732 = vld [vmem:[%s7 + $0x970] sm:$0xff]
    %v3733 = vld [vmem:[%s7 + $0x978] sm:$0xff]
    %v3734 = vld [vmem:[%s7 + $0x980] sm:$0xff]
    %v3735 = vld [vmem:[%s7 + $0x988] sm:$0xff]
    %v3736 = vld [vmem:[%s7 + $0x990] sm:$0xff]
    %v3737 = vld [vmem:[%s7 + $0x998] sm:$0xff]
    %v3738 = vld [vmem:[%s7 + $0x9a0] sm:$0xff]
    %v3739 = vld [vmem:[%s7 + $0x9a8] sm:$0xff]
    %v3740 = vld [vmem:[%s7 + $0x9b0] sm:$0xff]
    %v3741 = vld [vmem:[%s7 + $0x9b8] sm:$0xff]
    %v3742 = vld [vmem:[%s7 + $0x9c0] sm:$0xff]
    %v3743 = vld [vmem:[%s7 + $0x9c8] sm:$0xff]
    %v3744 = vld [vmem:[%s7 + $0x9d0] sm:$0xff]
    %v3745 = vld [vmem:[%s7 + $0x9d8] sm:$0xff]
    %v3746 = vld [vmem:[%s7 + $0x9e0] sm:$0xff]
    %v3747 = vld [vmem:[%s7 + $0x9e8] sm:$0xff]
    %v3748 = vld [vmem:[%s7 + $0x9f0] sm:$0xff]
    %v3749 = vld [vmem:[%s7 + $0x9f8] sm:$0xff]
    %v3750 = vld [vmem:[%s7 + $0xa00] sm:$0xff]
    %v3751 = vld [vmem:[%s7 + $0xa08] sm:$0xff]
    %v3752 = vld [vmem:[%s7 + $0xa10] sm:$0xff]
    %v3753 = vld [vmem:[%s7 + $0xa18] sm:$0xff]
    %v3754 = vld [vmem:[%s7 + $0xa20] sm:$0xff]
    %v3755 = vld [vmem:[%s7 + $0xa28] sm:$0xff]
    %v3756 = vld [vmem:[%s7 + $0xa30] sm:$0xff]
    %v3757 = vld [vmem:[%s7 + $0xa38] sm:$0xff]
    %v3758 = vld [vmem:[%s7 + $0xa40] sm:$0xff]
    %v3759 = vld [vmem:[%s7 + $0xa48] sm:$0xff]
    %v3760 = vld [vmem:[%s7 + $0xa50] sm:$0xff]
    %v3761 = vld [vmem:[%s7 + $0xa58] sm:$0xff]
    %v3762 = vld [vmem:[%s7 + $0xa60] sm:$0xff]
    %v3763 = vld [vmem:[%s7 + $0xa68] sm:$0xff]
    %v3764 = vld [vmem:[%s7 + $0xa70] sm:$0xff]
    %v3765 = vld [vmem:[%s7 + $0xa78] sm:$0xff]
    %v3766 = vld [vmem:[%s7 + $0xa80] sm:$0xff]
    %v3767 = vld [vmem:[%s7 + $0xa88] sm:$0xff]
    %v3768 = vld [vmem:[%s7 + $0xa90] sm:$0xff]
    %v3769 = vld [vmem:[%s7 + $0xa98] sm:$0xff]
    %v3770 = vld [vmem:[%s7 + $0xaa0] sm:$0xff]
    %v3771 = vld [vmem:[%s7 + $0xaa8] sm:$0xff]
    %v3772 = vld [vmem:[%s7 + $0xab0] sm:$0xff]
    %v3773 = vld [vmem:[%s7 + $0xab8] sm:$0xff]
    %v3774 = vld [vmem:[%s7 + $0xac0] sm:$0xff]
    %v3775 = vld [vmem:[%s7 + $0xac8] sm:$0xff]
    %v3776 = vld [vmem:[%s7 + $0xad0] sm:$0xff]
    %v3777 = vld [vmem:[%s7 + $0xad8] sm:$0xff]
    %v3778 = vld [vmem:[%s7 + $0xae0] sm:$0xff]
    %v3779 = vld [vmem:[%s7 + $0xae8] sm:$0xff]
    %v3780 = vld [vmem:[%s7 + $0xaf0] sm:$0xff]
    %v3781 = vld [vmem:[%s7 + $0xaf8] sm:$0xff]
    %v3782 = vld [vmem:[%s7 + $0xb00] sm:$0xff]
    %v3783 = vld [vmem:[%s7 + $0xb08] sm:$0xff]
    %v3784 = vld [vmem:[%s7 + $0xb10] sm:$0xff]
    %v3785 = vld [vmem:[%s7 + $0xb18] sm:$0xff]
    %v3786 = vld [vmem:[%s7 + $0xb20] sm:$0xff]
    %v3787 = vld [vmem:[%s7 + $0xb28] sm:$0xff]
    %v3788 = vld [vmem:[%s7 + $0xb30] sm:$0xff]
    %v3789 = vld [vmem:[%s7 + $0xb38] sm:$0xff]
    %v3790 = vld [vmem:[%s7 + $0xb40] sm:$0xff]
    %v3791 = vld [vmem:[%s7 + $0xb48] sm:$0xff]
    %v3792 = vld [vmem:[%s7 + $0xb50] sm:$0xff]
    %v3793 = vld [vmem:[%s7 + $0xb58] sm:$0xff]
    %v3794 = vld [vmem:[%s7 + $0xb60] sm:$0xff]
    %v3795 = vld [vmem:[%s7 + $0xb68] sm:$0xff]
    %v3796 = vld [vmem:[%s7 + $0xb70] sm:$0xff]
    %v3797 = vld [vmem:[%s7 + $0xb78] sm:$0xff]
    %v3798 = vld [vmem:[%s7 + $0xb80] sm:$0xff]
    %v3799 = vld [vmem:[%s7 + $0xb88] sm:$0xff]
    %v3800 = vld [vmem:[%s7 + $0xb90] sm:$0xff]
    %v3801 = vld [vmem:[%s7 + $0xb98] sm:$0xff]
    %v3802 = vld [vmem:[%s7 + $0xba0] sm:$0xff]
    %v3803 = vld [vmem:[%s7 + $0xba8] sm:$0xff]
    %v3804 = vld [vmem:[%s7 + $0xbb0] sm:$0xff]
    %v3805 = vld [vmem:[%s7 + $0xbb8] sm:$0xff]
    %v3806 = vld [vmem:[%s7 + $0xbc0] sm:$0xff]
    %v3807 = vld [vmem:[%s7 + $0xbc8] sm:$0xff]
    %v3808 = vld [vmem:[%s7 + $0xbd0] sm:$0xff]
    %v3809 = vld [vmem:[%s7 + $0xbd8] sm:$0xff]
    %v3810 = vld [vmem:[%s7 + $0xbe0] sm:$0xff]
    %v3811 = vld [vmem:[%s7 + $0xbe8] sm:$0xff]
    %v3812 = vld [vmem:[%s7 + $0xbf0] sm:$0xff]
    %v3813 = vld [vmem:[%s7 + $0xbf8] sm:$0xff]
    %v3814 = vld [vmem:[%s7 + $0xc00] sm:$0xff]
    %v3815 = vld [vmem:[%s7 + $0xc08] sm:$0xff]
    %v3816 = vld [vmem:[%s7 + $0xc10] sm:$0xff]
    %v3817 = vld [vmem:[%s7 + $0xc18] sm:$0xff]
    %v3818 = vld [vmem:[%s7 + $0xc20] sm:$0xff]
    %v3819 = vld [vmem:[%s7 + $0xc28] sm:$0xff]
    %v3820 = vld [vmem:[%s7 + $0xc30] sm:$0xff]
    %v3821 = vld [vmem:[%s7 + $0xc38] sm:$0xff]
    %v3822 = vld [vmem:[%s7 + $0xc40] sm:$0xff]
    %v3823 = vld [vmem:[%s7 + $0xc48] sm:$0xff]
    %v3824 = vld [vmem:[%s7 + $0xc50] sm:$0xff]
    %v3825 = vld [vmem:[%s7 + $0xc58] sm:$0xff]
    %v3826 = vld [vmem:[%s7 + $0xc60] sm:$0xff]
    %v3827 = vld [vmem:[%s7 + $0xc68] sm:$0xff]
    %v3828 = vld [vmem:[%s7 + $0xc70] sm:$0xff]
    %v3829 = vld [vmem:[%s7 + $0xc78] sm:$0xff]
    %v3830 = vld [vmem:[%s7 + $0xc80] sm:$0xff]
    %v3831 = vld [vmem:[%s7 + $0xc88] sm:$0xff]
    %v3832 = vld [vmem:[%s7 + $0xc90] sm:$0xff]
    %v3833 = vld [vmem:[%s7 + $0xc98] sm:$0xff]
    %v3834 = vld [vmem:[%s7 + $0xca0] sm:$0xff]
    %v3835 = vld [vmem:[%s7 + $0xca8] sm:$0xff]
    %v3836 = vld [vmem:[%s7 + $0xcb0] sm:$0xff]
    %v3837 = vld [vmem:[%s7 + $0xcb8] sm:$0xff]
    %v3838 = vld [vmem:[%s7 + $0xcc0] sm:$0xff]
    %v3839 = vld [vmem:[%s7 + $0xcc8] sm:$0xff]
    %v3840 = vld [vmem:[%s7 + $0xcd0] sm:$0xff]
    %v3841 = vld [vmem:[%s7 + $0xcd8] sm:$0xff]
    %v3842 = vld [vmem:[%s7 + $0xce0] sm:$0xff]
    %v3843 = vld [vmem:[%s7 + $0xce8] sm:$0xff]
    %v3844 = vld [vmem:[%s7 + $0xcf0] sm:$0xff]
    %v3845 = vld [vmem:[%s7 + $0xcf8] sm:$0xff]
    %v3846 = vld [vmem:[%s7 + $0xd00] sm:$0xff]
    %v3847 = vld [vmem:[%s7 + $0xd08] sm:$0xff]
    %v3848 = vld [vmem:[%s7 + $0xd10] sm:$0xff]
    %v3849 = vld [vmem:[%s7 + $0xd18] sm:$0xff]
    %v3850 = vld [vmem:[%s7 + $0xd20] sm:$0xff]
    %v3851 = vld [vmem:[%s7 + $0xd28] sm:$0xff]
    %v3852 = vld [vmem:[%s7 + $0xd30] sm:$0xff]
    %v3853 = vld [vmem:[%s7 + $0xd38] sm:$0xff]
    %v3854 = vld [vmem:[%s7 + $0xd40] sm:$0xff]
    %v3855 = vld [vmem:[%s7 + $0xd48] sm:$0xff]
    %v3856 = vld [vmem:[%s7 + $0xd50] sm:$0xff]
    %v3857 = vld [vmem:[%s7 + $0xd58] sm:$0xff]
    %v3858 = vld [vmem:[%s7 + $0xd60] sm:$0xff]
    %v3859 = vld [vmem:[%s7 + $0xd68] sm:$0xff]
    %v3860 = vld [vmem:[%s7 + $0xd70] sm:$0xff]
    %v3861 = vld [vmem:[%s7 + $0xd78] sm:$0xff]
    %v3862 = vld [vmem:[%s7 + $0xd80] sm:$0xff]
    %v3863 = vld [vmem:[%s7 + $0xd88] sm:$0xff]
    %v3864 = vld [vmem:[%s7 + $0xd90] sm:$0xff]
    %v3865 = vld [vmem:[%s7 + $0xd98] sm:$0xff]
    %v3866 = vld [vmem:[%s7 + $0xda0] sm:$0xff]
    %v3867 = vld [vmem:[%s7 + $0xda8] sm:$0xff]
    %v3868 = vld [vmem:[%s7 + $0xdb0] sm:$0xff]
    %v3869 = vld [vmem:[%s7 + $0xdb8] sm:$0xff]
    %v3870 = vld [vmem:[%s7 + $0xdc0] sm:$0xff]
    %v3871 = vld [vmem:[%s7 + $0xdc8] sm:$0xff]
    %v3872 = vld [vmem:[%s7 + $0xdd0] sm:$0xff]
    %v3873 = vld [vmem:[%s7 + $0xdd8] sm:$0xff]
    %v3874 = vld [vmem:[%s7 + $0xde0] sm:$0xff]
    %v3875 = vld [vmem:[%s7 + $0xde8] sm:$0xff]
    %v3876 = vld [vmem:[%s7 + $0xdf0] sm:$0xff]
    %v3877 = vld [vmem:[%s7 + $0xdf8] sm:$0xff]
    %v3878 = vld [vmem:[%s7 + $0xe00] sm:$0xff]
    %v3879 = vld [vmem:[%s7 + $0xe08] sm:$0xff]
    %v3880 = vld [vmem:[%s7 + $0xe10] sm:$0xff]
    %v3881 = vld [vmem:[%s7 + $0xe18] sm:$0xff]
    %v3882 = vld [vmem:[%s7 + $0xe20] sm:$0xff]
    %v3883 = vld [vmem:[%s7 + $0xe28] sm:$0xff]
    %v3884 = vld [vmem:[%s7 + $0xe30] sm:$0xff]
    %v3885 = vld [vmem:[%s7 + $0xe38] sm:$0xff]
    %v3886 = vld [vmem:[%s7 + $0xe40] sm:$0xff]
    %v3887 = vld [vmem:[%s7 + $0xe48] sm:$0xff]
    %v3888 = vld [vmem:[%s7 + $0xe50] sm:$0xff]
    %v3889 = vld [vmem:[%s7 + $0xe58] sm:$0xff]
    %v3890 = vld [vmem:[%s7 + $0xe60] sm:$0xff]
    %v3891 = vld [vmem:[%s7 + $0xe68] sm:$0xff]
    %v3892 = vld [vmem:[%s7 + $0xe70] sm:$0xff]
    %v3893 = vld [vmem:[%s7 + $0xe78] sm:$0xff]
    %v3894 = vld [vmem:[%s7 + $0xe80] sm:$0xff]
    %v3895 = vld [vmem:[%s7 + $0xe88] sm:$0xff]
    %v3896 = vld [vmem:[%s7 + $0xe90] sm:$0xff]
    %v3897 = vld [vmem:[%s7 + $0xe98] sm:$0xff]
    %v3898 = vld [vmem:[%s7 + $0xea0] sm:$0xff]
    %v3899 = vld [vmem:[%s7 + $0xea8] sm:$0xff]
    %v3900 = vld [vmem:[%s7 + $0xeb0] sm:$0xff]
    %v3901 = vld [vmem:[%s7 + $0xeb8] sm:$0xff]
    %v3902 = vld [vmem:[%s7 + $0xec0] sm:$0xff]
    %v3903 = vld [vmem:[%s7 + $0xec8] sm:$0xff]
    %v3904 = vld [vmem:[%s7 + $0xed0] sm:$0xff]
    %v3905 = vld [vmem:[%s7 + $0xed8] sm:$0xff]
    %v3906 = vld [vmem:[%s7 + $0xee0] sm:$0xff]
    %v3907 = vld [vmem:[%s7 + $0xee8] sm:$0xff]
    %v3908 = vld [vmem:[%s7 + $0xef0] sm:$0xff]
    %v3909 = vld [vmem:[%s7 + $0xef8] sm:$0xff]
    %v3910 = vld [vmem:[%s7 + $0xf00] sm:$0xff]
    %v3911 = vld [vmem:[%s7 + $0xf08] sm:$0xff]
    %v3912 = vld [vmem:[%s7 + $0xf10] sm:$0xff]
    %v3913 = vld [vmem:[%s7 + $0xf18] sm:$0xff]
    %v3914 = vld [vmem:[%s7 + $0xf20] sm:$0xff]
    %v3915 = vld [vmem:[%s7 + $0xf28] sm:$0xff]
    %v3916 = vld [vmem:[%s7 + $0xf30] sm:$0xff]
    %v3917 = vld [vmem:[%s7 + $0xf38] sm:$0xff]
    %v3918 = vld [vmem:[%s7 + $0xf40] sm:$0xff]
    %v3919 = vld [vmem:[%s7 + $0xf48] sm:$0xff]
    %v3920 = vld [vmem:[%s7 + $0xf50] sm:$0xff]
    %v3921 = vld [vmem:[%s7 + $0xf58] sm:$0xff]
    %v3922 = vld [vmem:[%s7 + $0xf60] sm:$0xff]
    %v3923 = vld [vmem:[%s7 + $0xf68] sm:$0xff]
    %v3924 = vld [vmem:[%s7 + $0xf70] sm:$0xff]
    %v3925 = vld [vmem:[%s7 + $0xf78] sm:$0xff]
    %v3926 = vld [vmem:[%s7 + $0xf80] sm:$0xff]
    %v3927 = vld [vmem:[%s7 + $0xf88] sm:$0xff]
    %v3928 = vld [vmem:[%s7 + $0xf90] sm:$0xff]
    %v3929 = vld [vmem:[%s7 + $0xf98] sm:$0xff]
    %v3930 = vld [vmem:[%s7 + $0xfa0] sm:$0xff]
    %v3931 = vld [vmem:[%s7 + $0xfa8] sm:$0xff]
    %v3932 = vld [vmem:[%s7 + $0xfb0] sm:$0xff]
    %v3933 = vld [vmem:[%s7 + $0xfb8] sm:$0xff]
    %v3934 = vld [vmem:[%s7 + $0xfc0] sm:$0xff]
    %v3935 = vld [vmem:[%s7 + $0xfc8] sm:$0xff]
    %v3936 = vld [vmem:[%s7 + $0xfd0] sm:$0xff]
    %v3937 = vld [vmem:[%s7 + $0xfd8] sm:$0xff]
    %v3938 = vld [vmem:[%s7 + $0xfe0] sm:$0xff]
    %v3939 = vld [vmem:[%s7 + $0xfe8] sm:$0xff]
    %v3940 = vld [vmem:[%s7 + $0xff0] sm:$0xff]
    %v3941 = vld [vmem:[%s7 + $0xff8] sm:$0xff]
    %v3942 = vld [vmem:[%s7 + $0x1000] sm:$0xff]
    %v3943 = vld [vmem:[%s7 + $0x1008] sm:$0xff]
    %v3944 = vld [vmem:[%s7 + $0x1010] sm:$0xff]
    %v3945 = vld [vmem:[%s7 + $0x1018] sm:$0xff]
    %v3946 = vld [vmem:[%s7 + $0x1020] sm:$0xff]
    %v3947 = vld [vmem:[%s7 + $0x1028] sm:$0xff]
    %v3948 = vld [vmem:[%s7 + $0x1030] sm:$0xff]
    %v3949 = vld [vmem:[%s7 + $0x1038] sm:$0xff]
    %v3950 = vld [vmem:[%s7 + $0x1040] sm:$0xff]
    %v3951 = vld [vmem:[%s7 + $0x1048] sm:$0xff]
    %v3952 = vld [vmem:[%s7 + $0x1050] sm:$0xff]
    %v3953 = vld [vmem:[%s7 + $0x1058] sm:$0xff]
    %v3954 = vld [vmem:[%s7 + $0x1060] sm:$0xff]
    %v3955 = vld [vmem:[%s7 + $0x1068] sm:$0xff]
    %v3956 = vld [vmem:[%s7 + $0x1070] sm:$0xff]
    %v3957 = vld [vmem:[%s7 + $0x1078] sm:$0xff]
    %v3958 = vld [vmem:[%s7 + $0x1080] sm:$0xff]
    %v3959 = vld [vmem:[%s7 + $0x1088] sm:$0xff]
    %v3960 = vld [vmem:[%s7 + $0x1090] sm:$0xff]
    %v3961 = vld [vmem:[%s7 + $0x1098] sm:$0xff]
    %v3962 = vld [vmem:[%s7 + $0x10a0] sm:$0xff]
    %v3963 = vld [vmem:[%s7 + $0x10a8] sm:$0xff]
    %v3964 = vld [vmem:[%s7 + $0x10b0] sm:$0xff]
    %v3965 = vld [vmem:[%s7 + $0x10b8] sm:$0xff]
    %v3966 = vld [vmem:[%s7 + $0x10c0] sm:$0xff]
    %v3967 = vld [vmem:[%s7 + $0x10c8] sm:$0xff]
    %v3968 = vld [vmem:[%s7 + $0x10d0] sm:$0xff]
    %v3969 = vld [vmem:[%s7 + $0x10d8] sm:$0xff]
    %v3970 = vld [vmem:[%s7 + $0x10e0] sm:$0xff]
    %v3971 = vld [vmem:[%s7 + $0x10e8] sm:$0xff]
    %v3972 = vld [vmem:[%s7 + $0x10f0] sm:$0xff]
    %v3973 = vld [vmem:[%s7 + $0x10f8] sm:$0xff]
    %v3974 = vld [vmem:[%s7 + $0x1100] sm:$0xff]
    %v3975 = vld [vmem:[%s7 + $0x1108] sm:$0xff]
    %v3976 = vld [vmem:[%s7 + $0x1110] sm:$0xff]
    %v3977 = vld [vmem:[%s7 + $0x1118] sm:$0xff]
    %v3978 = vld [vmem:[%s7 + $0x1120] sm:$0xff]
    %v3979 = vld [vmem:[%s7 + $0x1128] sm:$0xff]
    %v3980 = vld [vmem:[%s7 + $0x1130] sm:$0xff]
    %v3981 = vld [vmem:[%s7 + $0x1138] sm:$0xff]
    %v3982 = vld [vmem:[%s7 + $0x1140] sm:$0xff]
    %v3983 = vld [vmem:[%s7 + $0x1148] sm:$0xff]
    %v3984 = vld [vmem:[%s7 + $0x1150] sm:$0xff]
    %v3985 = vld [vmem:[%s7 + $0x1158] sm:$0xff]
    %v3986 = vld [vmem:[%s7 + $0x1160] sm:$0xff]
    %v3987 = vld [vmem:[%s7 + $0x1168] sm:$0xff]
    %v3988 = vld [vmem:[%s7 + $0x1170] sm:$0xff]
    %v3989 = vld [vmem:[%s7 + $0x1178] sm:$0xff]
    %v3990 = vld [vmem:[%s7 + $0x1180] sm:$0xff]
    %v3991 = vld [vmem:[%s7 + $0x1188] sm:$0xff]
    %v3992 = vld [vmem:[%s7 + $0x1190] sm:$0xff]
    %v3993 = vld [vmem:[%s7 + $0x1198] sm:$0xff]
    %v3994 = vld [vmem:[%s7 + $0x11a0] sm:$0xff]
    %v3995 = vld [vmem:[%s7 + $0x11a8] sm:$0xff]
    %v3996 = vld [vmem:[%s7 + $0x11b0] sm:$0xff]
    %v3997 = vld [vmem:[%s7 + $0x11b8] sm:$0xff]
    %v3998 = vld [vmem:[%s7 + $0x11c0] sm:$0xff]
    %v3999 = vld [vmem:[%s7 + $0x11c8] sm:$0xff]
    %v4000 = vld [vmem:[%s7 + $0x11d0] sm:$0xff]
    %v4001 = vld [vmem:[%s7 + $0x11d8] sm:$0xff]
    %v4002 = vld [vmem:[%s7 + $0x11e0] sm:$0xff]
    %v4003 = vld [vmem:[%s7 + $0x11e8] sm:$0xff]
    %v4004 = vld [vmem:[%s7 + $0x11f0] sm:$0xff]
    %v4005 = vld [vmem:[%s7 + $0x11f8] sm:$0xff]
    %v4006 = vld [vmem:[%s7 + $0x1200] sm:$0xff]
    %v4007 = vld [vmem:[%s7 + $0x1208] sm:$0xff]
    %v4008 = vld [vmem:[%s7 + $0x1210] sm:$0xff]
    %v4009 = vld [vmem:[%s7 + $0x1218] sm:$0xff]
    %v4010 = vld [vmem:[%s7 + $0x1220] sm:$0xff]
    %v4011 = vld [vmem:[%s7 + $0x1228] sm:$0xff]
    %v4012 = vld [vmem:[%s7 + $0x1230] sm:$0xff]
    %v4013 = vld [vmem:[%s7 + $0x1238] sm:$0xff]
    %v4014 = vld [vmem:[%s7 + $0x1240] sm:$0xff]
    %v4015 = vld [vmem:[%s7 + $0x1248] sm:$0xff]
    %v4016 = vld [vmem:[%s7 + $0x1250] sm:$0xff]
    %v4017 = vld [vmem:[%s7 + $0x1258] sm:$0xff]
    %v4018 = vld [vmem:[%s7 + $0x1260] sm:$0xff]
    %v4019 = vld [vmem:[%s7 + $0x1268] sm:$0xff]
    %v4020 = vld [vmem:[%s7 + $0x1270] sm:$0xff]
    %v4021 = vld [vmem:[%s7 + $0x1278] sm:$0xff]
    %v4022 = vld [vmem:[%s7 + $0x1280] sm:$0xff]
    %v4023 = vld [vmem:[%s7 + $0x1288] sm:$0xff]
    %v4024 = vld [vmem:[%s7 + $0x1290] sm:$0xff]
    %v4025 = vld [vmem:[%s7 + $0x1298] sm:$0xff]
    %v4026 = vld [vmem:[%s7 + $0x12a0] sm:$0xff]
    %v4027 = vld [vmem:[%s7 + $0x12a8] sm:$0xff]
    %v4028 = vld [vmem:[%s7 + $0x12b0] sm:$0xff]
    %v4029 = vld [vmem:[%s7 + $0x12b8] sm:$0xff]
    %v4030 = vld [vmem:[%s7 + $0x12c0] sm:$0xff]
    %v4031 = vld [vmem:[%s7 + $0x12c8] sm:$0xff]
    %v4032 = vld [vmem:[%s7 + $0x12d0] sm:$0xff]
    %v4033 = vld [vmem:[%s7 + $0x12d8] sm:$0xff]
    %v4034 = vld [vmem:[%s7 + $0x12e0] sm:$0xff]
    %v4035 = vld [vmem:[%s7 + $0x12e8] sm:$0xff]
    %v4036 = vld [vmem:[%s7 + $0x12f0] sm:$0xff]
    %v4037 = vld [vmem:[%s7 + $0x12f8] sm:$0xff]
    %v4038 = vld [vmem:[%s7 + $0x1300] sm:$0xff]
    %v4039 = vld [vmem:[%s7 + $0x1308] sm:$0xff]
    %v4040 = vld [vmem:[%s7 + $0x1310] sm:$0xff]
    %v4041 = vld [vmem:[%s7 + $0x1318] sm:$0xff]
    %v4042 = vld [vmem:[%s7 + $0x1320] sm:$0xff]
    %v4043 = vld [vmem:[%s7 + $0x1328] sm:$0xff]
    %v4044 = vld [vmem:[%s7 + $0x1330] sm:$0xff]
    %v4045 = vld [vmem:[%s7 + $0x1338] sm:$0xff]
    %v4046 = vld [vmem:[%s7 + $0x1340] sm:$0xff]
    %v4047 = vld [vmem:[%s7 + $0x1348] sm:$0xff]
    %v4048 = vld [vmem:[%s7 + $0x1350] sm:$0xff]
    %v4049 = vld [vmem:[%s7 + $0x1358] sm:$0xff]
    %v4050 = vld [vmem:[%s7 + $0x1360] sm:$0xff]
    %v4051 = vld [vmem:[%s7 + $0x1368] sm:$0xff]
    %v4052 = vld [vmem:[%s7 + $0x1370] sm:$0xff]
    %v4053 = vld [vmem:[%s7 + $0x1378] sm:$0xff]
    %v4054 = vld [vmem:[%s7 + $0x1380] sm:$0xff]
    %v4055 = vld [vmem:[%s7 + $0x1388] sm:$0xff]
    %v4056 = vld [vmem:[%s7 + $0x1390] sm:$0xff]
    %v4057 = vld [vmem:[%s7 + $0x1398] sm:$0xff]
    %v4058 = vld [vmem:[%s7 + $0x13a0] sm:$0xff]
    %v4059 = vld [vmem:[%s7 + $0x13a8] sm:$0xff]
    %v4060 = vld [vmem:[%s7 + $0x13b0] sm:$0xff]
    %v4061 = vld [vmem:[%s7 + $0x13b8] sm:$0xff]
    %v4062 = vld [vmem:[%s7 + $0x13c0] sm:$0xff]
    %v4063 = vld [vmem:[%s7 + $0x13c8] sm:$0xff]
    %v4064 = vld [vmem:[%s7 + $0x13d0] sm:$0xff]
    %v4065 = vld [vmem:[%s7 + $0x13d8] sm:$0xff]
    %v4066 = vld [vmem:[%s7 + $0x13e0] sm:$0xff]
    %v4067 = vld [vmem:[%s7 + $0x13e8] sm:$0xff]
    %v4068 = vld [vmem:[%s7 + $0x13f0] sm:$0xff]
    %v4069 = vld [vmem:[%s7 + $0x13f8] sm:$0xff]
    %v4070 = vld [vmem:[%s7 + $0x1400] sm:$0xff]
    %v4071 = vld [vmem:[%s7 + $0x1408] sm:$0xff]
    %v4072 = vld [vmem:[%s7 + $0x1410] sm:$0xff]
    %v4073 = vld [vmem:[%s7 + $0x1418] sm:$0xff]
    %v4074 = vld [vmem:[%s7 + $0x1420] sm:$0xff]
    %v4075 = vld [vmem:[%s7 + $0x1428] sm:$0xff]
    %v4076 = vld [vmem:[%s7 + $0x1430] sm:$0xff]
    %v4077 = vld [vmem:[%s7 + $0x1438] sm:$0xff]
    %v4078 = vld [vmem:[%s7 + $0x1440] sm:$0xff]
    %v4079 = vld [vmem:[%s7 + $0x1448] sm:$0xff]
    %v4080 = vld [vmem:[%s7 + $0x1450] sm:$0xff]
    %v4081 = vld [vmem:[%s7 + $0x1458] sm:$0xff]
    %v4082 = vld [vmem:[%s7 + $0x1460] sm:$0xff]
    %v4083 = vld [vmem:[%s7 + $0x1468] sm:$0xff]
    %v4084 = vld [vmem:[%s7 + $0x1470] sm:$0xff]
    %v4085 = vld [vmem:[%s7 + $0x1478] sm:$0xff]
    %v4086 = vld [vmem:[%s7 + $0x1480] sm:$0xff]
    %v4087 = vld [vmem:[%s7 + $0x1488] sm:$0xff]
    %v4088 = vld [vmem:[%s7 + $0x1490] sm:$0xff]
    %v4089 = vld [vmem:[%s7 + $0x1498] sm:$0xff]
    %v4090 = vld [vmem:[%s7 + $0x14a0] sm:$0xff]
    %v4091 = vld [vmem:[%s7 + $0x14a8] sm:$0xff]
    %v4092 = vld [vmem:[%s7 + $0x14b0] sm:$0xff]
    %v4093 = vld [vmem:[%s7 + $0x14b8] sm:$0xff]
    %v4094 = vld [vmem:[%s7 + $0x14c0] sm:$0xff]
    %v4095 = vld [vmem:[%s7 + $0x14c8] sm:$0xff]
    %v4096 = vld [vmem:[%s7 + $0x14d0] sm:$0xff]
    %v4097 = vld [vmem:[%s7 + $0x14d8] sm:$0xff]
    %v4098 = vld [vmem:[%s7 + $0x14e0] sm:$0xff]
    %v4099 = vld [vmem:[%s7 + $0x14e8] sm:$0xff]
    %v4100 = vld [vmem:[%s7 + $0x14f0] sm:$0xff]
    %v4101 = vld [vmem:[%s7 + $0x14f8] sm:$0xff]
    %v4102 = vld [vmem:[%s7 + $0x1500] sm:$0xff]
    %v4103 = vld [vmem:[%s7 + $0x1508] sm:$0xff]
    %v4104 = vld [vmem:[%s7 + $0x1510] sm:$0xff]
    %v4105 = vld [vmem:[%s7 + $0x1518] sm:$0xff]
    %v4106 = vld [vmem:[%s7 + $0x1520] sm:$0xff]
    %v4107 = vld [vmem:[%s7 + $0x1528] sm:$0xff]
    %v4108 = vld [vmem:[%s7 + $0x1530] sm:$0xff]
    %v4109 = vld [vmem:[%s7 + $0x1538] sm:$0xff]
    %v4110 = vld [vmem:[%s7 + $0x1540] sm:$0xff]
    %v4111 = vld [vmem:[%s7 + $0x1548] sm:$0xff]
    %v4112 = vld [vmem:[%s7 + $0x1550] sm:$0xff]
    %v4113 = vld [vmem:[%s7 + $0x1558] sm:$0xff]
    %v4114 = vld [vmem:[%s7 + $0x1560] sm:$0xff]
    %v4115 = vld [vmem:[%s7 + $0x1568] sm:$0xff]
    %v4116 = vld [vmem:[%s8] sm:$0x7f]
    %v4118 = vlaneseq
    %v4119 = vshrl.u32 %v4118, 7
    %v4120 = vsub.s32 0, %v4119
    %v4121 = vrot.slane %v4116, %v4120
    %v4122 = vlaneseq
    %v4123 = vshrl.u32 %v4122, 7
    %v4124 = vsub.s32 1, %v4123
    %v4125 = vrot.slane %v4116, %v4124
    %v4126 = vlaneseq
    %v4127 = vshrl.u32 %v4126, 7
    %v4128 = vsub.s32 2, %v4127
    %v4129 = vrot.slane %v4116, %v4128
    %v4130 = vlaneseq
    %v4131 = vshrl.u32 %v4130, 7
    %v4132 = vsub.s32 3, %v4131
    %v4133 = vrot.slane %v4116, %v4132
    %v4134 = vlaneseq
    %v4135 = vshrl.u32 %v4134, 7
    %v4136 = vsub.s32 4, %v4135
    %v4137 = vrot.slane %v4116, %v4136
    %v4138 = vlaneseq
    %v4139 = vshrl.u32 %v4138, 7
    %v4140 = vsub.s32 5, %v4139
    %v4141 = vrot.slane %v4116, %v4140
    %v4142 = vlaneseq
    %v4143 = vshrl.u32 %v4142, 7
    %v4144 = vsub.s32 6, %v4143
    %v4145 = vrot.slane %v4116, %v4144
    %4153 = vmatprep.subr.mxu0 %v3536
    %4154 = vmatpush1.msra.mxu0 %v3535
    %4155 = vmatprep.subr.mxu0 %v3529
    %4156 = vmatpush1.msra.mxu0 %v3528
    %4157 = vmatprep.subr.mxu0 %v3522
    %4158 = vmatpush1.msra.mxu0 %v3521
    %4159 = vmatprep.subr.mxu0 %v3515
    %4160 = vmatpush1.msra.mxu0 %v3514
    %4161 = vmatprep.subr.mxu0 %v3508
    %4162 = vmatpush1.msra.mxu0 %v3507
    %4163 = vmatprep.subr.mxu0 %v3501
    %4164 = vmatpush1.msra.mxu0 %v3500
    %4165 = vmatprep.subr.mxu0 %v3494
    %4166 = vmatpush1.msra.mxu0 %v3493
    %4167 = vmatprep.subr.mxu0 %v3487
    %4168 = vmatpush1.msra.mxu0 %v3486
    %4169 = vmatprep.subr.mxu0 %v3480
    %4170 = vmatpush1.msra.mxu0 %v3479
    %4171 = vmatprep.subr.mxu0 %v3473
    %4172 = vmatpush1.msra.mxu0 %v3472
    %4173 = vmatprep.subr.mxu0 %v3466
    %4174 = vmatpush1.msra.mxu0 %v3465
    %4175 = vmatprep.subr.mxu0 %v3459
    %4176 = vmatpush1.msra.mxu0 %v3458
    %4177 = vmatprep.subr.mxu0 %v3452
    %4178 = vmatpush1.msra.mxu0 %v3451
    %4179 = vmatprep.subr.mxu0 %v3445
    %4180 = vmatpush1.msra.mxu0 %v3444
    %4181 = vmatprep.subr.mxu0 %v3438
    %4182 = vmatpush1.msra.mxu0 %v3437
    %4183 = vmatprep.subr.mxu0 %v3431
    %4184 = vmatpush1.msra.mxu0 %v3430
    %4185 = vmatprep.subr.mxu0 %v3648
    %4186 = vmatpush2.msra.mxu0 %v3647
    %4187 = vmatprep.subr.mxu0 %v3641
    %4188 = vmatpush2.msra.mxu0 %v3640
    %4189 = vmatprep.subr.mxu0 %v3634
    %4190 = vmatpush2.msra.mxu0 %v3633
    %4191 = vmatprep.subr.mxu0 %v3627
    %4192 = vmatpush2.msra.mxu0 %v3626
    %4193 = vmatprep.subr.mxu0 %v3620
    %4194 = vmatpush2.msra.mxu0 %v3619
    %4195 = vmatprep.subr.mxu0 %v3613
    %4196 = vmatpush2.msra.mxu0 %v3612
    %4197 = vmatprep.subr.mxu0 %v3606
    %4198 = vmatpush2.msra.mxu0 %v3605
    %4199 = vmatprep.subr.mxu0 %v3599
    %4200 = vmatpush2.msra.mxu0 %v3598
    %4201 = vmatprep.subr.mxu0 %v3592
    %4202 = vmatpush2.msra.mxu0 %v3591
    %4203 = vmatprep.subr.mxu0 %v3585
    %4204 = vmatpush2.msra.mxu0 %v3584
    %4205 = vmatprep.subr.mxu0 %v3578
    %4206 = vmatpush2.msra.mxu0 %v3577
    %4207 = vmatprep.subr.mxu0 %v3571
    %4208 = vmatpush2.msra.mxu0 %v3570
    %4209 = vmatprep.subr.mxu0 %v3564
    %4210 = vmatpush2.msra.mxu0 %v3563
    %4211 = vmatprep.subr.mxu0 %v3557
    %4212 = vmatpush2.msra.mxu0 %v3556
    %4213 = vmatprep.subr.mxu0 %v3550
    %4214 = vmatpush2.msra.mxu0 %v3549
    %4215 = vmatprep.subr.mxu0 %v3543
    %4216 = vmatpush2.msra.mxu0 %v3542
    %4217 = vmatprep.mubr.f32.mxu0 %v819
    %4218 = vmatmul.mubr.f32.gmra.mxu0 %v811
    %v4219 = vpop.f32.mrf.mxu0
    %v4220 = vadd.f32 %v4121, %v4219
    %v4221 = vpop.f32.mrf.mxu0
    %v4222 = vadd.f32 %v4125, %v4221
    %4223 = vdwg.mxu0
    %4224 = vmatprep.subr.mxu0 %v3760
    %4225 = vmatpush1.msra.mxu0 %v3759
    %4226 = vmatprep.subr.mxu0 %v3753
    %4227 = vmatpush1.msra.mxu0 %v3752
    %4228 = vmatprep.subr.mxu0 %v3746
    %4229 = vmatpush1.msra.mxu0 %v3745
    %4230 = vmatprep.subr.mxu0 %v3739
    %4231 = vmatpush1.msra.mxu0 %v3738
    %4232 = vmatprep.subr.mxu0 %v3732
    %4233 = vmatpush1.msra.mxu0 %v3731
    %4234 = vmatprep.subr.mxu0 %v3725
    %4235 = vmatpush1.msra.mxu0 %v3724
    %4236 = vmatprep.subr.mxu0 %v3718
    %4237 = vmatpush1.msra.mxu0 %v3717
    %4238 = vmatprep.subr.mxu0 %v3711
    %4239 = vmatpush1.msra.mxu0 %v3710
    %4240 = vmatprep.subr.mxu0 %v3704
    %4241 = vmatpush1.msra.mxu0 %v3703
    %4242 = vmatprep.subr.mxu0 %v3697
    %4243 = vmatpush1.msra.mxu0 %v3696
    %4244 = vmatprep.subr.mxu0 %v3690
    %4245 = vmatpush1.msra.mxu0 %v3689
    %4246 = vmatprep.subr.mxu0 %v3683
    %4247 = vmatpush1.msra.mxu0 %v3682
    %4248 = vmatprep.subr.mxu0 %v3676
    %4249 = vmatpush1.msra.mxu0 %v3675
    %4250 = vmatprep.subr.mxu0 %v3669
    %4251 = vmatpush1.msra.mxu0 %v3668
    %4252 = vmatprep.subr.mxu0 %v3662
    %4253 = vmatpush1.msra.mxu0 %v3661
    %4254 = vmatprep.subr.mxu0 %v3655
    %4255 = vmatpush1.msra.mxu0 %v3654
    %4256 = vmatprep.subr.mxu0 %v3872
    %4257 = vmatpush2.msra.mxu0 %v3871
    %4258 = vmatprep.subr.mxu0 %v3865
    %4259 = vmatpush2.msra.mxu0 %v3864
    %4260 = vmatprep.subr.mxu0 %v3858
    %4261 = vmatpush2.msra.mxu0 %v3857
    %4262 = vmatprep.subr.mxu0 %v3851
    %4263 = vmatpush2.msra.mxu0 %v3850
    %4264 = vmatprep.subr.mxu0 %v3844
    %4265 = vmatpush2.msra.mxu0 %v3843
    %4266 = vmatprep.subr.mxu0 %v3837
    %4267 = vmatpush2.msra.mxu0 %v3836
    %4268 = vmatprep.subr.mxu0 %v3830
    %4269 = vmatpush2.msra.mxu0 %v3829
    %4270 = vmatprep.subr.mxu0 %v3823
    %4271 = vmatpush2.msra.mxu0 %v3822
    %4272 = vmatprep.subr.mxu0 %v3816
    %4273 = vmatpush2.msra.mxu0 %v3815
    %4274 = vmatprep.subr.mxu0 %v3809
    %4275 = vmatpush2.msra.mxu0 %v3808
    %4276 = vmatprep.subr.mxu0 %v3802
    %4277 = vmatpush2.msra.mxu0 %v3801
    %4278 = vmatprep.subr.mxu0 %v3795
    %4279 = vmatpush2.msra.mxu0 %v3794
    %4280 = vmatprep.subr.mxu0 %v3788
    %4281 = vmatpush2.msra.mxu0 %v3787
    %4282 = vmatprep.subr.mxu0 %v3781
    %4283 = vmatpush2.msra.mxu0 %v3780
    %4284 = vmatprep.subr.mxu0 %v3774
    %4285 = vmatpush2.msra.mxu0 %v3773
    %4286 = vmatprep.subr.mxu0 %v3767
    %4287 = vmatpush2.msra.mxu0 %v3766
    %4288 = vmatprep.mubr.f32.mxu0 %v820
    %4289 = vmatmul.mubr.f32.gmra.mxu0 %v818
    %v4290 = vpop.f32.mrf.mxu0
    %v4291 = vadd.f32 %v4220, %v4290
    %v4292 = vpop.f32.mrf.mxu0
    %v4293 = vadd.f32 %v4222, %v4292
    %4294 = vdwg.mxu0
    %4295 = vmatprep.subr.mxu0 %v3984
    %4296 = vmatpush1.msra.mxu0 %v3983
    %4297 = vmatprep.subr.mxu0 %v3977
    %4298 = vmatpush1.msra.mxu0 %v3976
    %4299 = vmatprep.subr.mxu0 %v3970
    %4300 = vmatpush1.msra.mxu0 %v3969
    %4301 = vmatprep.subr.mxu0 %v3963
    %4302 = vmatpush1.msra.mxu0 %v3962
    %4303 = vmatprep.subr.mxu0 %v3956
    %4304 = vmatpush1.msra.mxu0 %v3955
    %4305 = vmatprep.subr.mxu0 %v3949
    %4306 = vmatpush1.msra.mxu0 %v3948
    %4307 = vmatprep.subr.mxu0 %v3942
    %4308 = vmatpush1.msra.mxu0 %v3941
    %4309 = vmatprep.subr.mxu0 %v3935
    %4310 = vmatpush1.msra.mxu0 %v3934
    %4311 = vmatprep.subr.mxu0 %v3928
    %4312 = vmatpush1.msra.mxu0 %v3927
    %4313 = vmatprep.subr.mxu0 %v3921
    %4314 = vmatpush1.msra.mxu0 %v3920
    %4315 = vmatprep.subr.mxu0 %v3914
    %4316 = vmatpush1.msra.mxu0 %v3913
    %4317 = vmatprep.subr.mxu0 %v3907
    %4318 = vmatpush1.msra.mxu0 %v3906
    %4319 = vmatprep.subr.mxu0 %v3900
    %4320 = vmatpush1.msra.mxu0 %v3899
    %4321 = vmatprep.subr.mxu0 %v3893
    %4322 = vmatpush1.msra.mxu0 %v3892
    %4323 = vmatprep.subr.mxu0 %v3886
    %4324 = vmatpush1.msra.mxu0 %v3885
    %4325 = vmatprep.subr.mxu0 %v3879
    %4326 = vmatpush1.msra.mxu0 %v3878
    %4327 = vmatprep.subr.mxu0 %v4096
    %4328 = vmatpush2.msra.mxu0 %v4095
    %4329 = vmatprep.subr.mxu0 %v4089
    %4330 = vmatpush2.msra.mxu0 %v4088
    %4331 = vmatprep.subr.mxu0 %v4082
    %4332 = vmatpush2.msra.mxu0 %v4081
    %4333 = vmatprep.subr.mxu0 %v4075
    %4334 = vmatpush2.msra.mxu0 %v4074
    %4335 = vmatprep.subr.mxu0 %v4068
    %4336 = vmatpush2.msra.mxu0 %v4067
    %4337 = vmatprep.subr.mxu0 %v4061
    %4338 = vmatpush2.msra.mxu0 %v4060
    %4339 = vmatprep.subr.mxu0 %v4054
    %4340 = vmatpush2.msra.mxu0 %v4053
    %4341 = vmatprep.subr.mxu0 %v4047
    %4342 = vmatpush2.msra.mxu0 %v4046
    %4343 = vmatprep.subr.mxu0 %v4040
    %4344 = vmatpush2.msra.mxu0 %v4039
    %4345 = vmatprep.subr.mxu0 %v4033
    %4346 = vmatpush2.msra.mxu0 %v4032
    %4347 = vmatprep.subr.mxu0 %v4026
    %4348 = vmatpush2.msra.mxu0 %v4025
    %4349 = vmatprep.subr.mxu0 %v4019
    %4350 = vmatpush2.msra.mxu0 %v4018
    %4351 = vmatprep.subr.mxu0 %v4012
    %4352 = vmatpush2.msra.mxu0 %v4011
    %4353 = vmatprep.subr.mxu0 %v4005
    %4354 = vmatpush2.msra.mxu0 %v4004
    %4355 = vmatprep.subr.mxu0 %v3998
    %4356 = vmatpush2.msra.mxu0 %v3997
    %4357 = vmatprep.subr.mxu0 %v3991
    %4358 = vmatpush2.msra.mxu0 %v3990
    %4359 = vmatprep.mubr.f32.mxu0 %v836
    %4360 = vmatmul.mubr.f32.gmra.mxu0 %v828
    %v4361 = vpop.f32.mrf.mxu0
    %v4362 = vadd.f32 %v4291, %v4361
    %v4363 = vpop.f32.mrf.mxu0
    %v4364 = vadd.f32 %v4293, %v4363
    %4365 = vdwg.mxu0
    %4366 = vmatprep.subr.mxu0 0.0
    %4367 = vmatpush1.msra.mxu0 0.0
    %4368 = vmatprep.subr.mxu0 0.0
    %4369 = vmatpush1.msra.mxu0 0.0
    %4370 = vmatprep.subr.mxu0 0.0
    %4371 = vmatpush1.msra.mxu0 0.0
    %4372 = vmatprep.subr.mxu0 0.0
    %4373 = vmatpush1.msra.mxu0 0.0
    %4374 = vmatprep.subr.mxu0 0.0
    %4375 = vmatpush1.msra.mxu0 0.0
    %4376 = vmatprep.subr.mxu0 0.0
    %4377 = vmatpush1.msra.mxu0 0.0
    %4378 = vmatprep.subr.mxu0 0.0
    %4379 = vmatpush1.msra.mxu0 0.0
    %4380 = vmatprep.subr.mxu0 0.0
    %4381 = vmatpush1.msra.mxu0 0.0
    %4382 = vmatprep.subr.mxu0 0.0
    %4383 = vmatpush1.msra.mxu0 0.0
    %4384 = vmatprep.subr.mxu0 0.0
    %4385 = vmatpush1.msra.mxu0 0.0
    %4386 = vmatprep.subr.mxu0 0.0
    %4387 = vmatpush1.msra.mxu0 0.0
    %4388 = vmatprep.subr.mxu0 0.0
    %4389 = vmatpush1.msra.mxu0 0.0
    %4390 = vmatprep.subr.mxu0 0.0
    %4391 = vmatpush1.msra.mxu0 0.0
    %4392 = vmatprep.subr.mxu0 0.0
    %4393 = vmatpush1.msra.mxu0 0.0
    %4394 = vmatprep.subr.mxu0 %v4110
    %4395 = vmatpush1.msra.mxu0 %v4109
    %4396 = vmatprep.subr.mxu0 %v4103
    %4397 = vmatpush1.msra.mxu0 %v4102
    %4398 = vmatprep.subr.mxu0 0.0
    %4399 = vmatpush2.msra.mxu0 0.0
    %4400 = vmatprep.subr.mxu0 0.0
    %4401 = vmatpush2.msra.mxu0 0.0
    %4402 = vmatprep.subr.mxu0 0.0
    %4403 = vmatpush2.msra.mxu0 0.0
    %4404 = vmatprep.subr.mxu0 0.0
    %4405 = vmatpush2.msra.mxu0 0.0
    %4406 = vmatprep.subr.mxu0 0.0
    %4407 = vmatpush2.msra.mxu0 0.0
    %4408 = vmatprep.subr.mxu0 0.0
    %4409 = vmatpush2.msra.mxu0 0.0
    %4410 = vmatprep.subr.mxu0 0.0
    %4411 = vmatpush2.msra.mxu0 0.0
    %4412 = vmatprep.subr.mxu0 0.0
    %4413 = vmatpush2.msra.mxu0 0.0
    %4414 = vmatprep.subr.mxu0 0.0
    %4415 = vmatpush2.msra.mxu0 0.0
    %4416 = vmatprep.subr.mxu0 0.0
    %4417 = vmatpush2.msra.mxu0 0.0
    %4418 = vmatprep.subr.mxu0 0.0
    %4419 = vmatpush2.msra.mxu0 0.0
    %4420 = vmatprep.subr.mxu0 0.0
    %4421 = vmatpush2.msra.mxu0 0.0
    %4422 = vmatprep.subr.mxu0 0.0
    %4423 = vmatpush2.msra.mxu0 0.0
    %4424 = vmatprep.subr.mxu0 0.0
    %4425 = vmatpush2.msra.mxu0 0.0
    %4426 = vmatprep.subr.mxu0 0.0
    %4427 = vmatpush2.msra.mxu0 0.0
    %4428 = vmatprep.subr.mxu0 0.0
    %4429 = vmatpush2.msra.mxu0 0.0
    %4430 = vmatprep.mubr.f32.mxu0 0.0
    %4431 = vmatmul.mubr.f32.gmra.mxu0 %v844
    %v4432 = vpop.f32.mrf.mxu0
    %v4433 = vadd.f32 %v4362, %v4432
    %v4434 = vpop.f32.mrf.mxu0
    %v4435 = vadd.f32 %v4364, %v4434
    %4436 = vdwg.mxu0
    %4437 = vmatprep.subr.mxu0 %v3538
    %4438 = vmatpush1.msra.mxu0 %v3537
    %4439 = vmatprep.subr.mxu0 %v3531
    %4440 = vmatpush1.msra.mxu0 %v3530
    %4441 = vmatprep.subr.mxu0 %v3524
    %4442 = vmatpush1.msra.mxu0 %v3523
    %4443 = vmatprep.subr.mxu0 %v3517
    %4444 = vmatpush1.msra.mxu0 %v3516
    %4445 = vmatprep.subr.mxu0 %v3510
    %4446 = vmatpush1.msra.mxu0 %v3509
    %4447 = vmatprep.subr.mxu0 %v3503
    %4448 = vmatpush1.msra.mxu0 %v3502
    %4449 = vmatprep.subr.mxu0 %v3496
    %4450 = vmatpush1.msra.mxu0 %v3495
    %4451 = vmatprep.subr.mxu0 %v3489
    %4452 = vmatpush1.msra.mxu0 %v3488
    %4453 = vmatprep.subr.mxu0 %v3482
    %4454 = vmatpush1.msra.mxu0 %v3481
    %4455 = vmatprep.subr.mxu0 %v3475
    %4456 = vmatpush1.msra.mxu0 %v3474
    %4457 = vmatprep.subr.mxu0 %v3468
    %4458 = vmatpush1.msra.mxu0 %v3467
    %4459 = vmatprep.subr.mxu0 %v3461
    %4460 = vmatpush1.msra.mxu0 %v3460
    %4461 = vmatprep.subr.mxu0 %v3454
    %4462 = vmatpush1.msra.mxu0 %v3453
    %4463 = vmatprep.subr.mxu0 %v3447
    %4464 = vmatpush1.msra.mxu0 %v3446
    %4465 = vmatprep.subr.mxu0 %v3440
    %4466 = vmatpush1.msra.mxu0 %v3439
    %4467 = vmatprep.subr.mxu0 %v3433
    %4468 = vmatpush1.msra.mxu0 %v3432
    %4469 = vmatprep.subr.mxu0 %v3650
    %4470 = vmatpush2.msra.mxu0 %v3649
    %4471 = vmatprep.subr.mxu0 %v3643
    %4472 = vmatpush2.msra.mxu0 %v3642
    %4473 = vmatprep.subr.mxu0 %v3636
    %4474 = vmatpush2.msra.mxu0 %v3635
    %4475 = vmatprep.subr.mxu0 %v3629
    %4476 = vmatpush2.msra.mxu0 %v3628
    %4477 = vmatprep.subr.mxu0 %v3622
    %4478 = vmatpush2.msra.mxu0 %v3621
    %4479 = vmatprep.subr.mxu0 %v3615
    %4480 = vmatpush2.msra.mxu0 %v3614
    %4481 = vmatprep.subr.mxu0 %v3608
    %4482 = vmatpush2.msra.mxu0 %v3607
    %4483 = vmatprep.subr.mxu0 %v3601
    %4484 = vmatpush2.msra.mxu0 %v3600
    %4485 = vmatprep.subr.mxu0 %v3594
    %4486 = vmatpush2.msra.mxu0 %v3593
    %4487 = vmatprep.subr.mxu0 %v3587
    %4488 = vmatpush2.msra.mxu0 %v3586
    %4489 = vmatprep.subr.mxu0 %v3580
    %4490 = vmatpush2.msra.mxu0 %v3579
    %4491 = vmatprep.subr.mxu0 %v3573
    %4492 = vmatpush2.msra.mxu0 %v3572
    %4493 = vmatprep.subr.mxu0 %v3566
    %4494 = vmatpush2.msra.mxu0 %v3565
    %4495 = vmatprep.subr.mxu0 %v3559
    %4496 = vmatpush2.msra.mxu0 %v3558
    %4497 = vmatprep.subr.mxu0 %v3552
    %4498 = vmatpush2.msra.mxu0 %v3551
    %4499 = vmatprep.subr.mxu0 %v3545
    %4500 = vmatpush2.msra.mxu0 %v3544
    %4501 = vmatprep.mubr.f32.mxu0 %v819
    %4502 = vmatmul.mubr.f32.gmra.mxu0 %v811
    %v4503 = vpop.f32.mrf.mxu0
    %v4504 = vadd.f32 %v4129, %v4503
    %v4505 = vpop.f32.mrf.mxu0
    %v4506 = vadd.f32 %v4133, %v4505
    %4507 = vdwg.mxu0
    %4508 = vmatprep.subr.mxu0 %v3762
    %4509 = vmatpush1.msra.mxu0 %v3761
    %4510 = vmatprep.subr.mxu0 %v3755
    %4511 = vmatpush1.msra.mxu0 %v3754
    %4512 = vmatprep.subr.mxu0 %v3748
    %4513 = vmatpush1.msra.mxu0 %v3747
    %4514 = vmatprep.subr.mxu0 %v3741
    %4515 = vmatpush1.msra.mxu0 %v3740
    %4516 = vmatprep.subr.mxu0 %v3734
    %4517 = vmatpush1.msra.mxu0 %v3733
    %4518 = vmatprep.subr.mxu0 %v3727
    %4519 = vmatpush1.msra.mxu0 %v3726
    %4520 = vmatprep.subr.mxu0 %v3720
    %4521 = vmatpush1.msra.mxu0 %v3719
    %4522 = vmatprep.subr.mxu0 %v3713
    %4523 = vmatpush1.msra.mxu0 %v3712
    %4524 = vmatprep.subr.mxu0 %v3706
    %4525 = vmatpush1.msra.mxu0 %v3705
    %4526 = vmatprep.subr.mxu0 %v3699
    %4527 = vmatpush1.msra.mxu0 %v3698
    %4528 = vmatprep.subr.mxu0 %v3692
    %4529 = vmatpush1.msra.mxu0 %v3691
    %4530 = vmatprep.subr.mxu0 %v3685
    %4531 = vmatpush1.msra.mxu0 %v3684
    %4532 = vmatprep.subr.mxu0 %v3678
    %4533 = vmatpush1.msra.mxu0 %v3677
    %4534 = vmatprep.subr.mxu0 %v3671
    %4535 = vmatpush1.msra.mxu0 %v3670
    %4536 = vmatprep.subr.mxu0 %v3664
    %4537 = vmatpush1.msra.mxu0 %v3663
    %4538 = vmatprep.subr.mxu0 %v3657
    %4539 = vmatpush1.msra.mxu0 %v3656
    %4540 = vmatprep.subr.mxu0 %v3874
    %4541 = vmatpush2.msra.mxu0 %v3873
    %4542 = vmatprep.subr.mxu0 %v3867
    %4543 = vmatpush2.msra.mxu0 %v3866
    %4544 = vmatprep.subr.mxu0 %v3860
    %4545 = vmatpush2.msra.mxu0 %v3859
    %4546 = vmatprep.subr.mxu0 %v3853
    %4547 = vmatpush2.msra.mxu0 %v3852
    %4548 = vmatprep.subr.mxu0 %v3846
    %4549 = vmatpush2.msra.mxu0 %v3845
    %4550 = vmatprep.subr.mxu0 %v3839
    %4551 = vmatpush2.msra.mxu0 %v3838
    %4552 = vmatprep.subr.mxu0 %v3832
    %4553 = vmatpush2.msra.mxu0 %v3831
    %4554 = vmatprep.subr.mxu0 %v3825
    %4555 = vmatpush2.msra.mxu0 %v3824
    %4556 = vmatprep.subr.mxu0 %v3818
    %4557 = vmatpush2.msra.mxu0 %v3817
    %4558 = vmatprep.subr.mxu0 %v3811
    %4559 = vmatpush2.msra.mxu0 %v3810
    %4560 = vmatprep.subr.mxu0 %v3804
    %4561 = vmatpush2.msra.mxu0 %v3803
    %4562 = vmatprep.subr.mxu0 %v3797
    %4563 = vmatpush2.msra.mxu0 %v3796
    %4564 = vmatprep.subr.mxu0 %v3790
    %4565 = vmatpush2.msra.mxu0 %v3789
    %4566 = vmatprep.subr.mxu0 %v3783
    %4567 = vmatpush2.msra.mxu0 %v3782
    %4568 = vmatprep.subr.mxu0 %v3776
    %4569 = vmatpush2.msra.mxu0 %v3775
    %4570 = vmatprep.subr.mxu0 %v3769
    %4571 = vmatpush2.msra.mxu0 %v3768
    %4572 = vmatprep.mubr.f32.mxu0 %v820
    %4573 = vmatmul.mubr.f32.gmra.mxu0 %v818
    %v4574 = vpop.f32.mrf.mxu0
    %v4575 = vadd.f32 %v4504, %v4574
    %v4576 = vpop.f32.mrf.mxu0
    %v4577 = vadd.f32 %v4506, %v4576
    %4578 = vdwg.mxu0
    %4579 = vmatprep.subr.mxu0 %v3986
    %4580 = vmatpush1.msra.mxu0 %v3985
    %4581 = vmatprep.subr.mxu0 %v3979
    %4582 = vmatpush1.msra.mxu0 %v3978
    %4583 = vmatprep.subr.mxu0 %v3972
    %4584 = vmatpush1.msra.mxu0 %v3971
    %4585 = vmatprep.subr.mxu0 %v3965
    %4586 = vmatpush1.msra.mxu0 %v3964
    %4587 = vmatprep.subr.mxu0 %v3958
    %4588 = vmatpush1.msra.mxu0 %v3957
    %4589 = vmatprep.subr.mxu0 %v3951
    %4590 = vmatpush1.msra.mxu0 %v3950
    %4591 = vmatprep.subr.mxu0 %v3944
    %4592 = vmatpush1.msra.mxu0 %v3943
    %4593 = vmatprep.subr.mxu0 %v3937
    %4594 = vmatpush1.msra.mxu0 %v3936
    %4595 = vmatprep.subr.mxu0 %v3930
    %4596 = vmatpush1.msra.mxu0 %v3929
    %4597 = vmatprep.subr.mxu0 %v3923
    %4598 = vmatpush1.msra.mxu0 %v3922
    %4599 = vmatprep.subr.mxu0 %v3916
    %4600 = vmatpush1.msra.mxu0 %v3915
    %4601 = vmatprep.subr.mxu0 %v3909
    %4602 = vmatpush1.msra.mxu0 %v3908
    %4603 = vmatprep.subr.mxu0 %v3902
    %4604 = vmatpush1.msra.mxu0 %v3901
    %4605 = vmatprep.subr.mxu0 %v3895
    %4606 = vmatpush1.msra.mxu0 %v3894
    %4607 = vmatprep.subr.mxu0 %v3888
    %4608 = vmatpush1.msra.mxu0 %v3887
    %4609 = vmatprep.subr.mxu0 %v3881
    %4610 = vmatpush1.msra.mxu0 %v3880
    %4611 = vmatprep.subr.mxu0 %v4098
    %4612 = vmatpush2.msra.mxu0 %v4097
    %4613 = vmatprep.subr.mxu0 %v4091
    %4614 = vmatpush2.msra.mxu0 %v4090
    %4615 = vmatprep.subr.mxu0 %v4084
    %4616 = vmatpush2.msra.mxu0 %v4083
    %4617 = vmatprep.subr.mxu0 %v4077
    %4618 = vmatpush2.msra.mxu0 %v4076
    %4619 = vmatprep.subr.mxu0 %v4070
    %4620 = vmatpush2.msra.mxu0 %v4069
    %4621 = vmatprep.subr.mxu0 %v4063
    %4622 = vmatpush2.msra.mxu0 %v4062
    %4623 = vmatprep.subr.mxu0 %v4056
    %4624 = vmatpush2.msra.mxu0 %v4055
    %4625 = vmatprep.subr.mxu0 %v4049
    %4626 = vmatpush2.msra.mxu0 %v4048
    %4627 = vmatprep.subr.mxu0 %v4042
    %4628 = vmatpush2.msra.mxu0 %v4041
    %4629 = vmatprep.subr.mxu0 %v4035
    %4630 = vmatpush2.msra.mxu0 %v4034
    %4631 = vmatprep.subr.mxu0 %v4028
    %4632 = vmatpush2.msra.mxu0 %v4027
    %4633 = vmatprep.subr.mxu0 %v4021
    %4634 = vmatpush2.msra.mxu0 %v4020
    %4635 = vmatprep.subr.mxu0 %v4014
    %4636 = vmatpush2.msra.mxu0 %v4013
    %4637 = vmatprep.subr.mxu0 %v4007
    %4638 = vmatpush2.msra.mxu0 %v4006
    %4639 = vmatprep.subr.mxu0 %v4000
    %4640 = vmatpush2.msra.mxu0 %v3999
    %4641 = vmatprep.subr.mxu0 %v3993
    %4642 = vmatpush2.msra.mxu0 %v3992
    %4643 = vmatprep.mubr.f32.mxu0 %v836
    %4644 = vmatmul.mubr.f32.gmra.mxu0 %v828
    %v4645 = vpop.f32.mrf.mxu0
    %v4646 = vadd.f32 %v4575, %v4645
    %v4647 = vpop.f32.mrf.mxu0
    %v4648 = vadd.f32 %v4577, %v4647
    %4649 = vdwg.mxu0
    %4650 = vmatprep.subr.mxu0 0.0
    %4651 = vmatpush1.msra.mxu0 0.0
    %4652 = vmatprep.subr.mxu0 0.0
    %4653 = vmatpush1.msra.mxu0 0.0
    %4654 = vmatprep.subr.mxu0 0.0
    %4655 = vmatpush1.msra.mxu0 0.0
    %4656 = vmatprep.subr.mxu0 0.0
    %4657 = vmatpush1.msra.mxu0 0.0
    %4658 = vmatprep.subr.mxu0 0.0
    %4659 = vmatpush1.msra.mxu0 0.0
    %4660 = vmatprep.subr.mxu0 0.0
    %4661 = vmatpush1.msra.mxu0 0.0
    %4662 = vmatprep.subr.mxu0 0.0
    %4663 = vmatpush1.msra.mxu0 0.0
    %4664 = vmatprep.subr.mxu0 0.0
    %4665 = vmatpush1.msra.mxu0 0.0
    %4666 = vmatprep.subr.mxu0 0.0
    %4667 = vmatpush1.msra.mxu0 0.0
    %4668 = vmatprep.subr.mxu0 0.0
    %4669 = vmatpush1.msra.mxu0 0.0
    %4670 = vmatprep.subr.mxu0 0.0
    %4671 = vmatpush1.msra.mxu0 0.0
    %4672 = vmatprep.subr.mxu0 0.0
    %4673 = vmatpush1.msra.mxu0 0.0
    %4674 = vmatprep.subr.mxu0 0.0
    %4675 = vmatpush1.msra.mxu0 0.0
    %4676 = vmatprep.subr.mxu0 0.0
    %4677 = vmatpush1.msra.mxu0 0.0
    %4678 = vmatprep.subr.mxu0 %v4112
    %4679 = vmatpush1.msra.mxu0 %v4111
    %4680 = vmatprep.subr.mxu0 %v4105
    %4681 = vmatpush1.msra.mxu0 %v4104
    %4682 = vmatprep.subr.mxu0 0.0
    %4683 = vmatpush2.msra.mxu0 0.0
    %4684 = vmatprep.subr.mxu0 0.0
    %4685 = vmatpush2.msra.mxu0 0.0
    %4686 = vmatprep.subr.mxu0 0.0
    %4687 = vmatpush2.msra.mxu0 0.0
    %4688 = vmatprep.subr.mxu0 0.0
    %4689 = vmatpush2.msra.mxu0 0.0
    %4690 = vmatprep.subr.mxu0 0.0
    %4691 = vmatpush2.msra.mxu0 0.0
    %4692 = vmatprep.subr.mxu0 0.0
    %4693 = vmatpush2.msra.mxu0 0.0
    %4694 = vmatprep.subr.mxu0 0.0
    %4695 = vmatpush2.msra.mxu0 0.0
    %4696 = vmatprep.subr.mxu0 0.0
    %4697 = vmatpush2.msra.mxu0 0.0
    %4698 = vmatprep.subr.mxu0 0.0
    %4699 = vmatpush2.msra.mxu0 0.0
    %4700 = vmatprep.subr.mxu0 0.0
    %4701 = vmatpush2.msra.mxu0 0.0
    %4702 = vmatprep.subr.mxu0 0.0
    %4703 = vmatpush2.msra.mxu0 0.0
    %4704 = vmatprep.subr.mxu0 0.0
    %4705 = vmatpush2.msra.mxu0 0.0
    %4706 = vmatprep.subr.mxu0 0.0
    %4707 = vmatpush2.msra.mxu0 0.0
    %4708 = vmatprep.subr.mxu0 0.0
    %4709 = vmatpush2.msra.mxu0 0.0
    %4710 = vmatprep.subr.mxu0 0.0
    %4711 = vmatpush2.msra.mxu0 0.0
    %4712 = vmatprep.subr.mxu0 0.0
    %4713 = vmatpush2.msra.mxu0 0.0
    %4714 = vmatprep.mubr.f32.mxu0 0.0
    %4715 = vmatmul.mubr.f32.gmra.mxu0 %v844
    %v4716 = vpop.f32.mrf.mxu0
    %v4717 = vadd.f32 %v4646, %v4716
    %v4718 = vpop.f32.mrf.mxu0
    %v4719 = vadd.f32 %v4648, %v4718
    %4720 = vdwg.mxu0
    %4721 = vmatprep.subr.mxu0 %v3540
    %4722 = vmatpush1.msra.mxu0 %v3539
    %4723 = vmatprep.subr.mxu0 %v3533
    %4724 = vmatpush1.msra.mxu0 %v3532
    %4725 = vmatprep.subr.mxu0 %v3526
    %4726 = vmatpush1.msra.mxu0 %v3525
    %4727 = vmatprep.subr.mxu0 %v3519
    %4728 = vmatpush1.msra.mxu0 %v3518
    %4729 = vmatprep.subr.mxu0 %v3512
    %4730 = vmatpush1.msra.mxu0 %v3511
    %4731 = vmatprep.subr.mxu0 %v3505
    %4732 = vmatpush1.msra.mxu0 %v3504
    %4733 = vmatprep.subr.mxu0 %v3498
    %4734 = vmatpush1.msra.mxu0 %v3497
    %4735 = vmatprep.subr.mxu0 %v3491
    %4736 = vmatpush1.msra.mxu0 %v3490
    %4737 = vmatprep.subr.mxu0 %v3484
    %4738 = vmatpush1.msra.mxu0 %v3483
    %4739 = vmatprep.subr.mxu0 %v3477
    %4740 = vmatpush1.msra.mxu0 %v3476
    %4741 = vmatprep.subr.mxu0 %v3470
    %4742 = vmatpush1.msra.mxu0 %v3469
    %4743 = vmatprep.subr.mxu0 %v3463
    %4744 = vmatpush1.msra.mxu0 %v3462
    %4745 = vmatprep.subr.mxu0 %v3456
    %4746 = vmatpush1.msra.mxu0 %v3455
    %4747 = vmatprep.subr.mxu0 %v3449
    %4748 = vmatpush1.msra.mxu0 %v3448
    %4749 = vmatprep.subr.mxu0 %v3442
    %4750 = vmatpush1.msra.mxu0 %v3441
    %4751 = vmatprep.subr.mxu0 %v3435
    %4752 = vmatpush1.msra.mxu0 %v3434
    %4753 = vmatprep.subr.mxu0 %v3652
    %4754 = vmatpush2.msra.mxu0 %v3651
    %4755 = vmatprep.subr.mxu0 %v3645
    %4756 = vmatpush2.msra.mxu0 %v3644
    %4757 = vmatprep.subr.mxu0 %v3638
    %4758 = vmatpush2.msra.mxu0 %v3637
    %4759 = vmatprep.subr.mxu0 %v3631
    %4760 = vmatpush2.msra.mxu0 %v3630
    %4761 = vmatprep.subr.mxu0 %v3624
    %4762 = vmatpush2.msra.mxu0 %v3623
    %4763 = vmatprep.subr.mxu0 %v3617
    %4764 = vmatpush2.msra.mxu0 %v3616
    %4765 = vmatprep.subr.mxu0 %v3610
    %4766 = vmatpush2.msra.mxu0 %v3609
    %4767 = vmatprep.subr.mxu0 %v3603
    %4768 = vmatpush2.msra.mxu0 %v3602
    %4769 = vmatprep.subr.mxu0 %v3596
    %4770 = vmatpush2.msra.mxu0 %v3595
    %4771 = vmatprep.subr.mxu0 %v3589
    %4772 = vmatpush2.msra.mxu0 %v3588
    %4773 = vmatprep.subr.mxu0 %v3582
    %4774 = vmatpush2.msra.mxu0 %v3581
    %4775 = vmatprep.subr.mxu0 %v3575
    %4776 = vmatpush2.msra.mxu0 %v3574
    %4777 = vmatprep.subr.mxu0 %v3568
    %4778 = vmatpush2.msra.mxu0 %v3567
    %4779 = vmatprep.subr.mxu0 %v3561
    %4780 = vmatpush2.msra.mxu0 %v3560
    %4781 = vmatprep.subr.mxu0 %v3554
    %4782 = vmatpush2.msra.mxu0 %v3553
    %4783 = vmatprep.subr.mxu0 %v3547
    %4784 = vmatpush2.msra.mxu0 %v3546
    %4785 = vmatprep.mubr.f32.mxu0 %v819
    %4786 = vmatmul.mubr.f32.gmra.mxu0 %v811
    %v4787 = vpop.f32.mrf.mxu0
    %v4788 = vadd.f32 %v4137, %v4787
    %v4789 = vpop.f32.mrf.mxu0
    %v4790 = vadd.f32 %v4141, %v4789
    %4791 = vdwg.mxu0
    %4792 = vmatprep.subr.mxu0 %v3764
    %4793 = vmatpush1.msra.mxu0 %v3763
    %4794 = vmatprep.subr.mxu0 %v3757
    %4795 = vmatpush1.msra.mxu0 %v3756
    %4796 = vmatprep.subr.mxu0 %v3750
    %4797 = vmatpush1.msra.mxu0 %v3749
    %4798 = vmatprep.subr.mxu0 %v3743
    %4799 = vmatpush1.msra.mxu0 %v3742
    %4800 = vmatprep.subr.mxu0 %v3736
    %4801 = vmatpush1.msra.mxu0 %v3735
    %4802 = vmatprep.subr.mxu0 %v3729
    %4803 = vmatpush1.msra.mxu0 %v3728
    %4804 = vmatprep.subr.mxu0 %v3722
    %4805 = vmatpush1.msra.mxu0 %v3721
    %4806 = vmatprep.subr.mxu0 %v3715
    %4807 = vmatpush1.msra.mxu0 %v3714
    %4808 = vmatprep.subr.mxu0 %v3708
    %4809 = vmatpush1.msra.mxu0 %v3707
    %4810 = vmatprep.subr.mxu0 %v3701
    %4811 = vmatpush1.msra.mxu0 %v3700
    %4812 = vmatprep.subr.mxu0 %v3694
    %4813 = vmatpush1.msra.mxu0 %v3693
    %4814 = vmatprep.subr.mxu0 %v3687
    %4815 = vmatpush1.msra.mxu0 %v3686
    %4816 = vmatprep.subr.mxu0 %v3680
    %4817 = vmatpush1.msra.mxu0 %v3679
    %4818 = vmatprep.subr.mxu0 %v3673
    %4819 = vmatpush1.msra.mxu0 %v3672
    %4820 = vmatprep.subr.mxu0 %v3666
    %4821 = vmatpush1.msra.mxu0 %v3665
    %4822 = vmatprep.subr.mxu0 %v3659
    %4823 = vmatpush1.msra.mxu0 %v3658
    %4824 = vmatprep.subr.mxu0 %v3876
    %4825 = vmatpush2.msra.mxu0 %v3875
    %4826 = vmatprep.subr.mxu0 %v3869
    %4827 = vmatpush2.msra.mxu0 %v3868
    %4828 = vmatprep.subr.mxu0 %v3862
    %4829 = vmatpush2.msra.mxu0 %v3861
    %4830 = vmatprep.subr.mxu0 %v3855
    %4831 = vmatpush2.msra.mxu0 %v3854
    %4832 = vmatprep.subr.mxu0 %v3848
    %4833 = vmatpush2.msra.mxu0 %v3847
    %4834 = vmatprep.subr.mxu0 %v3841
    %4835 = vmatpush2.msra.mxu0 %v3840
    %4836 = vmatprep.subr.mxu0 %v3834
    %4837 = vmatpush2.msra.mxu0 %v3833
    %4838 = vmatprep.subr.mxu0 %v3827
    %4839 = vmatpush2.msra.mxu0 %v3826
    %4840 = vmatprep.subr.mxu0 %v3820
    %4841 = vmatpush2.msra.mxu0 %v3819
    %4842 = vmatprep.subr.mxu0 %v3813
    %4843 = vmatpush2.msra.mxu0 %v3812
    %4844 = vmatprep.subr.mxu0 %v3806
    %4845 = vmatpush2.msra.mxu0 %v3805
    %4846 = vmatprep.subr.mxu0 %v3799
    %4847 = vmatpush2.msra.mxu0 %v3798
    %4848 = vmatprep.subr.mxu0 %v3792
    %4849 = vmatpush2.msra.mxu0 %v3791
    %4850 = vmatprep.subr.mxu0 %v3785
    %4851 = vmatpush2.msra.mxu0 %v3784
    %4852 = vmatprep.subr.mxu0 %v3778
    %4853 = vmatpush2.msra.mxu0 %v3777
    %4854 = vmatprep.subr.mxu0 %v3771
    %4855 = vmatpush2.msra.mxu0 %v3770
    %4856 = vmatprep.mubr.f32.mxu0 %v820
    %4857 = vmatmul.mubr.f32.gmra.mxu0 %v818
    %v4858 = vpop.f32.mrf.mxu0
    %v4859 = vadd.f32 %v4788, %v4858
    %v4860 = vpop.f32.mrf.mxu0
    %v4861 = vadd.f32 %v4790, %v4860
    %4862 = vdwg.mxu0
    %4863 = vmatprep.subr.mxu0 %v3988
    %4864 = vmatpush1.msra.mxu0 %v3987
    %4865 = vmatprep.subr.mxu0 %v3981
    %4866 = vmatpush1.msra.mxu0 %v3980
    %4867 = vmatprep.subr.mxu0 %v3974
    %4868 = vmatpush1.msra.mxu0 %v3973
    %4869 = vmatprep.subr.mxu0 %v3967
    %4870 = vmatpush1.msra.mxu0 %v3966
    %4871 = vmatprep.subr.mxu0 %v3960
    %4872 = vmatpush1.msra.mxu0 %v3959
    %4873 = vmatprep.subr.mxu0 %v3953
    %4874 = vmatpush1.msra.mxu0 %v3952
    %4875 = vmatprep.subr.mxu0 %v3946
    %4876 = vmatpush1.msra.mxu0 %v3945
    %4877 = vmatprep.subr.mxu0 %v3939
    %4878 = vmatpush1.msra.mxu0 %v3938
    %4879 = vmatprep.subr.mxu0 %v3932
    %4880 = vmatpush1.msra.mxu0 %v3931
    %4881 = vmatprep.subr.mxu0 %v3925
    %4882 = vmatpush1.msra.mxu0 %v3924
    %4883 = vmatprep.subr.mxu0 %v3918
    %4884 = vmatpush1.msra.mxu0 %v3917
    %4885 = vmatprep.subr.mxu0 %v3911
    %4886 = vmatpush1.msra.mxu0 %v3910
    %4887 = vmatprep.subr.mxu0 %v3904
    %4888 = vmatpush1.msra.mxu0 %v3903
    %4889 = vmatprep.subr.mxu0 %v3897
    %4890 = vmatpush1.msra.mxu0 %v3896
    %4891 = vmatprep.subr.mxu0 %v3890
    %4892 = vmatpush1.msra.mxu0 %v3889
    %4893 = vmatprep.subr.mxu0 %v3883
    %4894 = vmatpush1.msra.mxu0 %v3882
    %4895 = vmatprep.subr.mxu0 %v4100
    %4896 = vmatpush2.msra.mxu0 %v4099
    %4897 = vmatprep.subr.mxu0 %v4093
    %4898 = vmatpush2.msra.mxu0 %v4092
    %4899 = vmatprep.subr.mxu0 %v4086
    %4900 = vmatpush2.msra.mxu0 %v4085
    %4901 = vmatprep.subr.mxu0 %v4079
    %4902 = vmatpush2.msra.mxu0 %v4078
    %4903 = vmatprep.subr.mxu0 %v4072
    %4904 = vmatpush2.msra.mxu0 %v4071
    %4905 = vmatprep.subr.mxu0 %v4065
    %4906 = vmatpush2.msra.mxu0 %v4064
    %4907 = vmatprep.subr.mxu0 %v4058
    %4908 = vmatpush2.msra.mxu0 %v4057
    %4909 = vmatprep.subr.mxu0 %v4051
    %4910 = vmatpush2.msra.mxu0 %v4050
    %4911 = vmatprep.subr.mxu0 %v4044
    %4912 = vmatpush2.msra.mxu0 %v4043
    %4913 = vmatprep.subr.mxu0 %v4037
    %4914 = vmatpush2.msra.mxu0 %v4036
    %4915 = vmatprep.subr.mxu0 %v4030
    %4916 = vmatpush2.msra.mxu0 %v4029
    %4917 = vmatprep.subr.mxu0 %v4023
    %4918 = vmatpush2.msra.mxu0 %v4022
    %4919 = vmatprep.subr.mxu0 %v4016
    %4920 = vmatpush2.msra.mxu0 %v4015
    %4921 = vmatprep.subr.mxu0 %v4009
    %4922 = vmatpush2.msra.mxu0 %v4008
    %4923 = vmatprep.subr.mxu0 %v4002
    %4924 = vmatpush2.msra.mxu0 %v4001
    %4925 = vmatprep.subr.mxu0 %v3995
    %4926 = vmatpush2.msra.mxu0 %v3994
    %4927 = vmatprep.mubr.f32.mxu0 %v836
    %4928 = vmatmul.mubr.f32.gmra.mxu0 %v828
    %v4929 = vpop.f32.mrf.mxu0
    %v4930 = vadd.f32 %v4859, %v4929
    %v4931 = vpop.f32.mrf.mxu0
    %v4932 = vadd.f32 %v4861, %v4931
    %4933 = vdwg.mxu0
    %4934 = vmatprep.subr.mxu0 0.0
    %4935 = vmatpush1.msra.mxu0 0.0
    %4936 = vmatprep.subr.mxu0 0.0
    %4937 = vmatpush1.msra.mxu0 0.0
    %4938 = vmatprep.subr.mxu0 0.0
    %4939 = vmatpush1.msra.mxu0 0.0
    %4940 = vmatprep.subr.mxu0 0.0
    %4941 = vmatpush1.msra.mxu0 0.0
    %4942 = vmatprep.subr.mxu0 0.0
    %4943 = vmatpush1.msra.mxu0 0.0
    %4944 = vmatprep.subr.mxu0 0.0
    %4945 = vmatpush1.msra.mxu0 0.0
    %4946 = vmatprep.subr.mxu0 0.0
    %4947 = vmatpush1.msra.mxu0 0.0
    %4948 = vmatprep.subr.mxu0 0.0
    %4949 = vmatpush1.msra.mxu0 0.0
    %4950 = vmatprep.subr.mxu0 0.0
    %4951 = vmatpush1.msra.mxu0 0.0
    %4952 = vmatprep.subr.mxu0 0.0
    %4953 = vmatpush1.msra.mxu0 0.0
    %4954 = vmatprep.subr.mxu0 0.0
    %4955 = vmatpush1.msra.mxu0 0.0
    %4956 = vmatprep.subr.mxu0 0.0
    %4957 = vmatpush1.msra.mxu0 0.0
    %4958 = vmatprep.subr.mxu0 0.0
    %4959 = vmatpush1.msra.mxu0 0.0
    %4960 = vmatprep.subr.mxu0 0.0
    %4961 = vmatpush1.msra.mxu0 0.0
    %4962 = vmatprep.subr.mxu0 %v4114
    %4963 = vmatpush1.msra.mxu0 %v4113
    %4964 = vmatprep.subr.mxu0 %v4107
    %4965 = vmatpush1.msra.mxu0 %v4106
    %4966 = vmatprep.subr.mxu0 0.0
    %4967 = vmatpush2.msra.mxu0 0.0
    %4968 = vmatprep.subr.mxu0 0.0
    %4969 = vmatpush2.msra.mxu0 0.0
    %4970 = vmatprep.subr.mxu0 0.0
    %4971 = vmatpush2.msra.mxu0 0.0
    %4972 = vmatprep.subr.mxu0 0.0
    %4973 = vmatpush2.msra.mxu0 0.0
    %4974 = vmatprep.subr.mxu0 0.0
    %4975 = vmatpush2.msra.mxu0 0.0
    %4976 = vmatprep.subr.mxu0 0.0
    %4977 = vmatpush2.msra.mxu0 0.0
    %4978 = vmatprep.subr.mxu0 0.0
    %4979 = vmatpush2.msra.mxu0 0.0
    %4980 = vmatprep.subr.mxu0 0.0
    %4981 = vmatpush2.msra.mxu0 0.0
    %4982 = vmatprep.subr.mxu0 0.0
    %4983 = vmatpush2.msra.mxu0 0.0
    %4984 = vmatprep.subr.mxu0 0.0
    %4985 = vmatpush2.msra.mxu0 0.0
    %4986 = vmatprep.subr.mxu0 0.0
    %4987 = vmatpush2.msra.mxu0 0.0
    %4988 = vmatprep.subr.mxu0 0.0
    %4989 = vmatpush2.msra.mxu0 0.0
    %4990 = vmatprep.subr.mxu0 0.0
    %4991 = vmatpush2.msra.mxu0 0.0
    %4992 = vmatprep.subr.mxu0 0.0
    %4993 = vmatpush2.msra.mxu0 0.0
    %4994 = vmatprep.subr.mxu0 0.0
    %4995 = vmatpush2.msra.mxu0 0.0
    %4996 = vmatprep.subr.mxu0 0.0
    %4997 = vmatpush2.msra.mxu0 0.0
    %4998 = vmatprep.mubr.f32.mxu0 0.0
    %4999 = vmatmul.mubr.f32.gmra.mxu0 %v844
    %v5000 = vpop.f32.mrf.mxu0
    %v5001 = vadd.f32 %v4930, %v5000
    %v5002 = vpop.f32.mrf.mxu0
    %v5003 = vadd.f32 %v4932, %v5002
    %5004 = vdwg.mxu0
    %5005 = vmatprep.subr.mxu0 0.0
    %5006 = vmatpush1.msra.mxu0 %v3541
    %5007 = vmatprep.subr.mxu0 0.0
    %5008 = vmatpush1.msra.mxu0 %v3534
    %5009 = vmatprep.subr.mxu0 0.0
    %5010 = vmatpush1.msra.mxu0 %v3527
    %5011 = vmatprep.subr.mxu0 0.0
    %5012 = vmatpush1.msra.mxu0 %v3520
    %5013 = vmatprep.subr.mxu0 0.0
    %5014 = vmatpush1.msra.mxu0 %v3513
    %5015 = vmatprep.subr.mxu0 0.0
    %5016 = vmatpush1.msra.mxu0 %v3506
    %5017 = vmatprep.subr.mxu0 0.0
    %5018 = vmatpush1.msra.mxu0 %v3499
    %5019 = vmatprep.subr.mxu0 0.0
    %5020 = vmatpush1.msra.mxu0 %v3492
    %5021 = vmatprep.subr.mxu0 0.0
    %5022 = vmatpush1.msra.mxu0 %v3485
    %5023 = vmatprep.subr.mxu0 0.0
    %5024 = vmatpush1.msra.mxu0 %v3478
    %5025 = vmatprep.subr.mxu0 0.0
    %5026 = vmatpush1.msra.mxu0 %v3471
    %5027 = vmatprep.subr.mxu0 0.0
    %5028 = vmatpush1.msra.mxu0 %v3464
    %5029 = vmatprep.subr.mxu0 0.0
    %5030 = vmatpush1.msra.mxu0 %v3457
    %5031 = vmatprep.subr.mxu0 0.0
    %5032 = vmatpush1.msra.mxu0 %v3450
    %5033 = vmatprep.subr.mxu0 0.0
    %5034 = vmatpush1.msra.mxu0 %v3443
    %5035 = vmatprep.subr.mxu0 0.0
    %5036 = vmatpush1.msra.mxu0 %v3436
    %5037 = vmatprep.subr.mxu0 0.0
    %5038 = vmatpush2.msra.mxu0 %v3653
    %5039 = vmatprep.subr.mxu0 0.0
    %5040 = vmatpush2.msra.mxu0 %v3646
    %5041 = vmatprep.subr.mxu0 0.0
    %5042 = vmatpush2.msra.mxu0 %v3639
    %5043 = vmatprep.subr.mxu0 0.0
    %5044 = vmatpush2.msra.mxu0 %v3632
    %5045 = vmatprep.subr.mxu0 0.0
    %5046 = vmatpush2.msra.mxu0 %v3625
    %5047 = vmatprep.subr.mxu0 0.0
    %5048 = vmatpush2.msra.mxu0 %v3618
    %5049 = vmatprep.subr.mxu0 0.0
    %5050 = vmatpush2.msra.mxu0 %v3611
    %5051 = vmatprep.subr.mxu0 0.0
    %5052 = vmatpush2.msra.mxu0 %v3604
    %5053 = vmatprep.subr.mxu0 0.0
    %5054 = vmatpush2.msra.mxu0 %v3597
    %5055 = vmatprep.subr.mxu0 0.0
    %5056 = vmatpush2.msra.mxu0 %v3590
    %5057 = vmatprep.subr.mxu0 0.0
    %5058 = vmatpush2.msra.mxu0 %v3583
    %5059 = vmatprep.subr.mxu0 0.0
    %5060 = vmatpush2.msra.mxu0 %v3576
    %5061 = vmatprep.subr.mxu0 0.0
    %5062 = vmatpush2.msra.mxu0 %v3569
    %5063 = vmatprep.subr.mxu0 0.0
    %5064 = vmatpush2.msra.mxu0 %v3562
    %5065 = vmatprep.subr.mxu0 0.0
    %5066 = vmatpush2.msra.mxu0 %v3555
    %5067 = vmatprep.subr.mxu0 0.0
    %5068 = vmatpush2.msra.mxu0 %v3548
    %5069 = vmatprep.mubr.f32.mxu0 %v819
    %5070 = vmatmul.mubr.f32.gmra.mxu0 %v811
    %v5071 = vpop.f32.mrf.mxu0
    %v5072 = vadd.f32 %v4145, %v5071
    %v5073 = vpop.f32.mrf.mxu0
    %5074 = vdwg.mxu0
    %5075 = vmatprep.subr.mxu0 0.0
    %5076 = vmatpush1.msra.mxu0 %v3765
    %5077 = vmatprep.subr.mxu0 0.0
    %5078 = vmatpush1.msra.mxu0 %v3758
    %5079 = vmatprep.subr.mxu0 0.0
    %5080 = vmatpush1.msra.mxu0 %v3751
    %5081 = vmatprep.subr.mxu0 0.0
    %5082 = vmatpush1.msra.mxu0 %v3744
    %5083 = vmatprep.subr.mxu0 0.0
    %5084 = vmatpush1.msra.mxu0 %v3737
    %5085 = vmatprep.subr.mxu0 0.0
    %5086 = vmatpush1.msra.mxu0 %v3730
    %5087 = vmatprep.subr.mxu0 0.0
    %5088 = vmatpush1.msra.mxu0 %v3723
    %5089 = vmatprep.subr.mxu0 0.0
    %5090 = vmatpush1.msra.mxu0 %v3716
    %5091 = vmatprep.subr.mxu0 0.0
    %5092 = vmatpush1.msra.mxu0 %v3709
    %5093 = vmatprep.subr.mxu0 0.0
    %5094 = vmatpush1.msra.mxu0 %v3702
    %5095 = vmatprep.subr.mxu0 0.0
    %5096 = vmatpush1.msra.mxu0 %v3695
    %5097 = vmatprep.subr.mxu0 0.0
    %5098 = vmatpush1.msra.mxu0 %v3688
    %5099 = vmatprep.subr.mxu0 0.0
    %5100 = vmatpush1.msra.mxu0 %v3681
    %5101 = vmatprep.subr.mxu0 0.0
    %5102 = vmatpush1.msra.mxu0 %v3674
    %5103 = vmatprep.subr.mxu0 0.0
    %5104 = vmatpush1.msra.mxu0 %v3667
    %5105 = vmatprep.subr.mxu0 0.0
    %5106 = vmatpush1.msra.mxu0 %v3660
    %5107 = vmatprep.subr.mxu0 0.0
    %5108 = vmatpush2.msra.mxu0 %v3877
    %5109 = vmatprep.subr.mxu0 0.0
    %5110 = vmatpush2.msra.mxu0 %v3870
    %5111 = vmatprep.subr.mxu0 0.0
    %5112 = vmatpush2.msra.mxu0 %v3863
    %5113 = vmatprep.subr.mxu0 0.0
    %5114 = vmatpush2.msra.mxu0 %v3856
    %5115 = vmatprep.subr.mxu0 0.0
    %5116 = vmatpush2.msra.mxu0 %v3849
    %5117 = vmatprep.subr.mxu0 0.0
    %5118 = vmatpush2.msra.mxu0 %v3842
    %5119 = vmatprep.subr.mxu0 0.0
    %5120 = vmatpush2.msra.mxu0 %v3835
    %5121 = vmatprep.subr.mxu0 0.0
    %5122 = vmatpush2.msra.mxu0 %v3828
    %5123 = vmatprep.subr.mxu0 0.0
    %5124 = vmatpush2.msra.mxu0 %v3821
    %5125 = vmatprep.subr.mxu0 0.0
    %5126 = vmatpush2.msra.mxu0 %v3814
    %5127 = vmatprep.subr.mxu0 0.0
    %5128 = vmatpush2.msra.mxu0 %v3807
    %5129 = vmatprep.subr.mxu0 0.0
    %5130 = vmatpush2.msra.mxu0 %v3800
    %5131 = vmatprep.subr.mxu0 0.0
    %5132 = vmatpush2.msra.mxu0 %v3793
    %5133 = vmatprep.subr.mxu0 0.0
    %5134 = vmatpush2.msra.mxu0 %v3786
    %5135 = vmatprep.subr.mxu0 0.0
    %5136 = vmatpush2.msra.mxu0 %v3779
    %5137 = vmatprep.subr.mxu0 0.0
    %5138 = vmatpush2.msra.mxu0 %v3772
    %5139 = vmatprep.mubr.f32.mxu0 %v820
    %5140 = vmatmul.mubr.f32.gmra.mxu0 %v818
    %v5141 = vpop.f32.mrf.mxu0
    %v5142 = vadd.f32 %v5072, %v5141
    %v5143 = vpop.f32.mrf.mxu0
    %5144 = vdwg.mxu0
    %5145 = vmatprep.subr.mxu0 0.0
    %5146 = vmatpush1.msra.mxu0 %v3989
    %5147 = vmatprep.subr.mxu0 0.0
    %5148 = vmatpush1.msra.mxu0 %v3982
    %5149 = vmatprep.subr.mxu0 0.0
    %5150 = vmatpush1.msra.mxu0 %v3975
    %5151 = vmatprep.subr.mxu0 0.0
    %5152 = vmatpush1.msra.mxu0 %v3968
    %5153 = vmatprep.subr.mxu0 0.0
    %5154 = vmatpush1.msra.mxu0 %v3961
    %5155 = vmatprep.subr.mxu0 0.0
    %5156 = vmatpush1.msra.mxu0 %v3954
    %5157 = vmatprep.subr.mxu0 0.0
    %5158 = vmatpush1.msra.mxu0 %v3947
    %5159 = vmatprep.subr.mxu0 0.0
    %5160 = vmatpush1.msra.mxu0 %v3940
    %5161 = vmatprep.subr.mxu0 0.0
    %5162 = vmatpush1.msra.mxu0 %v3933
    %5163 = vmatprep.subr.mxu0 0.0
    %5164 = vmatpush1.msra.mxu0 %v3926
    %5165 = vmatprep.subr.mxu0 0.0
    %5166 = vmatpush1.msra.mxu0 %v3919
    %5167 = vmatprep.subr.mxu0 0.0
    %5168 = vmatpush1.msra.mxu0 %v3912
    %5169 = vmatprep.subr.mxu0 0.0
    %5170 = vmatpush1.msra.mxu0 %v3905
    %5171 = vmatprep.subr.mxu0 0.0
    %5172 = vmatpush1.msra.mxu0 %v3898
    %5173 = vmatprep.subr.mxu0 0.0
    %5174 = vmatpush1.msra.mxu0 %v3891
    %5175 = vmatprep.subr.mxu0 0.0
    %5176 = vmatpush1.msra.mxu0 %v3884
    %5177 = vmatprep.subr.mxu0 0.0
    %5178 = vmatpush2.msra.mxu0 %v4101
    %5179 = vmatprep.subr.mxu0 0.0
    %5180 = vmatpush2.msra.mxu0 %v4094
    %5181 = vmatprep.subr.mxu0 0.0
    %5182 = vmatpush2.msra.mxu0 %v4087
    %5183 = vmatprep.subr.mxu0 0.0
    %5184 = vmatpush2.msra.mxu0 %v4080
    %5185 = vmatprep.subr.mxu0 0.0
    %5186 = vmatpush2.msra.mxu0 %v4073
    %5187 = vmatprep.subr.mxu0 0.0
    %5188 = vmatpush2.msra.mxu0 %v4066
    %5189 = vmatprep.subr.mxu0 0.0
    %5190 = vmatpush2.msra.mxu0 %v4059
    %5191 = vmatprep.subr.mxu0 0.0
    %5192 = vmatpush2.msra.mxu0 %v4052
    %5193 = vmatprep.subr.mxu0 0.0
    %5194 = vmatpush2.msra.mxu0 %v4045
    %5195 = vmatprep.subr.mxu0 0.0
    %5196 = vmatpush2.msra.mxu0 %v4038
    %5197 = vmatprep.subr.mxu0 0.0
    %5198 = vmatpush2.msra.mxu0 %v4031
    %5199 = vmatprep.subr.mxu0 0.0
    %5200 = vmatpush2.msra.mxu0 %v4024
    %5201 = vmatprep.subr.mxu0 0.0
    %5202 = vmatpush2.msra.mxu0 %v4017
    %5203 = vmatprep.subr.mxu0 0.0
    %5204 = vmatpush2.msra.mxu0 %v4010
    %5205 = vmatprep.subr.mxu0 0.0
    %5206 = vmatpush2.msra.mxu0 %v4003
    %5207 = vmatprep.subr.mxu0 0.0
    %5208 = vmatpush2.msra.mxu0 %v3996
    %5209 = vmatprep.mubr.f32.mxu0 %v836
    %5210 = vmatmul.mubr.f32.gmra.mxu0 %v828
    %v5211 = vpop.f32.mrf.mxu0
    %v5212 = vadd.f32 %v5142, %v5211
    %v5213 = vpop.f32.mrf.mxu0
    %5214 = vdwg.mxu0
    %5215 = vmatprep.subr.mxu0 0.0
    %5216 = vmatpush1.msra.mxu0 0.0
    %5217 = vmatprep.subr.mxu0 0.0
    %5218 = vmatpush1.msra.mxu0 0.0
    %5219 = vmatprep.subr.mxu0 0.0
    %5220 = vmatpush1.msra.mxu0 0.0
    %5221 = vmatprep.subr.mxu0 0.0
    %5222 = vmatpush1.msra.mxu0 0.0
    %5223 = vmatprep.subr.mxu0 0.0
    %5224 = vmatpush1.msra.mxu0 0.0
    %5225 = vmatprep.subr.mxu0 0.0
    %5226 = vmatpush1.msra.mxu0 0.0
    %5227 = vmatprep.subr.mxu0 0.0
    %5228 = vmatpush1.msra.mxu0 0.0
    %5229 = vmatprep.subr.mxu0 0.0
    %5230 = vmatpush1.msra.mxu0 0.0
    %5231 = vmatprep.subr.mxu0 0.0
    %5232 = vmatpush1.msra.mxu0 0.0
    %5233 = vmatprep.subr.mxu0 0.0
    %5234 = vmatpush1.msra.mxu0 0.0
    %5235 = vmatprep.subr.mxu0 0.0
    %5236 = vmatpush1.msra.mxu0 0.0
    %5237 = vmatprep.subr.mxu0 0.0
    %5238 = vmatpush1.msra.mxu0 0.0
    %5239 = vmatprep.subr.mxu0 0.0
    %5240 = vmatpush1.msra.mxu0 0.0
    %5241 = vmatprep.subr.mxu0 0.0
    %5242 = vmatpush1.msra.mxu0 0.0
    %5243 = vmatprep.subr.mxu0 0.0
    %5244 = vmatpush1.msra.mxu0 %v4115
    %5245 = vmatprep.subr.mxu0 0.0
    %5246 = vmatpush1.msra.mxu0 %v4108
    %5247 = vmatprep.subr.mxu0 0.0
    %5248 = vmatpush2.msra.mxu0 0.0
    %5249 = vmatprep.subr.mxu0 0.0
    %5250 = vmatpush2.msra.mxu0 0.0
    %5251 = vmatprep.subr.mxu0 0.0
    %5252 = vmatpush2.msra.mxu0 0.0
    %5253 = vmatprep.subr.mxu0 0.0
    %5254 = vmatpush2.msra.mxu0 0.0
    %5255 = vmatprep.subr.mxu0 0.0
    %5256 = vmatpush2.msra.mxu0 0.0
    %5257 = vmatprep.subr.mxu0 0.0
    %5258 = vmatpush2.msra.mxu0 0.0
    %5259 = vmatprep.subr.mxu0 0.0
    %5260 = vmatpush2.msra.mxu0 0.0
    %5261 = vmatprep.subr.mxu0 0.0
    %5262 = vmatpush2.msra.mxu0 0.0
    %5263 = vmatprep.subr.mxu0 0.0
    %5264 = vmatpush2.msra.mxu0 0.0
    %5265 = vmatprep.subr.mxu0 0.0
    %5266 = vmatpush2.msra.mxu0 0.0
    %5267 = vmatprep.subr.mxu0 0.0
    %5268 = vmatpush2.msra.mxu0 0.0
    %5269 = vmatprep.subr.mxu0 0.0
    %5270 = vmatpush2.msra.mxu0 0.0
    %5271 = vmatprep.subr.mxu0 0.0
    %5272 = vmatpush2.msra.mxu0 0.0
    %5273 = vmatprep.subr.mxu0 0.0
    %5274 = vmatpush2.msra.mxu0 0.0
    %5275 = vmatprep.subr.mxu0 0.0
    %5276 = vmatpush2.msra.mxu0 0.0
    %5277 = vmatprep.subr.mxu0 0.0
    %5278 = vmatpush2.msra.mxu0 0.0
    %5279 = vmatprep.mubr.f32.mxu0 0.0
    %5280 = vmatmul.mubr.f32.gmra.mxu0 %v844
    %v5281 = vpop.f32.mrf.mxu0
    %v5282 = vadd.f32 %v5212, %v5281
    %v5283 = vpop.f32.mrf.mxu0
    %5284 = vdwg.mxu0
    %v5285 = vmul.f32 %v4433, 0.5
    %v5286 = vmul.f32 %v4435, 0.5
    %v5287 = vmul.f32 %v4717, 0.5
    %v5288 = vmul.f32 %v4719, 0.5
    %v5289 = vmul.f32 %v5001, 0.5
    %v5290 = vmul.f32 %v5003, 0.5
    %v5291 = vmul.f32 %v5282, 0.5
    %v5292 = vmul.f32 %v4433, %v1985
    %v5293 = vmul.f32 %v4435, %v1985
    %v5294 = vmul.f32 %v4717, %v1985
    %v5295 = vmul.f32 %v4719, %v1985
    %v5296 = vmul.f32 %v5001, %v1985
    %v5297 = vmul.f32 %v5003, %v1985
    %v5298 = vmul.f32 %v5282, %v1985
    %vm5299 = vcmp.ge.f32.partialorder %v5292, 0.0
    %vm5300 = vcmp.ge.f32.partialorder %v5293, 0.0
    %vm5301 = vcmp.ge.f32.partialorder %v5294, 0.0
    %vm5302 = vcmp.ge.f32.partialorder %v5295, 0.0
    %vm5303 = vcmp.ge.f32.partialorder %v5296, 0.0
    %vm5304 = vcmp.ge.f32.partialorder %v5297, 0.0
    %vm5305 = vcmp.ge.f32.partialorder %v5298, 0.0
    %v5306 = vsel %vm5299, 1.0, -1.0
    %v5307 = vsel %vm5300, 1.0, -1.0
    %v5308 = vsel %vm5301, 1.0, -1.0
    %v5309 = vsel %vm5302, 1.0, -1.0
    %v5310 = vsel %vm5303, 1.0, -1.0
    %v5311 = vsel %vm5304, 1.0, -1.0
    %v5312 = vsel %vm5305, 1.0, -1.0
    %v5313 = vand.u32 2147483647, %v5292
    %v5314 = vand.u32 2147483647, %v5293
    %v5315 = vand.u32 2147483647, %v5294
    %v5316 = vand.u32 2147483647, %v5295
    %v5317 = vand.u32 2147483647, %v5296
    %v5318 = vand.u32 2147483647, %v5297
    %v5319 = vand.u32 2147483647, %v5298
    %v5320 = vmul.f32 %v5313, 0.3275911
    %v5321 = vmul.f32 %v5314, 0.3275911
    %v5322 = vmul.f32 %v5315, 0.3275911
    %v5323 = vmul.f32 %v5316, 0.3275911
    %v5324 = vmul.f32 %v5317, 0.3275911
    %v5325 = vmul.f32 %v5318, 0.3275911
    %v5326 = vmul.f32 %v5319, 0.3275911
    %v5327 = vadd.f32 %v5320, 1.0
    %v5328 = vadd.f32 %v5321, 1.0
    %v5329 = vadd.f32 %v5322, 1.0
    %v5330 = vadd.f32 %v5323, 1.0
    %v5331 = vadd.f32 %v5324, 1.0
    %v5332 = vadd.f32 %v5325, 1.0
    %v5333 = vadd.f32 %v5326, 1.0
    %v5334 = vrcp.pop %v5327
    %v5335 = vmul.f32 1.0, %v5334
    %v5336 = vrcp.pop %v5328
    %v5337 = vmul.f32 1.0, %v5336
    %v5338 = vrcp.pop %v5329
    %v5339 = vmul.f32 1.0, %v5338
    %v5340 = vrcp.pop %v5330
    %v5341 = vmul.f32 1.0, %v5340
    %v5342 = vrcp.pop %v5331
    %v5343 = vmul.f32 1.0, %v5342
    %v5344 = vrcp.pop %v5332
    %v5345 = vmul.f32 1.0, %v5344
    %v5346 = vrcp.pop %v5333
    %v5347 = vmul.f32 1.0, %v5346
    %v5348 = vmul.f32 %v5335, 1.0614054
    %v5349 = vmul.f32 %v5337, 1.0614054
    %v5350 = vmul.f32 %v5339, 1.0614054
    %v5351 = vmul.f32 %v5341, 1.0614054
    %v5352 = vmul.f32 %v5343, 1.0614054
    %v5353 = vmul.f32 %v5345, 1.0614054
    %v5354 = vmul.f32 %v5347, 1.0614054
    %v5355 = vadd.f32 %v5348, -1.4531521
    %v5356 = vadd.f32 %v5349, -1.4531521
    %v5357 = vadd.f32 %v5350, -1.4531521
    %v5358 = vadd.f32 %v5351, -1.4531521
    %v5359 = vadd.f32 %v5352, -1.4531521
    %v5360 = vadd.f32 %v5353, -1.4531521
    %v5361 = vadd.f32 %v5354, -1.4531521
    %v5362 = vmul.f32 %v5355, %v5335
    %v5363 = vmul.f32 %v5356, %v5337
    %v5364 = vmul.f32 %v5357, %v5339
    %v5365 = vmul.f32 %v5358, %v5341
    %v5366 = vmul.f32 %v5359, %v5343
    %v5367 = vmul.f32 %v5360, %v5345
    %v5368 = vmul.f32 %v5361, %v5347
    %v5369 = vadd.f32 %v5362, 1.4214138
    %v5370 = vadd.f32 %v5363, 1.4214138
    %v5371 = vadd.f32 %v5364, 1.4214138
    %v5372 = vadd.f32 %v5365, 1.4214138
    %v5373 = vadd.f32 %v5366, 1.4214138
    %v5374 = vadd.f32 %v5367, 1.4214138
    %v5375 = vadd.f32 %v5368, 1.4214138
    %v5376 = vmul.f32 %v5369, %v5335
    %v5377 = vmul.f32 %v5370, %v5337
    %v5378 = vmul.f32 %v5371, %v5339
    %v5379 = vmul.f32 %v5372, %v5341
    %v5380 = vmul.f32 %v5373, %v5343
    %v5381 = vmul.f32 %v5374, %v5345
    %v5382 = vmul.f32 %v5375, %v5347
    %v5383 = vadd.f32 %v5376, -0.28449672
    %v5384 = vadd.f32 %v5377, -0.28449672
    %v5385 = vadd.f32 %v5378, -0.28449672
    %v5386 = vadd.f32 %v5379, -0.28449672
    %v5387 = vadd.f32 %v5380, -0.28449672
    %v5388 = vadd.f32 %v5381, -0.28449672
    %v5389 = vadd.f32 %v5382, -0.28449672
    %v5390 = vmul.f32 %v5383, %v5335
    %v5391 = vmul.f32 %v5384, %v5337
    %v5392 = vmul.f32 %v5385, %v5339
    %v5393 = vmul.f32 %v5386, %v5341
    %v5394 = vmul.f32 %v5387, %v5343
    %v5395 = vmul.f32 %v5388, %v5345
    %v5396 = vmul.f32 %v5389, %v5347
    %v5397 = vadd.f32 %v5390, 0.2548296
    %v5398 = vadd.f32 %v5391, 0.2548296
    %v5399 = vadd.f32 %v5392, 0.2548296
    %v5400 = vadd.f32 %v5393, 0.2548296
    %v5401 = vadd.f32 %v5394, 0.2548296
    %v5402 = vadd.f32 %v5395, 0.2548296
    %v5403 = vadd.f32 %v5396, 0.2548296
    %v5404 = vmul.f32 %v5397, %v5335
    %v5405 = vmul.f32 %v5398, %v5337
    %v5406 = vmul.f32 %v5399, %v5339
    %v5407 = vmul.f32 %v5400, %v5341
    %v5408 = vmul.f32 %v5401, %v5343
    %v5409 = vmul.f32 %v5402, %v5345
    %v5410 = vmul.f32 %v5403, %v5347
    %v5411 = vsub.f32 0.0, %v5313
    %v5412 = vsub.f32 0.0, %v5314
    %v5413 = vsub.f32 0.0, %v5315
    %v5414 = vsub.f32 0.0, %v5316
    %v5415 = vsub.f32 0.0, %v5317
    %v5416 = vsub.f32 0.0, %v5318
    %v5417 = vsub.f32 0.0, %v5319
    %v5418 = vmul.f32 %v5411, %v5313
    %v5419 = vmul.f32 %v5412, %v5314
    %v5420 = vmul.f32 %v5413, %v5315
    %v5421 = vmul.f32 %v5414, %v5316
    %v5422 = vmul.f32 %v5415, %v5317
    %v5423 = vmul.f32 %v5416, %v5318
    %v5424 = vmul.f32 %v5417, %v5319
    %v5425 = vmul.f32 %v5418, 1.442695
    %v5426 = vpow.pop %v5425
    %v5427 = vmul.f32 %v5419, 1.442695
    %v5428 = vpow.pop %v5427
    %v5429 = vmul.f32 %v5420, 1.442695
    %v5430 = vpow.pop %v5429
    %v5431 = vmul.f32 %v5421, 1.442695
    %v5432 = vpow.pop %v5431
    %v5433 = vmul.f32 %v5422, 1.442695
    %v5434 = vpow.pop %v5433
    %v5435 = vmul.f32 %v5423, 1.442695
    %v5436 = vpow.pop %v5435
    %v5437 = vmul.f32 %v5424, 1.442695
    %v5438 = vpow.pop %v5437
    %v5439 = vmul.f32 %v5404, %v5426
    %v5440 = vmul.f32 %v5405, %v5428
    %v5441 = vmul.f32 %v5406, %v5430
    %v5442 = vmul.f32 %v5407, %v5432
    %v5443 = vmul.f32 %v5408, %v5434
    %v5444 = vmul.f32 %v5409, %v5436
    %v5445 = vmul.f32 %v5410, %v5438
    %v5446 = vsub.f32 1.0, %v5439
    %v5447 = vsub.f32 1.0, %v5440
    %v5448 = vsub.f32 1.0, %v5441
    %v5449 = vsub.f32 1.0, %v5442
    %v5450 = vsub.f32 1.0, %v5443
    %v5451 = vsub.f32 1.0, %v5444
    %v5452 = vsub.f32 1.0, %v5445
    %v5453 = vmul.f32 %v5306, %v5446
    %v5454 = vmul.f32 %v5307, %v5447
    %v5455 = vmul.f32 %v5308, %v5448
    %v5456 = vmul.f32 %v5309, %v5449
    %v5457 = vmul.f32 %v5310, %v5450
    %v5458 = vmul.f32 %v5311, %v5451
    %v5459 = vmul.f32 %v5312, %v5452
    %v5460 = vadd.f32 %v5453, 1.0
    %v5461 = vadd.f32 %v5454, 1.0
    %v5462 = vadd.f32 %v5455, 1.0
    %v5463 = vadd.f32 %v5456, 1.0
    %v5464 = vadd.f32 %v5457, 1.0
    %v5465 = vadd.f32 %v5458, 1.0
    %v5466 = vadd.f32 %v5459, 1.0
    %v5467 = vmul.f32 %v5285, %v5460
    %v5468 = vmul.f32 %v5286, %v5461
    %v5469 = vmul.f32 %v5287, %v5462
    %v5470 = vmul.f32 %v5288, %v5463
    %v5471 = vmul.f32 %v5289, %v5464
    %v5472 = vmul.f32 %v5290, %v5465
    %v5473 = vmul.f32 %v5291, %v5466
    %v5474 = vld [vmem:[%s9] sm:$0xff]
    %v5475 = vld [vmem:[%s9 + $0x8] sm:$0xff]
    %v5476 = vld [vmem:[%s9 + $0x10] sm:$0xff]
    %v5477 = vld [vmem:[%s9 + $0x18] sm:$0xff]
    %v5478 = vld [vmem:[%s9 + $0x20] sm:$0xff]
    %v5479 = vld [vmem:[%s9 + $0x28] sm:$0xff]
    %v5480 = vld [vmem:[%s9 + $0x30] sm:$0xff]
    %v5481 = vld [vmem:[%s9 + $0x38] sm:$0xff]
    %v5482 = vld [vmem:[%s9 + $0x40] sm:$0xff]
    %v5483 = vld [vmem:[%s9 + $0x48] sm:$0xff]
    %v5484 = vld [vmem:[%s9 + $0x50] sm:$0xff]
    %v5485 = vld [vmem:[%s9 + $0x58] sm:$0xff]
    %v5486 = vld [vmem:[%s9 + $0x60] sm:$0xff]
    %v5487 = vld [vmem:[%s9 + $0x68] sm:$0xff]
    %v5488 = vld [vmem:[%s9 + $0x70] sm:$0xff]
    %v5489 = vld [vmem:[%s9 + $0x78] sm:$0xff]
    %v5490 = vld [vmem:[%s9 + $0x80] sm:$0xff]
    %v5491 = vld [vmem:[%s9 + $0x88] sm:$0xff]
    %v5492 = vld [vmem:[%s9 + $0x90] sm:$0xff]
    %v5493 = vld [vmem:[%s9 + $0x98] sm:$0xff]
    %v5494 = vld [vmem:[%s9 + $0xa0] sm:$0xff]
    %v5495 = vld [vmem:[%s9 + $0xa8] sm:$0xff]
    %v5496 = vld [vmem:[%s9 + $0xb0] sm:$0xff]
    %v5497 = vld [vmem:[%s9 + $0xb8] sm:$0xff]
    %v5498 = vld [vmem:[%s9 + $0xc0] sm:$0xff]
    %v5499 = vld [vmem:[%s9 + $0xc8] sm:$0xff]
    %v5500 = vld [vmem:[%s9 + $0xd0] sm:$0xff]
    %v5501 = vld [vmem:[%s9 + $0xd8] sm:$0xff]
    %v5502 = vld [vmem:[%s9 + $0xe0] sm:$0xff]
    %v5503 = vld [vmem:[%s9 + $0xe8] sm:$0xff]
    %v5504 = vld [vmem:[%s9 + $0xf0] sm:$0xff]
    %v5505 = vld [vmem:[%s9 + $0xf8] sm:$0xff]
    %v5506 = vld [vmem:[%s9 + $0x100] sm:$0xff]
    %v5507 = vld [vmem:[%s9 + $0x108] sm:$0xff]
    %v5508 = vld [vmem:[%s9 + $0x110] sm:$0xff]
    %v5509 = vld [vmem:[%s9 + $0x118] sm:$0xff]
    %v5510 = vld [vmem:[%s9 + $0x120] sm:$0xff]
    %v5511 = vld [vmem:[%s9 + $0x128] sm:$0xff]
    %v5512 = vld [vmem:[%s9 + $0x130] sm:$0xff]
    %v5513 = vld [vmem:[%s9 + $0x138] sm:$0xff]
    %v5514 = vld [vmem:[%s9 + $0x140] sm:$0xff]
    %v5515 = vld [vmem:[%s9 + $0x148] sm:$0xff]
    %v5516 = vld [vmem:[%s9 + $0x150] sm:$0xff]
    %v5517 = vld [vmem:[%s9 + $0x158] sm:$0xff]
    %v5518 = vld [vmem:[%s9 + $0x160] sm:$0xff]
    %v5519 = vld [vmem:[%s9 + $0x168] sm:$0xff]
    %v5520 = vld [vmem:[%s9 + $0x170] sm:$0xff]
    %v5521 = vld [vmem:[%s9 + $0x178] sm:$0xff]
    %v5522 = vld [vmem:[%s9 + $0x180] sm:$0xff]
    %v5523 = vld [vmem:[%s9 + $0x188] sm:$0xff]
    %v5524 = vld [vmem:[%s9 + $0x190] sm:$0xff]
    %v5525 = vld [vmem:[%s9 + $0x198] sm:$0xff]
    %v5526 = vld [vmem:[%s9 + $0x1a0] sm:$0xff]
    %v5527 = vld [vmem:[%s9 + $0x1a8] sm:$0xff]
    %v5528 = vld [vmem:[%s9 + $0x1b0] sm:$0xff]
    %v5529 = vld [vmem:[%s9 + $0x1b8] sm:$0xff]
    %v5530 = vld [vmem:[%s9 + $0x1c0] sm:$0xff]
    %v5531 = vld [vmem:[%s9 + $0x1c8] sm:$0xff]
    %v5532 = vld [vmem:[%s9 + $0x1d0] sm:$0xff]
    %v5533 = vld [vmem:[%s9 + $0x1d8] sm:$0xff]
    %v5534 = vld [vmem:[%s9 + $0x1e0] sm:$0xff]
    %v5535 = vld [vmem:[%s9 + $0x1e8] sm:$0xff]
    %v5536 = vld [vmem:[%s9 + $0x1f0] sm:$0xff]
    %v5537 = vld [vmem:[%s9 + $0x1f8] sm:$0xff]
    %v5538 = vld [vmem:[%s9 + $0x200] sm:$0xff]
    %v5539 = vld [vmem:[%s9 + $0x208] sm:$0xff]
    %v5540 = vld [vmem:[%s9 + $0x210] sm:$0xff]
    %v5541 = vld [vmem:[%s9 + $0x218] sm:$0xff]
    %v5542 = vld [vmem:[%s9 + $0x220] sm:$0xff]
    %v5543 = vld [vmem:[%s9 + $0x228] sm:$0xff]
    %v5544 = vld [vmem:[%s9 + $0x230] sm:$0xff]
    %v5545 = vld [vmem:[%s9 + $0x238] sm:$0xff]
    %v5546 = vld [vmem:[%s9 + $0x240] sm:$0xff]
    %v5547 = vld [vmem:[%s9 + $0x248] sm:$0xff]
    %v5548 = vld [vmem:[%s9 + $0x250] sm:$0xff]
    %v5549 = vld [vmem:[%s9 + $0x258] sm:$0xff]
    %v5550 = vld [vmem:[%s9 + $0x260] sm:$0xff]
    %v5551 = vld [vmem:[%s9 + $0x268] sm:$0xff]
    %v5552 = vld [vmem:[%s9 + $0x270] sm:$0xff]
    %v5553 = vld [vmem:[%s9 + $0x278] sm:$0xff]
    %v5554 = vld [vmem:[%s9 + $0x280] sm:$0xff]
    %v5555 = vld [vmem:[%s9 + $0x288] sm:$0xff]
    %v5556 = vld [vmem:[%s9 + $0x290] sm:$0xff]
    %v5557 = vld [vmem:[%s9 + $0x298] sm:$0xff]
    %v5558 = vld [vmem:[%s9 + $0x2a0] sm:$0xff]
    %v5559 = vld [vmem:[%s9 + $0x2a8] sm:$0xff]
    %v5560 = vld [vmem:[%s9 + $0x2b0] sm:$0xff]
    %v5561 = vld [vmem:[%s9 + $0x2b8] sm:$0xff]
    %v5562 = vld [vmem:[%s9 + $0x2c0] sm:$0xff]
    %v5563 = vld [vmem:[%s9 + $0x2c8] sm:$0xff]
    %v5564 = vld [vmem:[%s9 + $0x2d0] sm:$0xff]
    %v5565 = vld [vmem:[%s9 + $0x2d8] sm:$0xff]
    %v5566 = vld [vmem:[%s9 + $0x2e0] sm:$0xff]
    %v5567 = vld [vmem:[%s9 + $0x2e8] sm:$0xff]
    %v5568 = vld [vmem:[%s9 + $0x2f0] sm:$0xff]
    %v5569 = vld [vmem:[%s9 + $0x2f8] sm:$0xff]
    %v5570 = vld [vmem:[%s9 + $0x300] sm:$0xff]
    %v5571 = vld [vmem:[%s9 + $0x308] sm:$0xff]
    %v5572 = vld [vmem:[%s9 + $0x310] sm:$0xff]
    %v5573 = vld [vmem:[%s9 + $0x318] sm:$0xff]
    %v5574 = vld [vmem:[%s9 + $0x320] sm:$0xff]
    %v5575 = vld [vmem:[%s9 + $0x328] sm:$0xff]
    %v5576 = vld [vmem:[%s9 + $0x330] sm:$0xff]
    %v5577 = vld [vmem:[%s9 + $0x338] sm:$0xff]
    %v5578 = vld [vmem:[%s9 + $0x340] sm:$0xff]
    %v5579 = vld [vmem:[%s9 + $0x348] sm:$0xff]
    %v5580 = vld [vmem:[%s9 + $0x350] sm:$0xff]
    %v5581 = vld [vmem:[%s9 + $0x358] sm:$0xff]
    %v5582 = vld [vmem:[%s9 + $0x360] sm:$0xff]
    %v5583 = vld [vmem:[%s9 + $0x368] sm:$0xff]
    %v5584 = vld [vmem:[%s9 + $0x370] sm:$0xff]
    %v5585 = vld [vmem:[%s9 + $0x378] sm:$0xff]
    %v5586 = vld [vmem:[%s9 + $0x380] sm:$0xff]
    %v5587 = vld [vmem:[%s9 + $0x388] sm:$0xff]
    %v5588 = vld [vmem:[%s9 + $0x390] sm:$0xff]
    %v5589 = vld [vmem:[%s9 + $0x398] sm:$0xff]
    %v5590 = vld [vmem:[%s9 + $0x3a0] sm:$0xff]
    %v5591 = vld [vmem:[%s9 + $0x3a8] sm:$0xff]
    %v5592 = vld [vmem:[%s9 + $0x3b0] sm:$0xff]
    %v5593 = vld [vmem:[%s9 + $0x3b8] sm:$0xff]
    %v5594 = vld [vmem:[%s9 + $0x3c0] sm:$0xff]
    %v5595 = vld [vmem:[%s9 + $0x3c8] sm:$0xff]
    %v5596 = vld [vmem:[%s9 + $0x3d0] sm:$0xff]
    %v5597 = vld [vmem:[%s9 + $0x3d8] sm:$0xff]
    %v5598 = vld [vmem:[%s9 + $0x3e0] sm:$0xff]
    %v5599 = vld [vmem:[%s9 + $0x3e8] sm:$0xff]
    %v5600 = vld [vmem:[%s9 + $0x3f0] sm:$0xff]
    %v5601 = vld [vmem:[%s9 + $0x3f8] sm:$0xff]
    %v5602 = vld [vmem:[%s9 + $0x400] sm:$0xff]
    %v5603 = vld [vmem:[%s9 + $0x408] sm:$0xff]
    %v5604 = vld [vmem:[%s9 + $0x410] sm:$0xff]
    %v5605 = vld [vmem:[%s9 + $0x418] sm:$0xff]
    %v5606 = vld [vmem:[%s9 + $0x420] sm:$0xff]
    %v5607 = vld [vmem:[%s9 + $0x428] sm:$0xff]
    %v5608 = vld [vmem:[%s9 + $0x430] sm:$0xff]
    %v5609 = vld [vmem:[%s9 + $0x438] sm:$0xff]
    %v5610 = vld [vmem:[%s9 + $0x440] sm:$0xff]
    %v5611 = vld [vmem:[%s9 + $0x448] sm:$0xff]
    %v5612 = vld [vmem:[%s9 + $0x450] sm:$0xff]
    %v5613 = vld [vmem:[%s9 + $0x458] sm:$0xff]
    %v5614 = vld [vmem:[%s9 + $0x460] sm:$0xff]
    %v5615 = vld [vmem:[%s9 + $0x468] sm:$0xff]
    %v5616 = vld [vmem:[%s9 + $0x470] sm:$0xff]
    %v5617 = vld [vmem:[%s9 + $0x478] sm:$0xff]
    %v5618 = vld [vmem:[%s9 + $0x480] sm:$0xff]
    %v5619 = vld [vmem:[%s9 + $0x488] sm:$0xff]
    %v5620 = vld [vmem:[%s9 + $0x490] sm:$0xff]
    %v5621 = vld [vmem:[%s9 + $0x498] sm:$0xff]
    %v5622 = vld [vmem:[%s9 + $0x4a0] sm:$0xff]
    %v5623 = vld [vmem:[%s9 + $0x4a8] sm:$0xff]
    %v5624 = vld [vmem:[%s9 + $0x4b0] sm:$0xff]
    %v5625 = vld [vmem:[%s9 + $0x4b8] sm:$0xff]
    %v5626 = vld [vmem:[%s9 + $0x4c0] sm:$0xff]
    %v5627 = vld [vmem:[%s9 + $0x4c8] sm:$0xff]
    %v5628 = vld [vmem:[%s9 + $0x4d0] sm:$0xff]
    %v5629 = vld [vmem:[%s9 + $0x4d8] sm:$0xff]
    %v5630 = vld [vmem:[%s9 + $0x4e0] sm:$0xff]
    %v5631 = vld [vmem:[%s9 + $0x4e8] sm:$0xff]
    %v5632 = vld [vmem:[%s9 + $0x4f0] sm:$0xff]
    %v5633 = vld [vmem:[%s9 + $0x4f8] sm:$0xff]
    %v5634 = vld [vmem:[%s9 + $0x500] sm:$0xff]
    %v5635 = vld [vmem:[%s9 + $0x508] sm:$0xff]
    %v5636 = vld [vmem:[%s9 + $0x510] sm:$0xff]
    %v5637 = vld [vmem:[%s9 + $0x518] sm:$0xff]
    %v5638 = vld [vmem:[%s9 + $0x520] sm:$0xff]
    %v5639 = vld [vmem:[%s9 + $0x528] sm:$0xff]
    %v5640 = vld [vmem:[%s9 + $0x530] sm:$0xff]
    %v5641 = vld [vmem:[%s9 + $0x538] sm:$0xff]
    %v5642 = vld [vmem:[%s9 + $0x540] sm:$0xff]
    %v5643 = vld [vmem:[%s9 + $0x548] sm:$0xff]
    %v5644 = vld [vmem:[%s9 + $0x550] sm:$0xff]
    %v5645 = vld [vmem:[%s9 + $0x558] sm:$0xff]
    %v5646 = vld [vmem:[%s9 + $0x560] sm:$0xff]
    %v5647 = vld [vmem:[%s9 + $0x568] sm:$0xff]
    %v5648 = vld [vmem:[%s9 + $0x570] sm:$0xff]
    %v5649 = vld [vmem:[%s9 + $0x578] sm:$0xff]
    %v5650 = vld [vmem:[%s9 + $0x580] sm:$0xff]
    %v5651 = vld [vmem:[%s9 + $0x588] sm:$0xff]
    %v5652 = vld [vmem:[%s9 + $0x590] sm:$0xff]
    %v5653 = vld [vmem:[%s9 + $0x598] sm:$0xff]
    %v5654 = vld [vmem:[%s9 + $0x5a0] sm:$0xff]
    %v5655 = vld [vmem:[%s9 + $0x5a8] sm:$0xff]
    %v5656 = vld [vmem:[%s9 + $0x5b0] sm:$0xff]
    %v5657 = vld [vmem:[%s9 + $0x5b8] sm:$0xff]
    %v5658 = vld [vmem:[%s9 + $0x5c0] sm:$0xff]
    %v5659 = vld [vmem:[%s9 + $0x5c8] sm:$0xff]
    %v5660 = vld [vmem:[%s9 + $0x5d0] sm:$0xff]
    %v5661 = vld [vmem:[%s9 + $0x5d8] sm:$0xff]
    %v5662 = vld [vmem:[%s9 + $0x5e0] sm:$0xff]
    %v5663 = vld [vmem:[%s9 + $0x5e8] sm:$0xff]
    %v5664 = vld [vmem:[%s9 + $0x5f0] sm:$0xff]
    %v5665 = vld [vmem:[%s9 + $0x5f8] sm:$0xff]
    %v5666 = vld [vmem:[%s9 + $0x600] sm:$0xff]
    %v5667 = vld [vmem:[%s9 + $0x608] sm:$0xff]
    %v5668 = vld [vmem:[%s9 + $0x610] sm:$0xff]
    %v5669 = vld [vmem:[%s9 + $0x618] sm:$0xff]
    %v5670 = vld [vmem:[%s9 + $0x620] sm:$0xff]
    %v5671 = vld [vmem:[%s9 + $0x628] sm:$0xff]
    %v5672 = vld [vmem:[%s9 + $0x630] sm:$0xff]
    %v5673 = vld [vmem:[%s9 + $0x638] sm:$0xff]
    %v5674 = vld [vmem:[%s9 + $0x640] sm:$0xff]
    %v5675 = vld [vmem:[%s9 + $0x648] sm:$0xff]
    %v5676 = vld [vmem:[%s9 + $0x650] sm:$0xff]
    %v5677 = vld [vmem:[%s9 + $0x658] sm:$0xff]
    %v5678 = vld [vmem:[%s9 + $0x660] sm:$0xff]
    %v5679 = vld [vmem:[%s9 + $0x668] sm:$0xff]
    %v5680 = vld [vmem:[%s9 + $0x670] sm:$0xff]
    %v5681 = vld [vmem:[%s9 + $0x678] sm:$0xff]
    %v5682 = vld [vmem:[%s9 + $0x680] sm:$0xff]
    %v5683 = vld [vmem:[%s9 + $0x688] sm:$0xff]
    %v5684 = vld [vmem:[%s9 + $0x690] sm:$0xff]
    %v5685 = vld [vmem:[%s9 + $0x698] sm:$0xff]
    %v5686 = vld [vmem:[%s9 + $0x6a0] sm:$0xff]
    %v5687 = vld [vmem:[%s9 + $0x6a8] sm:$0xff]
    %v5688 = vld [vmem:[%s9 + $0x6b0] sm:$0xff]
    %v5689 = vld [vmem:[%s9 + $0x6b8] sm:$0xff]
    %v5690 = vld [vmem:[%s9 + $0x6c0] sm:$0xff]
    %v5691 = vld [vmem:[%s9 + $0x6c8] sm:$0xff]
    %v5692 = vld [vmem:[%s9 + $0x6d0] sm:$0xff]
    %v5693 = vld [vmem:[%s9 + $0x6d8] sm:$0xff]
    %v5694 = vld [vmem:[%s9 + $0x6e0] sm:$0xff]
    %v5695 = vld [vmem:[%s9 + $0x6e8] sm:$0xff]
    %v5696 = vld [vmem:[%s9 + $0x6f0] sm:$0xff]
    %v5697 = vld [vmem:[%s9 + $0x6f8] sm:$0xff]
    %v5698 = vld [vmem:[%s9 + $0x700] sm:$0xff]
    %v5699 = vld [vmem:[%s9 + $0x708] sm:$0xff]
    %v5700 = vld [vmem:[%s9 + $0x710] sm:$0xff]
    %v5701 = vld [vmem:[%s9 + $0x718] sm:$0xff]
    %v5702 = vld [vmem:[%s9 + $0x720] sm:$0xff]
    %v5703 = vld [vmem:[%s9 + $0x728] sm:$0xff]
    %v5704 = vld [vmem:[%s9 + $0x730] sm:$0xff]
    %v5705 = vld [vmem:[%s9 + $0x738] sm:$0xff]
    %v5706 = vld [vmem:[%s9 + $0x740] sm:$0xff]
    %v5707 = vld [vmem:[%s9 + $0x748] sm:$0xff]
    %v5708 = vld [vmem:[%s9 + $0x750] sm:$0xff]
    %v5709 = vld [vmem:[%s9 + $0x758] sm:$0xff]
    %v5710 = vld [vmem:[%s9 + $0x760] sm:$0xff]
    %v5711 = vld [vmem:[%s9 + $0x768] sm:$0xff]
    %v5712 = vld [vmem:[%s9 + $0x770] sm:$0xff]
    %v5713 = vld [vmem:[%s9 + $0x778] sm:$0xff]
    %v5714 = vld [vmem:[%s9 + $0x780] sm:$0xff]
    %v5715 = vld [vmem:[%s9 + $0x788] sm:$0xff]
    %v5716 = vld [vmem:[%s9 + $0x790] sm:$0xff]
    %v5717 = vld [vmem:[%s9 + $0x798] sm:$0xff]
    %v5718 = vld [vmem:[%s9 + $0x7a0] sm:$0xff]
    %v5719 = vld [vmem:[%s9 + $0x7a8] sm:$0xff]
    %v5720 = vld [vmem:[%s9 + $0x7b0] sm:$0xff]
    %v5721 = vld [vmem:[%s9 + $0x7b8] sm:$0xff]
    %v5722 = vld [vmem:[%s9 + $0x7c0] sm:$0xff]
    %v5723 = vld [vmem:[%s9 + $0x7c8] sm:$0xff]
    %v5724 = vld [vmem:[%s9 + $0x7d0] sm:$0xff]
    %v5725 = vld [vmem:[%s9 + $0x7d8] sm:$0xff]
    %v5726 = vld [vmem:[%s9 + $0x7e0] sm:$0xff]
    %v5727 = vld [vmem:[%s9 + $0x7e8] sm:$0xff]
    %v5728 = vld [vmem:[%s9 + $0x7f0] sm:$0xff]
    %v5729 = vld [vmem:[%s9 + $0x7f8] sm:$0xff]
    %v5730 = vld [vmem:[%s9 + $0x800] sm:$0xff]
    %v5731 = vld [vmem:[%s9 + $0x808] sm:$0xff]
    %v5732 = vld [vmem:[%s9 + $0x810] sm:$0xff]
    %v5733 = vld [vmem:[%s9 + $0x818] sm:$0xff]
    %v5734 = vld [vmem:[%s9 + $0x820] sm:$0xff]
    %v5735 = vld [vmem:[%s9 + $0x828] sm:$0xff]
    %v5736 = vld [vmem:[%s9 + $0x830] sm:$0xff]
    %v5737 = vld [vmem:[%s9 + $0x838] sm:$0xff]
    %v5738 = vld [vmem:[%s9 + $0x840] sm:$0xff]
    %v5739 = vld [vmem:[%s9 + $0x848] sm:$0xff]
    %v5740 = vld [vmem:[%s9 + $0x850] sm:$0xff]
    %v5741 = vld [vmem:[%s9 + $0x858] sm:$0xff]
    %v5742 = vld [vmem:[%s9 + $0x860] sm:$0xff]
    %v5743 = vld [vmem:[%s9 + $0x868] sm:$0xff]
    %v5744 = vld [vmem:[%s9 + $0x870] sm:$0xff]
    %v5745 = vld [vmem:[%s9 + $0x878] sm:$0xff]
    %v5746 = vld [vmem:[%s9 + $0x880] sm:$0xff]
    %v5747 = vld [vmem:[%s9 + $0x888] sm:$0xff]
    %v5748 = vld [vmem:[%s9 + $0x890] sm:$0xff]
    %v5749 = vld [vmem:[%s9 + $0x898] sm:$0xff]
    %v5750 = vld [vmem:[%s9 + $0x8a0] sm:$0xff]
    %v5751 = vld [vmem:[%s9 + $0x8a8] sm:$0xff]
    %v5752 = vld [vmem:[%s9 + $0x8b0] sm:$0xff]
    %v5753 = vld [vmem:[%s9 + $0x8b8] sm:$0xff]
    %v5754 = vld [vmem:[%s9 + $0x8c0] sm:$0xff]
    %v5755 = vld [vmem:[%s9 + $0x8c8] sm:$0xff]
    %v5756 = vld [vmem:[%s9 + $0x8d0] sm:$0xff]
    %v5757 = vld [vmem:[%s9 + $0x8d8] sm:$0xff]
    %v5758 = vld [vmem:[%s9 + $0x8e0] sm:$0xff]
    %v5759 = vld [vmem:[%s9 + $0x8e8] sm:$0xff]
    %v5760 = vld [vmem:[%s9 + $0x8f0] sm:$0xff]
    %v5761 = vld [vmem:[%s9 + $0x8f8] sm:$0xff]
    %v5762 = vld [vmem:[%s9 + $0x900] sm:$0xff]
    %v5763 = vld [vmem:[%s9 + $0x908] sm:$0xff]
    %v5764 = vld [vmem:[%s9 + $0x910] sm:$0xff]
    %v5765 = vld [vmem:[%s9 + $0x918] sm:$0xff]
    %v5766 = vld [vmem:[%s9 + $0x920] sm:$0xff]
    %v5767 = vld [vmem:[%s9 + $0x928] sm:$0xff]
    %v5768 = vld [vmem:[%s9 + $0x930] sm:$0xff]
    %v5769 = vld [vmem:[%s9 + $0x938] sm:$0xff]
    %v5770 = vld [vmem:[%s9 + $0x940] sm:$0xff]
    %v5771 = vld [vmem:[%s9 + $0x948] sm:$0xff]
    %v5772 = vld [vmem:[%s9 + $0x950] sm:$0xff]
    %v5773 = vld [vmem:[%s9 + $0x958] sm:$0xff]
    %v5774 = vld [vmem:[%s9 + $0x960] sm:$0xff]
    %v5775 = vld [vmem:[%s9 + $0x968] sm:$0xff]
    %v5776 = vld [vmem:[%s9 + $0x970] sm:$0xff]
    %v5777 = vld [vmem:[%s9 + $0x978] sm:$0xff]
    %v5778 = vld [vmem:[%s9 + $0x980] sm:$0xff]
    %v5779 = vld [vmem:[%s9 + $0x988] sm:$0xff]
    %v5780 = vld [vmem:[%s9 + $0x990] sm:$0xff]
    %v5781 = vld [vmem:[%s9 + $0x998] sm:$0xff]
    %v5782 = vld [vmem:[%s9 + $0x9a0] sm:$0xff]
    %v5783 = vld [vmem:[%s9 + $0x9a8] sm:$0xff]
    %v5784 = vld [vmem:[%s9 + $0x9b0] sm:$0xff]
    %v5785 = vld [vmem:[%s9 + $0x9b8] sm:$0xff]
    %v5786 = vld [vmem:[%s9 + $0x9c0] sm:$0xff]
    %v5787 = vld [vmem:[%s9 + $0x9c8] sm:$0xff]
    %v5788 = vld [vmem:[%s9 + $0x9d0] sm:$0xff]
    %v5789 = vld [vmem:[%s9 + $0x9d8] sm:$0xff]
    %v5790 = vld [vmem:[%s9 + $0x9e0] sm:$0xff]
    %v5791 = vld [vmem:[%s9 + $0x9e8] sm:$0xff]
    %v5792 = vld [vmem:[%s9 + $0x9f0] sm:$0xff]
    %v5793 = vld [vmem:[%s9 + $0x9f8] sm:$0xff]
    %v5794 = vld [vmem:[%s9 + $0xa00] sm:$0xff]
    %v5795 = vld [vmem:[%s9 + $0xa08] sm:$0xff]
    %v5796 = vld [vmem:[%s9 + $0xa10] sm:$0xff]
    %v5797 = vld [vmem:[%s9 + $0xa18] sm:$0xff]
    %v5798 = vld [vmem:[%s9 + $0xa20] sm:$0xff]
    %v5799 = vld [vmem:[%s9 + $0xa28] sm:$0xff]
    %v5800 = vld [vmem:[%s9 + $0xa30] sm:$0xff]
    %v5801 = vld [vmem:[%s9 + $0xa38] sm:$0xff]
    %v5802 = vld [vmem:[%s9 + $0xa40] sm:$0xff]
    %v5803 = vld [vmem:[%s9 + $0xa48] sm:$0xff]
    %v5804 = vld [vmem:[%s9 + $0xa50] sm:$0xff]
    %v5805 = vld [vmem:[%s9 + $0xa58] sm:$0xff]
    %v5806 = vld [vmem:[%s9 + $0xa60] sm:$0xff]
    %v5807 = vld [vmem:[%s9 + $0xa68] sm:$0xff]
    %v5808 = vld [vmem:[%s9 + $0xa70] sm:$0xff]
    %v5809 = vld [vmem:[%s9 + $0xa78] sm:$0xff]
    %v5810 = vld [vmem:[%s9 + $0xa80] sm:$0xff]
    %v5811 = vld [vmem:[%s9 + $0xa88] sm:$0xff]
    %v5812 = vld [vmem:[%s9 + $0xa90] sm:$0xff]
    %v5813 = vld [vmem:[%s9 + $0xa98] sm:$0xff]
    %v5814 = vld [vmem:[%s9 + $0xaa0] sm:$0xff]
    %v5815 = vld [vmem:[%s9 + $0xaa8] sm:$0xff]
    %v5816 = vld [vmem:[%s9 + $0xab0] sm:$0xff]
    %v5817 = vld [vmem:[%s9 + $0xab8] sm:$0xff]
    %v5818 = vld [vmem:[%s9 + $0xac0] sm:$0xff]
    %v5819 = vld [vmem:[%s9 + $0xac8] sm:$0xff]
    %v5820 = vld [vmem:[%s9 + $0xad0] sm:$0xff]
    %v5821 = vld [vmem:[%s9 + $0xad8] sm:$0xff]
    %v5822 = vld [vmem:[%s9 + $0xae0] sm:$0xff]
    %v5823 = vld [vmem:[%s9 + $0xae8] sm:$0xff]
    %v5824 = vld [vmem:[%s9 + $0xaf0] sm:$0xff]
    %v5825 = vld [vmem:[%s9 + $0xaf8] sm:$0xff]
    %v5826 = vld [vmem:[%s9 + $0xb00] sm:$0xff]
    %v5827 = vld [vmem:[%s9 + $0xb08] sm:$0xff]
    %v5828 = vld [vmem:[%s9 + $0xb10] sm:$0xff]
    %v5829 = vld [vmem:[%s9 + $0xb18] sm:$0xff]
    %v5830 = vld [vmem:[%s9 + $0xb20] sm:$0xff]
    %v5831 = vld [vmem:[%s9 + $0xb28] sm:$0xff]
    %v5832 = vld [vmem:[%s9 + $0xb30] sm:$0xff]
    %v5833 = vld [vmem:[%s9 + $0xb38] sm:$0xff]
    %v5834 = vld [vmem:[%s9 + $0xb40] sm:$0xff]
    %v5835 = vld [vmem:[%s9 + $0xb48] sm:$0xff]
    %v5836 = vld [vmem:[%s9 + $0xb50] sm:$0xff]
    %v5837 = vld [vmem:[%s9 + $0xb58] sm:$0xff]
    %v5838 = vld [vmem:[%s9 + $0xb60] sm:$0xff]
    %v5839 = vld [vmem:[%s9 + $0xb68] sm:$0xff]
    %v5840 = vld [vmem:[%s9 + $0xb70] sm:$0xff]
    %v5841 = vld [vmem:[%s9 + $0xb78] sm:$0xff]
    %v5842 = vld [vmem:[%s9 + $0xb80] sm:$0xff]
    %v5843 = vld [vmem:[%s9 + $0xb88] sm:$0xff]
    %v5844 = vld [vmem:[%s9 + $0xb90] sm:$0xff]
    %v5845 = vld [vmem:[%s9 + $0xb98] sm:$0xff]
    %v5846 = vld [vmem:[%s9 + $0xba0] sm:$0xff]
    %v5847 = vld [vmem:[%s9 + $0xba8] sm:$0xff]
    %v5848 = vld [vmem:[%s9 + $0xbb0] sm:$0xff]
    %v5849 = vld [vmem:[%s9 + $0xbb8] sm:$0xff]
    %v5850 = vld [vmem:[%s9 + $0xbc0] sm:$0xff]
    %v5851 = vld [vmem:[%s9 + $0xbc8] sm:$0xff]
    %v5852 = vld [vmem:[%s9 + $0xbd0] sm:$0xff]
    %v5853 = vld [vmem:[%s9 + $0xbd8] sm:$0xff]
    %v5854 = vld [vmem:[%s9 + $0xbe0] sm:$0xff]
    %v5855 = vld [vmem:[%s9 + $0xbe8] sm:$0xff]
    %v5856 = vld [vmem:[%s9 + $0xbf0] sm:$0xff]
    %v5857 = vld [vmem:[%s9 + $0xbf8] sm:$0xff]
    %v5858 = vld [vmem:[%s9 + $0xc00] sm:$0xff]
    %v5859 = vld [vmem:[%s9 + $0xc08] sm:$0xff]
    %v5860 = vld [vmem:[%s9 + $0xc10] sm:$0xff]
    %v5861 = vld [vmem:[%s9 + $0xc18] sm:$0xff]
    %v5862 = vld [vmem:[%s9 + $0xc20] sm:$0xff]
    %v5863 = vld [vmem:[%s9 + $0xc28] sm:$0xff]
    %v5864 = vld [vmem:[%s9 + $0xc30] sm:$0xff]
    %v5865 = vld [vmem:[%s9 + $0xc38] sm:$0xff]
    %v5866 = vld [vmem:[%s10] sm:$0xf]
    %v5868 = vlaneseq
    %v5869 = vshrl.u32 %v5868, 7
    %v5870 = vsub.s32 0, %v5869
    %v5871 = vrot.slane %v5866, %v5870
    %v5872 = vlaneseq
    %v5873 = vshrl.u32 %v5872, 7
    %v5874 = vsub.s32 1, %v5873
    %v5875 = vrot.slane %v5866, %v5874
    %v5876 = vlaneseq
    %v5877 = vshrl.u32 %v5876, 7
    %v5878 = vsub.s32 2, %v5877
    %v5879 = vrot.slane %v5866, %v5878
    %v5880 = vlaneseq
    %v5881 = vshrl.u32 %v5880, 7
    %v5882 = vsub.s32 3, %v5881
    %v5883 = vrot.slane %v5866, %v5882
    %v5889 = vsel %vm843, %v5473, 0
    %5891 = vmatprep.subr.mxu0 %v5535
    %5892 = vmatpush1.msra.mxu0 %v5534
    %5893 = vmatprep.subr.mxu0 %v5531
    %5894 = vmatpush1.msra.mxu0 %v5530
    %5895 = vmatprep.subr.mxu0 %v5527
    %5896 = vmatpush1.msra.mxu0 %v5526
    %5897 = vmatprep.subr.mxu0 %v5523
    %5898 = vmatpush1.msra.mxu0 %v5522
    %5899 = vmatprep.subr.mxu0 %v5519
    %5900 = vmatpush1.msra.mxu0 %v5518
    %5901 = vmatprep.subr.mxu0 %v5515
    %5902 = vmatpush1.msra.mxu0 %v5514
    %5903 = vmatprep.subr.mxu0 %v5511
    %5904 = vmatpush1.msra.mxu0 %v5510
    %5905 = vmatprep.subr.mxu0 %v5507
    %5906 = vmatpush1.msra.mxu0 %v5506
    %5907 = vmatprep.subr.mxu0 %v5503
    %5908 = vmatpush1.msra.mxu0 %v5502
    %5909 = vmatprep.subr.mxu0 %v5499
    %5910 = vmatpush1.msra.mxu0 %v5498
    %5911 = vmatprep.subr.mxu0 %v5495
    %5912 = vmatpush1.msra.mxu0 %v5494
    %5913 = vmatprep.subr.mxu0 %v5491
    %5914 = vmatpush1.msra.mxu0 %v5490
    %5915 = vmatprep.subr.mxu0 %v5487
    %5916 = vmatpush1.msra.mxu0 %v5486
    %5917 = vmatprep.subr.mxu0 %v5483
    %5918 = vmatpush1.msra.mxu0 %v5482
    %5919 = vmatprep.subr.mxu0 %v5479
    %5920 = vmatpush1.msra.mxu0 %v5478
    %5921 = vmatprep.subr.mxu0 %v5475
    %5922 = vmatpush1.msra.mxu0 %v5474
    %5923 = vmatprep.subr.mxu0 %v5599
    %5924 = vmatpush2.msra.mxu0 %v5598
    %5925 = vmatprep.subr.mxu0 %v5595
    %5926 = vmatpush2.msra.mxu0 %v5594
    %5927 = vmatprep.subr.mxu0 %v5591
    %5928 = vmatpush2.msra.mxu0 %v5590
    %5929 = vmatprep.subr.mxu0 %v5587
    %5930 = vmatpush2.msra.mxu0 %v5586
    %5931 = vmatprep.subr.mxu0 %v5583
    %5932 = vmatpush2.msra.mxu0 %v5582
    %5933 = vmatprep.subr.mxu0 %v5579
    %5934 = vmatpush2.msra.mxu0 %v5578
    %5935 = vmatprep.subr.mxu0 %v5575
    %5936 = vmatpush2.msra.mxu0 %v5574
    %5937 = vmatprep.subr.mxu0 %v5571
    %5938 = vmatpush2.msra.mxu0 %v5570
    %5939 = vmatprep.subr.mxu0 %v5567
    %5940 = vmatpush2.msra.mxu0 %v5566
    %5941 = vmatprep.subr.mxu0 %v5563
    %5942 = vmatpush2.msra.mxu0 %v5562
    %5943 = vmatprep.subr.mxu0 %v5559
    %5944 = vmatpush2.msra.mxu0 %v5558
    %5945 = vmatprep.subr.mxu0 %v5555
    %5946 = vmatpush2.msra.mxu0 %v5554
    %5947 = vmatprep.subr.mxu0 %v5551
    %5948 = vmatpush2.msra.mxu0 %v5550
    %5949 = vmatprep.subr.mxu0 %v5547
    %5950 = vmatpush2.msra.mxu0 %v5546
    %5951 = vmatprep.subr.mxu0 %v5543
    %5952 = vmatpush2.msra.mxu0 %v5542
    %5953 = vmatprep.subr.mxu0 %v5539
    %5954 = vmatpush2.msra.mxu0 %v5538
    %5955 = vmatprep.mubr.f32.mxu0 %v5468
    %5956 = vmatmul.mubr.f32.gmra.mxu0 %v5467
    %v5957 = vpop.f32.mrf.mxu0
    %v5958 = vadd.f32 %v5871, %v5957
    %v5959 = vpop.f32.mrf.mxu0
    %v5960 = vadd.f32 %v5875, %v5959
    %5961 = vdwg.mxu0
    %5962 = vmatprep.subr.mxu0 %v5663
    %5963 = vmatpush1.msra.mxu0 %v5662
    %5964 = vmatprep.subr.mxu0 %v5659
    %5965 = vmatpush1.msra.mxu0 %v5658
    %5966 = vmatprep.subr.mxu0 %v5655
    %5967 = vmatpush1.msra.mxu0 %v5654
    %5968 = vmatprep.subr.mxu0 %v5651
    %5969 = vmatpush1.msra.mxu0 %v5650
    %5970 = vmatprep.subr.mxu0 %v5647
    %5971 = vmatpush1.msra.mxu0 %v5646
    %5972 = vmatprep.subr.mxu0 %v5643
    %5973 = vmatpush1.msra.mxu0 %v5642
    %5974 = vmatprep.subr.mxu0 %v5639
    %5975 = vmatpush1.msra.mxu0 %v5638
    %5976 = vmatprep.subr.mxu0 %v5635
    %5977 = vmatpush1.msra.mxu0 %v5634
    %5978 = vmatprep.subr.mxu0 %v5631
    %5979 = vmatpush1.msra.mxu0 %v5630
    %5980 = vmatprep.subr.mxu0 %v5627
    %5981 = vmatpush1.msra.mxu0 %v5626
    %5982 = vmatprep.subr.mxu0 %v5623
    %5983 = vmatpush1.msra.mxu0 %v5622
    %5984 = vmatprep.subr.mxu0 %v5619
    %5985 = vmatpush1.msra.mxu0 %v5618
    %5986 = vmatprep.subr.mxu0 %v5615
    %5987 = vmatpush1.msra.mxu0 %v5614
    %5988 = vmatprep.subr.mxu0 %v5611
    %5989 = vmatpush1.msra.mxu0 %v5610
    %5990 = vmatprep.subr.mxu0 %v5607
    %5991 = vmatpush1.msra.mxu0 %v5606
    %5992 = vmatprep.subr.mxu0 %v5603
    %5993 = vmatpush1.msra.mxu0 %v5602
    %5994 = vmatprep.subr.mxu0 %v5727
    %5995 = vmatpush2.msra.mxu0 %v5726
    %5996 = vmatprep.subr.mxu0 %v5723
    %5997 = vmatpush2.msra.mxu0 %v5722
    %5998 = vmatprep.subr.mxu0 %v5719
    %5999 = vmatpush2.msra.mxu0 %v5718
    %6000 = vmatprep.subr.mxu0 %v5715
    %6001 = vmatpush2.msra.mxu0 %v5714
    %6002 = vmatprep.subr.mxu0 %v5711
    %6003 = vmatpush2.msra.mxu0 %v5710
    %6004 = vmatprep.subr.mxu0 %v5707
    %6005 = vmatpush2.msra.mxu0 %v5706
    %6006 = vmatprep.subr.mxu0 %v5703
    %6007 = vmatpush2.msra.mxu0 %v5702
    %6008 = vmatprep.subr.mxu0 %v5699
    %6009 = vmatpush2.msra.mxu0 %v5698
    %6010 = vmatprep.subr.mxu0 %v5695
    %6011 = vmatpush2.msra.mxu0 %v5694
    %6012 = vmatprep.subr.mxu0 %v5691
    %6013 = vmatpush2.msra.mxu0 %v5690
    %6014 = vmatprep.subr.mxu0 %v5687
    %6015 = vmatpush2.msra.mxu0 %v5686
    %6016 = vmatprep.subr.mxu0 %v5683
    %6017 = vmatpush2.msra.mxu0 %v5682
    %6018 = vmatprep.subr.mxu0 %v5679
    %6019 = vmatpush2.msra.mxu0 %v5678
    %6020 = vmatprep.subr.mxu0 %v5675
    %6021 = vmatpush2.msra.mxu0 %v5674
    %6022 = vmatprep.subr.mxu0 %v5671
    %6023 = vmatpush2.msra.mxu0 %v5670
    %6024 = vmatprep.subr.mxu0 %v5667
    %6025 = vmatpush2.msra.mxu0 %v5666
    %6026 = vmatprep.mubr.f32.mxu0 %v5470
    %6027 = vmatmul.mubr.f32.gmra.mxu0 %v5469
    %v6028 = vpop.f32.mrf.mxu0
    %v6029 = vadd.f32 %v5958, %v6028
    %v6030 = vpop.f32.mrf.mxu0
    %v6031 = vadd.f32 %v5960, %v6030
    %6032 = vdwg.mxu0
    %6033 = vmatprep.subr.mxu0 %v5791
    %6034 = vmatpush1.msra.mxu0 %v5790
    %6035 = vmatprep.subr.mxu0 %v5787
    %6036 = vmatpush1.msra.mxu0 %v5786
    %6037 = vmatprep.subr.mxu0 %v5783
    %6038 = vmatpush1.msra.mxu0 %v5782
    %6039 = vmatprep.subr.mxu0 %v5779
    %6040 = vmatpush1.msra.mxu0 %v5778
    %6041 = vmatprep.subr.mxu0 %v5775
    %6042 = vmatpush1.msra.mxu0 %v5774
    %6043 = vmatprep.subr.mxu0 %v5771
    %6044 = vmatpush1.msra.mxu0 %v5770
    %6045 = vmatprep.subr.mxu0 %v5767
    %6046 = vmatpush1.msra.mxu0 %v5766
    %6047 = vmatprep.subr.mxu0 %v5763
    %6048 = vmatpush1.msra.mxu0 %v5762
    %6049 = vmatprep.subr.mxu0 %v5759
    %6050 = vmatpush1.msra.mxu0 %v5758
    %6051 = vmatprep.subr.mxu0 %v5755
    %6052 = vmatpush1.msra.mxu0 %v5754
    %6053 = vmatprep.subr.mxu0 %v5751
    %6054 = vmatpush1.msra.mxu0 %v5750
    %6055 = vmatprep.subr.mxu0 %v5747
    %6056 = vmatpush1.msra.mxu0 %v5746
    %6057 = vmatprep.subr.mxu0 %v5743
    %6058 = vmatpush1.msra.mxu0 %v5742
    %6059 = vmatprep.subr.mxu0 %v5739
    %6060 = vmatpush1.msra.mxu0 %v5738
    %6061 = vmatprep.subr.mxu0 %v5735
    %6062 = vmatpush1.msra.mxu0 %v5734
    %6063 = vmatprep.subr.mxu0 %v5731
    %6064 = vmatpush1.msra.mxu0 %v5730
    %6065 = vmatprep.subr.mxu0 %v5855
    %6066 = vmatpush2.msra.mxu0 %v5854
    %6067 = vmatprep.subr.mxu0 %v5851
    %6068 = vmatpush2.msra.mxu0 %v5850
    %6069 = vmatprep.subr.mxu0 %v5847
    %6070 = vmatpush2.msra.mxu0 %v5846
    %6071 = vmatprep.subr.mxu0 %v5843
    %6072 = vmatpush2.msra.mxu0 %v5842
    %6073 = vmatprep.subr.mxu0 %v5839
    %6074 = vmatpush2.msra.mxu0 %v5838
    %6075 = vmatprep.subr.mxu0 %v5835
    %6076 = vmatpush2.msra.mxu0 %v5834
    %6077 = vmatprep.subr.mxu0 %v5831
    %6078 = vmatpush2.msra.mxu0 %v5830
    %6079 = vmatprep.subr.mxu0 %v5827
    %6080 = vmatpush2.msra.mxu0 %v5826
    %6081 = vmatprep.subr.mxu0 %v5823
    %6082 = vmatpush2.msra.mxu0 %v5822
    %6083 = vmatprep.subr.mxu0 %v5819
    %6084 = vmatpush2.msra.mxu0 %v5818
    %6085 = vmatprep.subr.mxu0 %v5815
    %6086 = vmatpush2.msra.mxu0 %v5814
    %6087 = vmatprep.subr.mxu0 %v5811
    %6088 = vmatpush2.msra.mxu0 %v5810
    %6089 = vmatprep.subr.mxu0 %v5807
    %6090 = vmatpush2.msra.mxu0 %v5806
    %6091 = vmatprep.subr.mxu0 %v5803
    %6092 = vmatpush2.msra.mxu0 %v5802
    %6093 = vmatprep.subr.mxu0 %v5799
    %6094 = vmatpush2.msra.mxu0 %v5798
    %6095 = vmatprep.subr.mxu0 %v5795
    %6096 = vmatpush2.msra.mxu0 %v5794
    %6097 = vmatprep.mubr.f32.mxu0 %v5472
    %6098 = vmatmul.mubr.f32.gmra.mxu0 %v5471
    %v6099 = vpop.f32.mrf.mxu0
    %v6100 = vadd.f32 %v6029, %v6099
    %v6101 = vpop.f32.mrf.mxu0
    %v6102 = vadd.f32 %v6031, %v6101
    %6103 = vdwg.mxu0
    %6104 = vmatprep.subr.mxu0 0.0
    %6105 = vmatpush1.msra.mxu0 0.0
    %6106 = vmatprep.subr.mxu0 0.0
    %6107 = vmatpush1.msra.mxu0 0.0
    %6108 = vmatprep.subr.mxu0 0.0
    %6109 = vmatpush1.msra.mxu0 0.0
    %6110 = vmatprep.subr.mxu0 0.0
    %6111 = vmatpush1.msra.mxu0 0.0
    %6112 = vmatprep.subr.mxu0 0.0
    %6113 = vmatpush1.msra.mxu0 0.0
    %6114 = vmatprep.subr.mxu0 0.0
    %6115 = vmatpush1.msra.mxu0 0.0
    %6116 = vmatprep.subr.mxu0 0.0
    %6117 = vmatpush1.msra.mxu0 0.0
    %6118 = vmatprep.subr.mxu0 0.0
    %6119 = vmatpush1.msra.mxu0 0.0
    %6120 = vmatprep.subr.mxu0 0.0
    %6121 = vmatpush1.msra.mxu0 0.0
    %6122 = vmatprep.subr.mxu0 0.0
    %6123 = vmatpush1.msra.mxu0 0.0
    %6124 = vmatprep.subr.mxu0 0.0
    %6125 = vmatpush1.msra.mxu0 0.0
    %6126 = vmatprep.subr.mxu0 0.0
    %6127 = vmatpush1.msra.mxu0 0.0
    %6128 = vmatprep.subr.mxu0 0.0
    %6129 = vmatpush1.msra.mxu0 0.0
    %6130 = vmatprep.subr.mxu0 0.0
    %6131 = vmatpush1.msra.mxu0 0.0
    %6132 = vmatprep.subr.mxu0 %v5863
    %6133 = vmatpush1.msra.mxu0 %v5862
    %6134 = vmatprep.subr.mxu0 %v5859
    %6135 = vmatpush1.msra.mxu0 %v5858
    %6136 = vmatprep.subr.mxu0 0.0
    %6137 = vmatpush2.msra.mxu0 0.0
    %6138 = vmatprep.subr.mxu0 0.0
    %6139 = vmatpush2.msra.mxu0 0.0
    %6140 = vmatprep.subr.mxu0 0.0
    %6141 = vmatpush2.msra.mxu0 0.0
    %6142 = vmatprep.subr.mxu0 0.0
    %6143 = vmatpush2.msra.mxu0 0.0
    %6144 = vmatprep.subr.mxu0 0.0
    %6145 = vmatpush2.msra.mxu0 0.0
    %6146 = vmatprep.subr.mxu0 0.0
    %6147 = vmatpush2.msra.mxu0 0.0
    %6148 = vmatprep.subr.mxu0 0.0
    %6149 = vmatpush2.msra.mxu0 0.0
    %6150 = vmatprep.subr.mxu0 0.0
    %6151 = vmatpush2.msra.mxu0 0.0
    %6152 = vmatprep.subr.mxu0 0.0
    %6153 = vmatpush2.msra.mxu0 0.0
    %6154 = vmatprep.subr.mxu0 0.0
    %6155 = vmatpush2.msra.mxu0 0.0
    %6156 = vmatprep.subr.mxu0 0.0
    %6157 = vmatpush2.msra.mxu0 0.0
    %6158 = vmatprep.subr.mxu0 0.0
    %6159 = vmatpush2.msra.mxu0 0.0
    %6160 = vmatprep.subr.mxu0 0.0
    %6161 = vmatpush2.msra.mxu0 0.0
    %6162 = vmatprep.subr.mxu0 0.0
    %6163 = vmatpush2.msra.mxu0 0.0
    %6164 = vmatprep.subr.mxu0 0.0
    %6165 = vmatpush2.msra.mxu0 0.0
    %6166 = vmatprep.subr.mxu0 0.0
    %6167 = vmatpush2.msra.mxu0 0.0
    %6168 = vmatprep.mubr.f32.mxu0 0.0
    %6169 = vmatmul.mubr.f32.gmra.mxu0 %v5889
    %v6170 = vpop.f32.mrf.mxu0
    %v6171 = vadd.f32 %v6100, %v6170
    %v6172 = vpop.f32.mrf.mxu0
    %v6173 = vadd.f32 %v6102, %v6172
    %6174 = vdwg.mxu0
    %6175 = vmatprep.subr.mxu0 %v5537
    %6176 = vmatpush1.msra.mxu0 %v5536
    %6177 = vmatprep.subr.mxu0 %v5533
    %6178 = vmatpush1.msra.mxu0 %v5532
    %6179 = vmatprep.subr.mxu0 %v5529
    %6180 = vmatpush1.msra.mxu0 %v5528
    %6181 = vmatprep.subr.mxu0 %v5525
    %6182 = vmatpush1.msra.mxu0 %v5524
    %6183 = vmatprep.subr.mxu0 %v5521
    %6184 = vmatpush1.msra.mxu0 %v5520
    %6185 = vmatprep.subr.mxu0 %v5517
    %6186 = vmatpush1.msra.mxu0 %v5516
    %6187 = vmatprep.subr.mxu0 %v5513
    %6188 = vmatpush1.msra.mxu0 %v5512
    %6189 = vmatprep.subr.mxu0 %v5509
    %6190 = vmatpush1.msra.mxu0 %v5508
    %6191 = vmatprep.subr.mxu0 %v5505
    %6192 = vmatpush1.msra.mxu0 %v5504
    %6193 = vmatprep.subr.mxu0 %v5501
    %6194 = vmatpush1.msra.mxu0 %v5500
    %6195 = vmatprep.subr.mxu0 %v5497
    %6196 = vmatpush1.msra.mxu0 %v5496
    %6197 = vmatprep.subr.mxu0 %v5493
    %6198 = vmatpush1.msra.mxu0 %v5492
    %6199 = vmatprep.subr.mxu0 %v5489
    %6200 = vmatpush1.msra.mxu0 %v5488
    %6201 = vmatprep.subr.mxu0 %v5485
    %6202 = vmatpush1.msra.mxu0 %v5484
    %6203 = vmatprep.subr.mxu0 %v5481
    %6204 = vmatpush1.msra.mxu0 %v5480
    %6205 = vmatprep.subr.mxu0 %v5477
    %6206 = vmatpush1.msra.mxu0 %v5476
    %6207 = vmatprep.subr.mxu0 %v5601
    %6208 = vmatpush2.msra.mxu0 %v5600
    %6209 = vmatprep.subr.mxu0 %v5597
    %6210 = vmatpush2.msra.mxu0 %v5596
    %6211 = vmatprep.subr.mxu0 %v5593
    %6212 = vmatpush2.msra.mxu0 %v5592
    %6213 = vmatprep.subr.mxu0 %v5589
    %6214 = vmatpush2.msra.mxu0 %v5588
    %6215 = vmatprep.subr.mxu0 %v5585
    %6216 = vmatpush2.msra.mxu0 %v5584
    %6217 = vmatprep.subr.mxu0 %v5581
    %6218 = vmatpush2.msra.mxu0 %v5580
    %6219 = vmatprep.subr.mxu0 %v5577
    %6220 = vmatpush2.msra.mxu0 %v5576
    %6221 = vmatprep.subr.mxu0 %v5573
    %6222 = vmatpush2.msra.mxu0 %v5572
    %6223 = vmatprep.subr.mxu0 %v5569
    %6224 = vmatpush2.msra.mxu0 %v5568
    %6225 = vmatprep.subr.mxu0 %v5565
    %6226 = vmatpush2.msra.mxu0 %v5564
    %6227 = vmatprep.subr.mxu0 %v5561
    %6228 = vmatpush2.msra.mxu0 %v5560
    %6229 = vmatprep.subr.mxu0 %v5557
    %6230 = vmatpush2.msra.mxu0 %v5556
    %6231 = vmatprep.subr.mxu0 %v5553
    %6232 = vmatpush2.msra.mxu0 %v5552
    %6233 = vmatprep.subr.mxu0 %v5549
    %6234 = vmatpush2.msra.mxu0 %v5548
    %6235 = vmatprep.subr.mxu0 %v5545
    %6236 = vmatpush2.msra.mxu0 %v5544
    %6237 = vmatprep.subr.mxu0 %v5541
    %6238 = vmatpush2.msra.mxu0 %v5540
    %6239 = vmatprep.mubr.f32.mxu0 %v5468
    %6240 = vmatmul.mubr.f32.gmra.mxu0 %v5467
    %v6241 = vpop.f32.mrf.mxu0
    %v6242 = vadd.f32 %v5879, %v6241
    %v6243 = vpop.f32.mrf.mxu0
    %v6244 = vadd.f32 %v5883, %v6243
    %6245 = vdwg.mxu0
    %6246 = vmatprep.subr.mxu0 %v5665
    %6247 = vmatpush1.msra.mxu0 %v5664
    %6248 = vmatprep.subr.mxu0 %v5661
    %6249 = vmatpush1.msra.mxu0 %v5660
    %6250 = vmatprep.subr.mxu0 %v5657
    %6251 = vmatpush1.msra.mxu0 %v5656
    %6252 = vmatprep.subr.mxu0 %v5653
    %6253 = vmatpush1.msra.mxu0 %v5652
    %6254 = vmatprep.subr.mxu0 %v5649
    %6255 = vmatpush1.msra.mxu0 %v5648
    %6256 = vmatprep.subr.mxu0 %v5645
    %6257 = vmatpush1.msra.mxu0 %v5644
    %6258 = vmatprep.subr.mxu0 %v5641
    %6259 = vmatpush1.msra.mxu0 %v5640
    %6260 = vmatprep.subr.mxu0 %v5637
    %6261 = vmatpush1.msra.mxu0 %v5636
    %6262 = vmatprep.subr.mxu0 %v5633
    %6263 = vmatpush1.msra.mxu0 %v5632
    %6264 = vmatprep.subr.mxu0 %v5629
    %6265 = vmatpush1.msra.mxu0 %v5628
    %6266 = vmatprep.subr.mxu0 %v5625
    %6267 = vmatpush1.msra.mxu0 %v5624
    %6268 = vmatprep.subr.mxu0 %v5621
    %6269 = vmatpush1.msra.mxu0 %v5620
    %6270 = vmatprep.subr.mxu0 %v5617
    %6271 = vmatpush1.msra.mxu0 %v5616
    %6272 = vmatprep.subr.mxu0 %v5613
    %6273 = vmatpush1.msra.mxu0 %v5612
    %6274 = vmatprep.subr.mxu0 %v5609
    %6275 = vmatpush1.msra.mxu0 %v5608
    %6276 = vmatprep.subr.mxu0 %v5605
    %6277 = vmatpush1.msra.mxu0 %v5604
    %6278 = vmatprep.subr.mxu0 %v5729
    %6279 = vmatpush2.msra.mxu0 %v5728
    %6280 = vmatprep.subr.mxu0 %v5725
    %6281 = vmatpush2.msra.mxu0 %v5724
    %6282 = vmatprep.subr.mxu0 %v5721
    %6283 = vmatpush2.msra.mxu0 %v5720
    %6284 = vmatprep.subr.mxu0 %v5717
    %6285 = vmatpush2.msra.mxu0 %v5716
    %6286 = vmatprep.subr.mxu0 %v5713
    %6287 = vmatpush2.msra.mxu0 %v5712
    %6288 = vmatprep.subr.mxu0 %v5709
    %6289 = vmatpush2.msra.mxu0 %v5708
    %6290 = vmatprep.subr.mxu0 %v5705
    %6291 = vmatpush2.msra.mxu0 %v5704
    %6292 = vmatprep.subr.mxu0 %v5701
    %6293 = vmatpush2.msra.mxu0 %v5700
    %6294 = vmatprep.subr.mxu0 %v5697
    %6295 = vmatpush2.msra.mxu0 %v5696
    %6296 = vmatprep.subr.mxu0 %v5693
    %6297 = vmatpush2.msra.mxu0 %v5692
    %6298 = vmatprep.subr.mxu0 %v5689
    %6299 = vmatpush2.msra.mxu0 %v5688
    %6300 = vmatprep.subr.mxu0 %v5685
    %6301 = vmatpush2.msra.mxu0 %v5684
    %6302 = vmatprep.subr.mxu0 %v5681
    %6303 = vmatpush2.msra.mxu0 %v5680
    %6304 = vmatprep.subr.mxu0 %v5677
    %6305 = vmatpush2.msra.mxu0 %v5676
    %6306 = vmatprep.subr.mxu0 %v5673
    %6307 = vmatpush2.msra.mxu0 %v5672
    %6308 = vmatprep.subr.mxu0 %v5669
    %6309 = vmatpush2.msra.mxu0 %v5668
    %6310 = vmatprep.mubr.f32.mxu0 %v5470
    %6311 = vmatmul.mubr.f32.gmra.mxu0 %v5469
    %v6312 = vpop.f32.mrf.mxu0
    %v6313 = vadd.f32 %v6242, %v6312
    %v6314 = vpop.f32.mrf.mxu0
    %v6315 = vadd.f32 %v6244, %v6314
    %6316 = vdwg.mxu0
    %6317 = vmatprep.subr.mxu0 %v5793
    %6318 = vmatpush1.msra.mxu0 %v5792
    %6319 = vmatprep.subr.mxu0 %v5789
    %6320 = vmatpush1.msra.mxu0 %v5788
    %6321 = vmatprep.subr.mxu0 %v5785
    %6322 = vmatpush1.msra.mxu0 %v5784
    %6323 = vmatprep.subr.mxu0 %v5781
    %6324 = vmatpush1.msra.mxu0 %v5780
    %6325 = vmatprep.subr.mxu0 %v5777
    %6326 = vmatpush1.msra.mxu0 %v5776
    %6327 = vmatprep.subr.mxu0 %v5773
    %6328 = vmatpush1.msra.mxu0 %v5772
    %6329 = vmatprep.subr.mxu0 %v5769
    %6330 = vmatpush1.msra.mxu0 %v5768
    %6331 = vmatprep.subr.mxu0 %v5765
    %6332 = vmatpush1.msra.mxu0 %v5764
    %6333 = vmatprep.subr.mxu0 %v5761
    %6334 = vmatpush1.msra.mxu0 %v5760
    %6335 = vmatprep.subr.mxu0 %v5757
    %6336 = vmatpush1.msra.mxu0 %v5756
    %6337 = vmatprep.subr.mxu0 %v5753
    %6338 = vmatpush1.msra.mxu0 %v5752
    %6339 = vmatprep.subr.mxu0 %v5749
    %6340 = vmatpush1.msra.mxu0 %v5748
    %6341 = vmatprep.subr.mxu0 %v5745
    %6342 = vmatpush1.msra.mxu0 %v5744
    %6343 = vmatprep.subr.mxu0 %v5741
    %6344 = vmatpush1.msra.mxu0 %v5740
    %6345 = vmatprep.subr.mxu0 %v5737
    %6346 = vmatpush1.msra.mxu0 %v5736
    %6347 = vmatprep.subr.mxu0 %v5733
    %6348 = vmatpush1.msra.mxu0 %v5732
    %6349 = vmatprep.subr.mxu0 %v5857
    %6350 = vmatpush2.msra.mxu0 %v5856
    %6351 = vmatprep.subr.mxu0 %v5853
    %6352 = vmatpush2.msra.mxu0 %v5852
    %6353 = vmatprep.subr.mxu0 %v5849
    %6354 = vmatpush2.msra.mxu0 %v5848
    %6355 = vmatprep.subr.mxu0 %v5845
    %6356 = vmatpush2.msra.mxu0 %v5844
    %6357 = vmatprep.subr.mxu0 %v5841
    %6358 = vmatpush2.msra.mxu0 %v5840
    %6359 = vmatprep.subr.mxu0 %v5837
    %6360 = vmatpush2.msra.mxu0 %v5836
    %6361 = vmatprep.subr.mxu0 %v5833
    %6362 = vmatpush2.msra.mxu0 %v5832
    %6363 = vmatprep.subr.mxu0 %v5829
    %6364 = vmatpush2.msra.mxu0 %v5828
    %6365 = vmatprep.subr.mxu0 %v5825
    %6366 = vmatpush2.msra.mxu0 %v5824
    %6367 = vmatprep.subr.mxu0 %v5821
    %6368 = vmatpush2.msra.mxu0 %v5820
    %6369 = vmatprep.subr.mxu0 %v5817
    %6370 = vmatpush2.msra.mxu0 %v5816
    %6371 = vmatprep.subr.mxu0 %v5813
    %6372 = vmatpush2.msra.mxu0 %v5812
    %6373 = vmatprep.subr.mxu0 %v5809
    %6374 = vmatpush2.msra.mxu0 %v5808
    %6375 = vmatprep.subr.mxu0 %v5805
    %6376 = vmatpush2.msra.mxu0 %v5804
    %6377 = vmatprep.subr.mxu0 %v5801
    %6378 = vmatpush2.msra.mxu0 %v5800
    %6379 = vmatprep.subr.mxu0 %v5797
    %6380 = vmatpush2.msra.mxu0 %v5796
    %6381 = vmatprep.mubr.f32.mxu0 %v5472
    %6382 = vmatmul.mubr.f32.gmra.mxu0 %v5471
    %v6383 = vpop.f32.mrf.mxu0
    %v6384 = vadd.f32 %v6313, %v6383
    %v6385 = vpop.f32.mrf.mxu0
    %v6386 = vadd.f32 %v6315, %v6385
    %6387 = vdwg.mxu0
    %6388 = vmatprep.subr.mxu0 0.0
    %6389 = vmatpush1.msra.mxu0 0.0
    %6390 = vmatprep.subr.mxu0 0.0
    %6391 = vmatpush1.msra.mxu0 0.0
    %6392 = vmatprep.subr.mxu0 0.0
    %6393 = vmatpush1.msra.mxu0 0.0
    %6394 = vmatprep.subr.mxu0 0.0
    %6395 = vmatpush1.msra.mxu0 0.0
    %6396 = vmatprep.subr.mxu0 0.0
    %6397 = vmatpush1.msra.mxu0 0.0
    %6398 = vmatprep.subr.mxu0 0.0
    %6399 = vmatpush1.msra.mxu0 0.0
    %6400 = vmatprep.subr.mxu0 0.0
    %6401 = vmatpush1.msra.mxu0 0.0
    %6402 = vmatprep.subr.mxu0 0.0
    %6403 = vmatpush1.msra.mxu0 0.0
    %6404 = vmatprep.subr.mxu0 0.0
    %6405 = vmatpush1.msra.mxu0 0.0
    %6406 = vmatprep.subr.mxu0 0.0
    %6407 = vmatpush1.msra.mxu0 0.0
    %6408 = vmatprep.subr.mxu0 0.0
    %6409 = vmatpush1.msra.mxu0 0.0
    %6410 = vmatprep.subr.mxu0 0.0
    %6411 = vmatpush1.msra.mxu0 0.0
    %6412 = vmatprep.subr.mxu0 0.0
    %6413 = vmatpush1.msra.mxu0 0.0
    %6414 = vmatprep.subr.mxu0 0.0
    %6415 = vmatpush1.msra.mxu0 0.0
    %6416 = vmatprep.subr.mxu0 %v5865
    %6417 = vmatpush1.msra.mxu0 %v5864
    %6418 = vmatprep.subr.mxu0 %v5861
    %6419 = vmatpush1.msra.mxu0 %v5860
    %6420 = vmatprep.subr.mxu0 0.0
    %6421 = vmatpush2.msra.mxu0 0.0
    %6422 = vmatprep.subr.mxu0 0.0
    %6423 = vmatpush2.msra.mxu0 0.0
    %6424 = vmatprep.subr.mxu0 0.0
    %6425 = vmatpush2.msra.mxu0 0.0
    %6426 = vmatprep.subr.mxu0 0.0
    %6427 = vmatpush2.msra.mxu0 0.0
    %6428 = vmatprep.subr.mxu0 0.0
    %6429 = vmatpush2.msra.mxu0 0.0
    %6430 = vmatprep.subr.mxu0 0.0
    %6431 = vmatpush2.msra.mxu0 0.0
    %6432 = vmatprep.subr.mxu0 0.0
    %6433 = vmatpush2.msra.mxu0 0.0
    %6434 = vmatprep.subr.mxu0 0.0
    %6435 = vmatpush2.msra.mxu0 0.0
    %6436 = vmatprep.subr.mxu0 0.0
    %6437 = vmatpush2.msra.mxu0 0.0
    %6438 = vmatprep.subr.mxu0 0.0
    %6439 = vmatpush2.msra.mxu0 0.0
    %6440 = vmatprep.subr.mxu0 0.0
    %6441 = vmatpush2.msra.mxu0 0.0
    %6442 = vmatprep.subr.mxu0 0.0
    %6443 = vmatpush2.msra.mxu0 0.0
    %6444 = vmatprep.subr.mxu0 0.0
    %6445 = vmatpush2.msra.mxu0 0.0
    %6446 = vmatprep.subr.mxu0 0.0
    %6447 = vmatpush2.msra.mxu0 0.0
    %6448 = vmatprep.subr.mxu0 0.0
    %6449 = vmatpush2.msra.mxu0 0.0
    %6450 = vmatprep.subr.mxu0 0.0
    %6451 = vmatpush2.msra.mxu0 0.0
    %6452 = vmatprep.mubr.f32.mxu0 0.0
    %6453 = vmatmul.mubr.f32.gmra.mxu0 %v5889
    %v6454 = vpop.f32.mrf.mxu0
    %v6455 = vadd.f32 %v6384, %v6454
    %v6456 = vpop.f32.mrf.mxu0
    %v6457 = vadd.f32 %v6386, %v6456
    %6458 = vdwg.mxu0
    %v6459 = vmul.f32 %v6171, 0.5
    %v6460 = vmul.f32 %v6173, 0.5
    %v6461 = vmul.f32 %v6455, 0.5
    %v6462 = vmul.f32 %v6457, 0.5
    %v6463 = vmul.f32 %v6171, %v1985
    %v6464 = vmul.f32 %v6173, %v1985
    %v6465 = vmul.f32 %v6455, %v1985
    %v6466 = vmul.f32 %v6457, %v1985
    %vm6467 = vcmp.ge.f32.partialorder %v6463, 0.0
    %vm6468 = vcmp.ge.f32.partialorder %v6464, 0.0
    %vm6469 = vcmp.ge.f32.partialorder %v6465, 0.0
    %vm6470 = vcmp.ge.f32.partialorder %v6466, 0.0
    %v6471 = vsel %vm6467, 1.0, -1.0
    %v6472 = vsel %vm6468, 1.0, -1.0
    %v6473 = vsel %vm6469, 1.0, -1.0
    %v6474 = vsel %vm6470, 1.0, -1.0
    %v6475 = vand.u32 2147483647, %v6463
    %v6476 = vand.u32 2147483647, %v6464
    %v6477 = vand.u32 2147483647, %v6465
    %v6478 = vand.u32 2147483647, %v6466
    %v6479 = vmul.f32 %v6475, 0.3275911
    %v6480 = vmul.f32 %v6476, 0.3275911
    %v6481 = vmul.f32 %v6477, 0.3275911
    %v6482 = vmul.f32 %v6478, 0.3275911
    %v6483 = vadd.f32 %v6479, 1.0
    %v6484 = vadd.f32 %v6480, 1.0
    %v6485 = vadd.f32 %v6481, 1.0
    %v6486 = vadd.f32 %v6482, 1.0
    %v6487 = vrcp.pop %v6483
    %v6488 = vmul.f32 1.0, %v6487
    %v6489 = vrcp.pop %v6484
    %v6490 = vmul.f32 1.0, %v6489
    %v6491 = vrcp.pop %v6485
    %v6492 = vmul.f32 1.0, %v6491
    %v6493 = vrcp.pop %v6486
    %v6494 = vmul.f32 1.0, %v6493
    %v6495 = vmul.f32 %v6488, 1.0614054
    %v6496 = vmul.f32 %v6490, 1.0614054
    %v6497 = vmul.f32 %v6492, 1.0614054
    %v6498 = vmul.f32 %v6494, 1.0614054
    %v6499 = vadd.f32 %v6495, -1.4531521
    %v6500 = vadd.f32 %v6496, -1.4531521
    %v6501 = vadd.f32 %v6497, -1.4531521
    %v6502 = vadd.f32 %v6498, -1.4531521
    %v6503 = vmul.f32 %v6499, %v6488
    %v6504 = vmul.f32 %v6500, %v6490
    %v6505 = vmul.f32 %v6501, %v6492
    %v6506 = vmul.f32 %v6502, %v6494
    %v6507 = vadd.f32 %v6503, 1.4214138
    %v6508 = vadd.f32 %v6504, 1.4214138
    %v6509 = vadd.f32 %v6505, 1.4214138
    %v6510 = vadd.f32 %v6506, 1.4214138
    %v6511 = vmul.f32 %v6507, %v6488
    %v6512 = vmul.f32 %v6508, %v6490
    %v6513 = vmul.f32 %v6509, %v6492
    %v6514 = vmul.f32 %v6510, %v6494
    %v6515 = vadd.f32 %v6511, -0.28449672
    %v6516 = vadd.f32 %v6512, -0.28449672
    %v6517 = vadd.f32 %v6513, -0.28449672
    %v6518 = vadd.f32 %v6514, -0.28449672
    %v6519 = vmul.f32 %v6515, %v6488
    %v6520 = vmul.f32 %v6516, %v6490
    %v6521 = vmul.f32 %v6517, %v6492
    %v6522 = vmul.f32 %v6518, %v6494
    %v6523 = vadd.f32 %v6519, 0.2548296
    %v6524 = vadd.f32 %v6520, 0.2548296
    %v6525 = vadd.f32 %v6521, 0.2548296
    %v6526 = vadd.f32 %v6522, 0.2548296
    %v6527 = vmul.f32 %v6523, %v6488
    %v6528 = vmul.f32 %v6524, %v6490
    %v6529 = vmul.f32 %v6525, %v6492
    %v6530 = vmul.f32 %v6526, %v6494
    %v6531 = vsub.f32 0.0, %v6475
    %v6532 = vsub.f32 0.0, %v6476
    %v6533 = vsub.f32 0.0, %v6477
    %v6534 = vsub.f32 0.0, %v6478
    %v6535 = vmul.f32 %v6531, %v6475
    %v6536 = vmul.f32 %v6532, %v6476
    %v6537 = vmul.f32 %v6533, %v6477
    %v6538 = vmul.f32 %v6534, %v6478
    %v6539 = vmul.f32 %v6535, 1.442695
    %v6540 = vpow.pop %v6539
    %v6541 = vmul.f32 %v6536, 1.442695
    %v6542 = vpow.pop %v6541
    %v6543 = vmul.f32 %v6537, 1.442695
    %v6544 = vpow.pop %v6543
    %v6545 = vmul.f32 %v6538, 1.442695
    %v6546 = vpow.pop %v6545
    %v6547 = vmul.f32 %v6527, %v6540
    %v6548 = vmul.f32 %v6528, %v6542
    %v6549 = vmul.f32 %v6529, %v6544
    %v6550 = vmul.f32 %v6530, %v6546
    %v6551 = vsub.f32 1.0, %v6547
    %v6552 = vsub.f32 1.0, %v6548
    %v6553 = vsub.f32 1.0, %v6549
    %v6554 = vsub.f32 1.0, %v6550
    %v6555 = vmul.f32 %v6471, %v6551
    %v6556 = vmul.f32 %v6472, %v6552
    %v6557 = vmul.f32 %v6473, %v6553
    %v6558 = vmul.f32 %v6474, %v6554
    %v6559 = vadd.f32 %v6555, 1.0
    %v6560 = vadd.f32 %v6556, 1.0
    %v6561 = vadd.f32 %v6557, 1.0
    %v6562 = vadd.f32 %v6558, 1.0
    %v6563 = vmul.f32 %v6459, %v6559
    %v6564 = vmul.f32 %v6460, %v6560
    %v6565 = vmul.f32 %v6461, %v6561
    %v6566 = vmul.f32 %v6462, %v6562
    %v6567 = vld [vmem:[#allocation2] sm:$0xff]
    %v6568 = vld [vmem:[#allocation2 + $0x8] sm:$0xff]
    %v6569 = vld [vmem:[#allocation2 + $0x10] sm:$0xff]
    %v6570 = vld [vmem:[#allocation2 + $0x18] sm:$0xff]
    %v6571 = vld [vmem:[#allocation2 + $0x20] sm:$0xff]
    %v6572 = vld [vmem:[#allocation2 + $0x28] sm:$0xff]
    %v6573 = vld [vmem:[#allocation2 + $0x30] sm:$0xff]
    %v6574 = vld [vmem:[#allocation2 + $0x38] sm:$0xff]
    %v6575 = vld [vmem:[#allocation2 + $0x40] sm:$0xff]
    %v6576 = vld [vmem:[#allocation2 + $0x48] sm:$0xff]
    %v6577 = vld [vmem:[#allocation2 + $0x50] sm:$0xff]
    %v6578 = vld [vmem:[#allocation2 + $0x58] sm:$0xff]
    %v6579 = vld [vmem:[#allocation2 + $0x60] sm:$0xff]
    %v6580 = vld [vmem:[#allocation2 + $0x68] sm:$0xff]
    %v6581 = vld [vmem:[#allocation2 + $0x70] sm:$0xff]
    %v6582 = vld [vmem:[#allocation2 + $0x78] sm:$0xff]
    %v6583 = vld [vmem:[#allocation2 + $0x80] sm:$0xff]
    %v6584 = vld [vmem:[#allocation2 + $0x88] sm:$0xff]
    %v6585 = vld [vmem:[#allocation2 + $0x90] sm:$0xff]
    %v6586 = vld [vmem:[#allocation2 + $0x98] sm:$0xff]
    %v6587 = vld [vmem:[#allocation2 + $0xa0] sm:$0xff]
    %v6588 = vld [vmem:[#allocation2 + $0xa8] sm:$0xff]
    %v6589 = vld [vmem:[#allocation2 + $0xb0] sm:$0xff]
    %v6590 = vld [vmem:[#allocation2 + $0xb8] sm:$0xff]
    %v6591 = vld [vmem:[#allocation2 + $0xc0] sm:$0xff]
    %v6592 = vld [vmem:[#allocation2 + $0xc8] sm:$0xff]
    %v6593 = vld [vmem:[#allocation2 + $0xd0] sm:$0xff]
    %v6594 = vld [vmem:[#allocation2 + $0xd8] sm:$0xff]
    %v6595 = vld [vmem:[#allocation2 + $0xe0] sm:$0xff]
    %v6596 = vld [vmem:[#allocation2 + $0xe8] sm:$0xff]
    %v6597 = vld [vmem:[#allocation2 + $0xf0] sm:$0xff]
    %v6598 = vld [vmem:[#allocation2 + $0xf8] sm:$0xff]
    %v6599 = vld [vmem:[#allocation2 + $0x100] sm:$0xff]
    %v6600 = vld [vmem:[#allocation2 + $0x108] sm:$0xff]
    %v6601 = vld [vmem:[#allocation2 + $0x110] sm:$0xff]
    %v6602 = vld [vmem:[#allocation2 + $0x118] sm:$0xff]
    %v6603 = vld [vmem:[#allocation2 + $0x120] sm:$0xff]
    %v6604 = vld [vmem:[#allocation2 + $0x128] sm:$0xff]
    %v6605 = vld [vmem:[#allocation2 + $0x130] sm:$0xff]
    %v6606 = vld [vmem:[#allocation2 + $0x138] sm:$0xff]
    %v6607 = vld [vmem:[#allocation2 + $0x140] sm:$0xff]
    %v6608 = vld [vmem:[#allocation2 + $0x148] sm:$0xff]
    %v6609 = vld [vmem:[#allocation2 + $0x150] sm:$0xff]
    %v6610 = vld [vmem:[#allocation2 + $0x158] sm:$0xff]
    %v6611 = vld [vmem:[#allocation2 + $0x160] sm:$0xff]
    %v6612 = vld [vmem:[#allocation2 + $0x168] sm:$0xff]
    %v6613 = vld [vmem:[#allocation2 + $0x170] sm:$0xff]
    %v6614 = vld [vmem:[#allocation2 + $0x178] sm:$0xff]
    %v6615 = vld [vmem:[#allocation2 + $0x180] sm:$0xff]
    %v6616 = vld [vmem:[%s14] sm:$0x1]
    %v6618 = vlaneseq
    %v6619 = vshrl.u32 %v6618, 7
    %v6620 = vsub.s32 0, %v6619
    %v6621 = vrot.slane %v6616, %v6620
    %vm6623 = vcmask 64512
    %v6625 = vsel %vm6623, %v6566, 0
    %6627 = vmatprep.subr.mxu0 0.0
    %6628 = vmatpush1.msra.mxu0 %v6582
    %6629 = vmatprep.subr.mxu0 0.0
    %6630 = vmatpush1.msra.mxu0 %v6581
    %6631 = vmatprep.subr.mxu0 0.0
    %6632 = vmatpush1.msra.mxu0 %v6580
    %6633 = vmatprep.subr.mxu0 0.0
    %6634 = vmatpush1.msra.mxu0 %v6579
    %6635 = vmatprep.subr.mxu0 0.0
    %6636 = vmatpush1.msra.mxu0 %v6578
    %6637 = vmatprep.subr.mxu0 0.0
    %6638 = vmatpush1.msra.mxu0 %v6577
    %6639 = vmatprep.subr.mxu0 0.0
    %6640 = vmatpush1.msra.mxu0 %v6576
    %6641 = vmatprep.subr.mxu0 0.0
    %6642 = vmatpush1.msra.mxu0 %v6575
    %6643 = vmatprep.subr.mxu0 0.0
    %6644 = vmatpush1.msra.mxu0 %v6574
    %6645 = vmatprep.subr.mxu0 0.0
    %6646 = vmatpush1.msra.mxu0 %v6573
    %6647 = vmatprep.subr.mxu0 0.0
    %6648 = vmatpush1.msra.mxu0 %v6572
    %6649 = vmatprep.subr.mxu0 0.0
    %6650 = vmatpush1.msra.mxu0 %v6571
    %6651 = vmatprep.subr.mxu0 0.0
    %6652 = vmatpush1.msra.mxu0 %v6570
    %6653 = vmatprep.subr.mxu0 0.0
    %6654 = vmatpush1.msra.mxu0 %v6569
    %6655 = vmatprep.subr.mxu0 0.0
    %6656 = vmatpush1.msra.mxu0 %v6568
    %6657 = vmatprep.subr.mxu0 0.0
    %6658 = vmatpush1.msra.mxu0 %v6567
    %6659 = vmatprep.subr.mxu0 0.0
    %6660 = vmatpush2.msra.mxu0 %v6598
    %6661 = vmatprep.subr.mxu0 0.0
    %6662 = vmatpush2.msra.mxu0 %v6597
    %6663 = vmatprep.subr.mxu0 0.0
    %6664 = vmatpush2.msra.mxu0 %v6596
    %6665 = vmatprep.subr.mxu0 0.0
    %6666 = vmatpush2.msra.mxu0 %v6595
    %6667 = vmatprep.subr.mxu0 0.0
    %6668 = vmatpush2.msra.mxu0 %v6594
    %6669 = vmatprep.subr.mxu0 0.0
    %6670 = vmatpush2.msra.mxu0 %v6593
    %6671 = vmatprep.subr.mxu0 0.0
    %6672 = vmatpush2.msra.mxu0 %v6592
    %6673 = vmatprep.subr.mxu0 0.0
    %6674 = vmatpush2.msra.mxu0 %v6591
    %6675 = vmatprep.subr.mxu0 0.0
    %6676 = vmatpush2.msra.mxu0 %v6590
    %6677 = vmatprep.subr.mxu0 0.0
    %6678 = vmatpush2.msra.mxu0 %v6589
    %6679 = vmatprep.subr.mxu0 0.0
    %6680 = vmatpush2.msra.mxu0 %v6588
    %6681 = vmatprep.subr.mxu0 0.0
    %6682 = vmatpush2.msra.mxu0 %v6587
    %6683 = vmatprep.subr.mxu0 0.0
    %6684 = vmatpush2.msra.mxu0 %v6586
    %6685 = vmatprep.subr.mxu0 0.0
    %6686 = vmatpush2.msra.mxu0 %v6585
    %6687 = vmatprep.subr.mxu0 0.0
    %6688 = vmatpush2.msra.mxu0 %v6584
    %6689 = vmatprep.subr.mxu0 0.0
    %6690 = vmatpush2.msra.mxu0 %v6583
    %6691 = vmatprep.mubr.f32.mxu0 %v6564
    %6692 = vmatmul.mubr.f32.gmra.mxu0 %v6563
    %v6693 = vpop.f32.mrf.mxu0
    %v6694 = vadd.f32 %v6621, %v6693
    %v6695 = vpop.f32.mrf.mxu0
    %6696 = vdwg.mxu0
    %6697 = vmatprep.subr.mxu0 0.0
    %6698 = vmatpush1.msra.mxu0 %v6614
    %6699 = vmatprep.subr.mxu0 0.0
    %6700 = vmatpush1.msra.mxu0 %v6613
    %6701 = vmatprep.subr.mxu0 0.0
    %6702 = vmatpush1.msra.mxu0 %v6612
    %6703 = vmatprep.subr.mxu0 0.0
    %6704 = vmatpush1.msra.mxu0 %v6611
    %6705 = vmatprep.subr.mxu0 0.0
    %6706 = vmatpush1.msra.mxu0 %v6610
    %6707 = vmatprep.subr.mxu0 0.0
    %6708 = vmatpush1.msra.mxu0 %v6609
    %6709 = vmatprep.subr.mxu0 0.0
    %6710 = vmatpush1.msra.mxu0 %v6608
    %6711 = vmatprep.subr.mxu0 0.0
    %6712 = vmatpush1.msra.mxu0 %v6607
    %6713 = vmatprep.subr.mxu0 0.0
    %6714 = vmatpush1.msra.mxu0 %v6606
    %6715 = vmatprep.subr.mxu0 0.0
    %6716 = vmatpush1.msra.mxu0 %v6605
    %6717 = vmatprep.subr.mxu0 0.0
    %6718 = vmatpush1.msra.mxu0 %v6604
    %6719 = vmatprep.subr.mxu0 0.0
    %6720 = vmatpush1.msra.mxu0 %v6603
    %6721 = vmatprep.subr.mxu0 0.0
    %6722 = vmatpush1.msra.mxu0 %v6602
    %6723 = vmatprep.subr.mxu0 0.0
    %6724 = vmatpush1.msra.mxu0 %v6601
    %6725 = vmatprep.subr.mxu0 0.0
    %6726 = vmatpush1.msra.mxu0 %v6600
    %6727 = vmatprep.subr.mxu0 0.0
    %6728 = vmatpush1.msra.mxu0 %v6599
    %6729 = vmatprep.subr.mxu0 0.0
    %6730 = vmatpush2.msra.mxu0 0.0
    %6731 = vmatprep.subr.mxu0 0.0
    %6732 = vmatpush2.msra.mxu0 0.0
    %6733 = vmatprep.subr.mxu0 0.0
    %6734 = vmatpush2.msra.mxu0 0.0
    %6735 = vmatprep.subr.mxu0 0.0
    %6736 = vmatpush2.msra.mxu0 0.0
    %6737 = vmatprep.subr.mxu0 0.0
    %6738 = vmatpush2.msra.mxu0 0.0
    %6739 = vmatprep.subr.mxu0 0.0
    %6740 = vmatpush2.msra.mxu0 0.0
    %6741 = vmatprep.subr.mxu0 0.0
    %6742 = vmatpush2.msra.mxu0 0.0
    %6743 = vmatprep.subr.mxu0 0.0
    %6744 = vmatpush2.msra.mxu0 0.0
    %6745 = vmatprep.subr.mxu0 0.0
    %6746 = vmatpush2.msra.mxu0 0.0
    %6747 = vmatprep.subr.mxu0 0.0
    %6748 = vmatpush2.msra.mxu0 0.0
    %6749 = vmatprep.subr.mxu0 0.0
    %6750 = vmatpush2.msra.mxu0 0.0
    %6751 = vmatprep.subr.mxu0 0.0
    %6752 = vmatpush2.msra.mxu0 0.0
    %6753 = vmatprep.subr.mxu0 0.0
    %6754 = vmatpush2.msra.mxu0 0.0
    %6755 = vmatprep.subr.mxu0 0.0
    %6756 = vmatpush2.msra.mxu0 0.0
    %6757 = vmatprep.subr.mxu0 0.0
    %6758 = vmatpush2.msra.mxu0 0.0
    %6759 = vmatprep.subr.mxu0 0.0
    %6760 = vmatpush2.msra.mxu0 %v6615
    %6761 = vmatprep.mubr.f32.mxu0 %v6625
    %6762 = vmatmul.mubr.f32.gmra.mxu0 %v6565
    %v6763 = vpop.f32.mrf.mxu0
    %v6764 = vadd.f32 %v6694, %v6763
    %v6765 = vpop.f32.mrf.mxu0
    %6766 = vdwg.mxu0
    %v6767 = vtanh.pop %v6764
    %v6768 = vld [vmem:[%s15] sm:$0xff]
    %v6769 = vld [vmem:[%s15 + $0x8] sm:$0xff]
    %v6770 = vld [vmem:[%s15 + $0x10] sm:$0xff]
    %v6771 = vld [vmem:[%s15 + $0x18] sm:$0xff]
    %v6772 = vld [vmem:[%s15 + $0x20] sm:$0xff]
    %v6773 = vld [vmem:[%s15 + $0x28] sm:$0xff]
    %v6774 = vld [vmem:[%s15 + $0x30] sm:$0xff]
    %v6775 = vld [vmem:[%s15 + $0x38] sm:$0xff]
    %v6776 = vld [vmem:[%s15 + $0x40] sm:$0xff]
    %v6777 = vld [vmem:[%s15 + $0x48] sm:$0xff]
    %v6778 = vld [vmem:[%s15 + $0x50] sm:$0xff]
    %v6779 = vld [vmem:[%s15 + $0x58] sm:$0xff]
    %v6780 = vld [vmem:[%s15 + $0x60] sm:$0xff]
    %v6781 = vld [vmem:[%s15 + $0x68] sm:$0xff]
    %v6782 = vld [vmem:[%s15 + $0x70] sm:$0xff]
    %v6783 = vld [vmem:[%s15 + $0x78] sm:$0xff]
    %v6784 = vld [vmem:[%s16] sm:$0x1]
    %v6786 = vlaneseq
    %v6787 = vshrl.u32 %v6786, 7
    %v6788 = vsub.s32 0, %v6787
    %v6789 = vrot.slane %v6784, %v6788
    %6791 = vmatprep.subr.mxu0 0.0
    %6792 = vmatpush1.msra.mxu0 %v6783
    %6793 = vmatprep.subr.mxu0 0.0
    %6794 = vmatpush1.msra.mxu0 %v6782
    %6795 = vmatprep.subr.mxu0 0.0
    %6796 = vmatpush1.msra.mxu0 %v6781
    %6797 = vmatprep.subr.mxu0 0.0
    %6798 = vmatpush1.msra.mxu0 %v6780
    %6799 = vmatprep.subr.mxu0 0.0
    %6800 = vmatpush1.msra.mxu0 %v6779
    %6801 = vmatprep.subr.mxu0 0.0
    %6802 = vmatpush1.msra.mxu0 %v6778
    %6803 = vmatprep.subr.mxu0 0.0
    %6804 = vmatpush1.msra.mxu0 %v6777
    %6805 = vmatprep.subr.mxu0 0.0
    %6806 = vmatpush1.msra.mxu0 %v6776
    %6807 = vmatprep.subr.mxu0 0.0
    %6808 = vmatpush1.msra.mxu0 %v6775
    %6809 = vmatprep.subr.mxu0 0.0
    %6810 = vmatpush1.msra.mxu0 %v6774
    %6811 = vmatprep.subr.mxu0 0.0
    %6812 = vmatpush1.msra.mxu0 %v6773
    %6813 = vmatprep.subr.mxu0 0.0
    %6814 = vmatpush1.msra.mxu0 %v6772
    %6815 = vmatprep.subr.mxu0 0.0
    %6816 = vmatpush1.msra.mxu0 %v6771
    %6817 = vmatprep.subr.mxu0 0.0
    %6818 = vmatpush1.msra.mxu0 %v6770
    %6819 = vmatprep.subr.mxu0 0.0
    %6820 = vmatpush1.msra.mxu0 %v6769
    %6821 = vmatprep.subr.mxu0 0.0
    %6822 = vmatpush1.msra.mxu0 %v6768
    %6823 = vmatprep.subr.mxu0 0.0
    %6824 = vmatpush2.msra.mxu0 0.0
    %6825 = vmatprep.subr.mxu0 0.0
    %6826 = vmatpush2.msra.mxu0 0.0
    %6827 = vmatprep.subr.mxu0 0.0
    %6828 = vmatpush2.msra.mxu0 0.0
    %6829 = vmatprep.subr.mxu0 0.0
    %6830 = vmatpush2.msra.mxu0 0.0
    %6831 = vmatprep.subr.mxu0 0.0
    %6832 = vmatpush2.msra.mxu0 0.0
    %6833 = vmatprep.subr.mxu0 0.0
    %6834 = vmatpush2.msra.mxu0 0.0
    %6835 = vmatprep.subr.mxu0 0.0
    %6836 = vmatpush2.msra.mxu0 0.0
    %6837 = vmatprep.subr.mxu0 0.0
    %6838 = vmatpush2.msra.mxu0 0.0
    %6839 = vmatprep.subr.mxu0 0.0
    %6840 = vmatpush2.msra.mxu0 0.0
    %6841 = vmatprep.subr.mxu0 0.0
    %6842 = vmatpush2.msra.mxu0 0.0
    %6843 = vmatprep.subr.mxu0 0.0
    %6844 = vmatpush2.msra.mxu0 0.0
    %6845 = vmatprep.subr.mxu0 0.0
    %6846 = vmatpush2.msra.mxu0 0.0
    %6847 = vmatprep.subr.mxu0 0.0
    %6848 = vmatpush2.msra.mxu0 0.0
    %6849 = vmatprep.subr.mxu0 0.0
    %6850 = vmatpush2.msra.mxu0 0.0
    %6851 = vmatprep.subr.mxu0 0.0
    %6852 = vmatpush2.msra.mxu0 0.0
    %6853 = vmatprep.subr.mxu0 0.0
    %6854 = vmatpush2.msra.mxu0 0.0
    %6855 = vmatprep.mubr.f32.mxu0 0.0
    %6856 = vmatmul.mubr.f32.gmra.mxu0 %v6767
    %v6857 = vpop.f32.mrf.mxu0
    %v6858 = vadd.f32 %v6789, %v6857
    %v6859 = vpop.f32.mrf.mxu0
    %6860 = vdwg.mxu0
    %v6861 = vadd.f32 %v3427, %v6858
    %v6862 = vld [vmem:[%s17] sm:$0xff]
    %v6863 = vld [vmem:[%s17 + $0x8] sm:$0xff]
    %v6864 = vld [vmem:[%s17 + $0x10] sm:$0xff]
    %v6865 = vld [vmem:[%s17 + $0x18] sm:$0xff]
    %v6866 = vld [vmem:[%s18] sm:$0x1]
    %v6868 = vlaneseq
    %v6869 = vshrl.u32 %v6868, 7
    %v6870 = vsub.s32 0, %v6869
    %v6871 = vrot.slane %v6866, %v6870
    %v6874 = vsel %vm3170, %v6861, 0
    %6876 = vmatprep.subr.mxu0 0.0
    %6877 = vmatpush1.msra.mxu0 0.0
    %6878 = vmatprep.subr.mxu0 0.0
    %6879 = vmatpush1.msra.mxu0 0.0
    %6880 = vmatprep.subr.mxu0 0.0
    %6881 = vmatpush1.msra.mxu0 0.0
    %6882 = vmatprep.subr.mxu0 0.0
    %6883 = vmatpush1.msra.mxu0 0.0
    %6884 = vmatprep.subr.mxu0 0.0
    %6885 = vmatpush1.msra.mxu0 0.0
    %6886 = vmatprep.subr.mxu0 0.0
    %6887 = vmatpush1.msra.mxu0 0.0
    %6888 = vmatprep.subr.mxu0 0.0
    %6889 = vmatpush1.msra.mxu0 0.0
    %6890 = vmatprep.subr.mxu0 0.0
    %6891 = vmatpush1.msra.mxu0 0.0
    %6892 = vmatprep.subr.mxu0 0.0
    %6893 = vmatpush1.msra.mxu0 0.0
    %6894 = vmatprep.subr.mxu0 0.0
    %6895 = vmatpush1.msra.mxu0 0.0
    %6896 = vmatprep.subr.mxu0 0.0
    %6897 = vmatpush1.msra.mxu0 0.0
    %6898 = vmatprep.subr.mxu0 0.0
    %6899 = vmatpush1.msra.mxu0 0.0
    %6900 = vmatprep.subr.mxu0 0.0
    %6901 = vmatpush1.msra.mxu0 %v6865
    %6902 = vmatprep.subr.mxu0 0.0
    %6903 = vmatpush1.msra.mxu0 %v6864
    %6904 = vmatprep.subr.mxu0 0.0
    %6905 = vmatpush1.msra.mxu0 %v6863
    %6906 = vmatprep.subr.mxu0 0.0
    %6907 = vmatpush1.msra.mxu0 %v6862
    %6908 = vmatprep.subr.mxu0 0.0
    %6909 = vmatpush2.msra.mxu0 0.0
    %6910 = vmatprep.subr.mxu0 0.0
    %6911 = vmatpush2.msra.mxu0 0.0
    %6912 = vmatprep.subr.mxu0 0.0
    %6913 = vmatpush2.msra.mxu0 0.0
    %6914 = vmatprep.subr.mxu0 0.0
    %6915 = vmatpush2.msra.mxu0 0.0
    %6916 = vmatprep.subr.mxu0 0.0
    %6917 = vmatpush2.msra.mxu0 0.0
    %6918 = vmatprep.subr.mxu0 0.0
    %6919 = vmatpush2.msra.mxu0 0.0
    %6920 = vmatprep.subr.mxu0 0.0
    %6921 = vmatpush2.msra.mxu0 0.0
    %6922 = vmatprep.subr.mxu0 0.0
    %6923 = vmatpush2.msra.mxu0 0.0
    %6924 = vmatprep.subr.mxu0 0.0
    %6925 = vmatpush2.msra.mxu0 0.0
    %6926 = vmatprep.subr.mxu0 0.0
    %6927 = vmatpush2.msra.mxu0 0.0
    %6928 = vmatprep.subr.mxu0 0.0
    %6929 = vmatpush2.msra.mxu0 0.0
    %6930 = vmatprep.subr.mxu0 0.0
    %6931 = vmatpush2.msra.mxu0 0.0
    %6932 = vmatprep.subr.mxu0 0.0
    %6933 = vmatpush2.msra.mxu0 0.0
    %6934 = vmatprep.subr.mxu0 0.0
    %6935 = vmatpush2.msra.mxu0 0.0
    %6936 = vmatprep.subr.mxu0 0.0
    %6937 = vmatpush2.msra.mxu0 0.0
    %6938 = vmatprep.subr.mxu0 0.0
    %6939 = vmatpush2.msra.mxu0 0.0
    %6940 = vmatprep.mubr.f32.mxu0 0.0
    %6941 = vmatmul.mubr.f32.gmra.mxu0 %v6874
    %v6942 = vpop.f32.mrf.mxu0
    %v6943 = vadd.f32 %v6871, %v6942
    %v6944 = vpop.f32.mrf.mxu0
    %6945 = vdwg.mxu0
    %vm6946 = vcmask 74752
    %v6947 = vsel %vm6946, %v6943, -inf
    %6948 = vmax.xlane.f32.xlu0 %v6947
    %v6949 = vpop.xlane.xlu0 %6948
    %v6950 = vsub.f32 %v6943, %v6949
    %v6951 = vmul.f32 %v6950, 1.442695
    %v6952 = vpow.pop %v6951
    %v6953 = vsel %vm6946, %v6952, 0.0
    %6954 = vadd.xlane.f32.xlu0 %v6953
    %v6955 = vpop.xlane.xlu0 %6954
    %v6956 = vrcp.pop %v6955
    %v6957 = vmul.f32 %v6952, %v6956
    %6958 = vst.msk [vmem:[#allocation5] sm:$0x3] %vm6946, %v6957
    // Predicated region
    $region82: #{neural_network_forward.1} parent=1 // pred_check
      _
    $region83: #{neural_network_forward.1} parent=1 // pred_check_branch
      %6960 = sbr.rel (0) target = $region85
    $region84: #{neural_network_forward.1} parent=1 // pred_region
      %s6962 = ssub.s32 32, 32
      %6963 = vsyncadd [#allocation4], %s6962
      %s6965 = sshll.u32 [#allocation5], 4
      %s6966 = int_to_ptr.vmem [resolvable:$true] %s6965
      %6968 = dma.vmem_to_hbm [thread:$0]  %s6966, 32, %s19, [#allocation4]
    $region85: #{neural_network_forward.1} parent=1 // pred_fallthru
      _
    // Predicated region
    $region86: #{neural_network_forward.1} parent=1 // pred_check
      _
    $region87: #{neural_network_forward.1} parent=1 // pred_check_branch
      %6970 = sbr.rel (0) target = $region89
    $region88: #{neural_network_forward.1} parent=1 // pred_region
      %6971 = dma.done [#allocation4], 32
    $region89: #{neural_network_forward.1} parent=1 // pred_fallthru
      _
    %6972 = vsyncpa [#allocation3], 1
    %6973 = vsyncpa [#allocation4], 1

</llo_original>
